<compile_context>
chip_gen: v6e
topology: v6e:2x2x1
jax: 0.10.0
libtpu: 0.0.40
codegen_flags: <defaults>
</compile_context>

<pallas_src>
import jax
import jax.numpy as jnp
from jax.experimental import pallas as pl
from jax.experimental.pallas import tpu as pltpu

EPS = 1e-5
LANE = 128   # channel dims padded to a multiple of the lane width
TS = 256     # spatial (lane) tile per grid step


def _round_up(v, m):
    return ((v + m - 1) // m) * m


def _stats_kernel(w_ref, x_ref, y_ref, sum_ref, sq_ref):
    """Phase 1: relu16 -> conv2d23 (W @ X on MXU) -> per-channel sum / sumsq."""
    # x_ref: (1, CP, TS) bf16 ; w_ref: (CP, CP) bf16 (resident, constant block index)
    x = jnp.maximum(x_ref[0], 0)                                      # relu16 (bf16, VPU)
    y = jnp.dot(w_ref[...], x, preferred_element_type=jnp.float32)    # f32 accumulate
    y_ref[0] = y

    @pl.when(jnp.logical_and(pl.program_id(0) == 0, pl.program_id(1) == 0))
    def _():
        sum_ref[...] = jnp.zeros_like(sum_ref)
        sq_ref[...] = jnp.zeros_like(sq_ref)

    # Resident accumulator outputs (same block index across the whole grid).
    sum_ref[...] += jnp.sum(y, axis=1, keepdims=True)                 # (CP, 1)
    sq_ref[...] += jnp.sum(y * y, axis=1, keepdims=True)              # (CP, 1)


def _apply_kernel(y_ref, scale_ref, shift_ref, o_ref):
    """Phase 2: batchnorm2d15 as y*scale + shift, then relu17 (lane-dense stores)."""
    o_ref[0] = jnp.maximum(y_ref[0] * scale_ref[...] + shift_ref[...], 0.0)


@jax.jit
def fused_relu_conv1x1_bn_relu(x_nchw, weight, gamma, beta):
    """x_nchw: (N, C, H, W) f32; weight: (Cout, Cin) f32 (1x1 kernel squeezed);
    gamma/beta: (Cout,) f32. Returns (N, Cout, H, W) f32 (training-mode BN)."""
    n, c, h, w = x_nchw.shape
    cout = weight.shape[0]
    s = h * w
    cp = _round_up(max(c, cout), LANE)      # 696 -> 768
    sp = _round_up(s, TS)                   # 784 -> 1024
    n_s_tiles = sp // TS

    # Zero-pad + bf16 cast (fused XLA ops; padded rows/cols/cols-of-W are zero).
    x_rows = x_nchw.reshape(n, c, s)
    x_p = jnp.pad(x_rows, ((0, 0), (0, cp - c), (0, sp - s))).astype(jnp.bfloat16)
    w_p = jnp.pad(weight, ((0, cp - cout), (0, cp - c))).astype(jnp.bfloat16)
    gamma_p = jnp.pad(gamma, (0, cp - cout)).reshape(cp, 1)
    beta_p = jnp.pad(beta, (0, cp - cout)).reshape(cp, 1)

    # ---------------- Phase 1: relu -> matmul -> y tiles + batch-stat sums ----------------
    cost1 = pl.CostEstimate(
        flops=2 * n * cp * cp * sp + 4 * n * cp * sp,
        transcendentals=0,
        bytes_accessed=int(x_p.size * 2 + w_p.size * 2 + n * cp * sp * 4 + 2 * cp * 4),
    )
    y, ysum, ysq = pl.pallas_call(
        _stats_kernel,
        out_shape=(
            jax.ShapeDtypeStruct((n, cp, sp), jnp.float32),   # y = conv output (pre-BN)
            jax.ShapeDtypeStruct((cp, 1), jnp.float32),       # per-channel sum
            jax.ShapeDtypeStruct((cp, 1), jnp.float32),       # per-channel sum of squares
        ),
        grid=(n, n_s_tiles),
        in_specs=[
            pl.BlockSpec((cp, cp), lambda b, t: (0, 0)),          # W resident
            pl.BlockSpec((1, cp, TS), lambda b, t: (b, 0, t)),    # X tile
        ],
        out_specs=(
            pl.BlockSpec((1, cp, TS), lambda b, t: (b, 0, t)),
            pl.BlockSpec((cp, 1), lambda b, t: (0, 0)),
            pl.BlockSpec((cp, 1), lambda b, t: (0, 0)),
        ),
        compiler_params=pltpu.CompilerParams(
            dimension_semantics=("arbitrary", "arbitrary")),
        cost_estimate=cost1,
    )(w_p, x_p)

    # ---------------- Batch statistics -> per-channel affine (tiny, plain JAX) ------------
    count = float(n * s)                                  # real (unpadded) element count
    mean = ysum / count
    var = jnp.maximum(ysq / count - mean * mean, 0.0)     # biased variance (training BN)
    inv_std = jax.lax.rsqrt(var + EPS)
    scale = gamma_p * inv_std                             # (CP, 1)
    shift = beta_p - mean * scale                         # (CP, 1)

    # ---------------- Phase 2: y*scale + shift -> relu (parallel, megacore on v7x) --------
    cost2 = pl.CostEstimate(
        flops=3 * n * cp * sp,
        transcendentals=0,
        bytes_accessed=int(2 * n * cp * sp * 4 + 2 * cp * 4),
    )
    out_p = pl.pallas_call(
        _apply_kernel,
        out_shape=jax.ShapeDtypeStruct((n, cp, sp), jnp.float32),
        grid=(n, n_s_tiles),
        in_specs=[
            pl.BlockSpec((1, cp, TS), lambda b, t: (b, 0, t)),
            pl.BlockSpec((cp, 1), lambda b, t: (0, 0)),
            pl.BlockSpec((cp, 1), lambda b, t: (0, 0)),
        ],
        out_specs=pl.BlockSpec((1, cp, TS), lambda b, t: (b, 0, t)),
        compiler_params=pltpu.CompilerParams(
            dimension_semantics=("parallel", "parallel")),
        cost_estimate=cost2,
    )(y, scale, shift)

    # Drop channel/spatial padding, back to (N, Cout, H, W) -- reshape only, no transpose.
    return out_p[:, :cout, :s].reshape(n, cout, h, w)


def _reference(x_nchw, weight, gamma, beta):
    """Pure-JAX reference matching PyTorch semantics (training-mode batchnorm), f32."""
    x = jnp.maximum(x_nchw, 0.0)
    y = jnp.einsum("nchw,oc->nohw", x, weight, precision=jax.lax.Precision.HIGHEST)
    mean = jnp.mean(y, axis=(0, 2, 3), keepdims=True)
    var = jnp.mean((y - mean) ** 2, axis=(0, 2, 3), keepdims=True)
    bn = (y - mean) * jax.lax.rsqrt(var + EPS)
    bn = bn * gamma[None, :, None, None] + beta[None, :, None, None]
    return jnp.maximum(bn, 0.0)


if __name__ == "__main__":
    # Shapes from the module spec: Conv2d/BatchNorm2d fix C=696; input is (1, 696, 28, 28).
    N, C, H, W = 1, 696, 28, 28

    key = jax.random.PRNGKey(0)
    kx, kw, kg, kb = jax.random.split(key, 4)

    x = jax.random.normal(kx, (N, C, H, W), dtype=jnp.float32)
    # Conv2d(696, 696, kernel_size=1, bias=False): weight (Cout, Cin, 1, 1) -> (Cout, Cin)
    weight = jax.random.normal(kw, (C, C), dtype=jnp.float32) * 0.02
    gamma = 1.0 + 0.1 * jax.random.normal(kg, (C,), dtype=jnp.float32)
    beta = 0.1 * jax.random.normal(kb, (C,), dtype=jnp.float32)

    out = jax.block_until_ready(fused_relu_conv1x1_bn_relu(x, weight, gamma, beta))
    ref = jax.block_until_ready(_reference(x, weight, gamma, beta))

    assert out.shape == (N, C, H, W)
    # Tolerance loosened vs the f32 reference because the conv uses bf16 MXU inputs
    # (f32 accumulate); expected max abs error ~2e-2 on BN-normalized outputs.
    max_diff = float(jnp.max(jnp.abs(out - ref)))
    assert jnp.allclose(out, ref, atol=5e-2, rtol=2e-2), f"max abs diff {max_diff}"

    print("KERNEL_OK")
</pallas_src>

<mosaic_0001>
module attributes {stable_mosaic.version = 11 : i64} {
  func.func @_stats_kernel(%arg0: i32, %arg1: i32, %arg2: memref<768x768xbf16, #tpu.memory_space<vmem>>, %arg3: memref<1x768x256xbf16, #tpu.memory_space<vmem>>, %arg4: memref<1x768x256xf32, #tpu.memory_space<vmem>>, %arg5: memref<768x1xf32, #tpu.memory_space<vmem>>, %arg6: memref<768x1xf32, #tpu.memory_space<vmem>>) attributes {dimension_semantics = [#tpu.dimension_semantics<arbitrary>, #tpu.dimension_semantics<arbitrary>], iteration_bounds = array<i64: 1, 4>, scalar_prefetch = 0 : i64, scratch_operands = 0 : i64, tpu.core_type = #tpu.core_type<tc>, window_params = [{pipeline_mode = #tpu.pipeline_mode<synchronous>, transform_indices = @transform_0, window_bounds = array<i64: 768, 768>}, {transform_indices = @transform_1, window_bounds = array<i64: 1, 768, 256>}, {transform_indices = @transform_2, window_bounds = array<i64: 1, 768, 256>}, {pipeline_mode = #tpu.pipeline_mode<synchronous>, transform_indices = @transform_3, window_bounds = array<i64: 768, 1>}, {pipeline_mode = #tpu.pipeline_mode<synchronous>, transform_indices = @transform_4, window_bounds = array<i64: 768, 1>}]} {
    %c0 = arith.constant 0 : index
    %c0_0 = arith.constant 0 : index
    %c0_1 = arith.constant 0 : index
    %0 = vector.load %arg3[%c0, %c0_0, %c0_1] : memref<1x768x256xbf16, #tpu.memory_space<vmem>>, vector<1x768x256xbf16>
    %1 = vector.shape_cast %0 : vector<1x768x256xbf16> to vector<768x256xbf16>
    %cst = arith.constant 0.000000e+00 : bf16
    %2 = vector.broadcast %cst : bf16 to vector<768x256xbf16>
    %3 = arith.maximumf %1, %2 : vector<768x256xbf16>
    %c0_2 = arith.constant 0 : index
    %c0_3 = arith.constant 0 : index
    %4 = vector.load %arg2[%c0_2, %c0_3] : memref<768x768xbf16, #tpu.memory_space<vmem>>, vector<768x768xbf16>
    %cst_4 = arith.constant dense<0.000000e+00> : vector<768x256xf32>
    %5 = tpu.matmul %4, %3, %cst_4 {dimension_numbers = #tpu.dot_dimension_numbers<[1], [0], [0], [1], [0, 0, 1, 1], [], []>} : vector<768x768xbf16>, vector<768x256xbf16>, vector<768x256xf32> -> vector<768x256xf32>
    %c0_5 = arith.constant 0 : index
    %c0_6 = arith.constant 0 : index
    %c0_7 = arith.constant 0 : index
    %6 = vector.load %arg4[%c0_5, %c0_6, %c0_7] : memref<1x768x256xf32, #tpu.memory_space<vmem>>, vector<1x768x256xf32>
    %7 = vector.shape_cast %6 : vector<1x768x256xf32> to vector<768x256xf32>
    %8 = vector.shape_cast %5 : vector<768x256xf32> to vector<1x768x256xf32>
    tpu.vector_store %arg4[%c0_5, %c0_6, %c0_7], %8 {strides = array<i32>} : memref<1x768x256xf32, #tpu.memory_space<vmem>>, vector<1x768x256xf32>,
    %c0_i32 = arith.constant 0 : i32
    %9 = arith.cmpi eq, %arg0, %c0_i32 : i32
    %c0_i32_8 = arith.constant 0 : i32
    %10 = arith.cmpi eq, %arg1, %c0_i32_8 : i32
    %11 = arith.andi %9, %10 : i1
    %12 = arith.extui %11 : i1 to i32
    %c0_i32_9 = arith.constant 0 : i32
    %13 = arith.cmpi ne, %12, %c0_i32_9 : i32
    scf.if %13 {
      %cst_20 = arith.constant 0.000000e+00 : f32
      %25 = vector.broadcast %cst_20 : f32 to vector<768x1xf32>
      %c0_21 = arith.constant 0 : index
      %c0_22 = arith.constant 0 : index
      %26 = vector.load %arg5[%c0_21, %c0_22] : memref<768x1xf32, #tpu.memory_space<vmem>>, vector<768x1xf32>
      tpu.vector_store %arg5[%c0_21, %c0_22], %25 {strides = array<i32>} : memref<768x1xf32, #tpu.memory_space<vmem>>, vector<768x1xf32>,
      %cst_23 = arith.constant 0.000000e+00 : f32
      %27 = vector.broadcast %cst_23 : f32 to vector<768x1xf32>
      %c0_24 = arith.constant 0 : index
      %c0_25 = arith.constant 0 : index
      %28 = vector.load %arg6[%c0_24, %c0_25] : memref<768x1xf32, #tpu.memory_space<vmem>>, vector<768x1xf32>
      tpu.vector_store %arg6[%c0_24, %c0_25], %27 {strides = array<i32>} : memref<768x1xf32, #tpu.memory_space<vmem>>, vector<768x1xf32>,
    } else {
    }
    %c0_10 = arith.constant 0 : index
    %c0_11 = arith.constant 0 : index
    %14 = vector.load %arg5[%c0_10, %c0_11] : memref<768x1xf32, #tpu.memory_space<vmem>>, vector<768x1xf32>
    %cst_12 = arith.constant dense<0.000000e+00> : vector<768xf32>
    %15 = vector.multi_reduction <add>, %5, %cst_12 [1] : vector<768x256xf32> to vector<768xf32>
    %16 = vector.shape_cast %15 : vector<768xf32> to vector<768x1xf32>
    %17 = arith.addf %14, %16 : vector<768x1xf32>
    %c0_13 = arith.constant 0 : index
    %c0_14 = arith.constant 0 : index
    %18 = vector.load %arg5[%c0_13, %c0_14] : memref<768x1xf32, #tpu.memory_space<vmem>>, vector<768x1xf32>
    tpu.vector_store %arg5[%c0_13, %c0_14], %17 {strides = array<i32>} : memref<768x1xf32, #tpu.memory_space<vmem>>, vector<768x1xf32>,
    %c0_15 = arith.constant 0 : index
    %c0_16 = arith.constant 0 : index
    %19 = vector.load %arg6[%c0_15, %c0_16] : memref<768x1xf32, #tpu.memory_space<vmem>>, vector<768x1xf32>
    %20 = arith.mulf %5, %5 : vector<768x256xf32>
    %cst_17 = arith.constant dense<0.000000e+00> : vector<768xf32>
    %21 = vector.multi_reduction <add>, %20, %cst_17 [1] : vector<768x256xf32> to vector<768xf32>
    %22 = vector.shape_cast %21 : vector<768xf32> to vector<768x1xf32>
    %23 = arith.addf %19, %22 : vector<768x1xf32>
    %c0_18 = arith.constant 0 : index
    %c0_19 = arith.constant 0 : index
    %24 = vector.load %arg6[%c0_18, %c0_19] : memref<768x1xf32, #tpu.memory_space<vmem>>, vector<768x1xf32>
    tpu.vector_store %arg6[%c0_18, %c0_19], %23 {strides = array<i32>} : memref<768x1xf32, #tpu.memory_space<vmem>>, vector<768x1xf32>,
    return
  }
  func.func @transform_0(%arg0: i32, %arg1: i32) -> (i32, i32) {
    %c0_i32 = arith.constant 0 : i32
    %c0_i32_0 = arith.constant 0 : i32
    %c0_i32_1 = arith.constant 0 : i32
    return %c0_i32, %c0_i32_0 : i32, i32
  }
  func.func @transform_1(%arg0: i32, %arg1: i32) -> (i32, i32, i32) {
    %c0_i32 = arith.constant 0 : i32
    %c0_i32_0 = arith.constant 0 : i32
    return %arg0, %c0_i32, %arg1 : i32, i32, i32
  }
  func.func @transform_2(%arg0: i32, %arg1: i32) -> (i32, i32, i32) {
    %c0_i32 = arith.constant 0 : i32
    %c0_i32_0 = arith.constant 0 : i32
    return %arg0, %c0_i32, %arg1 : i32, i32, i32
  }
  func.func @transform_3(%arg0: i32, %arg1: i32) -> (i32, i32) {
    %c0_i32 = arith.constant 0 : i32
    %c0_i32_0 = arith.constant 0 : i32
    %c0_i32_1 = arith.constant 0 : i32
    return %c0_i32, %c0_i32_0 : i32, i32
  }
  func.func @transform_4(%arg0: i32, %arg1: i32) -> (i32, i32) {
    %c0_i32 = arith.constant 0 : i32
    %c0_i32_0 = arith.constant 0 : i32
    %c0_i32_1 = arith.constant 0 : i32
    return %c0_i32, %c0_i32_0 : i32, i32
  }
}

module attributes {stable_mosaic.version = 11 : i64} {
  func.func @_apply_kernel(%arg0: i32, %arg1: i32, %arg2: memref<1x768x256xf32, #tpu.memory_space<vmem>>, %arg3: memref<768x1xf32, #tpu.memory_space<vmem>>, %arg4: memref<768x1xf32, #tpu.memory_space<vmem>>, %arg5: memref<1x768x256xf32, #tpu.memory_space<vmem>>) attributes {dimension_semantics = [#tpu.dimension_semantics<parallel>, #tpu.dimension_semantics<parallel>], iteration_bounds = array<i64: 1, 4>, scalar_prefetch = 0 : i64, scratch_operands = 0 : i64, tpu.core_type = #tpu.core_type<tc>, window_params = [{transform_indices = @transform_0, window_bounds = array<i64: 1, 768, 256>}, {pipeline_mode = #tpu.pipeline_mode<synchronous>, transform_indices = @transform_1, window_bounds = array<i64: 768, 1>}, {pipeline_mode = #tpu.pipeline_mode<synchronous>, transform_indices = @transform_2, window_bounds = array<i64: 768, 1>}, {transform_indices = @transform_3, window_bounds = array<i64: 1, 768, 256>}]} {
    %c0 = arith.constant 0 : index
    %c0_0 = arith.constant 0 : index
    %c0_1 = arith.constant 0 : index
    %0 = vector.load %arg2[%c0, %c0_0, %c0_1] : memref<1x768x256xf32, #tpu.memory_space<vmem>>, vector<1x768x256xf32>
    %1 = vector.shape_cast %0 : vector<1x768x256xf32> to vector<768x256xf32>
    %c0_2 = arith.constant 0 : index
    %c0_3 = arith.constant 0 : index
    %2 = vector.load %arg3[%c0_2, %c0_3] : memref<768x1xf32, #tpu.memory_space<vmem>>, vector<768x1xf32>
    %3 = vector.broadcast %2 : vector<768x1xf32> to vector<768x256xf32>
    %4 = arith.mulf %1, %3 : vector<768x256xf32>
    %c0_4 = arith.constant 0 : index
    %c0_5 = arith.constant 0 : index
    %5 = vector.load %arg4[%c0_4, %c0_5] : memref<768x1xf32, #tpu.memory_space<vmem>>, vector<768x1xf32>
    %6 = vector.broadcast %5 : vector<768x1xf32> to vector<768x256xf32>
    %7 = arith.addf %4, %6 : vector<768x256xf32>
    %cst = arith.constant 0.000000e+00 : f32
    %8 = vector.broadcast %cst : f32 to vector<768x256xf32>
    %9 = arith.maximumf %7, %8 : vector<768x256xf32>
    %c0_6 = arith.constant 0 : index
    %c0_7 = arith.constant 0 : index
    %c0_8 = arith.constant 0 : index
    %10 = vector.load %arg5[%c0_6, %c0_7, %c0_8] : memref<1x768x256xf32, #tpu.memory_space<vmem>>, vector<1x768x256xf32>
    %11 = vector.shape_cast %10 : vector<1x768x256xf32> to vector<768x256xf32>
    %12 = vector.shape_cast %9 : vector<768x256xf32> to vector<1x768x256xf32>
    tpu.vector_store %arg5[%c0_6, %c0_7, %c0_8], %12 {strides = array<i32>} : memref<1x768x256xf32, #tpu.memory_space<vmem>>, vector<1x768x256xf32>,
    return
  }
  func.func @transform_0(%arg0: i32, %arg1: i32) -> (i32, i32, i32) {
    %c0_i32 = arith.constant 0 : i32
    %c0_i32_0 = arith.constant 0 : i32
    return %arg0, %c0_i32, %arg1 : i32, i32, i32
  }
  func.func @transform_1(%arg0: i32, %arg1: i32) -> (i32, i32) {
    %c0_i32 = arith.constant 0 : i32
    %c0_i32_0 = arith.constant 0 : i32
    %c0_i32_1 = arith.constant 0 : i32
    return %c0_i32, %c0_i32_0 : i32, i32
  }
  func.func @transform_2(%arg0: i32, %arg1: i32) -> (i32, i32) {
    %c0_i32 = arith.constant 0 : i32
    %c0_i32_0 = arith.constant 0 : i32
    %c0_i32_1 = arith.constant 0 : i32
    return %c0_i32, %c0_i32_0 : i32, i32
  }
  func.func @transform_3(%arg0: i32, %arg1: i32) -> (i32, i32, i32) {
    %c0_i32 = arith.constant 0 : i32
    %c0_i32_0 = arith.constant 0 : i32
    return %arg0, %c0_i32, %arg1 : i32, i32, i32
  }
}

</mosaic_0001>

<llo_original>
// kernel: fused_relu_conv1x1_bn_relu.3
$region0: #{fused_relu_conv1x1_bn_relu.3}
  #allocation0 [shape = 'u32[]', space=smem, size = 0x4, offset = 0x4, fixed_abs, tag = 'smem constant byte address 0x4 - core index']
  #allocation1 [shape = 'u32[144,128]{1,0:T(1,128)}', space=vmem, size = 0x12000, scoped, tag = 'internal scratch']
  %s0 = inlined_call_operand.vmem [shape: f32[1,768,1024], index: 0, kind: input, shape index: {}]
  %s1 = inlined_call_operand.vmem [shape: f32[768,1], index: 1, kind: input, shape index: {}]
  %s2 = inlined_call_operand.vmem [shape: f32[768,1], index: 2, kind: input, shape index: {}]
  %s3 = inlined_call_operand.vmem [shape: f32[1,768,1024], index: 3, kind: output, shape index: {}]
  %s4 = sld [smem:[#allocation0]]
  $region87: #{fused_relu_conv1x1_bn_relu.3} parent=0
    _
  %s6 = ssub.s32 1, %s4
  %s7 = scalar_select 0, %s6, %s4
  $region1: #{fused_relu_conv1x1_bn_relu.3} parent=0
    #allocation2 [shape = 'u8[1572864]{0}', space=vmem, size = 0x180000, scoped, tag = 'input window, operand 0']
    #allocation3 [shape = 'u8[1572864]{0}', space=vmem, size = 0x180000, scoped, tag = 'output window, operand 0']
    loop: start=0, step=1, limit=6
    $region2: #{fused_relu_conv1x1_bn_relu.3} parent=1 // loop_pre_header
      _
    $region3: #{fused_relu_conv1x1_bn_relu.3} parent=1 // loop_header
      %s9 = sphi 0, %s13
      %p10 = scmp.ge.s32.totalorder %s9, 6
      %s16 = sphi 0, %s28
      %s17 = sphi 0, %s24
      %s18 = sphi 0, %s16
      %s19 = sphi 0, %s17
      %s20 = sphi 0, %s18
      %s21 = sphi 0, %s19
      %s33 = sphi 0, %s35
      %s36 = sphi 0, %s33
      %s37 = sphi 0, %s36
      %s53 = sphi 0, %s37
      %s57 = sphi 0, %s57
      %s59 = sphi 0, %s57
      %s60 = sphi 0, %s59
      %s74 = sphi 0, %s60
      %s78 = sphi 0, %s78
      %s80 = sphi 0, %s78
      %s81 = sphi 0, %s80
      %s95 = sphi 0, %s81
      %s103 = sphi 0, %s105
      %s106 = sphi 0, %s103
      %s107 = sphi 0, %s106
      %s123 = sphi 0, %s107
    $region4: #{fused_relu_conv1x1_bn_relu.3} parent=1 // loop_header_branch
      %12 = sbr.rel (%p10) target = $region8
    $region5: #{fused_relu_conv1x1_bn_relu.3} parent=1 // loop_body
      %s14 = ssub.s32 %s9, 1
      %s15 = ssub.s32 %s9, 2
      %s22 = sadd.s32 1, %s17
      %p23 = scmp.ge.s32.totalorder %s22, 4
      %s24 = scalar_select %p23, 0, %s22
      %s25 = sadd.s32 1, %s16
      %s26 = scalar_select %p23, %s25, %s16
      %p27 = scmp.ge.s32.totalorder %s26, 1
      %s28 = scalar_select %p27, 0, %s26
      %s29 = ssub.s32 %s16, %s28
      %s30 = ssub.s32 %s17, %s24
      %s31 = sor.u32 %s29, %s30
      %p32 = scmp.eq.s32.totalorder %s31, 0
      %s34 = sadd.s32 %s33, 1
      %s35 = scalar_select %p32, %s33, %s34
      %p38 = pneg %p32
      %p39 = scmp.eq.s32.totalorder %s9, 3
      %p40 = por %p38, %p39
      %p41 = scmp.ne.s32.totalorder %s33, %s36
      %p42 = scmp.eq.s32.totalorder %s9, 0
      %p43 = por %p41, %p42
      %p44 = scmp.ne.s32.totalorder %s33, %s36
      %p45 = scmp.eq.s32.totalorder %s14, 3
      %p46 = por %p44, %p45
      %p47 = scmp.ne.s32.totalorder %s36, %s37
      %p48 = scmp.eq.s32.totalorder %s14, 0
      %p49 = por %p47, %p48
      %p50 = scmp.ne.s32.totalorder %s36, %s37
      %p51 = scmp.eq.s32.totalorder %s15, 3
      %p52 = por %p50, %p51
      %p54 = scmp.ne.s32.totalorder %s37, %s53
      %p55 = scmp.eq.s32.totalorder %s15, 0
      %p56 = por %p54, %p55
      %s58 = sadd.s32 %s57, 1
      %p61 = scmp.eq.s32.totalorder %s9, 3
      %p62 = scmp.ne.s32.totalorder %s57, %s59
      %p63 = scmp.eq.s32.totalorder %s9, 0
      %p64 = por %p62, %p63
      %p65 = scmp.ne.s32.totalorder %s57, %s59
      %p66 = scmp.eq.s32.totalorder %s14, 3
      %p67 = por %p65, %p66
      %p68 = scmp.ne.s32.totalorder %s59, %s60
      %p69 = scmp.eq.s32.totalorder %s14, 0
      %p70 = por %p68, %p69
      %p71 = scmp.ne.s32.totalorder %s59, %s60
      %p72 = scmp.eq.s32.totalorder %s15, 3
      %p73 = por %p71, %p72
      %p75 = scmp.ne.s32.totalorder %s60, %s74
      %p76 = scmp.eq.s32.totalorder %s15, 0
      %p77 = por %p75, %p76
      %s79 = sadd.s32 %s78, 1
      %p82 = scmp.eq.s32.totalorder %s9, 3
      %p83 = scmp.ne.s32.totalorder %s78, %s80
      %p84 = scmp.eq.s32.totalorder %s9, 0
      %p85 = por %p83, %p84
      %p86 = scmp.ne.s32.totalorder %s78, %s80
      %p87 = scmp.eq.s32.totalorder %s14, 3
      %p88 = por %p86, %p87
      %p89 = scmp.ne.s32.totalorder %s80, %s81
      %p90 = scmp.eq.s32.totalorder %s14, 0
      %p91 = por %p89, %p90
      %p92 = scmp.ne.s32.totalorder %s80, %s81
      %p93 = scmp.eq.s32.totalorder %s15, 3
      %p94 = por %p92, %p93
      %p96 = scmp.ne.s32.totalorder %s81, %s95
      %p97 = scmp.eq.s32.totalorder %s15, 0
      %p98 = por %p96, %p97
      %s99 = ssub.s32 %s16, %s28
      %s100 = ssub.s32 %s17, %s24
      %s101 = sor.u32 %s99, %s100
      %p102 = scmp.eq.s32.totalorder %s101, 0
      %s104 = sadd.s32 %s103, 1
      %s105 = scalar_select %p102, %s103, %s104
      %p108 = pneg %p102
      %p109 = scmp.eq.s32.totalorder %s9, 3
      %p110 = por %p108, %p109
      %p111 = scmp.ne.s32.totalorder %s103, %s106
      %p112 = scmp.eq.s32.totalorder %s9, 0
      %p113 = por %p111, %p112
      %p114 = scmp.ne.s32.totalorder %s103, %s106
      %p115 = scmp.eq.s32.totalorder %s14, 3
      %p116 = por %p114, %p115
      %p117 = scmp.ne.s32.totalorder %s106, %s107
      %p118 = scmp.eq.s32.totalorder %s14, 0
      %p119 = por %p117, %p118
      %p120 = scmp.ne.s32.totalorder %s106, %s107
      %p121 = scmp.eq.s32.totalorder %s15, 3
      %p122 = por %p120, %p121
      %p124 = scmp.ne.s32.totalorder %s107, %s123
      %p125 = scmp.eq.s32.totalorder %s15, 0
      %p126 = por %p124, %p125
      %p127 = scmp.le.s32.totalorder 1, %s9
      %p128 = scmp.lt.s32.totalorder %s9, 5
      %p129 = pnand %p127, %p128
      %p130 = pneg %p129
      // Predicated region
      $region9: #{fused_relu_conv1x1_bn_relu.3} parent=5 // pred_check
        _
      $region10: #{fused_relu_conv1x1_bn_relu.3} parent=5 // pred_check_branch
        %132 = sbr.rel (%p129) target = $region12
      $region11: #{fused_relu_conv1x1_bn_relu.3} parent=5 // pred_region
        %s133 = ssub.s32 %s9, 1
        // Predicated region
        $region13: #{fused_relu_conv1x1_bn_relu.3} parent=11 // pred_check
          %p134 = pneg %p70
        $region14: #{fused_relu_conv1x1_bn_relu.3} parent=11 // pred_check_branch
          %136 = sbr.rel (%p134) target = $region16
        $region15: #{fused_relu_conv1x1_bn_relu.3} parent=11 // pred_region
          _
        $region16: #{fused_relu_conv1x1_bn_relu.3} parent=11 // pred_fallthru
          _
        // Predicated region
        $region17: #{fused_relu_conv1x1_bn_relu.3} parent=11 // pred_check
          %p137 = pneg %p91
        $region18: #{fused_relu_conv1x1_bn_relu.3} parent=11 // pred_check_branch
          %139 = sbr.rel (%p137) target = $region20
        $region19: #{fused_relu_conv1x1_bn_relu.3} parent=11 // pred_region
          _
        $region20: #{fused_relu_conv1x1_bn_relu.3} parent=11 // pred_fallthru
          _
      $region12: #{fused_relu_conv1x1_bn_relu.3} parent=5 // pred_fallthru
        _
      %p140 = scmp.lt.s32.totalorder %s9, 4
      // Predicated region
      $region21: #{fused_relu_conv1x1_bn_relu.3} parent=5 // pred_check
        %p141 = pneg %p140
      $region22: #{fused_relu_conv1x1_bn_relu.3} parent=5 // pred_check_branch
        %143 = sbr.rel (%p141) target = $region24
      $region23: #{fused_relu_conv1x1_bn_relu.3} parent=5 // pred_region
        // Predicated region
        $region25: #{fused_relu_conv1x1_bn_relu.3} parent=23 // pred_check
          %p144 = pneg %p43
        $region26: #{fused_relu_conv1x1_bn_relu.3} parent=23 // pred_check_branch
          %146 = sbr.rel (%p144) target = $region28
        $region27: #{fused_relu_conv1x1_bn_relu.3} parent=23 // pred_region
          %s147 = sand.u32 %s33, 1
          %s148 = sand.u32 %s33, 1
          %s149 = smul.addr %s148, 1536
          %s150 = scalar_lea.vmem [#allocation2], %s149
          %s151 = smul.u32 2, %s17
          %s152 = smul.addr %s16, 768
          %s153 = sadd.s32 %s151, %s152
          %s154 = smul.addr %s153, 8
          %s155 = scalar_lea.vmem %s0, %s154
          // Predicated region
          $region29: #{fused_relu_conv1x1_bn_relu.3} parent=27 // pred_check
            _
          $region30: #{fused_relu_conv1x1_bn_relu.3} parent=27 // pred_check_branch
            %157 = sbr.rel (0) target = $region32
          $region31: #{fused_relu_conv1x1_bn_relu.3} parent=27 // pred_region
            // Predicated region
            $region33: #{fused_relu_conv1x1_bn_relu.3} parent=31 // pred_check
              _
            $region34: #{fused_relu_conv1x1_bn_relu.3} parent=31 // pred_check_branch
              %159 = sbr.rel (0) target = $region36
            $region35: #{fused_relu_conv1x1_bn_relu.3} parent=31 // pred_region
              loop: start=0, step=1, limit=1
              $region37: #{fused_relu_conv1x1_bn_relu.3} parent=35 // loop_pre_header
                _
              $region38: #{fused_relu_conv1x1_bn_relu.3} parent=35 // loop_header
                %s161 = sphi 0, %s165
                %p162 = scmp.ge.s32.totalorder %s161, 1
                %s166 = sphi %s155, %s155
                %s167 = sphi %s150, %s150
              $region39: #{fused_relu_conv1x1_bn_relu.3} parent=35 // loop_header_branch
                %164 = sbr.rel (%p162) target = $region43
              $region40: #{fused_relu_conv1x1_bn_relu.3} parent=35 // loop_body
                %v168 = vld [vmem:[%s166] sm:$0xff]
                %169 = vst [vmem:[%s167] sm:$0xff] %v168
                %v170 = vld [vmem:[%s166 + $0x8] sm:$0xff]
                %171 = vst [vmem:[%s167 + $0x8] sm:$0xff] %v170
                %v172 = vld [vmem:[%s166 + $0x40] sm:$0xff]
                %173 = vst [vmem:[%s167 + $0x10] sm:$0xff] %v172
                %v174 = vld [vmem:[%s166 + $0x48] sm:$0xff]
                %175 = vst [vmem:[%s167 + $0x18] sm:$0xff] %v174
                %v176 = vld [vmem:[%s166 + $0x80] sm:$0xff]
                %177 = vst [vmem:[%s167 + $0x20] sm:$0xff] %v176
                %v178 = vld [vmem:[%s166 + $0x88] sm:$0xff]
                %179 = vst [vmem:[%s167 + $0x28] sm:$0xff] %v178
                %v180 = vld [vmem:[%s166 + $0xc0] sm:$0xff]
                %181 = vst [vmem:[%s167 + $0x30] sm:$0xff] %v180
                %v182 = vld [vmem:[%s166 + $0xc8] sm:$0xff]
                %183 = vst [vmem:[%s167 + $0x38] sm:$0xff] %v182
                %v184 = vld [vmem:[%s166 + $0x100] sm:$0xff]
                %185 = vst [vmem:[%s167 + $0x40] sm:$0xff] %v184
                %v186 = vld [vmem:[%s166 + $0x108] sm:$0xff]
                %187 = vst [vmem:[%s167 + $0x48] sm:$0xff] %v186
                %v188 = vld [vmem:[%s166 + $0x140] sm:$0xff]
                %189 = vst [vmem:[%s167 + $0x50] sm:$0xff] %v188
                %v190 = vld [vmem:[%s166 + $0x148] sm:$0xff]
                %191 = vst [vmem:[%s167 + $0x58] sm:$0xff] %v190
                %v192 = vld [vmem:[%s166 + $0x180] sm:$0xff]
                %193 = vst [vmem:[%s167 + $0x60] sm:$0xff] %v192
                %v194 = vld [vmem:[%s166 + $0x188] sm:$0xff]
                %195 = vst [vmem:[%s167 + $0x68] sm:$0xff] %v194
                %v196 = vld [vmem:[%s166 + $0x1c0] sm:$0xff]
                %197 = vst [vmem:[%s167 + $0x70] sm:$0xff] %v196
                %v198 = vld [vmem:[%s166 + $0x1c8] sm:$0xff]
                %199 = vst [vmem:[%s167 + $0x78] sm:$0xff] %v198
                %v200 = vld [vmem:[%s166 + $0x200] sm:$0xff]
                %201 = vst [vmem:[%s167 + $0x80] sm:$0xff] %v200
                %v202 = vld [vmem:[%s166 + $0x208] sm:$0xff]
                %203 = vst [vmem:[%s167 + $0x88] sm:$0xff] %v202
                %v204 = vld [vmem:[%s166 + $0x240] sm:$0xff]
                %205 = vst [vmem:[%s167 + $0x90] sm:$0xff] %v204
                %v206 = vld [vmem:[%s166 + $0x248] sm:$0xff]
                %207 = vst [vmem:[%s167 + $0x98] sm:$0xff] %v206
                %v208 = vld [vmem:[%s166 + $0x280] sm:$0xff]
                %209 = vst [vmem:[%s167 + $0xa0] sm:$0xff] %v208
                %v210 = vld [vmem:[%s166 + $0x288] sm:$0xff]
                %211 = vst [vmem:[%s167 + $0xa8] sm:$0xff] %v210
                %v212 = vld [vmem:[%s166 + $0x2c0] sm:$0xff]
                %213 = vst [vmem:[%s167 + $0xb0] sm:$0xff] %v212
                %v214 = vld [vmem:[%s166 + $0x2c8] sm:$0xff]
                %215 = vst [vmem:[%s167 + $0xb8] sm:$0xff] %v214
                %v216 = vld [vmem:[%s166 + $0x300] sm:$0xff]
                %217 = vst [vmem:[%s167 + $0xc0] sm:$0xff] %v216
                %v218 = vld [vmem:[%s166 + $0x308] sm:$0xff]
                %219 = vst [vmem:[%s167 + $0xc8] sm:$0xff] %v218
                %v220 = vld [vmem:[%s166 + $0x340] sm:$0xff]
                %221 = vst [vmem:[%s167 + $0xd0] sm:$0xff] %v220
                %v222 = vld [vmem:[%s166 + $0x348] sm:$0xff]
                %223 = vst [vmem:[%s167 + $0xd8] sm:$0xff] %v222
                %v224 = vld [vmem:[%s166 + $0x380] sm:$0xff]
                %225 = vst [vmem:[%s167 + $0xe0] sm:$0xff] %v224
                %v226 = vld [vmem:[%s166 + $0x388] sm:$0xff]
                %227 = vst [vmem:[%s167 + $0xe8] sm:$0xff] %v226
                %v228 = vld [vmem:[%s166 + $0x3c0] sm:$0xff]
                %229 = vst [vmem:[%s167 + $0xf0] sm:$0xff] %v228
                %v230 = vld [vmem:[%s166 + $0x3c8] sm:$0xff]
                %231 = vst [vmem:[%s167 + $0xf8] sm:$0xff] %v230
                %v232 = vld [vmem:[%s166 + $0x400] sm:$0xff]
                %233 = vst [vmem:[%s167 + $0x100] sm:$0xff] %v232
                %v234 = vld [vmem:[%s166 + $0x408] sm:$0xff]
                %235 = vst [vmem:[%s167 + $0x108] sm:$0xff] %v234
                %v236 = vld [vmem:[%s166 + $0x440] sm:$0xff]
                %237 = vst [vmem:[%s167 + $0x110] sm:$0xff] %v236
                %v238 = vld [vmem:[%s166 + $0x448] sm:$0xff]
                %239 = vst [vmem:[%s167 + $0x118] sm:$0xff] %v238
                %v240 = vld [vmem:[%s166 + $0x480] sm:$0xff]
                %241 = vst [vmem:[%s167 + $0x120] sm:$0xff] %v240
                %v242 = vld [vmem:[%s166 + $0x488] sm:$0xff]
                %243 = vst [vmem:[%s167 + $0x128] sm:$0xff] %v242
                %v244 = vld [vmem:[%s166 + $0x4c0] sm:$0xff]
                %245 = vst [vmem:[%s167 + $0x130] sm:$0xff] %v244
                %v246 = vld [vmem:[%s166 + $0x4c8] sm:$0xff]
                %247 = vst [vmem:[%s167 + $0x138] sm:$0xff] %v246
                %v248 = vld [vmem:[%s166 + $0x500] sm:$0xff]
                %249 = vst [vmem:[%s167 + $0x140] sm:$0xff] %v248
                %v250 = vld [vmem:[%s166 + $0x508] sm:$0xff]
                %251 = vst [vmem:[%s167 + $0x148] sm:$0xff] %v250
                %v252 = vld [vmem:[%s166 + $0x540] sm:$0xff]
                %253 = vst [vmem:[%s167 + $0x150] sm:$0xff] %v252
                %v254 = vld [vmem:[%s166 + $0x548] sm:$0xff]
                %255 = vst [vmem:[%s167 + $0x158] sm:$0xff] %v254
                %v256 = vld [vmem:[%s166 + $0x580] sm:$0xff]
                %257 = vst [vmem:[%s167 + $0x160] sm:$0xff] %v256
                %v258 = vld [vmem:[%s166 + $0x588] sm:$0xff]
                %259 = vst [vmem:[%s167 + $0x168] sm:$0xff] %v258
                %v260 = vld [vmem:[%s166 + $0x5c0] sm:$0xff]
                %261 = vst [vmem:[%s167 + $0x170] sm:$0xff] %v260
                %v262 = vld [vmem:[%s166 + $0x5c8] sm:$0xff]
                %263 = vst [vmem:[%s167 + $0x178] sm:$0xff] %v262
                %v264 = vld [vmem:[%s166 + $0x600] sm:$0xff]
                %265 = vst [vmem:[%s167 + $0x180] sm:$0xff] %v264
                %v266 = vld [vmem:[%s166 + $0x608] sm:$0xff]
                %267 = vst [vmem:[%s167 + $0x188] sm:$0xff] %v266
                %v268 = vld [vmem:[%s166 + $0x640] sm:$0xff]
                %269 = vst [vmem:[%s167 + $0x190] sm:$0xff] %v268
                %v270 = vld [vmem:[%s166 + $0x648] sm:$0xff]
                %271 = vst [vmem:[%s167 + $0x198] sm:$0xff] %v270
                %v272 = vld [vmem:[%s166 + $0x680] sm:$0xff]
                %273 = vst [vmem:[%s167 + $0x1a0] sm:$0xff] %v272
                %v274 = vld [vmem:[%s166 + $0x688] sm:$0xff]
                %275 = vst [vmem:[%s167 + $0x1a8] sm:$0xff] %v274
                %v276 = vld [vmem:[%s166 + $0x6c0] sm:$0xff]
                %277 = vst [vmem:[%s167 + $0x1b0] sm:$0xff] %v276
                %v278 = vld [vmem:[%s166 + $0x6c8] sm:$0xff]
                %279 = vst [vmem:[%s167 + $0x1b8] sm:$0xff] %v278
                %v280 = vld [vmem:[%s166 + $0x700] sm:$0xff]
                %281 = vst [vmem:[%s167 + $0x1c0] sm:$0xff] %v280
                %v282 = vld [vmem:[%s166 + $0x708] sm:$0xff]
                %283 = vst [vmem:[%s167 + $0x1c8] sm:$0xff] %v282
                %v284 = vld [vmem:[%s166 + $0x740] sm:$0xff]
                %285 = vst [vmem:[%s167 + $0x1d0] sm:$0xff] %v284
                %v286 = vld [vmem:[%s166 + $0x748] sm:$0xff]
                %287 = vst [vmem:[%s167 + $0x1d8] sm:$0xff] %v286
                %v288 = vld [vmem:[%s166 + $0x780] sm:$0xff]
                %289 = vst [vmem:[%s167 + $0x1e0] sm:$0xff] %v288
                %v290 = vld [vmem:[%s166 + $0x788] sm:$0xff]
                %291 = vst [vmem:[%s167 + $0x1e8] sm:$0xff] %v290
                %v292 = vld [vmem:[%s166 + $0x7c0] sm:$0xff]
                %293 = vst [vmem:[%s167 + $0x1f0] sm:$0xff] %v292
                %v294 = vld [vmem:[%s166 + $0x7c8] sm:$0xff]
                %295 = vst [vmem:[%s167 + $0x1f8] sm:$0xff] %v294
                %v296 = vld [vmem:[%s166 + $0x800] sm:$0xff]
                %297 = vst [vmem:[%s167 + $0x200] sm:$0xff] %v296
                %v298 = vld [vmem:[%s166 + $0x808] sm:$0xff]
                %299 = vst [vmem:[%s167 + $0x208] sm:$0xff] %v298
                %v300 = vld [vmem:[%s166 + $0x840] sm:$0xff]
                %301 = vst [vmem:[%s167 + $0x210] sm:$0xff] %v300
                %v302 = vld [vmem:[%s166 + $0x848] sm:$0xff]
                %303 = vst [vmem:[%s167 + $0x218] sm:$0xff] %v302
                %v304 = vld [vmem:[%s166 + $0x880] sm:$0xff]
                %305 = vst [vmem:[%s167 + $0x220] sm:$0xff] %v304
                %v306 = vld [vmem:[%s166 + $0x888] sm:$0xff]
                %307 = vst [vmem:[%s167 + $0x228] sm:$0xff] %v306
                %v308 = vld [vmem:[%s166 + $0x8c0] sm:$0xff]
                %309 = vst [vmem:[%s167 + $0x230] sm:$0xff] %v308
                %v310 = vld [vmem:[%s166 + $0x8c8] sm:$0xff]
                %311 = vst [vmem:[%s167 + $0x238] sm:$0xff] %v310
                %v312 = vld [vmem:[%s166 + $0x900] sm:$0xff]
                %313 = vst [vmem:[%s167 + $0x240] sm:$0xff] %v312
                %v314 = vld [vmem:[%s166 + $0x908] sm:$0xff]
                %315 = vst [vmem:[%s167 + $0x248] sm:$0xff] %v314
                %v316 = vld [vmem:[%s166 + $0x940] sm:$0xff]
                %317 = vst [vmem:[%s167 + $0x250] sm:$0xff] %v316
                %v318 = vld [vmem:[%s166 + $0x948] sm:$0xff]
                %319 = vst [vmem:[%s167 + $0x258] sm:$0xff] %v318
                %v320 = vld [vmem:[%s166 + $0x980] sm:$0xff]
                %321 = vst [vmem:[%s167 + $0x260] sm:$0xff] %v320
                %v322 = vld [vmem:[%s166 + $0x988] sm:$0xff]
                %323 = vst [vmem:[%s167 + $0x268] sm:$0xff] %v322
                %v324 = vld [vmem:[%s166 + $0x9c0] sm:$0xff]
                %325 = vst [vmem:[%s167 + $0x270] sm:$0xff] %v324
                %v326 = vld [vmem:[%s166 + $0x9c8] sm:$0xff]
                %327 = vst [vmem:[%s167 + $0x278] sm:$0xff] %v326
                %v328 = vld [vmem:[%s166 + $0xa00] sm:$0xff]
                %329 = vst [vmem:[%s167 + $0x280] sm:$0xff] %v328
                %v330 = vld [vmem:[%s166 + $0xa08] sm:$0xff]
                %331 = vst [vmem:[%s167 + $0x288] sm:$0xff] %v330
                %v332 = vld [vmem:[%s166 + $0xa40] sm:$0xff]
                %333 = vst [vmem:[%s167 + $0x290] sm:$0xff] %v332
                %v334 = vld [vmem:[%s166 + $0xa48] sm:$0xff]
                %335 = vst [vmem:[%s167 + $0x298] sm:$0xff] %v334
                %v336 = vld [vmem:[%s166 + $0xa80] sm:$0xff]
                %337 = vst [vmem:[%s167 + $0x2a0] sm:$0xff] %v336
                %v338 = vld [vmem:[%s166 + $0xa88] sm:$0xff]
                %339 = vst [vmem:[%s167 + $0x2a8] sm:$0xff] %v338
                %v340 = vld [vmem:[%s166 + $0xac0] sm:$0xff]
                %341 = vst [vmem:[%s167 + $0x2b0] sm:$0xff] %v340
                %v342 = vld [vmem:[%s166 + $0xac8] sm:$0xff]
                %343 = vst [vmem:[%s167 + $0x2b8] sm:$0xff] %v342
                %v344 = vld [vmem:[%s166 + $0xb00] sm:$0xff]
                %345 = vst [vmem:[%s167 + $0x2c0] sm:$0xff] %v344
                %v346 = vld [vmem:[%s166 + $0xb08] sm:$0xff]
                %347 = vst [vmem:[%s167 + $0x2c8] sm:$0xff] %v346
                %v348 = vld [vmem:[%s166 + $0xb40] sm:$0xff]
                %349 = vst [vmem:[%s167 + $0x2d0] sm:$0xff] %v348
                %v350 = vld [vmem:[%s166 + $0xb48] sm:$0xff]
                %351 = vst [vmem:[%s167 + $0x2d8] sm:$0xff] %v350
                %v352 = vld [vmem:[%s166 + $0xb80] sm:$0xff]
                %353 = vst [vmem:[%s167 + $0x2e0] sm:$0xff] %v352
                %v354 = vld [vmem:[%s166 + $0xb88] sm:$0xff]
                %355 = vst [vmem:[%s167 + $0x2e8] sm:$0xff] %v354
                %v356 = vld [vmem:[%s166 + $0xbc0] sm:$0xff]
                %357 = vst [vmem:[%s167 + $0x2f0] sm:$0xff] %v356
                %v358 = vld [vmem:[%s166 + $0xbc8] sm:$0xff]
                %359 = vst [vmem:[%s167 + $0x2f8] sm:$0xff] %v358
                %v360 = vld [vmem:[%s166 + $0xc00] sm:$0xff]
                %361 = vst [vmem:[%s167 + $0x300] sm:$0xff] %v360
                %v362 = vld [vmem:[%s166 + $0xc08] sm:$0xff]
                %363 = vst [vmem:[%s167 + $0x308] sm:$0xff] %v362
                %v364 = vld [vmem:[%s166 + $0xc40] sm:$0xff]
                %365 = vst [vmem:[%s167 + $0x310] sm:$0xff] %v364
                %v366 = vld [vmem:[%s166 + $0xc48] sm:$0xff]
                %367 = vst [vmem:[%s167 + $0x318] sm:$0xff] %v366
                %v368 = vld [vmem:[%s166 + $0xc80] sm:$0xff]
                %369 = vst [vmem:[%s167 + $0x320] sm:$0xff] %v368
                %v370 = vld [vmem:[%s166 + $0xc88] sm:$0xff]
                %371 = vst [vmem:[%s167 + $0x328] sm:$0xff] %v370
                %v372 = vld [vmem:[%s166 + $0xcc0] sm:$0xff]
                %373 = vst [vmem:[%s167 + $0x330] sm:$0xff] %v372
                %v374 = vld [vmem:[%s166 + $0xcc8] sm:$0xff]
                %375 = vst [vmem:[%s167 + $0x338] sm:$0xff] %v374
                %v376 = vld [vmem:[%s166 + $0xd00] sm:$0xff]
                %377 = vst [vmem:[%s167 + $0x340] sm:$0xff] %v376
                %v378 = vld [vmem:[%s166 + $0xd08] sm:$0xff]
                %379 = vst [vmem:[%s167 + $0x348] sm:$0xff] %v378
                %v380 = vld [vmem:[%s166 + $0xd40] sm:$0xff]
                %381 = vst [vmem:[%s167 + $0x350] sm:$0xff] %v380
                %v382 = vld [vmem:[%s166 + $0xd48] sm:$0xff]
                %383 = vst [vmem:[%s167 + $0x358] sm:$0xff] %v382
                %v384 = vld [vmem:[%s166 + $0xd80] sm:$0xff]
                %385 = vst [vmem:[%s167 + $0x360] sm:$0xff] %v384
                %v386 = vld [vmem:[%s166 + $0xd88] sm:$0xff]
                %387 = vst [vmem:[%s167 + $0x368] sm:$0xff] %v386
                %v388 = vld [vmem:[%s166 + $0xdc0] sm:$0xff]
                %389 = vst [vmem:[%s167 + $0x370] sm:$0xff] %v388
                %v390 = vld [vmem:[%s166 + $0xdc8] sm:$0xff]
                %391 = vst [vmem:[%s167 + $0x378] sm:$0xff] %v390
                %v392 = vld [vmem:[%s166 + $0xe00] sm:$0xff]
                %393 = vst [vmem:[%s167 + $0x380] sm:$0xff] %v392
                %v394 = vld [vmem:[%s166 + $0xe08] sm:$0xff]
                %395 = vst [vmem:[%s167 + $0x388] sm:$0xff] %v394
                %v396 = vld [vmem:[%s166 + $0xe40] sm:$0xff]
                %397 = vst [vmem:[%s167 + $0x390] sm:$0xff] %v396
                %v398 = vld [vmem:[%s166 + $0xe48] sm:$0xff]
                %399 = vst [vmem:[%s167 + $0x398] sm:$0xff] %v398
                %v400 = vld [vmem:[%s166 + $0xe80] sm:$0xff]
                %401 = vst [vmem:[%s167 + $0x3a0] sm:$0xff] %v400
                %v402 = vld [vmem:[%s166 + $0xe88] sm:$0xff]
                %403 = vst [vmem:[%s167 + $0x3a8] sm:$0xff] %v402
                %v404 = vld [vmem:[%s166 + $0xec0] sm:$0xff]
                %405 = vst [vmem:[%s167 + $0x3b0] sm:$0xff] %v404
                %v406 = vld [vmem:[%s166 + $0xec8] sm:$0xff]
                %407 = vst [vmem:[%s167 + $0x3b8] sm:$0xff] %v406
                %v408 = vld [vmem:[%s166 + $0xf00] sm:$0xff]
                %409 = vst [vmem:[%s167 + $0x3c0] sm:$0xff] %v408
                %v410 = vld [vmem:[%s166 + $0xf08] sm:$0xff]
                %411 = vst [vmem:[%s167 + $0x3c8] sm:$0xff] %v410
                %v412 = vld [vmem:[%s166 + $0xf40] sm:$0xff]
                %413 = vst [vmem:[%s167 + $0x3d0] sm:$0xff] %v412
                %v414 = vld [vmem:[%s166 + $0xf48] sm:$0xff]
                %415 = vst [vmem:[%s167 + $0x3d8] sm:$0xff] %v414
                %v416 = vld [vmem:[%s166 + $0xf80] sm:$0xff]
                %417 = vst [vmem:[%s167 + $0x3e0] sm:$0xff] %v416
                %v418 = vld [vmem:[%s166 + $0xf88] sm:$0xff]
                %419 = vst [vmem:[%s167 + $0x3e8] sm:$0xff] %v418
                %v420 = vld [vmem:[%s166 + $0xfc0] sm:$0xff]
                %421 = vst [vmem:[%s167 + $0x3f0] sm:$0xff] %v420
                %v422 = vld [vmem:[%s166 + $0xfc8] sm:$0xff]
                %423 = vst [vmem:[%s167 + $0x3f8] sm:$0xff] %v422
                %v424 = vld [vmem:[%s166 + $0x1000] sm:$0xff]
                %425 = vst [vmem:[%s167 + $0x400] sm:$0xff] %v424
                %v426 = vld [vmem:[%s166 + $0x1008] sm:$0xff]
                %427 = vst [vmem:[%s167 + $0x408] sm:$0xff] %v426
                %v428 = vld [vmem:[%s166 + $0x1040] sm:$0xff]
                %429 = vst [vmem:[%s167 + $0x410] sm:$0xff] %v428
                %v430 = vld [vmem:[%s166 + $0x1048] sm:$0xff]
                %431 = vst [vmem:[%s167 + $0x418] sm:$0xff] %v430
                %v432 = vld [vmem:[%s166 + $0x1080] sm:$0xff]
                %433 = vst [vmem:[%s167 + $0x420] sm:$0xff] %v432
                %v434 = vld [vmem:[%s166 + $0x1088] sm:$0xff]
                %435 = vst [vmem:[%s167 + $0x428] sm:$0xff] %v434
                %v436 = vld [vmem:[%s166 + $0x10c0] sm:$0xff]
                %437 = vst [vmem:[%s167 + $0x430] sm:$0xff] %v436
                %v438 = vld [vmem:[%s166 + $0x10c8] sm:$0xff]
                %439 = vst [vmem:[%s167 + $0x438] sm:$0xff] %v438
                %v440 = vld [vmem:[%s166 + $0x1100] sm:$0xff]
                %441 = vst [vmem:[%s167 + $0x440] sm:$0xff] %v440
                %v442 = vld [vmem:[%s166 + $0x1108] sm:$0xff]
                %443 = vst [vmem:[%s167 + $0x448] sm:$0xff] %v442
                %v444 = vld [vmem:[%s166 + $0x1140] sm:$0xff]
                %445 = vst [vmem:[%s167 + $0x450] sm:$0xff] %v444
                %v446 = vld [vmem:[%s166 + $0x1148] sm:$0xff]
                %447 = vst [vmem:[%s167 + $0x458] sm:$0xff] %v446
                %v448 = vld [vmem:[%s166 + $0x1180] sm:$0xff]
                %449 = vst [vmem:[%s167 + $0x460] sm:$0xff] %v448
                %v450 = vld [vmem:[%s166 + $0x1188] sm:$0xff]
                %451 = vst [vmem:[%s167 + $0x468] sm:$0xff] %v450
                %v452 = vld [vmem:[%s166 + $0x11c0] sm:$0xff]
                %453 = vst [vmem:[%s167 + $0x470] sm:$0xff] %v452
                %v454 = vld [vmem:[%s166 + $0x11c8] sm:$0xff]
                %455 = vst [vmem:[%s167 + $0x478] sm:$0xff] %v454
                %v456 = vld [vmem:[%s166 + $0x1200] sm:$0xff]
                %457 = vst [vmem:[%s167 + $0x480] sm:$0xff] %v456
                %v458 = vld [vmem:[%s166 + $0x1208] sm:$0xff]
                %459 = vst [vmem:[%s167 + $0x488] sm:$0xff] %v458
                %v460 = vld [vmem:[%s166 + $0x1240] sm:$0xff]
                %461 = vst [vmem:[%s167 + $0x490] sm:$0xff] %v460
                %v462 = vld [vmem:[%s166 + $0x1248] sm:$0xff]
                %463 = vst [vmem:[%s167 + $0x498] sm:$0xff] %v462
                %v464 = vld [vmem:[%s166 + $0x1280] sm:$0xff]
                %465 = vst [vmem:[%s167 + $0x4a0] sm:$0xff] %v464
                %v466 = vld [vmem:[%s166 + $0x1288] sm:$0xff]
                %467 = vst [vmem:[%s167 + $0x4a8] sm:$0xff] %v466
                %v468 = vld [vmem:[%s166 + $0x12c0] sm:$0xff]
                %469 = vst [vmem:[%s167 + $0x4b0] sm:$0xff] %v468
                %v470 = vld [vmem:[%s166 + $0x12c8] sm:$0xff]
                %471 = vst [vmem:[%s167 + $0x4b8] sm:$0xff] %v470
                %v472 = vld [vmem:[%s166 + $0x1300] sm:$0xff]
                %473 = vst [vmem:[%s167 + $0x4c0] sm:$0xff] %v472
                %v474 = vld [vmem:[%s166 + $0x1308] sm:$0xff]
                %475 = vst [vmem:[%s167 + $0x4c8] sm:$0xff] %v474
                %v476 = vld [vmem:[%s166 + $0x1340] sm:$0xff]
                %477 = vst [vmem:[%s167 + $0x4d0] sm:$0xff] %v476
                %v478 = vld [vmem:[%s166 + $0x1348] sm:$0xff]
                %479 = vst [vmem:[%s167 + $0x4d8] sm:$0xff] %v478
                %v480 = vld [vmem:[%s166 + $0x1380] sm:$0xff]
                %481 = vst [vmem:[%s167 + $0x4e0] sm:$0xff] %v480
                %v482 = vld [vmem:[%s166 + $0x1388] sm:$0xff]
                %483 = vst [vmem:[%s167 + $0x4e8] sm:$0xff] %v482
                %v484 = vld [vmem:[%s166 + $0x13c0] sm:$0xff]
                %485 = vst [vmem:[%s167 + $0x4f0] sm:$0xff] %v484
                %v486 = vld [vmem:[%s166 + $0x13c8] sm:$0xff]
                %487 = vst [vmem:[%s167 + $0x4f8] sm:$0xff] %v486
                %v488 = vld [vmem:[%s166 + $0x1400] sm:$0xff]
                %489 = vst [vmem:[%s167 + $0x500] sm:$0xff] %v488
                %v490 = vld [vmem:[%s166 + $0x1408] sm:$0xff]
                %491 = vst [vmem:[%s167 + $0x508] sm:$0xff] %v490
                %v492 = vld [vmem:[%s166 + $0x1440] sm:$0xff]
                %493 = vst [vmem:[%s167 + $0x510] sm:$0xff] %v492
                %v494 = vld [vmem:[%s166 + $0x1448] sm:$0xff]
                %495 = vst [vmem:[%s167 + $0x518] sm:$0xff] %v494
                %v496 = vld [vmem:[%s166 + $0x1480] sm:$0xff]
                %497 = vst [vmem:[%s167 + $0x520] sm:$0xff] %v496
                %v498 = vld [vmem:[%s166 + $0x1488] sm:$0xff]
                %499 = vst [vmem:[%s167 + $0x528] sm:$0xff] %v498
                %v500 = vld [vmem:[%s166 + $0x14c0] sm:$0xff]
                %501 = vst [vmem:[%s167 + $0x530] sm:$0xff] %v500
                %v502 = vld [vmem:[%s166 + $0x14c8] sm:$0xff]
                %503 = vst [vmem:[%s167 + $0x538] sm:$0xff] %v502
                %v504 = vld [vmem:[%s166 + $0x1500] sm:$0xff]
                %505 = vst [vmem:[%s167 + $0x540] sm:$0xff] %v504
                %v506 = vld [vmem:[%s166 + $0x1508] sm:$0xff]
                %507 = vst [vmem:[%s167 + $0x548] sm:$0xff] %v506
                %v508 = vld [vmem:[%s166 + $0x1540] sm:$0xff]
                %509 = vst [vmem:[%s167 + $0x550] sm:$0xff] %v508
                %v510 = vld [vmem:[%s166 + $0x1548] sm:$0xff]
                %511 = vst [vmem:[%s167 + $0x558] sm:$0xff] %v510
                %v512 = vld [vmem:[%s166 + $0x1580] sm:$0xff]
                %513 = vst [vmem:[%s167 + $0x560] sm:$0xff] %v512
                %v514 = vld [vmem:[%s166 + $0x1588] sm:$0xff]
                %515 = vst [vmem:[%s167 + $0x568] sm:$0xff] %v514
                %v516 = vld [vmem:[%s166 + $0x15c0] sm:$0xff]
                %517 = vst [vmem:[%s167 + $0x570] sm:$0xff] %v516
                %v518 = vld [vmem:[%s166 + $0x15c8] sm:$0xff]
                %519 = vst [vmem:[%s167 + $0x578] sm:$0xff] %v518
                %v520 = vld [vmem:[%s166 + $0x1600] sm:$0xff]
                %521 = vst [vmem:[%s167 + $0x580] sm:$0xff] %v520
                %v522 = vld [vmem:[%s166 + $0x1608] sm:$0xff]
                %523 = vst [vmem:[%s167 + $0x588] sm:$0xff] %v522
                %v524 = vld [vmem:[%s166 + $0x1640] sm:$0xff]
                %525 = vst [vmem:[%s167 + $0x590] sm:$0xff] %v524
                %v526 = vld [vmem:[%s166 + $0x1648] sm:$0xff]
                %527 = vst [vmem:[%s167 + $0x598] sm:$0xff] %v526
                %v528 = vld [vmem:[%s166 + $0x1680] sm:$0xff]
                %529 = vst [vmem:[%s167 + $0x5a0] sm:$0xff] %v528
                %v530 = vld [vmem:[%s166 + $0x1688] sm:$0xff]
                %531 = vst [vmem:[%s167 + $0x5a8] sm:$0xff] %v530
                %v532 = vld [vmem:[%s166 + $0x16c0] sm:$0xff]
                %533 = vst [vmem:[%s167 + $0x5b0] sm:$0xff] %v532
                %v534 = vld [vmem:[%s166 + $0x16c8] sm:$0xff]
                %535 = vst [vmem:[%s167 + $0x5b8] sm:$0xff] %v534
                %v536 = vld [vmem:[%s166 + $0x1700] sm:$0xff]
                %537 = vst [vmem:[%s167 + $0x5c0] sm:$0xff] %v536
                %v538 = vld [vmem:[%s166 + $0x1708] sm:$0xff]
                %539 = vst [vmem:[%s167 + $0x5c8] sm:$0xff] %v538
                %v540 = vld [vmem:[%s166 + $0x1740] sm:$0xff]
                %541 = vst [vmem:[%s167 + $0x5d0] sm:$0xff] %v540
                %v542 = vld [vmem:[%s166 + $0x1748] sm:$0xff]
                %543 = vst [vmem:[%s167 + $0x5d8] sm:$0xff] %v542
                %v544 = vld [vmem:[%s166 + $0x1780] sm:$0xff]
                %545 = vst [vmem:[%s167 + $0x5e0] sm:$0xff] %v544
                %v546 = vld [vmem:[%s166 + $0x1788] sm:$0xff]
                %547 = vst [vmem:[%s167 + $0x5e8] sm:$0xff] %v546
                %v548 = vld [vmem:[%s166 + $0x17c0] sm:$0xff]
                %549 = vst [vmem:[%s167 + $0x5f0] sm:$0xff] %v548
                %v550 = vld [vmem:[%s166 + $0x17c8] sm:$0xff]
                %551 = vst [vmem:[%s167 + $0x5f8] sm:$0xff] %v550
              $region41: #{fused_relu_conv1x1_bn_relu.3} parent=35 // loop_footer
                %s165 = sadd.s32 1, %s161
              $region42: #{fused_relu_conv1x1_bn_relu.3} parent=35 // loop_footer_branch
                %160 = sbr.rel target = $region38
              $region43: #{fused_relu_conv1x1_bn_relu.3} parent=35 // loop_exit
                _
            $region36: #{fused_relu_conv1x1_bn_relu.3} parent=31 // pred_fallthru
              _
            // Predicated region
            $region44: #{fused_relu_conv1x1_bn_relu.3} parent=31 // pred_check
              _
            $region45: #{fused_relu_conv1x1_bn_relu.3} parent=31 // pred_check_branch
              %553 = sbr.rel target = $region47
            $region46: #{fused_relu_conv1x1_bn_relu.3} parent=31 // pred_region
              _
            $region47: #{fused_relu_conv1x1_bn_relu.3} parent=31 // pred_fallthru
              _
          $region32: #{fused_relu_conv1x1_bn_relu.3} parent=27 // pred_fallthru
            _
          %554 = vnop
        $region28: #{fused_relu_conv1x1_bn_relu.3} parent=23 // pred_fallthru
          _
      $region24: #{fused_relu_conv1x1_bn_relu.3} parent=5 // pred_fallthru
        _
      %p555 = scmp.le.s32.totalorder 1, %s9
      %p556 = scmp.lt.s32.totalorder %s9, 5
      %p557 = pnand %p555, %p556
      %p558 = pneg %p557
      // Predicated region
      $region48: #{fused_relu_conv1x1_bn_relu.3} parent=5 // pred_check
        _
      $region49: #{fused_relu_conv1x1_bn_relu.3} parent=5 // pred_check_branch
        %560 = sbr.rel (%p557) target = $region51
      $region50: #{fused_relu_conv1x1_bn_relu.3} parent=5 // pred_region
        %s561 = ssub.s32 %s9, 1
        %s562 = sand.u32 %s36, 1
        %s563 = sand.u32 %s36, 1
        %s564 = smul.addr %s563, 1536
        %s565 = scalar_lea.vmem [#allocation2], %s564
        // Predicated region
        $region52: #{fused_relu_conv1x1_bn_relu.3} parent=50 // pred_check
          %p566 = pneg %p49
        $region53: #{fused_relu_conv1x1_bn_relu.3} parent=50 // pred_check_branch
          %568 = sbr.rel (%p566) target = $region55
        $region54: #{fused_relu_conv1x1_bn_relu.3} parent=50 // pred_region
          _
        $region55: #{fused_relu_conv1x1_bn_relu.3} parent=50 // pred_fallthru
          _
        %s569 = sand.u32 %s36, 1
        %s570 = sand.u32 %s36, 1
        %s571 = smul.addr %s570, 1536
        %s572 = scalar_lea.vmem [#allocation2], %s571
        %p573 = pneg %p49
        %p574 = pneg %p46
        %p575 = pneg %p70
        %p576 = pneg %p67
        %p577 = pneg %p91
        %p578 = pneg %p88
        %p579 = pneg %p119
        %p580 = pneg %p116
        %s581 = sand.u32 %s106, 1
        %s582 = sand.u32 %s106, 1
        %s583 = smul.addr %s582, 1536
        %s584 = scalar_lea.vmem [#allocation3], %s583
        %s585 = smul.u32 2, %s19
        %s586 = smul.u32 2, %s19
        %v587 = vld [vmem:[%s565] sm:$0xff]
        %v588 = vld [vmem:[%s565 + $0x8] sm:$0xff]
        %v589 = vld [vmem:[%s565 + $0x10] sm:$0xff]
        %v590 = vld [vmem:[%s565 + $0x18] sm:$0xff]
        %v591 = vld [vmem:[%s565 + $0x20] sm:$0xff]
        %v592 = vld [vmem:[%s565 + $0x28] sm:$0xff]
        %v593 = vld [vmem:[%s565 + $0x30] sm:$0xff]
        %v594 = vld [vmem:[%s565 + $0x38] sm:$0xff]
        %v595 = vld [vmem:[%s565 + $0x40] sm:$0xff]
        %v596 = vld [vmem:[%s565 + $0x48] sm:$0xff]
        %v597 = vld [vmem:[%s565 + $0x50] sm:$0xff]
        %v598 = vld [vmem:[%s565 + $0x58] sm:$0xff]
        %v599 = vld [vmem:[%s565 + $0x60] sm:$0xff]
        %v600 = vld [vmem:[%s565 + $0x68] sm:$0xff]
        %v601 = vld [vmem:[%s565 + $0x70] sm:$0xff]
        %v602 = vld [vmem:[%s565 + $0x78] sm:$0xff]
        %v603 = vld [vmem:[%s565 + $0x80] sm:$0xff]
        %v604 = vld [vmem:[%s565 + $0x88] sm:$0xff]
        %v605 = vld [vmem:[%s565 + $0x90] sm:$0xff]
        %v606 = vld [vmem:[%s565 + $0x98] sm:$0xff]
        %v607 = vld [vmem:[%s565 + $0xa0] sm:$0xff]
        %v608 = vld [vmem:[%s565 + $0xa8] sm:$0xff]
        %v609 = vld [vmem:[%s565 + $0xb0] sm:$0xff]
        %v610 = vld [vmem:[%s565 + $0xb8] sm:$0xff]
        %v611 = vld [vmem:[%s565 + $0xc0] sm:$0xff]
        %v612 = vld [vmem:[%s565 + $0xc8] sm:$0xff]
        %v613 = vld [vmem:[%s565 + $0xd0] sm:$0xff]
        %v614 = vld [vmem:[%s565 + $0xd8] sm:$0xff]
        %v615 = vld [vmem:[%s565 + $0xe0] sm:$0xff]
        %v616 = vld [vmem:[%s565 + $0xe8] sm:$0xff]
        %v617 = vld [vmem:[%s565 + $0xf0] sm:$0xff]
        %v618 = vld [vmem:[%s565 + $0xf8] sm:$0xff]
        %v619 = vld [vmem:[%s565 + $0x100] sm:$0xff]
        %v620 = vld [vmem:[%s565 + $0x108] sm:$0xff]
        %v621 = vld [vmem:[%s565 + $0x110] sm:$0xff]
        %v622 = vld [vmem:[%s565 + $0x118] sm:$0xff]
        %v623 = vld [vmem:[%s565 + $0x120] sm:$0xff]
        %v624 = vld [vmem:[%s565 + $0x128] sm:$0xff]
        %v625 = vld [vmem:[%s565 + $0x130] sm:$0xff]
        %v626 = vld [vmem:[%s565 + $0x138] sm:$0xff]
        %v627 = vld [vmem:[%s565 + $0x140] sm:$0xff]
        %v628 = vld [vmem:[%s565 + $0x148] sm:$0xff]
        %v629 = vld [vmem:[%s565 + $0x150] sm:$0xff]
        %v630 = vld [vmem:[%s565 + $0x158] sm:$0xff]
        %v631 = vld [vmem:[%s565 + $0x160] sm:$0xff]
        %v632 = vld [vmem:[%s565 + $0x168] sm:$0xff]
        %v633 = vld [vmem:[%s565 + $0x170] sm:$0xff]
        %v634 = vld [vmem:[%s565 + $0x178] sm:$0xff]
        %v635 = vld [vmem:[%s565 + $0x180] sm:$0xff]
        %v636 = vld [vmem:[%s565 + $0x188] sm:$0xff]
        %v637 = vld [vmem:[%s565 + $0x190] sm:$0xff]
        %v638 = vld [vmem:[%s565 + $0x198] sm:$0xff]
        %v639 = vld [vmem:[%s565 + $0x1a0] sm:$0xff]
        %v640 = vld [vmem:[%s565 + $0x1a8] sm:$0xff]
        %v641 = vld [vmem:[%s565 + $0x1b0] sm:$0xff]
        %v642 = vld [vmem:[%s565 + $0x1b8] sm:$0xff]
        %v643 = vld [vmem:[%s565 + $0x1c0] sm:$0xff]
        %v644 = vld [vmem:[%s565 + $0x1c8] sm:$0xff]
        %v645 = vld [vmem:[%s565 + $0x1d0] sm:$0xff]
        %v646 = vld [vmem:[%s565 + $0x1d8] sm:$0xff]
        %v647 = vld [vmem:[%s565 + $0x1e0] sm:$0xff]
        %v648 = vld [vmem:[%s565 + $0x1e8] sm:$0xff]
        %v649 = vld [vmem:[%s565 + $0x1f0] sm:$0xff]
        %v650 = vld [vmem:[%s565 + $0x1f8] sm:$0xff]
        %v651 = vld [vmem:[%s565 + $0x200] sm:$0xff]
        %v652 = vld [vmem:[%s565 + $0x208] sm:$0xff]
        %v653 = vld [vmem:[%s565 + $0x210] sm:$0xff]
        %v654 = vld [vmem:[%s565 + $0x218] sm:$0xff]
        %v655 = vld [vmem:[%s565 + $0x220] sm:$0xff]
        %v656 = vld [vmem:[%s565 + $0x228] sm:$0xff]
        %v657 = vld [vmem:[%s565 + $0x230] sm:$0xff]
        %v658 = vld [vmem:[%s565 + $0x238] sm:$0xff]
        %v659 = vld [vmem:[%s565 + $0x240] sm:$0xff]
        %v660 = vld [vmem:[%s565 + $0x248] sm:$0xff]
        %v661 = vld [vmem:[%s565 + $0x250] sm:$0xff]
        %v662 = vld [vmem:[%s565 + $0x258] sm:$0xff]
        %v663 = vld [vmem:[%s565 + $0x260] sm:$0xff]
        %v664 = vld [vmem:[%s565 + $0x268] sm:$0xff]
        %v665 = vld [vmem:[%s565 + $0x270] sm:$0xff]
        %v666 = vld [vmem:[%s565 + $0x278] sm:$0xff]
        %v667 = vld [vmem:[%s565 + $0x280] sm:$0xff]
        %v668 = vld [vmem:[%s565 + $0x288] sm:$0xff]
        %v669 = vld [vmem:[%s565 + $0x290] sm:$0xff]
        %v670 = vld [vmem:[%s565 + $0x298] sm:$0xff]
        %v671 = vld [vmem:[%s565 + $0x2a0] sm:$0xff]
        %v672 = vld [vmem:[%s565 + $0x2a8] sm:$0xff]
        %v673 = vld [vmem:[%s565 + $0x2b0] sm:$0xff]
        %v674 = vld [vmem:[%s565 + $0x2b8] sm:$0xff]
        %v675 = vld [vmem:[%s565 + $0x2c0] sm:$0xff]
        %v676 = vld [vmem:[%s565 + $0x2c8] sm:$0xff]
        %v677 = vld [vmem:[%s565 + $0x2d0] sm:$0xff]
        %v678 = vld [vmem:[%s565 + $0x2d8] sm:$0xff]
        %v679 = vld [vmem:[%s565 + $0x2e0] sm:$0xff]
        %v680 = vld [vmem:[%s565 + $0x2e8] sm:$0xff]
        %v681 = vld [vmem:[%s565 + $0x2f0] sm:$0xff]
        %v682 = vld [vmem:[%s565 + $0x2f8] sm:$0xff]
        %v683 = vld [vmem:[%s565 + $0x300] sm:$0xff]
        %v684 = vld [vmem:[%s565 + $0x308] sm:$0xff]
        %v685 = vld [vmem:[%s565 + $0x310] sm:$0xff]
        %v686 = vld [vmem:[%s565 + $0x318] sm:$0xff]
        %v687 = vld [vmem:[%s565 + $0x320] sm:$0xff]
        %v688 = vld [vmem:[%s565 + $0x328] sm:$0xff]
        %v689 = vld [vmem:[%s565 + $0x330] sm:$0xff]
        %v690 = vld [vmem:[%s565 + $0x338] sm:$0xff]
        %v691 = vld [vmem:[%s565 + $0x340] sm:$0xff]
        %v692 = vld [vmem:[%s565 + $0x348] sm:$0xff]
        %v693 = vld [vmem:[%s565 + $0x350] sm:$0xff]
        %v694 = vld [vmem:[%s565 + $0x358] sm:$0xff]
        %v695 = vld [vmem:[%s565 + $0x360] sm:$0xff]
        %v696 = vld [vmem:[%s565 + $0x368] sm:$0xff]
        %v697 = vld [vmem:[%s565 + $0x370] sm:$0xff]
        %v698 = vld [vmem:[%s565 + $0x378] sm:$0xff]
        %v699 = vld [vmem:[%s565 + $0x380] sm:$0xff]
        %v700 = vld [vmem:[%s565 + $0x388] sm:$0xff]
        %v701 = vld [vmem:[%s565 + $0x390] sm:$0xff]
        %v702 = vld [vmem:[%s565 + $0x398] sm:$0xff]
        %v703 = vld [vmem:[%s565 + $0x3a0] sm:$0xff]
        %v704 = vld [vmem:[%s565 + $0x3a8] sm:$0xff]
        %v705 = vld [vmem:[%s565 + $0x3b0] sm:$0xff]
        %v706 = vld [vmem:[%s565 + $0x3b8] sm:$0xff]
        %v707 = vld [vmem:[%s565 + $0x3c0] sm:$0xff]
        %v708 = vld [vmem:[%s565 + $0x3c8] sm:$0xff]
        %v709 = vld [vmem:[%s565 + $0x3d0] sm:$0xff]
        %v710 = vld [vmem:[%s565 + $0x3d8] sm:$0xff]
        %v711 = vld [vmem:[%s565 + $0x3e0] sm:$0xff]
        %v712 = vld [vmem:[%s565 + $0x3e8] sm:$0xff]
        %v713 = vld [vmem:[%s565 + $0x3f0] sm:$0xff]
        %v714 = vld [vmem:[%s565 + $0x3f8] sm:$0xff]
        %v715 = vld [vmem:[%s565 + $0x400] sm:$0xff]
        %v716 = vld [vmem:[%s565 + $0x408] sm:$0xff]
        %v717 = vld [vmem:[%s565 + $0x410] sm:$0xff]
        %v718 = vld [vmem:[%s565 + $0x418] sm:$0xff]
        %v719 = vld [vmem:[%s565 + $0x420] sm:$0xff]
        %v720 = vld [vmem:[%s565 + $0x428] sm:$0xff]
        %v721 = vld [vmem:[%s565 + $0x430] sm:$0xff]
        %v722 = vld [vmem:[%s565 + $0x438] sm:$0xff]
        %v723 = vld [vmem:[%s565 + $0x440] sm:$0xff]
        %v724 = vld [vmem:[%s565 + $0x448] sm:$0xff]
        %v725 = vld [vmem:[%s565 + $0x450] sm:$0xff]
        %v726 = vld [vmem:[%s565 + $0x458] sm:$0xff]
        %v727 = vld [vmem:[%s565 + $0x460] sm:$0xff]
        %v728 = vld [vmem:[%s565 + $0x468] sm:$0xff]
        %v729 = vld [vmem:[%s565 + $0x470] sm:$0xff]
        %v730 = vld [vmem:[%s565 + $0x478] sm:$0xff]
        %v731 = vld [vmem:[%s565 + $0x480] sm:$0xff]
        %v732 = vld [vmem:[%s565 + $0x488] sm:$0xff]
        %v733 = vld [vmem:[%s565 + $0x490] sm:$0xff]
        %v734 = vld [vmem:[%s565 + $0x498] sm:$0xff]
        %v735 = vld [vmem:[%s565 + $0x4a0] sm:$0xff]
        %v736 = vld [vmem:[%s565 + $0x4a8] sm:$0xff]
        %v737 = vld [vmem:[%s565 + $0x4b0] sm:$0xff]
        %v738 = vld [vmem:[%s565 + $0x4b8] sm:$0xff]
        %v739 = vld [vmem:[%s565 + $0x4c0] sm:$0xff]
        %v740 = vld [vmem:[%s565 + $0x4c8] sm:$0xff]
        %v741 = vld [vmem:[%s565 + $0x4d0] sm:$0xff]
        %v742 = vld [vmem:[%s565 + $0x4d8] sm:$0xff]
        %v743 = vld [vmem:[%s565 + $0x4e0] sm:$0xff]
        %v744 = vld [vmem:[%s565 + $0x4e8] sm:$0xff]
        %v745 = vld [vmem:[%s565 + $0x4f0] sm:$0xff]
        %v746 = vld [vmem:[%s565 + $0x4f8] sm:$0xff]
        %v747 = vld [vmem:[%s565 + $0x500] sm:$0xff]
        %v748 = vld [vmem:[%s565 + $0x508] sm:$0xff]
        %v749 = vld [vmem:[%s565 + $0x510] sm:$0xff]
        %v750 = vld [vmem:[%s565 + $0x518] sm:$0xff]
        %v751 = vld [vmem:[%s565 + $0x520] sm:$0xff]
        %v752 = vld [vmem:[%s565 + $0x528] sm:$0xff]
        %v753 = vld [vmem:[%s565 + $0x530] sm:$0xff]
        %v754 = vld [vmem:[%s565 + $0x538] sm:$0xff]
        %v755 = vld [vmem:[%s565 + $0x540] sm:$0xff]
        %v756 = vld [vmem:[%s565 + $0x548] sm:$0xff]
        %v757 = vld [vmem:[%s565 + $0x550] sm:$0xff]
        %v758 = vld [vmem:[%s565 + $0x558] sm:$0xff]
        %v759 = vld [vmem:[%s565 + $0x560] sm:$0xff]
        %v760 = vld [vmem:[%s565 + $0x568] sm:$0xff]
        %v761 = vld [vmem:[%s565 + $0x570] sm:$0xff]
        %v762 = vld [vmem:[%s565 + $0x578] sm:$0xff]
        %v763 = vld [vmem:[%s565 + $0x580] sm:$0xff]
        %v764 = vld [vmem:[%s565 + $0x588] sm:$0xff]
        %v765 = vld [vmem:[%s565 + $0x590] sm:$0xff]
        %v766 = vld [vmem:[%s565 + $0x598] sm:$0xff]
        %v767 = vld [vmem:[%s565 + $0x5a0] sm:$0xff]
        %v768 = vld [vmem:[%s565 + $0x5a8] sm:$0xff]
        %v769 = vld [vmem:[%s565 + $0x5b0] sm:$0xff]
        %v770 = vld [vmem:[%s565 + $0x5b8] sm:$0xff]
        %v771 = vld [vmem:[%s565 + $0x5c0] sm:$0xff]
        %v772 = vld [vmem:[%s565 + $0x5c8] sm:$0xff]
        %v773 = vld [vmem:[%s565 + $0x5d0] sm:$0xff]
        %v774 = vld [vmem:[%s565 + $0x5d8] sm:$0xff]
        %v775 = vld [vmem:[%s565 + $0x5e0] sm:$0xff]
        %v776 = vld [vmem:[%s565 + $0x5e8] sm:$0xff]
        %v777 = vld [vmem:[%s565 + $0x5f0] sm:$0xff]
        %v778 = vld [vmem:[%s565 + $0x5f8] sm:$0xff]
        %v779 = vld [vmem:[%s1] sm:$0xff]
        %v780 = vld [vmem:[%s1 + $0x8] sm:$0xff]
        %v781 = vld [vmem:[%s1 + $0x10] sm:$0xff]
        %v782 = vld [vmem:[%s1 + $0x18] sm:$0xff]
        %v783 = vld [vmem:[%s1 + $0x20] sm:$0xff]
        %v784 = vld [vmem:[%s1 + $0x28] sm:$0xff]
        %v785 = vld [vmem:[%s1 + $0x30] sm:$0xff]
        %v786 = vld [vmem:[%s1 + $0x38] sm:$0xff]
        %v787 = vld [vmem:[%s1 + $0x40] sm:$0xff]
        %v788 = vld [vmem:[%s1 + $0x48] sm:$0xff]
        %v789 = vld [vmem:[%s1 + $0x50] sm:$0xff]
        %v790 = vld [vmem:[%s1 + $0x58] sm:$0xff]
        %v791 = vld [vmem:[%s1 + $0x60] sm:$0xff]
        %v792 = vld [vmem:[%s1 + $0x68] sm:$0xff]
        %v793 = vld [vmem:[%s1 + $0x70] sm:$0xff]
        %v794 = vld [vmem:[%s1 + $0x78] sm:$0xff]
        %v795 = vld [vmem:[%s1 + $0x80] sm:$0xff]
        %v796 = vld [vmem:[%s1 + $0x88] sm:$0xff]
        %v797 = vld [vmem:[%s1 + $0x90] sm:$0xff]
        %v798 = vld [vmem:[%s1 + $0x98] sm:$0xff]
        %v799 = vld [vmem:[%s1 + $0xa0] sm:$0xff]
        %v800 = vld [vmem:[%s1 + $0xa8] sm:$0xff]
        %v801 = vld [vmem:[%s1 + $0xb0] sm:$0xff]
        %v802 = vld [vmem:[%s1 + $0xb8] sm:$0xff]
        %v803 = vld [vmem:[%s1 + $0xc0] sm:$0xff]
        %v804 = vld [vmem:[%s1 + $0xc8] sm:$0xff]
        %v805 = vld [vmem:[%s1 + $0xd0] sm:$0xff]
        %v806 = vld [vmem:[%s1 + $0xd8] sm:$0xff]
        %v807 = vld [vmem:[%s1 + $0xe0] sm:$0xff]
        %v808 = vld [vmem:[%s1 + $0xe8] sm:$0xff]
        %v809 = vld [vmem:[%s1 + $0xf0] sm:$0xff]
        %v810 = vld [vmem:[%s1 + $0xf8] sm:$0xff]
        %v811 = vld [vmem:[%s1 + $0x100] sm:$0xff]
        %v812 = vld [vmem:[%s1 + $0x108] sm:$0xff]
        %v813 = vld [vmem:[%s1 + $0x110] sm:$0xff]
        %v814 = vld [vmem:[%s1 + $0x118] sm:$0xff]
        %v815 = vld [vmem:[%s1 + $0x120] sm:$0xff]
        %v816 = vld [vmem:[%s1 + $0x128] sm:$0xff]
        %v817 = vld [vmem:[%s1 + $0x130] sm:$0xff]
        %v818 = vld [vmem:[%s1 + $0x138] sm:$0xff]
        %v819 = vld [vmem:[%s1 + $0x140] sm:$0xff]
        %v820 = vld [vmem:[%s1 + $0x148] sm:$0xff]
        %v821 = vld [vmem:[%s1 + $0x150] sm:$0xff]
        %v822 = vld [vmem:[%s1 + $0x158] sm:$0xff]
        %v823 = vld [vmem:[%s1 + $0x160] sm:$0xff]
        %v824 = vld [vmem:[%s1 + $0x168] sm:$0xff]
        %v825 = vld [vmem:[%s1 + $0x170] sm:$0xff]
        %v826 = vld [vmem:[%s1 + $0x178] sm:$0xff]
        %v827 = vld [vmem:[%s1 + $0x180] sm:$0xff]
        %v828 = vld [vmem:[%s1 + $0x188] sm:$0xff]
        %v829 = vld [vmem:[%s1 + $0x190] sm:$0xff]
        %v830 = vld [vmem:[%s1 + $0x198] sm:$0xff]
        %v831 = vld [vmem:[%s1 + $0x1a0] sm:$0xff]
        %v832 = vld [vmem:[%s1 + $0x1a8] sm:$0xff]
        %v833 = vld [vmem:[%s1 + $0x1b0] sm:$0xff]
        %v834 = vld [vmem:[%s1 + $0x1b8] sm:$0xff]
        %v835 = vld [vmem:[%s1 + $0x1c0] sm:$0xff]
        %v836 = vld [vmem:[%s1 + $0x1c8] sm:$0xff]
        %v837 = vld [vmem:[%s1 + $0x1d0] sm:$0xff]
        %v838 = vld [vmem:[%s1 + $0x1d8] sm:$0xff]
        %v839 = vld [vmem:[%s1 + $0x1e0] sm:$0xff]
        %v840 = vld [vmem:[%s1 + $0x1e8] sm:$0xff]
        %v841 = vld [vmem:[%s1 + $0x1f0] sm:$0xff]
        %v842 = vld [vmem:[%s1 + $0x1f8] sm:$0xff]
        %v843 = vld [vmem:[%s1 + $0x200] sm:$0xff]
        %v844 = vld [vmem:[%s1 + $0x208] sm:$0xff]
        %v845 = vld [vmem:[%s1 + $0x210] sm:$0xff]
        %v846 = vld [vmem:[%s1 + $0x218] sm:$0xff]
        %v847 = vld [vmem:[%s1 + $0x220] sm:$0xff]
        %v848 = vld [vmem:[%s1 + $0x228] sm:$0xff]
        %v849 = vld [vmem:[%s1 + $0x230] sm:$0xff]
        %v850 = vld [vmem:[%s1 + $0x238] sm:$0xff]
        %v851 = vld [vmem:[%s1 + $0x240] sm:$0xff]
        %v852 = vld [vmem:[%s1 + $0x248] sm:$0xff]
        %v853 = vld [vmem:[%s1 + $0x250] sm:$0xff]
        %v854 = vld [vmem:[%s1 + $0x258] sm:$0xff]
        %v855 = vld [vmem:[%s1 + $0x260] sm:$0xff]
        %v856 = vld [vmem:[%s1 + $0x268] sm:$0xff]
        %v857 = vld [vmem:[%s1 + $0x270] sm:$0xff]
        %v858 = vld [vmem:[%s1 + $0x278] sm:$0xff]
        %v859 = vld [vmem:[%s1 + $0x280] sm:$0xff]
        %v860 = vld [vmem:[%s1 + $0x288] sm:$0xff]
        %v861 = vld [vmem:[%s1 + $0x290] sm:$0xff]
        %v862 = vld [vmem:[%s1 + $0x298] sm:$0xff]
        %v863 = vld [vmem:[%s1 + $0x2a0] sm:$0xff]
        %v864 = vld [vmem:[%s1 + $0x2a8] sm:$0xff]
        %v865 = vld [vmem:[%s1 + $0x2b0] sm:$0xff]
        %v866 = vld [vmem:[%s1 + $0x2b8] sm:$0xff]
        %v867 = vld [vmem:[%s1 + $0x2c0] sm:$0xff]
        %v868 = vld [vmem:[%s1 + $0x2c8] sm:$0xff]
        %v869 = vld [vmem:[%s1 + $0x2d0] sm:$0xff]
        %v870 = vld [vmem:[%s1 + $0x2d8] sm:$0xff]
        %v871 = vld [vmem:[%s1 + $0x2e0] sm:$0xff]
        %v872 = vld [vmem:[%s1 + $0x2e8] sm:$0xff]
        %v873 = vld [vmem:[%s1 + $0x2f0] sm:$0xff]
        %v874 = vld [vmem:[%s1 + $0x2f8] sm:$0xff]
        %876 = vset.pattern.permute.xlu0 0
        %877 = vperm.xlu0 %876, %v779
        %v878 = vpop.permute.xlu0 %877
        %881 = vset.pattern.permute.xlu0 0
        %882 = vperm.xlu0 %881, %v780
        %v883 = vpop.permute.xlu0 %882
        %886 = vset.pattern.permute.xlu0 0
        %887 = vperm.xlu0 %886, %v781
        %v888 = vpop.permute.xlu0 %887
        %891 = vset.pattern.permute.xlu0 0
        %892 = vperm.xlu0 %891, %v782
        %v893 = vpop.permute.xlu0 %892
        %896 = vset.pattern.permute.xlu0 0
        %897 = vperm.xlu0 %896, %v783
        %v898 = vpop.permute.xlu0 %897
        %901 = vset.pattern.permute.xlu0 0
        %902 = vperm.xlu0 %901, %v784
        %v903 = vpop.permute.xlu0 %902
        %906 = vset.pattern.permute.xlu0 0
        %907 = vperm.xlu0 %906, %v785
        %v908 = vpop.permute.xlu0 %907
        %911 = vset.pattern.permute.xlu0 0
        %912 = vperm.xlu0 %911, %v786
        %v913 = vpop.permute.xlu0 %912
        %916 = vset.pattern.permute.xlu0 0
        %917 = vperm.xlu0 %916, %v787
        %v918 = vpop.permute.xlu0 %917
        %921 = vset.pattern.permute.xlu0 0
        %922 = vperm.xlu0 %921, %v788
        %v923 = vpop.permute.xlu0 %922
        %926 = vset.pattern.permute.xlu0 0
        %927 = vperm.xlu0 %926, %v789
        %v928 = vpop.permute.xlu0 %927
        %931 = vset.pattern.permute.xlu0 0
        %932 = vperm.xlu0 %931, %v790
        %v933 = vpop.permute.xlu0 %932
        %936 = vset.pattern.permute.xlu0 0
        %937 = vperm.xlu0 %936, %v791
        %v938 = vpop.permute.xlu0 %937
        %941 = vset.pattern.permute.xlu0 0
        %942 = vperm.xlu0 %941, %v792
        %v943 = vpop.permute.xlu0 %942
        %946 = vset.pattern.permute.xlu0 0
        %947 = vperm.xlu0 %946, %v793
        %v948 = vpop.permute.xlu0 %947
        %951 = vset.pattern.permute.xlu0 0
        %952 = vperm.xlu0 %951, %v794
        %v953 = vpop.permute.xlu0 %952
        %956 = vset.pattern.permute.xlu0 0
        %957 = vperm.xlu0 %956, %v795
        %v958 = vpop.permute.xlu0 %957
        %961 = vset.pattern.permute.xlu0 0
        %962 = vperm.xlu0 %961, %v796
        %v963 = vpop.permute.xlu0 %962
        %966 = vset.pattern.permute.xlu0 0
        %967 = vperm.xlu0 %966, %v797
        %v968 = vpop.permute.xlu0 %967
        %971 = vset.pattern.permute.xlu0 0
        %972 = vperm.xlu0 %971, %v798
        %v973 = vpop.permute.xlu0 %972
        %976 = vset.pattern.permute.xlu0 0
        %977 = vperm.xlu0 %976, %v799
        %v978 = vpop.permute.xlu0 %977
        %981 = vset.pattern.permute.xlu0 0
        %982 = vperm.xlu0 %981, %v800
        %v983 = vpop.permute.xlu0 %982
        %986 = vset.pattern.permute.xlu0 0
        %987 = vperm.xlu0 %986, %v801
        %v988 = vpop.permute.xlu0 %987
        %991 = vset.pattern.permute.xlu0 0
        %992 = vperm.xlu0 %991, %v802
        %v993 = vpop.permute.xlu0 %992
        %996 = vset.pattern.permute.xlu0 0
        %997 = vperm.xlu0 %996, %v803
        %v998 = vpop.permute.xlu0 %997
        %1001 = vset.pattern.permute.xlu0 0
        %1002 = vperm.xlu0 %1001, %v804
        %v1003 = vpop.permute.xlu0 %1002
        %1006 = vset.pattern.permute.xlu0 0
        %1007 = vperm.xlu0 %1006, %v805
        %v1008 = vpop.permute.xlu0 %1007
        %1011 = vset.pattern.permute.xlu0 0
        %1012 = vperm.xlu0 %1011, %v806
        %v1013 = vpop.permute.xlu0 %1012
        %1016 = vset.pattern.permute.xlu0 0
        %1017 = vperm.xlu0 %1016, %v807
        %v1018 = vpop.permute.xlu0 %1017
        %1021 = vset.pattern.permute.xlu0 0
        %1022 = vperm.xlu0 %1021, %v808
        %v1023 = vpop.permute.xlu0 %1022
        %1026 = vset.pattern.permute.xlu0 0
        %1027 = vperm.xlu0 %1026, %v809
        %v1028 = vpop.permute.xlu0 %1027
        %1031 = vset.pattern.permute.xlu0 0
        %1032 = vperm.xlu0 %1031, %v810
        %v1033 = vpop.permute.xlu0 %1032
        %1036 = vset.pattern.permute.xlu0 0
        %1037 = vperm.xlu0 %1036, %v811
        %v1038 = vpop.permute.xlu0 %1037
        %1041 = vset.pattern.permute.xlu0 0
        %1042 = vperm.xlu0 %1041, %v812
        %v1043 = vpop.permute.xlu0 %1042
        %1046 = vset.pattern.permute.xlu0 0
        %1047 = vperm.xlu0 %1046, %v813
        %v1048 = vpop.permute.xlu0 %1047
        %1051 = vset.pattern.permute.xlu0 0
        %1052 = vperm.xlu0 %1051, %v814
        %v1053 = vpop.permute.xlu0 %1052
        %1056 = vset.pattern.permute.xlu0 0
        %1057 = vperm.xlu0 %1056, %v815
        %v1058 = vpop.permute.xlu0 %1057
        %1061 = vset.pattern.permute.xlu0 0
        %1062 = vperm.xlu0 %1061, %v816
        %v1063 = vpop.permute.xlu0 %1062
        %1066 = vset.pattern.permute.xlu0 0
        %1067 = vperm.xlu0 %1066, %v817
        %v1068 = vpop.permute.xlu0 %1067
        %1071 = vset.pattern.permute.xlu0 0
        %1072 = vperm.xlu0 %1071, %v818
        %v1073 = vpop.permute.xlu0 %1072
        %1076 = vset.pattern.permute.xlu0 0
        %1077 = vperm.xlu0 %1076, %v819
        %v1078 = vpop.permute.xlu0 %1077
        %1081 = vset.pattern.permute.xlu0 0
        %1082 = vperm.xlu0 %1081, %v820
        %v1083 = vpop.permute.xlu0 %1082
        %1086 = vset.pattern.permute.xlu0 0
        %1087 = vperm.xlu0 %1086, %v821
        %v1088 = vpop.permute.xlu0 %1087
        %1091 = vset.pattern.permute.xlu0 0
        %1092 = vperm.xlu0 %1091, %v822
        %v1093 = vpop.permute.xlu0 %1092
        %1096 = vset.pattern.permute.xlu0 0
        %1097 = vperm.xlu0 %1096, %v823
        %v1098 = vpop.permute.xlu0 %1097
        %1101 = vset.pattern.permute.xlu0 0
        %1102 = vperm.xlu0 %1101, %v824
        %v1103 = vpop.permute.xlu0 %1102
        %1106 = vset.pattern.permute.xlu0 0
        %1107 = vperm.xlu0 %1106, %v825
        %v1108 = vpop.permute.xlu0 %1107
        %1111 = vset.pattern.permute.xlu0 0
        %1112 = vperm.xlu0 %1111, %v826
        %v1113 = vpop.permute.xlu0 %1112
        %1116 = vset.pattern.permute.xlu0 0
        %1117 = vperm.xlu0 %1116, %v827
        %v1118 = vpop.permute.xlu0 %1117
        %1121 = vset.pattern.permute.xlu0 0
        %1122 = vperm.xlu0 %1121, %v828
        %v1123 = vpop.permute.xlu0 %1122
        %1126 = vset.pattern.permute.xlu0 0
        %1127 = vperm.xlu0 %1126, %v829
        %v1128 = vpop.permute.xlu0 %1127
        %1131 = vset.pattern.permute.xlu0 0
        %1132 = vperm.xlu0 %1131, %v830
        %v1133 = vpop.permute.xlu0 %1132
        %1136 = vset.pattern.permute.xlu0 0
        %1137 = vperm.xlu0 %1136, %v831
        %v1138 = vpop.permute.xlu0 %1137
        %1141 = vset.pattern.permute.xlu0 0
        %1142 = vperm.xlu0 %1141, %v832
        %v1143 = vpop.permute.xlu0 %1142
        %1146 = vset.pattern.permute.xlu0 0
        %1147 = vperm.xlu0 %1146, %v833
        %v1148 = vpop.permute.xlu0 %1147
        %1151 = vset.pattern.permute.xlu0 0
        %1152 = vperm.xlu0 %1151, %v834
        %v1153 = vpop.permute.xlu0 %1152
        %1156 = vset.pattern.permute.xlu0 0
        %1157 = vperm.xlu0 %1156, %v835
        %v1158 = vpop.permute.xlu0 %1157
        %1161 = vset.pattern.permute.xlu0 0
        %1162 = vperm.xlu0 %1161, %v836
        %v1163 = vpop.permute.xlu0 %1162
        %1166 = vset.pattern.permute.xlu0 0
        %1167 = vperm.xlu0 %1166, %v837
        %v1168 = vpop.permute.xlu0 %1167
        %1171 = vset.pattern.permute.xlu0 0
        %1172 = vperm.xlu0 %1171, %v838
        %v1173 = vpop.permute.xlu0 %1172
        %1176 = vset.pattern.permute.xlu0 0
        %1177 = vperm.xlu0 %1176, %v839
        %v1178 = vpop.permute.xlu0 %1177
        %1181 = vset.pattern.permute.xlu0 0
        %1182 = vperm.xlu0 %1181, %v840
        %v1183 = vpop.permute.xlu0 %1182
        %1186 = vset.pattern.permute.xlu0 0
        %1187 = vperm.xlu0 %1186, %v841
        %v1188 = vpop.permute.xlu0 %1187
        %1191 = vset.pattern.permute.xlu0 0
        %1192 = vperm.xlu0 %1191, %v842
        %v1193 = vpop.permute.xlu0 %1192
        %1196 = vset.pattern.permute.xlu0 0
        %1197 = vperm.xlu0 %1196, %v843
        %v1198 = vpop.permute.xlu0 %1197
        %1201 = vset.pattern.permute.xlu0 0
        %1202 = vperm.xlu0 %1201, %v844
        %v1203 = vpop.permute.xlu0 %1202
        %1206 = vset.pattern.permute.xlu0 0
        %1207 = vperm.xlu0 %1206, %v845
        %v1208 = vpop.permute.xlu0 %1207
        %1211 = vset.pattern.permute.xlu0 0
        %1212 = vperm.xlu0 %1211, %v846
        %v1213 = vpop.permute.xlu0 %1212
        %1216 = vset.pattern.permute.xlu0 0
        %1217 = vperm.xlu0 %1216, %v847
        %v1218 = vpop.permute.xlu0 %1217
        %1221 = vset.pattern.permute.xlu0 0
        %1222 = vperm.xlu0 %1221, %v848
        %v1223 = vpop.permute.xlu0 %1222
        %1226 = vset.pattern.permute.xlu0 0
        %1227 = vperm.xlu0 %1226, %v849
        %v1228 = vpop.permute.xlu0 %1227
        %1231 = vset.pattern.permute.xlu0 0
        %1232 = vperm.xlu0 %1231, %v850
        %v1233 = vpop.permute.xlu0 %1232
        %1236 = vset.pattern.permute.xlu0 0
        %1237 = vperm.xlu0 %1236, %v851
        %v1238 = vpop.permute.xlu0 %1237
        %1241 = vset.pattern.permute.xlu0 0
        %1242 = vperm.xlu0 %1241, %v852
        %v1243 = vpop.permute.xlu0 %1242
        %1246 = vset.pattern.permute.xlu0 0
        %1247 = vperm.xlu0 %1246, %v853
        %v1248 = vpop.permute.xlu0 %1247
        %1251 = vset.pattern.permute.xlu0 0
        %1252 = vperm.xlu0 %1251, %v854
        %v1253 = vpop.permute.xlu0 %1252
        %1256 = vset.pattern.permute.xlu0 0
        %1257 = vperm.xlu0 %1256, %v855
        %v1258 = vpop.permute.xlu0 %1257
        %1261 = vset.pattern.permute.xlu0 0
        %1262 = vperm.xlu0 %1261, %v856
        %v1263 = vpop.permute.xlu0 %1262
        %1266 = vset.pattern.permute.xlu0 0
        %1267 = vperm.xlu0 %1266, %v857
        %v1268 = vpop.permute.xlu0 %1267
        %1271 = vset.pattern.permute.xlu0 0
        %1272 = vperm.xlu0 %1271, %v858
        %v1273 = vpop.permute.xlu0 %1272
        %1276 = vset.pattern.permute.xlu0 0
        %1277 = vperm.xlu0 %1276, %v859
        %v1278 = vpop.permute.xlu0 %1277
        %1281 = vset.pattern.permute.xlu0 0
        %1282 = vperm.xlu0 %1281, %v860
        %v1283 = vpop.permute.xlu0 %1282
        %1286 = vset.pattern.permute.xlu0 0
        %1287 = vperm.xlu0 %1286, %v861
        %v1288 = vpop.permute.xlu0 %1287
        %1291 = vset.pattern.permute.xlu0 0
        %1292 = vperm.xlu0 %1291, %v862
        %v1293 = vpop.permute.xlu0 %1292
        %1296 = vset.pattern.permute.xlu0 0
        %1297 = vperm.xlu0 %1296, %v863
        %v1298 = vpop.permute.xlu0 %1297
        %1301 = vset.pattern.permute.xlu0 0
        %1302 = vperm.xlu0 %1301, %v864
        %v1303 = vpop.permute.xlu0 %1302
        %1306 = vset.pattern.permute.xlu0 0
        %1307 = vperm.xlu0 %1306, %v865
        %v1308 = vpop.permute.xlu0 %1307
        %1311 = vset.pattern.permute.xlu0 0
        %1312 = vperm.xlu0 %1311, %v866
        %v1313 = vpop.permute.xlu0 %1312
        %1316 = vset.pattern.permute.xlu0 0
        %1317 = vperm.xlu0 %1316, %v867
        %v1318 = vpop.permute.xlu0 %1317
        %1321 = vset.pattern.permute.xlu0 0
        %1322 = vperm.xlu0 %1321, %v868
        %v1323 = vpop.permute.xlu0 %1322
        %1326 = vset.pattern.permute.xlu0 0
        %1327 = vperm.xlu0 %1326, %v869
        %v1328 = vpop.permute.xlu0 %1327
        %1331 = vset.pattern.permute.xlu0 0
        %1332 = vperm.xlu0 %1331, %v870
        %v1333 = vpop.permute.xlu0 %1332
        %1336 = vset.pattern.permute.xlu0 0
        %1337 = vperm.xlu0 %1336, %v871
        %v1338 = vpop.permute.xlu0 %1337
        %1341 = vset.pattern.permute.xlu0 0
        %1342 = vperm.xlu0 %1341, %v872
        %v1343 = vpop.permute.xlu0 %1342
        %1346 = vset.pattern.permute.xlu0 0
        %1347 = vperm.xlu0 %1346, %v873
        %v1348 = vpop.permute.xlu0 %1347
        %1351 = vset.pattern.permute.xlu0 0
        %1352 = vperm.xlu0 %1351, %v874
        %v1353 = vpop.permute.xlu0 %1352
        %v1355 = vmul.f32 %v587, %v878
        %v1356 = vmul.f32 %v588, %v878
        %v1357 = vmul.f32 %v589, %v883
        %v1358 = vmul.f32 %v590, %v883
        %v1359 = vmul.f32 %v591, %v888
        %v1360 = vmul.f32 %v592, %v888
        %v1361 = vmul.f32 %v593, %v893
        %v1362 = vmul.f32 %v594, %v893
        %v1363 = vmul.f32 %v595, %v898
        %v1364 = vmul.f32 %v596, %v898
        %v1365 = vmul.f32 %v597, %v903
        %v1366 = vmul.f32 %v598, %v903
        %v1367 = vmul.f32 %v599, %v908
        %v1368 = vmul.f32 %v600, %v908
        %v1369 = vmul.f32 %v601, %v913
        %v1370 = vmul.f32 %v602, %v913
        %v1371 = vmul.f32 %v603, %v918
        %v1372 = vmul.f32 %v604, %v918
        %v1373 = vmul.f32 %v605, %v923
        %v1374 = vmul.f32 %v606, %v923
        %v1375 = vmul.f32 %v607, %v928
        %v1376 = vmul.f32 %v608, %v928
        %v1377 = vmul.f32 %v609, %v933
        %v1378 = vmul.f32 %v610, %v933
        %v1379 = vmul.f32 %v611, %v938
        %v1380 = vmul.f32 %v612, %v938
        %v1381 = vmul.f32 %v613, %v943
        %v1382 = vmul.f32 %v614, %v943
        %v1383 = vmul.f32 %v615, %v948
        %v1384 = vmul.f32 %v616, %v948
        %v1385 = vmul.f32 %v617, %v953
        %v1386 = vmul.f32 %v618, %v953
        %v1387 = vmul.f32 %v619, %v958
        %v1388 = vmul.f32 %v620, %v958
        %v1389 = vmul.f32 %v621, %v963
        %v1390 = vmul.f32 %v622, %v963
        %v1391 = vmul.f32 %v623, %v968
        %v1392 = vmul.f32 %v624, %v968
        %v1393 = vmul.f32 %v625, %v973
        %v1394 = vmul.f32 %v626, %v973
        %v1395 = vmul.f32 %v627, %v978
        %v1396 = vmul.f32 %v628, %v978
        %v1397 = vmul.f32 %v629, %v983
        %v1398 = vmul.f32 %v630, %v983
        %v1399 = vmul.f32 %v631, %v988
        %v1400 = vmul.f32 %v632, %v988
        %v1401 = vmul.f32 %v633, %v993
        %v1402 = vmul.f32 %v634, %v993
        %v1403 = vmul.f32 %v635, %v998
        %v1404 = vmul.f32 %v636, %v998
        %v1405 = vmul.f32 %v637, %v1003
        %v1406 = vmul.f32 %v638, %v1003
        %v1407 = vmul.f32 %v639, %v1008
        %v1408 = vmul.f32 %v640, %v1008
        %v1409 = vmul.f32 %v641, %v1013
        %v1410 = vmul.f32 %v642, %v1013
        %v1411 = vmul.f32 %v643, %v1018
        %v1412 = vmul.f32 %v644, %v1018
        %v1413 = vmul.f32 %v645, %v1023
        %v1414 = vmul.f32 %v646, %v1023
        %v1415 = vmul.f32 %v647, %v1028
        %v1416 = vmul.f32 %v648, %v1028
        %v1417 = vmul.f32 %v649, %v1033
        %v1418 = vmul.f32 %v650, %v1033
        %v1419 = vmul.f32 %v651, %v1038
        %v1420 = vmul.f32 %v652, %v1038
        %v1421 = vmul.f32 %v653, %v1043
        %v1422 = vmul.f32 %v654, %v1043
        %v1423 = vmul.f32 %v655, %v1048
        %v1424 = vmul.f32 %v656, %v1048
        %v1425 = vmul.f32 %v657, %v1053
        %v1426 = vmul.f32 %v658, %v1053
        %v1427 = vmul.f32 %v659, %v1058
        %v1428 = vmul.f32 %v660, %v1058
        %v1429 = vmul.f32 %v661, %v1063
        %v1430 = vmul.f32 %v662, %v1063
        %v1431 = vmul.f32 %v663, %v1068
        %v1432 = vmul.f32 %v664, %v1068
        %v1433 = vmul.f32 %v665, %v1073
        %v1434 = vmul.f32 %v666, %v1073
        %v1435 = vmul.f32 %v667, %v1078
        %v1436 = vmul.f32 %v668, %v1078
        %v1437 = vmul.f32 %v669, %v1083
        %v1438 = vmul.f32 %v670, %v1083
        %v1439 = vmul.f32 %v671, %v1088
        %v1440 = vmul.f32 %v672, %v1088
        %v1441 = vmul.f32 %v673, %v1093
        %v1442 = vmul.f32 %v674, %v1093
        %v1443 = vmul.f32 %v675, %v1098
        %v1444 = vmul.f32 %v676, %v1098
        %v1445 = vmul.f32 %v677, %v1103
        %v1446 = vmul.f32 %v678, %v1103
        %v1447 = vmul.f32 %v679, %v1108
        %v1448 = vmul.f32 %v680, %v1108
        %v1449 = vmul.f32 %v681, %v1113
        %v1450 = vmul.f32 %v682, %v1113
        %v1451 = vmul.f32 %v683, %v1118
        %v1452 = vmul.f32 %v684, %v1118
        %v1453 = vmul.f32 %v685, %v1123
        %v1454 = vmul.f32 %v686, %v1123
        %v1455 = vmul.f32 %v687, %v1128
        %v1456 = vmul.f32 %v688, %v1128
        %v1457 = vmul.f32 %v689, %v1133
        %v1458 = vmul.f32 %v690, %v1133
        %v1459 = vmul.f32 %v691, %v1138
        %v1460 = vmul.f32 %v692, %v1138
        %v1461 = vmul.f32 %v693, %v1143
        %v1462 = vmul.f32 %v694, %v1143
        %v1463 = vmul.f32 %v695, %v1148
        %v1464 = vmul.f32 %v696, %v1148
        %v1465 = vmul.f32 %v697, %v1153
        %v1466 = vmul.f32 %v698, %v1153
        %v1467 = vmul.f32 %v699, %v1158
        %v1468 = vmul.f32 %v700, %v1158
        %v1469 = vmul.f32 %v701, %v1163
        %v1470 = vmul.f32 %v702, %v1163
        %v1471 = vmul.f32 %v703, %v1168
        %v1472 = vmul.f32 %v704, %v1168
        %v1473 = vmul.f32 %v705, %v1173
        %v1474 = vmul.f32 %v706, %v1173
        %v1475 = vmul.f32 %v707, %v1178
        %v1476 = vmul.f32 %v708, %v1178
        %v1477 = vmul.f32 %v709, %v1183
        %v1478 = vmul.f32 %v710, %v1183
        %v1479 = vmul.f32 %v711, %v1188
        %v1480 = vmul.f32 %v712, %v1188
        %v1481 = vmul.f32 %v713, %v1193
        %v1482 = vmul.f32 %v714, %v1193
        %v1483 = vmul.f32 %v715, %v1198
        %v1484 = vmul.f32 %v716, %v1198
        %v1485 = vmul.f32 %v717, %v1203
        %v1486 = vmul.f32 %v718, %v1203
        %v1487 = vmul.f32 %v719, %v1208
        %v1488 = vmul.f32 %v720, %v1208
        %v1489 = vmul.f32 %v721, %v1213
        %v1490 = vmul.f32 %v722, %v1213
        %v1491 = vmul.f32 %v723, %v1218
        %v1492 = vmul.f32 %v724, %v1218
        %v1493 = vmul.f32 %v725, %v1223
        %v1494 = vmul.f32 %v726, %v1223
        %v1495 = vmul.f32 %v727, %v1228
        %v1496 = vmul.f32 %v728, %v1228
        %v1497 = vmul.f32 %v729, %v1233
        %v1498 = vmul.f32 %v730, %v1233
        %v1499 = vmul.f32 %v731, %v1238
        %v1500 = vmul.f32 %v732, %v1238
        %v1501 = vmul.f32 %v733, %v1243
        %v1502 = vmul.f32 %v734, %v1243
        %v1503 = vmul.f32 %v735, %v1248
        %v1504 = vmul.f32 %v736, %v1248
        %v1505 = vmul.f32 %v737, %v1253
        %v1506 = vmul.f32 %v738, %v1253
        %v1507 = vmul.f32 %v739, %v1258
        %v1508 = vmul.f32 %v740, %v1258
        %v1509 = vmul.f32 %v741, %v1263
        %v1510 = vmul.f32 %v742, %v1263
        %v1511 = vmul.f32 %v743, %v1268
        %v1512 = vmul.f32 %v744, %v1268
        %v1513 = vmul.f32 %v745, %v1273
        %v1514 = vmul.f32 %v746, %v1273
        %v1515 = vmul.f32 %v747, %v1278
        %v1516 = vmul.f32 %v748, %v1278
        %v1517 = vmul.f32 %v749, %v1283
        %v1518 = vmul.f32 %v750, %v1283
        %v1519 = vmul.f32 %v751, %v1288
        %v1520 = vmul.f32 %v752, %v1288
        %v1521 = vmul.f32 %v753, %v1293
        %v1522 = vmul.f32 %v754, %v1293
        %v1523 = vmul.f32 %v755, %v1298
        %v1524 = vmul.f32 %v756, %v1298
        %v1525 = vmul.f32 %v757, %v1303
        %v1526 = vmul.f32 %v758, %v1303
        %v1527 = vmul.f32 %v759, %v1308
        %v1528 = vmul.f32 %v760, %v1308
        %v1529 = vmul.f32 %v761, %v1313
        %v1530 = vmul.f32 %v762, %v1313
        %v1531 = vmul.f32 %v763, %v1318
        %v1532 = vmul.f32 %v764, %v1318
        %v1533 = vmul.f32 %v765, %v1323
        %v1534 = vmul.f32 %v766, %v1323
        %v1535 = vmul.f32 %v767, %v1328
        %v1536 = vmul.f32 %v768, %v1328
        %v1537 = vmul.f32 %v769, %v1333
        %v1538 = vmul.f32 %v770, %v1333
        %v1539 = vmul.f32 %v771, %v1338
        %v1540 = vmul.f32 %v772, %v1338
        %v1541 = vmul.f32 %v773, %v1343
        %v1542 = vmul.f32 %v774, %v1343
        %v1543 = vmul.f32 %v775, %v1348
        %v1544 = vmul.f32 %v776, %v1348
        %v1545 = vmul.f32 %v777, %v1353
        %v1546 = vmul.f32 %v778, %v1353
        %v1547 = vld [vmem:[%s2] sm:$0xff]
        %v1548 = vld [vmem:[%s2 + $0x8] sm:$0xff]
        %v1549 = vld [vmem:[%s2 + $0x10] sm:$0xff]
        %v1550 = vld [vmem:[%s2 + $0x18] sm:$0xff]
        %v1551 = vld [vmem:[%s2 + $0x20] sm:$0xff]
        %v1552 = vld [vmem:[%s2 + $0x28] sm:$0xff]
        %v1553 = vld [vmem:[%s2 + $0x30] sm:$0xff]
        %v1554 = vld [vmem:[%s2 + $0x38] sm:$0xff]
        %v1555 = vld [vmem:[%s2 + $0x40] sm:$0xff]
        %v1556 = vld [vmem:[%s2 + $0x48] sm:$0xff]
        %v1557 = vld [vmem:[%s2 + $0x50] sm:$0xff]
        %v1558 = vld [vmem:[%s2 + $0x58] sm:$0xff]
        %v1559 = vld [vmem:[%s2 + $0x60] sm:$0xff]
        %v1560 = vld [vmem:[%s2 + $0x68] sm:$0xff]
        %v1561 = vld [vmem:[%s2 + $0x70] sm:$0xff]
        %v1562 = vld [vmem:[%s2 + $0x78] sm:$0xff]
        %v1563 = vld [vmem:[%s2 + $0x80] sm:$0xff]
        %v1564 = vld [vmem:[%s2 + $0x88] sm:$0xff]
        %v1565 = vld [vmem:[%s2 + $0x90] sm:$0xff]
        %v1566 = vld [vmem:[%s2 + $0x98] sm:$0xff]
        %v1567 = vld [vmem:[%s2 + $0xa0] sm:$0xff]
        %v1568 = vld [vmem:[%s2 + $0xa8] sm:$0xff]
        %v1569 = vld [vmem:[%s2 + $0xb0] sm:$0xff]
        %v1570 = vld [vmem:[%s2 + $0xb8] sm:$0xff]
        %v1571 = vld [vmem:[%s2 + $0xc0] sm:$0xff]
        %v1572 = vld [vmem:[%s2 + $0xc8] sm:$0xff]
        %v1573 = vld [vmem:[%s2 + $0xd0] sm:$0xff]
        %v1574 = vld [vmem:[%s2 + $0xd8] sm:$0xff]
        %v1575 = vld [vmem:[%s2 + $0xe0] sm:$0xff]
        %v1576 = vld [vmem:[%s2 + $0xe8] sm:$0xff]
        %v1577 = vld [vmem:[%s2 + $0xf0] sm:$0xff]
        %v1578 = vld [vmem:[%s2 + $0xf8] sm:$0xff]
        %v1579 = vld [vmem:[%s2 + $0x100] sm:$0xff]
        %v1580 = vld [vmem:[%s2 + $0x108] sm:$0xff]
        %v1581 = vld [vmem:[%s2 + $0x110] sm:$0xff]
        %v1582 = vld [vmem:[%s2 + $0x118] sm:$0xff]
        %v1583 = vld [vmem:[%s2 + $0x120] sm:$0xff]
        %v1584 = vld [vmem:[%s2 + $0x128] sm:$0xff]
        %v1585 = vld [vmem:[%s2 + $0x130] sm:$0xff]
        %v1586 = vld [vmem:[%s2 + $0x138] sm:$0xff]
        %v1587 = vld [vmem:[%s2 + $0x140] sm:$0xff]
        %v1588 = vld [vmem:[%s2 + $0x148] sm:$0xff]
        %v1589 = vld [vmem:[%s2 + $0x150] sm:$0xff]
        %v1590 = vld [vmem:[%s2 + $0x158] sm:$0xff]
        %v1591 = vld [vmem:[%s2 + $0x160] sm:$0xff]
        %v1592 = vld [vmem:[%s2 + $0x168] sm:$0xff]
        %v1593 = vld [vmem:[%s2 + $0x170] sm:$0xff]
        %v1594 = vld [vmem:[%s2 + $0x178] sm:$0xff]
        %v1595 = vld [vmem:[%s2 + $0x180] sm:$0xff]
        %v1596 = vld [vmem:[%s2 + $0x188] sm:$0xff]
        %v1597 = vld [vmem:[%s2 + $0x190] sm:$0xff]
        %v1598 = vld [vmem:[%s2 + $0x198] sm:$0xff]
        %v1599 = vld [vmem:[%s2 + $0x1a0] sm:$0xff]
        %v1600 = vld [vmem:[%s2 + $0x1a8] sm:$0xff]
        %v1601 = vld [vmem:[%s2 + $0x1b0] sm:$0xff]
        %v1602 = vld [vmem:[%s2 + $0x1b8] sm:$0xff]
        %v1603 = vld [vmem:[%s2 + $0x1c0] sm:$0xff]
        %v1604 = vld [vmem:[%s2 + $0x1c8] sm:$0xff]
        %v1605 = vld [vmem:[%s2 + $0x1d0] sm:$0xff]
        %v1606 = vld [vmem:[%s2 + $0x1d8] sm:$0xff]
        %v1607 = vld [vmem:[%s2 + $0x1e0] sm:$0xff]
        %v1608 = vld [vmem:[%s2 + $0x1e8] sm:$0xff]
        %v1609 = vld [vmem:[%s2 + $0x1f0] sm:$0xff]
        %v1610 = vld [vmem:[%s2 + $0x1f8] sm:$0xff]
        %v1611 = vld [vmem:[%s2 + $0x200] sm:$0xff]
        %v1612 = vld [vmem:[%s2 + $0x208] sm:$0xff]
        %v1613 = vld [vmem:[%s2 + $0x210] sm:$0xff]
        %v1614 = vld [vmem:[%s2 + $0x218] sm:$0xff]
        %v1615 = vld [vmem:[%s2 + $0x220] sm:$0xff]
        %v1616 = vld [vmem:[%s2 + $0x228] sm:$0xff]
        %v1617 = vld [vmem:[%s2 + $0x230] sm:$0xff]
        %v1618 = vld [vmem:[%s2 + $0x238] sm:$0xff]
        %v1619 = vld [vmem:[%s2 + $0x240] sm:$0xff]
        %v1620 = vld [vmem:[%s2 + $0x248] sm:$0xff]
        %v1621 = vld [vmem:[%s2 + $0x250] sm:$0xff]
        %v1622 = vld [vmem:[%s2 + $0x258] sm:$0xff]
        %v1623 = vld [vmem:[%s2 + $0x260] sm:$0xff]
        %v1624 = vld [vmem:[%s2 + $0x268] sm:$0xff]
        %v1625 = vld [vmem:[%s2 + $0x270] sm:$0xff]
        %v1626 = vld [vmem:[%s2 + $0x278] sm:$0xff]
        %v1627 = vld [vmem:[%s2 + $0x280] sm:$0xff]
        %v1628 = vld [vmem:[%s2 + $0x288] sm:$0xff]
        %v1629 = vld [vmem:[%s2 + $0x290] sm:$0xff]
        %v1630 = vld [vmem:[%s2 + $0x298] sm:$0xff]
        %v1631 = vld [vmem:[%s2 + $0x2a0] sm:$0xff]
        %v1632 = vld [vmem:[%s2 + $0x2a8] sm:$0xff]
        %v1633 = vld [vmem:[%s2 + $0x2b0] sm:$0xff]
        %v1634 = vld [vmem:[%s2 + $0x2b8] sm:$0xff]
        %v1635 = vld [vmem:[%s2 + $0x2c0] sm:$0xff]
        %v1636 = vld [vmem:[%s2 + $0x2c8] sm:$0xff]
        %v1637 = vld [vmem:[%s2 + $0x2d0] sm:$0xff]
        %v1638 = vld [vmem:[%s2 + $0x2d8] sm:$0xff]
        %v1639 = vld [vmem:[%s2 + $0x2e0] sm:$0xff]
        %v1640 = vld [vmem:[%s2 + $0x2e8] sm:$0xff]
        %v1641 = vld [vmem:[%s2 + $0x2f0] sm:$0xff]
        %v1642 = vld [vmem:[%s2 + $0x2f8] sm:$0xff]
        %1644 = vset.pattern.permute.xlu0 0
        %1645 = vperm.xlu0 %1644, %v1547
        %v1646 = vpop.permute.xlu0 %1645
        %1649 = vset.pattern.permute.xlu0 0
        %1650 = vperm.xlu0 %1649, %v1548
        %v1651 = vpop.permute.xlu0 %1650
        %1654 = vset.pattern.permute.xlu0 0
        %1655 = vperm.xlu0 %1654, %v1549
        %v1656 = vpop.permute.xlu0 %1655
        %1659 = vset.pattern.permute.xlu0 0
        %1660 = vperm.xlu0 %1659, %v1550
        %v1661 = vpop.permute.xlu0 %1660
        %1664 = vset.pattern.permute.xlu0 0
        %1665 = vperm.xlu0 %1664, %v1551
        %v1666 = vpop.permute.xlu0 %1665
        %1669 = vset.pattern.permute.xlu0 0
        %1670 = vperm.xlu0 %1669, %v1552
        %v1671 = vpop.permute.xlu0 %1670
        %1674 = vset.pattern.permute.xlu0 0
        %1675 = vperm.xlu0 %1674, %v1553
        %v1676 = vpop.permute.xlu0 %1675
        %1679 = vset.pattern.permute.xlu0 0
        %1680 = vperm.xlu0 %1679, %v1554
        %v1681 = vpop.permute.xlu0 %1680
        %1684 = vset.pattern.permute.xlu0 0
        %1685 = vperm.xlu0 %1684, %v1555
        %v1686 = vpop.permute.xlu0 %1685
        %1689 = vset.pattern.permute.xlu0 0
        %1690 = vperm.xlu0 %1689, %v1556
        %v1691 = vpop.permute.xlu0 %1690
        %1694 = vset.pattern.permute.xlu0 0
        %1695 = vperm.xlu0 %1694, %v1557
        %v1696 = vpop.permute.xlu0 %1695
        %1699 = vset.pattern.permute.xlu0 0
        %1700 = vperm.xlu0 %1699, %v1558
        %v1701 = vpop.permute.xlu0 %1700
        %1704 = vset.pattern.permute.xlu0 0
        %1705 = vperm.xlu0 %1704, %v1559
        %v1706 = vpop.permute.xlu0 %1705
        %1709 = vset.pattern.permute.xlu0 0
        %1710 = vperm.xlu0 %1709, %v1560
        %v1711 = vpop.permute.xlu0 %1710
        %1714 = vset.pattern.permute.xlu0 0
        %1715 = vperm.xlu0 %1714, %v1561
        %v1716 = vpop.permute.xlu0 %1715
        %1719 = vset.pattern.permute.xlu0 0
        %1720 = vperm.xlu0 %1719, %v1562
        %v1721 = vpop.permute.xlu0 %1720
        %1724 = vset.pattern.permute.xlu0 0
        %1725 = vperm.xlu0 %1724, %v1563
        %v1726 = vpop.permute.xlu0 %1725
        %1729 = vset.pattern.permute.xlu0 0
        %1730 = vperm.xlu0 %1729, %v1564
        %v1731 = vpop.permute.xlu0 %1730
        %1734 = vset.pattern.permute.xlu0 0
        %1735 = vperm.xlu0 %1734, %v1565
        %v1736 = vpop.permute.xlu0 %1735
        %1739 = vset.pattern.permute.xlu0 0
        %1740 = vperm.xlu0 %1739, %v1566
        %v1741 = vpop.permute.xlu0 %1740
        %1744 = vset.pattern.permute.xlu0 0
        %1745 = vperm.xlu0 %1744, %v1567
        %v1746 = vpop.permute.xlu0 %1745
        %1749 = vset.pattern.permute.xlu0 0
        %1750 = vperm.xlu0 %1749, %v1568
        %v1751 = vpop.permute.xlu0 %1750
        %1754 = vset.pattern.permute.xlu0 0
        %1755 = vperm.xlu0 %1754, %v1569
        %v1756 = vpop.permute.xlu0 %1755
        %1759 = vset.pattern.permute.xlu0 0
        %1760 = vperm.xlu0 %1759, %v1570
        %v1761 = vpop.permute.xlu0 %1760
        %1764 = vset.pattern.permute.xlu0 0
        %1765 = vperm.xlu0 %1764, %v1571
        %v1766 = vpop.permute.xlu0 %1765
        %1769 = vset.pattern.permute.xlu0 0
        %1770 = vperm.xlu0 %1769, %v1572
        %v1771 = vpop.permute.xlu0 %1770
        %1774 = vset.pattern.permute.xlu0 0
        %1775 = vperm.xlu0 %1774, %v1573
        %v1776 = vpop.permute.xlu0 %1775
        %1779 = vset.pattern.permute.xlu0 0
        %1780 = vperm.xlu0 %1779, %v1574
        %v1781 = vpop.permute.xlu0 %1780
        %1784 = vset.pattern.permute.xlu0 0
        %1785 = vperm.xlu0 %1784, %v1575
        %v1786 = vpop.permute.xlu0 %1785
        %1789 = vset.pattern.permute.xlu0 0
        %1790 = vperm.xlu0 %1789, %v1576
        %v1791 = vpop.permute.xlu0 %1790
        %1794 = vset.pattern.permute.xlu0 0
        %1795 = vperm.xlu0 %1794, %v1577
        %v1796 = vpop.permute.xlu0 %1795
        %1799 = vset.pattern.permute.xlu0 0
        %1800 = vperm.xlu0 %1799, %v1578
        %v1801 = vpop.permute.xlu0 %1800
        %1804 = vset.pattern.permute.xlu0 0
        %1805 = vperm.xlu0 %1804, %v1579
        %v1806 = vpop.permute.xlu0 %1805
        %1809 = vset.pattern.permute.xlu0 0
        %1810 = vperm.xlu0 %1809, %v1580
        %v1811 = vpop.permute.xlu0 %1810
        %1814 = vset.pattern.permute.xlu0 0
        %1815 = vperm.xlu0 %1814, %v1581
        %v1816 = vpop.permute.xlu0 %1815
        %1819 = vset.pattern.permute.xlu0 0
        %1820 = vperm.xlu0 %1819, %v1582
        %v1821 = vpop.permute.xlu0 %1820
        %1824 = vset.pattern.permute.xlu0 0
        %1825 = vperm.xlu0 %1824, %v1583
        %v1826 = vpop.permute.xlu0 %1825
        %1829 = vset.pattern.permute.xlu0 0
        %1830 = vperm.xlu0 %1829, %v1584
        %v1831 = vpop.permute.xlu0 %1830
        %1834 = vset.pattern.permute.xlu0 0
        %1835 = vperm.xlu0 %1834, %v1585
        %v1836 = vpop.permute.xlu0 %1835
        %1839 = vset.pattern.permute.xlu0 0
        %1840 = vperm.xlu0 %1839, %v1586
        %v1841 = vpop.permute.xlu0 %1840
        %1844 = vset.pattern.permute.xlu0 0
        %1845 = vperm.xlu0 %1844, %v1587
        %v1846 = vpop.permute.xlu0 %1845
        %1849 = vset.pattern.permute.xlu0 0
        %1850 = vperm.xlu0 %1849, %v1588
        %v1851 = vpop.permute.xlu0 %1850
        %1854 = vset.pattern.permute.xlu0 0
        %1855 = vperm.xlu0 %1854, %v1589
        %v1856 = vpop.permute.xlu0 %1855
        %1859 = vset.pattern.permute.xlu0 0
        %1860 = vperm.xlu0 %1859, %v1590
        %v1861 = vpop.permute.xlu0 %1860
        %1864 = vset.pattern.permute.xlu0 0
        %1865 = vperm.xlu0 %1864, %v1591
        %v1866 = vpop.permute.xlu0 %1865
        %1869 = vset.pattern.permute.xlu0 0
        %1870 = vperm.xlu0 %1869, %v1592
        %v1871 = vpop.permute.xlu0 %1870
        %1874 = vset.pattern.permute.xlu0 0
        %1875 = vperm.xlu0 %1874, %v1593
        %v1876 = vpop.permute.xlu0 %1875
        %1879 = vset.pattern.permute.xlu0 0
        %1880 = vperm.xlu0 %1879, %v1594
        %v1881 = vpop.permute.xlu0 %1880
        %1884 = vset.pattern.permute.xlu0 0
        %1885 = vperm.xlu0 %1884, %v1595
        %v1886 = vpop.permute.xlu0 %1885
        %1889 = vset.pattern.permute.xlu0 0
        %1890 = vperm.xlu0 %1889, %v1596
        %v1891 = vpop.permute.xlu0 %1890
        %1894 = vset.pattern.permute.xlu0 0
        %1895 = vperm.xlu0 %1894, %v1597
        %v1896 = vpop.permute.xlu0 %1895
        %1899 = vset.pattern.permute.xlu0 0
        %1900 = vperm.xlu0 %1899, %v1598
        %v1901 = vpop.permute.xlu0 %1900
        %1904 = vset.pattern.permute.xlu0 0
        %1905 = vperm.xlu0 %1904, %v1599
        %v1906 = vpop.permute.xlu0 %1905
        %1909 = vset.pattern.permute.xlu0 0
        %1910 = vperm.xlu0 %1909, %v1600
        %v1911 = vpop.permute.xlu0 %1910
        %1914 = vset.pattern.permute.xlu0 0
        %1915 = vperm.xlu0 %1914, %v1601
        %v1916 = vpop.permute.xlu0 %1915
        %1919 = vset.pattern.permute.xlu0 0
        %1920 = vperm.xlu0 %1919, %v1602
        %v1921 = vpop.permute.xlu0 %1920
        %1924 = vset.pattern.permute.xlu0 0
        %1925 = vperm.xlu0 %1924, %v1603
        %v1926 = vpop.permute.xlu0 %1925
        %1929 = vset.pattern.permute.xlu0 0
        %1930 = vperm.xlu0 %1929, %v1604
        %v1931 = vpop.permute.xlu0 %1930
        %1934 = vset.pattern.permute.xlu0 0
        %1935 = vperm.xlu0 %1934, %v1605
        %v1936 = vpop.permute.xlu0 %1935
        %1939 = vset.pattern.permute.xlu0 0
        %1940 = vperm.xlu0 %1939, %v1606
        %v1941 = vpop.permute.xlu0 %1940
        %1944 = vset.pattern.permute.xlu0 0
        %1945 = vperm.xlu0 %1944, %v1607
        %v1946 = vpop.permute.xlu0 %1945
        %1949 = vset.pattern.permute.xlu0 0
        %1950 = vperm.xlu0 %1949, %v1608
        %v1951 = vpop.permute.xlu0 %1950
        %1954 = vset.pattern.permute.xlu0 0
        %1955 = vperm.xlu0 %1954, %v1609
        %v1956 = vpop.permute.xlu0 %1955
        %1959 = vset.pattern.permute.xlu0 0
        %1960 = vperm.xlu0 %1959, %v1610
        %v1961 = vpop.permute.xlu0 %1960
        %1964 = vset.pattern.permute.xlu0 0
        %1965 = vperm.xlu0 %1964, %v1611
        %v1966 = vpop.permute.xlu0 %1965
        %1969 = vset.pattern.permute.xlu0 0
        %1970 = vperm.xlu0 %1969, %v1612
        %v1971 = vpop.permute.xlu0 %1970
        %1974 = vset.pattern.permute.xlu0 0
        %1975 = vperm.xlu0 %1974, %v1613
        %v1976 = vpop.permute.xlu0 %1975
        %1979 = vset.pattern.permute.xlu0 0
        %1980 = vperm.xlu0 %1979, %v1614
        %v1981 = vpop.permute.xlu0 %1980
        %1984 = vset.pattern.permute.xlu0 0
        %1985 = vperm.xlu0 %1984, %v1615
        %v1986 = vpop.permute.xlu0 %1985
        %1989 = vset.pattern.permute.xlu0 0
        %1990 = vperm.xlu0 %1989, %v1616
        %v1991 = vpop.permute.xlu0 %1990
        %1994 = vset.pattern.permute.xlu0 0
        %1995 = vperm.xlu0 %1994, %v1617
        %v1996 = vpop.permute.xlu0 %1995
        %1999 = vset.pattern.permute.xlu0 0
        %2000 = vperm.xlu0 %1999, %v1618
        %v2001 = vpop.permute.xlu0 %2000
        %2004 = vset.pattern.permute.xlu0 0
        %2005 = vperm.xlu0 %2004, %v1619
        %v2006 = vpop.permute.xlu0 %2005
        %2009 = vset.pattern.permute.xlu0 0
        %2010 = vperm.xlu0 %2009, %v1620
        %v2011 = vpop.permute.xlu0 %2010
        %2014 = vset.pattern.permute.xlu0 0
        %2015 = vperm.xlu0 %2014, %v1621
        %v2016 = vpop.permute.xlu0 %2015
        %2019 = vset.pattern.permute.xlu0 0
        %2020 = vperm.xlu0 %2019, %v1622
        %v2021 = vpop.permute.xlu0 %2020
        %2024 = vset.pattern.permute.xlu0 0
        %2025 = vperm.xlu0 %2024, %v1623
        %v2026 = vpop.permute.xlu0 %2025
        %2029 = vset.pattern.permute.xlu0 0
        %2030 = vperm.xlu0 %2029, %v1624
        %v2031 = vpop.permute.xlu0 %2030
        %2034 = vset.pattern.permute.xlu0 0
        %2035 = vperm.xlu0 %2034, %v1625
        %v2036 = vpop.permute.xlu0 %2035
        %2039 = vset.pattern.permute.xlu0 0
        %2040 = vperm.xlu0 %2039, %v1626
        %v2041 = vpop.permute.xlu0 %2040
        %2044 = vset.pattern.permute.xlu0 0
        %2045 = vperm.xlu0 %2044, %v1627
        %v2046 = vpop.permute.xlu0 %2045
        %2049 = vset.pattern.permute.xlu0 0
        %2050 = vperm.xlu0 %2049, %v1628
        %v2051 = vpop.permute.xlu0 %2050
        %2054 = vset.pattern.permute.xlu0 0
        %2055 = vperm.xlu0 %2054, %v1629
        %v2056 = vpop.permute.xlu0 %2055
        %2059 = vset.pattern.permute.xlu0 0
        %2060 = vperm.xlu0 %2059, %v1630
        %v2061 = vpop.permute.xlu0 %2060
        %2064 = vset.pattern.permute.xlu0 0
        %2065 = vperm.xlu0 %2064, %v1631
        %v2066 = vpop.permute.xlu0 %2065
        %2069 = vset.pattern.permute.xlu0 0
        %2070 = vperm.xlu0 %2069, %v1632
        %v2071 = vpop.permute.xlu0 %2070
        %2074 = vset.pattern.permute.xlu0 0
        %2075 = vperm.xlu0 %2074, %v1633
        %v2076 = vpop.permute.xlu0 %2075
        %2079 = vset.pattern.permute.xlu0 0
        %2080 = vperm.xlu0 %2079, %v1634
        %v2081 = vpop.permute.xlu0 %2080
        %2084 = vset.pattern.permute.xlu0 0
        %2085 = vperm.xlu0 %2084, %v1635
        %v2086 = vpop.permute.xlu0 %2085
        %2089 = vset.pattern.permute.xlu0 0
        %2090 = vperm.xlu0 %2089, %v1636
        %v2091 = vpop.permute.xlu0 %2090
        %2094 = vset.pattern.permute.xlu0 0
        %2095 = vperm.xlu0 %2094, %v1637
        %v2096 = vpop.permute.xlu0 %2095
        %2099 = vset.pattern.permute.xlu0 0
        %2100 = vperm.xlu0 %2099, %v1638
        %v2101 = vpop.permute.xlu0 %2100
        %2104 = vset.pattern.permute.xlu0 0
        %2105 = vperm.xlu0 %2104, %v1639
        %v2106 = vpop.permute.xlu0 %2105
        %2109 = vset.pattern.permute.xlu0 0
        %2110 = vperm.xlu0 %2109, %v1640
        %v2111 = vpop.permute.xlu0 %2110
        %2114 = vset.pattern.permute.xlu0 0
        %2115 = vperm.xlu0 %2114, %v1641
        %v2116 = vpop.permute.xlu0 %2115
        %2119 = vset.pattern.permute.xlu0 0
        %2120 = vperm.xlu0 %2119, %v1642
        %v2121 = vpop.permute.xlu0 %2120
        %v2123 = vadd.f32 %v1355, %v1646
        %v2124 = vadd.f32 %v1356, %v1646
        %v2125 = vadd.f32 %v1357, %v1651
        %v2126 = vadd.f32 %v1358, %v1651
        %v2127 = vadd.f32 %v1359, %v1656
        %v2128 = vadd.f32 %v1360, %v1656
        %v2129 = vadd.f32 %v1361, %v1661
        %v2130 = vadd.f32 %v1362, %v1661
        %v2131 = vadd.f32 %v1363, %v1666
        %v2132 = vadd.f32 %v1364, %v1666
        %v2133 = vadd.f32 %v1365, %v1671
        %v2134 = vadd.f32 %v1366, %v1671
        %v2135 = vadd.f32 %v1367, %v1676
        %v2136 = vadd.f32 %v1368, %v1676
        %v2137 = vadd.f32 %v1369, %v1681
        %v2138 = vadd.f32 %v1370, %v1681
        %v2139 = vadd.f32 %v1371, %v1686
        %v2140 = vadd.f32 %v1372, %v1686
        %v2141 = vadd.f32 %v1373, %v1691
        %v2142 = vadd.f32 %v1374, %v1691
        %v2143 = vadd.f32 %v1375, %v1696
        %v2144 = vadd.f32 %v1376, %v1696
        %v2145 = vadd.f32 %v1377, %v1701
        %v2146 = vadd.f32 %v1378, %v1701
        %v2147 = vadd.f32 %v1379, %v1706
        %v2148 = vadd.f32 %v1380, %v1706
        %v2149 = vadd.f32 %v1381, %v1711
        %v2150 = vadd.f32 %v1382, %v1711
        %v2151 = vadd.f32 %v1383, %v1716
        %v2152 = vadd.f32 %v1384, %v1716
        %v2153 = vadd.f32 %v1385, %v1721
        %v2154 = vadd.f32 %v1386, %v1721
        %v2155 = vadd.f32 %v1387, %v1726
        %v2156 = vadd.f32 %v1388, %v1726
        %v2157 = vadd.f32 %v1389, %v1731
        %v2158 = vadd.f32 %v1390, %v1731
        %v2159 = vadd.f32 %v1391, %v1736
        %v2160 = vadd.f32 %v1392, %v1736
        %v2161 = vadd.f32 %v1393, %v1741
        %v2162 = vadd.f32 %v1394, %v1741
        %v2163 = vadd.f32 %v1395, %v1746
        %v2164 = vadd.f32 %v1396, %v1746
        %v2165 = vadd.f32 %v1397, %v1751
        %v2166 = vadd.f32 %v1398, %v1751
        %v2167 = vadd.f32 %v1399, %v1756
        %v2168 = vadd.f32 %v1400, %v1756
        %v2169 = vadd.f32 %v1401, %v1761
        %v2170 = vadd.f32 %v1402, %v1761
        %v2171 = vadd.f32 %v1403, %v1766
        %v2172 = vadd.f32 %v1404, %v1766
        %v2173 = vadd.f32 %v1405, %v1771
        %v2174 = vadd.f32 %v1406, %v1771
        %v2175 = vadd.f32 %v1407, %v1776
        %v2176 = vadd.f32 %v1408, %v1776
        %v2177 = vadd.f32 %v1409, %v1781
        %v2178 = vadd.f32 %v1410, %v1781
        %v2179 = vadd.f32 %v1411, %v1786
        %v2180 = vadd.f32 %v1412, %v1786
        %v2181 = vadd.f32 %v1413, %v1791
        %v2182 = vadd.f32 %v1414, %v1791
        %v2183 = vadd.f32 %v1415, %v1796
        %v2184 = vadd.f32 %v1416, %v1796
        %v2185 = vadd.f32 %v1417, %v1801
        %v2186 = vadd.f32 %v1418, %v1801
        %v2187 = vadd.f32 %v1419, %v1806
        %v2188 = vadd.f32 %v1420, %v1806
        %v2189 = vadd.f32 %v1421, %v1811
        %v2190 = vadd.f32 %v1422, %v1811
        %v2191 = vadd.f32 %v1423, %v1816
        %v2192 = vadd.f32 %v1424, %v1816
        %v2193 = vadd.f32 %v1425, %v1821
        %v2194 = vadd.f32 %v1426, %v1821
        %v2195 = vadd.f32 %v1427, %v1826
        %v2196 = vadd.f32 %v1428, %v1826
        %v2197 = vadd.f32 %v1429, %v1831
        %v2198 = vadd.f32 %v1430, %v1831
        %v2199 = vadd.f32 %v1431, %v1836
        %v2200 = vadd.f32 %v1432, %v1836
        %v2201 = vadd.f32 %v1433, %v1841
        %v2202 = vadd.f32 %v1434, %v1841
        %v2203 = vadd.f32 %v1435, %v1846
        %v2204 = vadd.f32 %v1436, %v1846
        %v2205 = vadd.f32 %v1437, %v1851
        %v2206 = vadd.f32 %v1438, %v1851
        %v2207 = vadd.f32 %v1439, %v1856
        %v2208 = vadd.f32 %v1440, %v1856
        %v2209 = vadd.f32 %v1441, %v1861
        %v2210 = vadd.f32 %v1442, %v1861
        %v2211 = vadd.f32 %v1443, %v1866
        %v2212 = vadd.f32 %v1444, %v1866
        %v2213 = vadd.f32 %v1445, %v1871
        %v2214 = vadd.f32 %v1446, %v1871
        %v2215 = vadd.f32 %v1447, %v1876
        %v2216 = vadd.f32 %v1448, %v1876
        %v2217 = vadd.f32 %v1449, %v1881
        %v2218 = vadd.f32 %v1450, %v1881
        %v2219 = vadd.f32 %v1451, %v1886
        %v2220 = vadd.f32 %v1452, %v1886
        %v2221 = vadd.f32 %v1453, %v1891
        %v2222 = vadd.f32 %v1454, %v1891
        %v2223 = vadd.f32 %v1455, %v1896
        %v2224 = vadd.f32 %v1456, %v1896
        %v2225 = vadd.f32 %v1457, %v1901
        %v2226 = vadd.f32 %v1458, %v1901
        %v2227 = vadd.f32 %v1459, %v1906
        %v2228 = vadd.f32 %v1460, %v1906
        %v2229 = vadd.f32 %v1461, %v1911
        %v2230 = vadd.f32 %v1462, %v1911
        %v2231 = vadd.f32 %v1463, %v1916
        %v2232 = vadd.f32 %v1464, %v1916
        %v2233 = vadd.f32 %v1465, %v1921
        %v2234 = vadd.f32 %v1466, %v1921
        %v2235 = vadd.f32 %v1467, %v1926
        %v2236 = vadd.f32 %v1468, %v1926
        %v2237 = vadd.f32 %v1469, %v1931
        %v2238 = vadd.f32 %v1470, %v1931
        %v2239 = vadd.f32 %v1471, %v1936
        %v2240 = vadd.f32 %v1472, %v1936
        %v2241 = vadd.f32 %v1473, %v1941
        %v2242 = vadd.f32 %v1474, %v1941
        %v2243 = vadd.f32 %v1475, %v1946
        %v2244 = vadd.f32 %v1476, %v1946
        %v2245 = vadd.f32 %v1477, %v1951
        %v2246 = vadd.f32 %v1478, %v1951
        %v2247 = vadd.f32 %v1479, %v1956
        %v2248 = vadd.f32 %v1480, %v1956
        %v2249 = vadd.f32 %v1481, %v1961
        %v2250 = vadd.f32 %v1482, %v1961
        %v2251 = vadd.f32 %v1483, %v1966
        %v2252 = vadd.f32 %v1484, %v1966
        %v2253 = vadd.f32 %v1485, %v1971
        %v2254 = vadd.f32 %v1486, %v1971
        %v2255 = vadd.f32 %v1487, %v1976
        %v2256 = vadd.f32 %v1488, %v1976
        %v2257 = vadd.f32 %v1489, %v1981
        %v2258 = vadd.f32 %v1490, %v1981
        %v2259 = vadd.f32 %v1491, %v1986
        %v2260 = vadd.f32 %v1492, %v1986
        %v2261 = vadd.f32 %v1493, %v1991
        %v2262 = vadd.f32 %v1494, %v1991
        %v2263 = vadd.f32 %v1495, %v1996
        %v2264 = vadd.f32 %v1496, %v1996
        %v2265 = vadd.f32 %v1497, %v2001
        %v2266 = vadd.f32 %v1498, %v2001
        %v2267 = vadd.f32 %v1499, %v2006
        %v2268 = vadd.f32 %v1500, %v2006
        %v2269 = vadd.f32 %v1501, %v2011
        %v2270 = vadd.f32 %v1502, %v2011
        %v2271 = vadd.f32 %v1503, %v2016
        %v2272 = vadd.f32 %v1504, %v2016
        %v2273 = vadd.f32 %v1505, %v2021
        %v2274 = vadd.f32 %v1506, %v2021
        %v2275 = vadd.f32 %v1507, %v2026
        %v2276 = vadd.f32 %v1508, %v2026
        %v2277 = vadd.f32 %v1509, %v2031
        %v2278 = vadd.f32 %v1510, %v2031
        %v2279 = vadd.f32 %v1511, %v2036
        %v2280 = vadd.f32 %v1512, %v2036
        %v2281 = vadd.f32 %v1513, %v2041
        %v2282 = vadd.f32 %v1514, %v2041
        %v2283 = vadd.f32 %v1515, %v2046
        %v2284 = vadd.f32 %v1516, %v2046
        %v2285 = vadd.f32 %v1517, %v2051
        %v2286 = vadd.f32 %v1518, %v2051
        %v2287 = vadd.f32 %v1519, %v2056
        %v2288 = vadd.f32 %v1520, %v2056
        %v2289 = vadd.f32 %v1521, %v2061
        %v2290 = vadd.f32 %v1522, %v2061
        %v2291 = vadd.f32 %v1523, %v2066
        %v2292 = vadd.f32 %v1524, %v2066
        %v2293 = vadd.f32 %v1525, %v2071
        %v2294 = vadd.f32 %v1526, %v2071
        %v2295 = vadd.f32 %v1527, %v2076
        %v2296 = vadd.f32 %v1528, %v2076
        %v2297 = vadd.f32 %v1529, %v2081
        %v2298 = vadd.f32 %v1530, %v2081
        %v2299 = vadd.f32 %v1531, %v2086
        %v2300 = vadd.f32 %v1532, %v2086
        %v2301 = vadd.f32 %v1533, %v2091
        %v2302 = vadd.f32 %v1534, %v2091
        %v2303 = vadd.f32 %v1535, %v2096
        %v2304 = vadd.f32 %v1536, %v2096
        %v2305 = vadd.f32 %v1537, %v2101
        %v2306 = vadd.f32 %v1538, %v2101
        %v2307 = vadd.f32 %v1539, %v2106
        %v2308 = vadd.f32 %v1540, %v2106
        %v2309 = vadd.f32 %v1541, %v2111
        %v2310 = vadd.f32 %v1542, %v2111
        %v2311 = vadd.f32 %v1543, %v2116
        %v2312 = vadd.f32 %v1544, %v2116
        %v2313 = vadd.f32 %v1545, %v2121
        %v2314 = vadd.f32 %v1546, %v2121
        %v2315 = vmax.f32 %v2123, 0.0
        %v2316 = vmax.f32 %v2124, 0.0
        %v2317 = vmax.f32 %v2125, 0.0
        %v2318 = vmax.f32 %v2126, 0.0
        %v2319 = vmax.f32 %v2127, 0.0
        %v2320 = vmax.f32 %v2128, 0.0
        %v2321 = vmax.f32 %v2129, 0.0
        %v2322 = vmax.f32 %v2130, 0.0
        %v2323 = vmax.f32 %v2131, 0.0
        %v2324 = vmax.f32 %v2132, 0.0
        %v2325 = vmax.f32 %v2133, 0.0
        %v2326 = vmax.f32 %v2134, 0.0
        %v2327 = vmax.f32 %v2135, 0.0
        %v2328 = vmax.f32 %v2136, 0.0
        %v2329 = vmax.f32 %v2137, 0.0
        %v2330 = vmax.f32 %v2138, 0.0
        %v2331 = vmax.f32 %v2139, 0.0
        %v2332 = vmax.f32 %v2140, 0.0
        %v2333 = vmax.f32 %v2141, 0.0
        %v2334 = vmax.f32 %v2142, 0.0
        %v2335 = vmax.f32 %v2143, 0.0
        %v2336 = vmax.f32 %v2144, 0.0
        %v2337 = vmax.f32 %v2145, 0.0
        %v2338 = vmax.f32 %v2146, 0.0
        %v2339 = vmax.f32 %v2147, 0.0
        %v2340 = vmax.f32 %v2148, 0.0
        %v2341 = vmax.f32 %v2149, 0.0
        %v2342 = vmax.f32 %v2150, 0.0
        %v2343 = vmax.f32 %v2151, 0.0
        %v2344 = vmax.f32 %v2152, 0.0
        %v2345 = vmax.f32 %v2153, 0.0
        %v2346 = vmax.f32 %v2154, 0.0
        %v2347 = vmax.f32 %v2155, 0.0
        %v2348 = vmax.f32 %v2156, 0.0
        %v2349 = vmax.f32 %v2157, 0.0
        %v2350 = vmax.f32 %v2158, 0.0
        %v2351 = vmax.f32 %v2159, 0.0
        %v2352 = vmax.f32 %v2160, 0.0
        %v2353 = vmax.f32 %v2161, 0.0
        %v2354 = vmax.f32 %v2162, 0.0
        %v2355 = vmax.f32 %v2163, 0.0
        %v2356 = vmax.f32 %v2164, 0.0
        %v2357 = vmax.f32 %v2165, 0.0
        %v2358 = vmax.f32 %v2166, 0.0
        %v2359 = vmax.f32 %v2167, 0.0
        %v2360 = vmax.f32 %v2168, 0.0
        %v2361 = vmax.f32 %v2169, 0.0
        %v2362 = vmax.f32 %v2170, 0.0
        %v2363 = vmax.f32 %v2171, 0.0
        %v2364 = vmax.f32 %v2172, 0.0
        %v2365 = vmax.f32 %v2173, 0.0
        %v2366 = vmax.f32 %v2174, 0.0
        %v2367 = vmax.f32 %v2175, 0.0
        %v2368 = vmax.f32 %v2176, 0.0
        %v2369 = vmax.f32 %v2177, 0.0
        %v2370 = vmax.f32 %v2178, 0.0
        %v2371 = vmax.f32 %v2179, 0.0
        %v2372 = vmax.f32 %v2180, 0.0
        %v2373 = vmax.f32 %v2181, 0.0
        %v2374 = vmax.f32 %v2182, 0.0
        %v2375 = vmax.f32 %v2183, 0.0
        %v2376 = vmax.f32 %v2184, 0.0
        %v2377 = vmax.f32 %v2185, 0.0
        %v2378 = vmax.f32 %v2186, 0.0
        %v2379 = vmax.f32 %v2187, 0.0
        %v2380 = vmax.f32 %v2188, 0.0
        %v2381 = vmax.f32 %v2189, 0.0
        %v2382 = vmax.f32 %v2190, 0.0
        %v2383 = vmax.f32 %v2191, 0.0
        %v2384 = vmax.f32 %v2192, 0.0
        %v2385 = vmax.f32 %v2193, 0.0
        %v2386 = vmax.f32 %v2194, 0.0
        %v2387 = vmax.f32 %v2195, 0.0
        %v2388 = vmax.f32 %v2196, 0.0
        %v2389 = vmax.f32 %v2197, 0.0
        %v2390 = vmax.f32 %v2198, 0.0
        %v2391 = vmax.f32 %v2199, 0.0
        %v2392 = vmax.f32 %v2200, 0.0
        %v2393 = vmax.f32 %v2201, 0.0
        %v2394 = vmax.f32 %v2202, 0.0
        %v2395 = vmax.f32 %v2203, 0.0
        %v2396 = vmax.f32 %v2204, 0.0
        %v2397 = vmax.f32 %v2205, 0.0
        %v2398 = vmax.f32 %v2206, 0.0
        %v2399 = vmax.f32 %v2207, 0.0
        %v2400 = vmax.f32 %v2208, 0.0
        %v2401 = vmax.f32 %v2209, 0.0
        %v2402 = vmax.f32 %v2210, 0.0
        %v2403 = vmax.f32 %v2211, 0.0
        %v2404 = vmax.f32 %v2212, 0.0
        %v2405 = vmax.f32 %v2213, 0.0
        %v2406 = vmax.f32 %v2214, 0.0
        %v2407 = vmax.f32 %v2215, 0.0
        %v2408 = vmax.f32 %v2216, 0.0
        %v2409 = vmax.f32 %v2217, 0.0
        %v2410 = vmax.f32 %v2218, 0.0
        %v2411 = vmax.f32 %v2219, 0.0
        %v2412 = vmax.f32 %v2220, 0.0
        %v2413 = vmax.f32 %v2221, 0.0
        %v2414 = vmax.f32 %v2222, 0.0
        %v2415 = vmax.f32 %v2223, 0.0
        %v2416 = vmax.f32 %v2224, 0.0
        %v2417 = vmax.f32 %v2225, 0.0
        %v2418 = vmax.f32 %v2226, 0.0
        %v2419 = vmax.f32 %v2227, 0.0
        %v2420 = vmax.f32 %v2228, 0.0
        %v2421 = vmax.f32 %v2229, 0.0
        %v2422 = vmax.f32 %v2230, 0.0
        %v2423 = vmax.f32 %v2231, 0.0
        %v2424 = vmax.f32 %v2232, 0.0
        %v2425 = vmax.f32 %v2233, 0.0
        %v2426 = vmax.f32 %v2234, 0.0
        %v2427 = vmax.f32 %v2235, 0.0
        %v2428 = vmax.f32 %v2236, 0.0
        %v2429 = vmax.f32 %v2237, 0.0
        %v2430 = vmax.f32 %v2238, 0.0
        %v2431 = vmax.f32 %v2239, 0.0
        %v2432 = vmax.f32 %v2240, 0.0
        %v2433 = vmax.f32 %v2241, 0.0
        %v2434 = vmax.f32 %v2242, 0.0
        %v2435 = vmax.f32 %v2243, 0.0
        %v2436 = vmax.f32 %v2244, 0.0
        %v2437 = vmax.f32 %v2245, 0.0
        %v2438 = vmax.f32 %v2246, 0.0
        %v2439 = vmax.f32 %v2247, 0.0
        %v2440 = vmax.f32 %v2248, 0.0
        %v2441 = vmax.f32 %v2249, 0.0
        %v2442 = vmax.f32 %v2250, 0.0
        %v2443 = vmax.f32 %v2251, 0.0
        %v2444 = vmax.f32 %v2252, 0.0
        %v2445 = vmax.f32 %v2253, 0.0
        %v2446 = vmax.f32 %v2254, 0.0
        %v2447 = vmax.f32 %v2255, 0.0
        %v2448 = vmax.f32 %v2256, 0.0
        %v2449 = vmax.f32 %v2257, 0.0
        %v2450 = vmax.f32 %v2258, 0.0
        %v2451 = vmax.f32 %v2259, 0.0
        %v2452 = vmax.f32 %v2260, 0.0
        %v2453 = vmax.f32 %v2261, 0.0
        %v2454 = vmax.f32 %v2262, 0.0
        %v2455 = vmax.f32 %v2263, 0.0
        %v2456 = vmax.f32 %v2264, 0.0
        %v2457 = vmax.f32 %v2265, 0.0
        %v2458 = vmax.f32 %v2266, 0.0
        %v2459 = vmax.f32 %v2267, 0.0
        %v2460 = vmax.f32 %v2268, 0.0
        %v2461 = vmax.f32 %v2269, 0.0
        %v2462 = vmax.f32 %v2270, 0.0
        %v2463 = vmax.f32 %v2271, 0.0
        %v2464 = vmax.f32 %v2272, 0.0
        %v2465 = vmax.f32 %v2273, 0.0
        %v2466 = vmax.f32 %v2274, 0.0
        %v2467 = vmax.f32 %v2275, 0.0
        %v2468 = vmax.f32 %v2276, 0.0
        %v2469 = vmax.f32 %v2277, 0.0
        %v2470 = vmax.f32 %v2278, 0.0
        %v2471 = vmax.f32 %v2279, 0.0
        %v2472 = vmax.f32 %v2280, 0.0
        %v2473 = vmax.f32 %v2281, 0.0
        %v2474 = vmax.f32 %v2282, 0.0
        %v2475 = vmax.f32 %v2283, 0.0
        %v2476 = vmax.f32 %v2284, 0.0
        %v2477 = vmax.f32 %v2285, 0.0
        %v2478 = vmax.f32 %v2286, 0.0
        %v2479 = vmax.f32 %v2287, 0.0
        %v2480 = vmax.f32 %v2288, 0.0
        %v2481 = vmax.f32 %v2289, 0.0
        %v2482 = vmax.f32 %v2290, 0.0
        %v2483 = vmax.f32 %v2291, 0.0
        %v2484 = vmax.f32 %v2292, 0.0
        %v2485 = vmax.f32 %v2293, 0.0
        %v2486 = vmax.f32 %v2294, 0.0
        %v2487 = vmax.f32 %v2295, 0.0
        %v2488 = vmax.f32 %v2296, 0.0
        %v2489 = vmax.f32 %v2297, 0.0
        %v2490 = vmax.f32 %v2298, 0.0
        %v2491 = vmax.f32 %v2299, 0.0
        %v2492 = vmax.f32 %v2300, 0.0
        %v2493 = vmax.f32 %v2301, 0.0
        %v2494 = vmax.f32 %v2302, 0.0
        %v2495 = vmax.f32 %v2303, 0.0
        %v2496 = vmax.f32 %v2304, 0.0
        %v2497 = vmax.f32 %v2305, 0.0
        %v2498 = vmax.f32 %v2306, 0.0
        %v2499 = vmax.f32 %v2307, 0.0
        %v2500 = vmax.f32 %v2308, 0.0
        %v2501 = vmax.f32 %v2309, 0.0
        %v2502 = vmax.f32 %v2310, 0.0
        %v2503 = vmax.f32 %v2311, 0.0
        %v2504 = vmax.f32 %v2312, 0.0
        %v2505 = vmax.f32 %v2313, 0.0
        %v2506 = vmax.f32 %v2314, 0.0
        %2507 = vst [vmem:[%s584] sm:$0xff] %v2315
        %2508 = vst [vmem:[%s584 + $0x8] sm:$0xff] %v2316
        %2509 = vst [vmem:[%s584 + $0x10] sm:$0xff] %v2317
        %2510 = vst [vmem:[%s584 + $0x18] sm:$0xff] %v2318
        %2511 = vst [vmem:[%s584 + $0x20] sm:$0xff] %v2319
        %2512 = vst [vmem:[%s584 + $0x28] sm:$0xff] %v2320
        %2513 = vst [vmem:[%s584 + $0x30] sm:$0xff] %v2321
        %2514 = vst [vmem:[%s584 + $0x38] sm:$0xff] %v2322
        %2515 = vst [vmem:[%s584 + $0x40] sm:$0xff] %v2323
        %2516 = vst [vmem:[%s584 + $0x48] sm:$0xff] %v2324
        %2517 = vst [vmem:[%s584 + $0x50] sm:$0xff] %v2325
        %2518 = vst [vmem:[%s584 + $0x58] sm:$0xff] %v2326
        %2519 = vst [vmem:[%s584 + $0x60] sm:$0xff] %v2327
        %2520 = vst [vmem:[%s584 + $0x68] sm:$0xff] %v2328
        %2521 = vst [vmem:[%s584 + $0x70] sm:$0xff] %v2329
        %2522 = vst [vmem:[%s584 + $0x78] sm:$0xff] %v2330
        %2523 = vst [vmem:[%s584 + $0x80] sm:$0xff] %v2331
        %2524 = vst [vmem:[%s584 + $0x88] sm:$0xff] %v2332
        %2525 = vst [vmem:[%s584 + $0x90] sm:$0xff] %v2333
        %2526 = vst [vmem:[%s584 + $0x98] sm:$0xff] %v2334
        %2527 = vst [vmem:[%s584 + $0xa0] sm:$0xff] %v2335
        %2528 = vst [vmem:[%s584 + $0xa8] sm:$0xff] %v2336
        %2529 = vst [vmem:[%s584 + $0xb0] sm:$0xff] %v2337
        %2530 = vst [vmem:[%s584 + $0xb8] sm:$0xff] %v2338
        %2531 = vst [vmem:[%s584 + $0xc0] sm:$0xff] %v2339
        %2532 = vst [vmem:[%s584 + $0xc8] sm:$0xff] %v2340
        %2533 = vst [vmem:[%s584 + $0xd0] sm:$0xff] %v2341
        %2534 = vst [vmem:[%s584 + $0xd8] sm:$0xff] %v2342
        %2535 = vst [vmem:[%s584 + $0xe0] sm:$0xff] %v2343
        %2536 = vst [vmem:[%s584 + $0xe8] sm:$0xff] %v2344
        %2537 = vst [vmem:[%s584 + $0xf0] sm:$0xff] %v2345
        %2538 = vst [vmem:[%s584 + $0xf8] sm:$0xff] %v2346
        %2539 = vst [vmem:[%s584 + $0x100] sm:$0xff] %v2347
        %2540 = vst [vmem:[%s584 + $0x108] sm:$0xff] %v2348
        %2541 = vst [vmem:[%s584 + $0x110] sm:$0xff] %v2349
        %2542 = vst [vmem:[%s584 + $0x118] sm:$0xff] %v2350
        %2543 = vst [vmem:[%s584 + $0x120] sm:$0xff] %v2351
        %2544 = vst [vmem:[%s584 + $0x128] sm:$0xff] %v2352
        %2545 = vst [vmem:[%s584 + $0x130] sm:$0xff] %v2353
        %2546 = vst [vmem:[%s584 + $0x138] sm:$0xff] %v2354
        %2547 = vst [vmem:[%s584 + $0x140] sm:$0xff] %v2355
        %2548 = vst [vmem:[%s584 + $0x148] sm:$0xff] %v2356
        %2549 = vst [vmem:[%s584 + $0x150] sm:$0xff] %v2357
        %2550 = vst [vmem:[%s584 + $0x158] sm:$0xff] %v2358
        %2551 = vst [vmem:[%s584 + $0x160] sm:$0xff] %v2359
        %2552 = vst [vmem:[%s584 + $0x168] sm:$0xff] %v2360
        %2553 = vst [vmem:[%s584 + $0x170] sm:$0xff] %v2361
        %2554 = vst [vmem:[%s584 + $0x178] sm:$0xff] %v2362
        %2555 = vst [vmem:[%s584 + $0x180] sm:$0xff] %v2363
        %2556 = vst [vmem:[%s584 + $0x188] sm:$0xff] %v2364
        %2557 = vst [vmem:[%s584 + $0x190] sm:$0xff] %v2365
        %2558 = vst [vmem:[%s584 + $0x198] sm:$0xff] %v2366
        %2559 = vst [vmem:[%s584 + $0x1a0] sm:$0xff] %v2367
        %2560 = vst [vmem:[%s584 + $0x1a8] sm:$0xff] %v2368
        %2561 = vst [vmem:[%s584 + $0x1b0] sm:$0xff] %v2369
        %2562 = vst [vmem:[%s584 + $0x1b8] sm:$0xff] %v2370
        %2563 = vst [vmem:[%s584 + $0x1c0] sm:$0xff] %v2371
        %2564 = vst [vmem:[%s584 + $0x1c8] sm:$0xff] %v2372
        %2565 = vst [vmem:[%s584 + $0x1d0] sm:$0xff] %v2373
        %2566 = vst [vmem:[%s584 + $0x1d8] sm:$0xff] %v2374
        %2567 = vst [vmem:[%s584 + $0x1e0] sm:$0xff] %v2375
        %2568 = vst [vmem:[%s584 + $0x1e8] sm:$0xff] %v2376
        %2569 = vst [vmem:[%s584 + $0x1f0] sm:$0xff] %v2377
        %2570 = vst [vmem:[%s584 + $0x1f8] sm:$0xff] %v2378
        %2571 = vst [vmem:[%s584 + $0x200] sm:$0xff] %v2379
        %2572 = vst [vmem:[%s584 + $0x208] sm:$0xff] %v2380
        %2573 = vst [vmem:[%s584 + $0x210] sm:$0xff] %v2381
        %2574 = vst [vmem:[%s584 + $0x218] sm:$0xff] %v2382
        %2575 = vst [vmem:[%s584 + $0x220] sm:$0xff] %v2383
        %2576 = vst [vmem:[%s584 + $0x228] sm:$0xff] %v2384
        %2577 = vst [vmem:[%s584 + $0x230] sm:$0xff] %v2385
        %2578 = vst [vmem:[%s584 + $0x238] sm:$0xff] %v2386
        %2579 = vst [vmem:[%s584 + $0x240] sm:$0xff] %v2387
        %2580 = vst [vmem:[%s584 + $0x248] sm:$0xff] %v2388
        %2581 = vst [vmem:[%s584 + $0x250] sm:$0xff] %v2389
        %2582 = vst [vmem:[%s584 + $0x258] sm:$0xff] %v2390
        %2583 = vst [vmem:[%s584 + $0x260] sm:$0xff] %v2391
        %2584 = vst [vmem:[%s584 + $0x268] sm:$0xff] %v2392
        %2585 = vst [vmem:[%s584 + $0x270] sm:$0xff] %v2393
        %2586 = vst [vmem:[%s584 + $0x278] sm:$0xff] %v2394
        %2587 = vst [vmem:[%s584 + $0x280] sm:$0xff] %v2395
        %2588 = vst [vmem:[%s584 + $0x288] sm:$0xff] %v2396
        %2589 = vst [vmem:[%s584 + $0x290] sm:$0xff] %v2397
        %2590 = vst [vmem:[%s584 + $0x298] sm:$0xff] %v2398
        %2591 = vst [vmem:[%s584 + $0x2a0] sm:$0xff] %v2399
        %2592 = vst [vmem:[%s584 + $0x2a8] sm:$0xff] %v2400
        %2593 = vst [vmem:[%s584 + $0x2b0] sm:$0xff] %v2401
        %2594 = vst [vmem:[%s584 + $0x2b8] sm:$0xff] %v2402
        %2595 = vst [vmem:[%s584 + $0x2c0] sm:$0xff] %v2403
        %2596 = vst [vmem:[%s584 + $0x2c8] sm:$0xff] %v2404
        %2597 = vst [vmem:[%s584 + $0x2d0] sm:$0xff] %v2405
        %2598 = vst [vmem:[%s584 + $0x2d8] sm:$0xff] %v2406
        %2599 = vst [vmem:[%s584 + $0x2e0] sm:$0xff] %v2407
        %2600 = vst [vmem:[%s584 + $0x2e8] sm:$0xff] %v2408
        %2601 = vst [vmem:[%s584 + $0x2f0] sm:$0xff] %v2409
        %2602 = vst [vmem:[%s584 + $0x2f8] sm:$0xff] %v2410
        %2603 = vst [vmem:[%s584 + $0x300] sm:$0xff] %v2411
        %2604 = vst [vmem:[%s584 + $0x308] sm:$0xff] %v2412
        %2605 = vst [vmem:[%s584 + $0x310] sm:$0xff] %v2413
        %2606 = vst [vmem:[%s584 + $0x318] sm:$0xff] %v2414
        %2607 = vst [vmem:[%s584 + $0x320] sm:$0xff] %v2415
        %2608 = vst [vmem:[%s584 + $0x328] sm:$0xff] %v2416
        %2609 = vst [vmem:[%s584 + $0x330] sm:$0xff] %v2417
        %2610 = vst [vmem:[%s584 + $0x338] sm:$0xff] %v2418
        %2611 = vst [vmem:[%s584 + $0x340] sm:$0xff] %v2419
        %2612 = vst [vmem:[%s584 + $0x348] sm:$0xff] %v2420
        %2613 = vst [vmem:[%s584 + $0x350] sm:$0xff] %v2421
        %2614 = vst [vmem:[%s584 + $0x358] sm:$0xff] %v2422
        %2615 = vst [vmem:[%s584 + $0x360] sm:$0xff] %v2423
        %2616 = vst [vmem:[%s584 + $0x368] sm:$0xff] %v2424
        %2617 = vst [vmem:[%s584 + $0x370] sm:$0xff] %v2425
        %2618 = vst [vmem:[%s584 + $0x378] sm:$0xff] %v2426
        %2619 = vst [vmem:[%s584 + $0x380] sm:$0xff] %v2427
        %2620 = vst [vmem:[%s584 + $0x388] sm:$0xff] %v2428
        %2621 = vst [vmem:[%s584 + $0x390] sm:$0xff] %v2429
        %2622 = vst [vmem:[%s584 + $0x398] sm:$0xff] %v2430
        %2623 = vst [vmem:[%s584 + $0x3a0] sm:$0xff] %v2431
        %2624 = vst [vmem:[%s584 + $0x3a8] sm:$0xff] %v2432
        %2625 = vst [vmem:[%s584 + $0x3b0] sm:$0xff] %v2433
        %2626 = vst [vmem:[%s584 + $0x3b8] sm:$0xff] %v2434
        %2627 = vst [vmem:[%s584 + $0x3c0] sm:$0xff] %v2435
        %2628 = vst [vmem:[%s584 + $0x3c8] sm:$0xff] %v2436
        %2629 = vst [vmem:[%s584 + $0x3d0] sm:$0xff] %v2437
        %2630 = vst [vmem:[%s584 + $0x3d8] sm:$0xff] %v2438
        %2631 = vst [vmem:[%s584 + $0x3e0] sm:$0xff] %v2439
        %2632 = vst [vmem:[%s584 + $0x3e8] sm:$0xff] %v2440
        %2633 = vst [vmem:[%s584 + $0x3f0] sm:$0xff] %v2441
        %2634 = vst [vmem:[%s584 + $0x3f8] sm:$0xff] %v2442
        %2635 = vst [vmem:[%s584 + $0x400] sm:$0xff] %v2443
        %2636 = vst [vmem:[%s584 + $0x408] sm:$0xff] %v2444
        %2637 = vst [vmem:[%s584 + $0x410] sm:$0xff] %v2445
        %2638 = vst [vmem:[%s584 + $0x418] sm:$0xff] %v2446
        %2639 = vst [vmem:[%s584 + $0x420] sm:$0xff] %v2447
        %2640 = vst [vmem:[%s584 + $0x428] sm:$0xff] %v2448
        %2641 = vst [vmem:[%s584 + $0x430] sm:$0xff] %v2449
        %2642 = vst [vmem:[%s584 + $0x438] sm:$0xff] %v2450
        %2643 = vst [vmem:[%s584 + $0x440] sm:$0xff] %v2451
        %2644 = vst [vmem:[%s584 + $0x448] sm:$0xff] %v2452
        %2645 = vst [vmem:[%s584 + $0x450] sm:$0xff] %v2453
        %2646 = vst [vmem:[%s584 + $0x458] sm:$0xff] %v2454
        %2647 = vst [vmem:[%s584 + $0x460] sm:$0xff] %v2455
        %2648 = vst [vmem:[%s584 + $0x468] sm:$0xff] %v2456
        %2649 = vst [vmem:[%s584 + $0x470] sm:$0xff] %v2457
        %2650 = vst [vmem:[%s584 + $0x478] sm:$0xff] %v2458
        %2651 = vst [vmem:[%s584 + $0x480] sm:$0xff] %v2459
        %2652 = vst [vmem:[%s584 + $0x488] sm:$0xff] %v2460
        %2653 = vst [vmem:[%s584 + $0x490] sm:$0xff] %v2461
        %2654 = vst [vmem:[%s584 + $0x498] sm:$0xff] %v2462
        %2655 = vst [vmem:[%s584 + $0x4a0] sm:$0xff] %v2463
        %2656 = vst [vmem:[%s584 + $0x4a8] sm:$0xff] %v2464
        %2657 = vst [vmem:[%s584 + $0x4b0] sm:$0xff] %v2465
        %2658 = vst [vmem:[%s584 + $0x4b8] sm:$0xff] %v2466
        %2659 = vst [vmem:[%s584 + $0x4c0] sm:$0xff] %v2467
        %2660 = vst [vmem:[%s584 + $0x4c8] sm:$0xff] %v2468
        %2661 = vst [vmem:[%s584 + $0x4d0] sm:$0xff] %v2469
        %2662 = vst [vmem:[%s584 + $0x4d8] sm:$0xff] %v2470
        %2663 = vst [vmem:[%s584 + $0x4e0] sm:$0xff] %v2471
        %2664 = vst [vmem:[%s584 + $0x4e8] sm:$0xff] %v2472
        %2665 = vst [vmem:[%s584 + $0x4f0] sm:$0xff] %v2473
        %2666 = vst [vmem:[%s584 + $0x4f8] sm:$0xff] %v2474
        %2667 = vst [vmem:[%s584 + $0x500] sm:$0xff] %v2475
        %2668 = vst [vmem:[%s584 + $0x508] sm:$0xff] %v2476
        %2669 = vst [vmem:[%s584 + $0x510] sm:$0xff] %v2477
        %2670 = vst [vmem:[%s584 + $0x518] sm:$0xff] %v2478
        %2671 = vst [vmem:[%s584 + $0x520] sm:$0xff] %v2479
        %2672 = vst [vmem:[%s584 + $0x528] sm:$0xff] %v2480
        %2673 = vst [vmem:[%s584 + $0x530] sm:$0xff] %v2481
        %2674 = vst [vmem:[%s584 + $0x538] sm:$0xff] %v2482
        %2675 = vst [vmem:[%s584 + $0x540] sm:$0xff] %v2483
        %2676 = vst [vmem:[%s584 + $0x548] sm:$0xff] %v2484
        %2677 = vst [vmem:[%s584 + $0x550] sm:$0xff] %v2485
        %2678 = vst [vmem:[%s584 + $0x558] sm:$0xff] %v2486
        %2679 = vst [vmem:[%s584 + $0x560] sm:$0xff] %v2487
        %2680 = vst [vmem:[%s584 + $0x568] sm:$0xff] %v2488
        %2681 = vst [vmem:[%s584 + $0x570] sm:$0xff] %v2489
        %2682 = vst [vmem:[%s584 + $0x578] sm:$0xff] %v2490
        %2683 = vst [vmem:[%s584 + $0x580] sm:$0xff] %v2491
        %2684 = vst [vmem:[%s584 + $0x588] sm:$0xff] %v2492
        %2685 = vst [vmem:[%s584 + $0x590] sm:$0xff] %v2493
        %2686 = vst [vmem:[%s584 + $0x598] sm:$0xff] %v2494
        %2687 = vst [vmem:[%s584 + $0x5a0] sm:$0xff] %v2495
        %2688 = vst [vmem:[%s584 + $0x5a8] sm:$0xff] %v2496
        %2689 = vst [vmem:[%s584 + $0x5b0] sm:$0xff] %v2497
        %2690 = vst [vmem:[%s584 + $0x5b8] sm:$0xff] %v2498
        %2691 = vst [vmem:[%s584 + $0x5c0] sm:$0xff] %v2499
        %2692 = vst [vmem:[%s584 + $0x5c8] sm:$0xff] %v2500
        %2693 = vst [vmem:[%s584 + $0x5d0] sm:$0xff] %v2501
        %2694 = vst [vmem:[%s584 + $0x5d8] sm:$0xff] %v2502
        %2695 = vst [vmem:[%s584 + $0x5e0] sm:$0xff] %v2503
        %2696 = vst [vmem:[%s584 + $0x5e8] sm:$0xff] %v2504
        %2697 = vst [vmem:[%s584 + $0x5f0] sm:$0xff] %v2505
        %2698 = vst [vmem:[%s584 + $0x5f8] sm:$0xff] %v2506
        %s2699 = sand.u32 %s106, 1
        %s2700 = sand.u32 %s106, 1
        %s2701 = smul.addr %s2700, 1536
        %s2702 = scalar_lea.vmem [#allocation3], %s2701
        // Predicated region
        $region56: #{fused_relu_conv1x1_bn_relu.3} parent=50 // pred_check
          %p2703 = pneg %p116
        $region57: #{fused_relu_conv1x1_bn_relu.3} parent=50 // pred_check_branch
          %2705 = sbr.rel (%p2703) target = $region59
        $region58: #{fused_relu_conv1x1_bn_relu.3} parent=50 // pred_region
          %s2706 = smul.u32 2, %s19
          %s2707 = smul.addr %s18, 768
          %s2708 = sadd.s32 %s2706, %s2707
          %s2709 = smul.addr %s2708, 8
          %s2710 = scalar_lea.vmem %s3, %s2709
          // Predicated region
          $region60: #{fused_relu_conv1x1_bn_relu.3} parent=58 // pred_check
            _
          $region61: #{fused_relu_conv1x1_bn_relu.3} parent=58 // pred_check_branch
            %2712 = sbr.rel (0) target = $region63
          $region62: #{fused_relu_conv1x1_bn_relu.3} parent=58 // pred_region
            // Predicated region
            $region64: #{fused_relu_conv1x1_bn_relu.3} parent=62 // pred_check
              _
            $region65: #{fused_relu_conv1x1_bn_relu.3} parent=62 // pred_check_branch
              %2714 = sbr.rel (0) target = $region67
            $region66: #{fused_relu_conv1x1_bn_relu.3} parent=62 // pred_region
              loop: start=0, step=1, limit=1
              $region68: #{fused_relu_conv1x1_bn_relu.3} parent=66 // loop_pre_header
                _
              $region69: #{fused_relu_conv1x1_bn_relu.3} parent=66 // loop_header
                %s2716 = sphi 0, %s2720
                %p2717 = scmp.ge.s32.totalorder %s2716, 1
                %s2721 = sphi %s2702, %s2702
                %s2722 = sphi %s2710, %s2710
              $region70: #{fused_relu_conv1x1_bn_relu.3} parent=66 // loop_header_branch
                %2719 = sbr.rel (%p2717) target = $region74
              $region71: #{fused_relu_conv1x1_bn_relu.3} parent=66 // loop_body
                %v2723 = vld [vmem:[%s2721] sm:$0xff]
                %2724 = vst [vmem:[%s2722] sm:$0xff] %v2723
                %v2725 = vld [vmem:[%s2721 + $0x8] sm:$0xff]
                %2726 = vst [vmem:[%s2722 + $0x8] sm:$0xff] %v2725
                %v2727 = vld [vmem:[%s2721 + $0x10] sm:$0xff]
                %2728 = vst [vmem:[%s2722 + $0x40] sm:$0xff] %v2727
                %v2729 = vld [vmem:[%s2721 + $0x18] sm:$0xff]
                %2730 = vst [vmem:[%s2722 + $0x48] sm:$0xff] %v2729
                %v2731 = vld [vmem:[%s2721 + $0x20] sm:$0xff]
                %2732 = vst [vmem:[%s2722 + $0x80] sm:$0xff] %v2731
                %v2733 = vld [vmem:[%s2721 + $0x28] sm:$0xff]
                %2734 = vst [vmem:[%s2722 + $0x88] sm:$0xff] %v2733
                %v2735 = vld [vmem:[%s2721 + $0x30] sm:$0xff]
                %2736 = vst [vmem:[%s2722 + $0xc0] sm:$0xff] %v2735
                %v2737 = vld [vmem:[%s2721 + $0x38] sm:$0xff]
                %2738 = vst [vmem:[%s2722 + $0xc8] sm:$0xff] %v2737
                %v2739 = vld [vmem:[%s2721 + $0x40] sm:$0xff]
                %2740 = vst [vmem:[%s2722 + $0x100] sm:$0xff] %v2739
                %v2741 = vld [vmem:[%s2721 + $0x48] sm:$0xff]
                %2742 = vst [vmem:[%s2722 + $0x108] sm:$0xff] %v2741
                %v2743 = vld [vmem:[%s2721 + $0x50] sm:$0xff]
                %2744 = vst [vmem:[%s2722 + $0x140] sm:$0xff] %v2743
                %v2745 = vld [vmem:[%s2721 + $0x58] sm:$0xff]
                %2746 = vst [vmem:[%s2722 + $0x148] sm:$0xff] %v2745
                %v2747 = vld [vmem:[%s2721 + $0x60] sm:$0xff]
                %2748 = vst [vmem:[%s2722 + $0x180] sm:$0xff] %v2747
                %v2749 = vld [vmem:[%s2721 + $0x68] sm:$0xff]
                %2750 = vst [vmem:[%s2722 + $0x188] sm:$0xff] %v2749
                %v2751 = vld [vmem:[%s2721 + $0x70] sm:$0xff]
                %2752 = vst [vmem:[%s2722 + $0x1c0] sm:$0xff] %v2751
                %v2753 = vld [vmem:[%s2721 + $0x78] sm:$0xff]
                %2754 = vst [vmem:[%s2722 + $0x1c8] sm:$0xff] %v2753
                %v2755 = vld [vmem:[%s2721 + $0x80] sm:$0xff]
                %2756 = vst [vmem:[%s2722 + $0x200] sm:$0xff] %v2755
                %v2757 = vld [vmem:[%s2721 + $0x88] sm:$0xff]
                %2758 = vst [vmem:[%s2722 + $0x208] sm:$0xff] %v2757
                %v2759 = vld [vmem:[%s2721 + $0x90] sm:$0xff]
                %2760 = vst [vmem:[%s2722 + $0x240] sm:$0xff] %v2759
                %v2761 = vld [vmem:[%s2721 + $0x98] sm:$0xff]
                %2762 = vst [vmem:[%s2722 + $0x248] sm:$0xff] %v2761
                %v2763 = vld [vmem:[%s2721 + $0xa0] sm:$0xff]
                %2764 = vst [vmem:[%s2722 + $0x280] sm:$0xff] %v2763
                %v2765 = vld [vmem:[%s2721 + $0xa8] sm:$0xff]
                %2766 = vst [vmem:[%s2722 + $0x288] sm:$0xff] %v2765
                %v2767 = vld [vmem:[%s2721 + $0xb0] sm:$0xff]
                %2768 = vst [vmem:[%s2722 + $0x2c0] sm:$0xff] %v2767
                %v2769 = vld [vmem:[%s2721 + $0xb8] sm:$0xff]
                %2770 = vst [vmem:[%s2722 + $0x2c8] sm:$0xff] %v2769
                %v2771 = vld [vmem:[%s2721 + $0xc0] sm:$0xff]
                %2772 = vst [vmem:[%s2722 + $0x300] sm:$0xff] %v2771
                %v2773 = vld [vmem:[%s2721 + $0xc8] sm:$0xff]
                %2774 = vst [vmem:[%s2722 + $0x308] sm:$0xff] %v2773
                %v2775 = vld [vmem:[%s2721 + $0xd0] sm:$0xff]
                %2776 = vst [vmem:[%s2722 + $0x340] sm:$0xff] %v2775
                %v2777 = vld [vmem:[%s2721 + $0xd8] sm:$0xff]
                %2778 = vst [vmem:[%s2722 + $0x348] sm:$0xff] %v2777
                %v2779 = vld [vmem:[%s2721 + $0xe0] sm:$0xff]
                %2780 = vst [vmem:[%s2722 + $0x380] sm:$0xff] %v2779
                %v2781 = vld [vmem:[%s2721 + $0xe8] sm:$0xff]
                %2782 = vst [vmem:[%s2722 + $0x388] sm:$0xff] %v2781
                %v2783 = vld [vmem:[%s2721 + $0xf0] sm:$0xff]
                %2784 = vst [vmem:[%s2722 + $0x3c0] sm:$0xff] %v2783
                %v2785 = vld [vmem:[%s2721 + $0xf8] sm:$0xff]
                %2786 = vst [vmem:[%s2722 + $0x3c8] sm:$0xff] %v2785
                %v2787 = vld [vmem:[%s2721 + $0x100] sm:$0xff]
                %2788 = vst [vmem:[%s2722 + $0x400] sm:$0xff] %v2787
                %v2789 = vld [vmem:[%s2721 + $0x108] sm:$0xff]
                %2790 = vst [vmem:[%s2722 + $0x408] sm:$0xff] %v2789
                %v2791 = vld [vmem:[%s2721 + $0x110] sm:$0xff]
                %2792 = vst [vmem:[%s2722 + $0x440] sm:$0xff] %v2791
                %v2793 = vld [vmem:[%s2721 + $0x118] sm:$0xff]
                %2794 = vst [vmem:[%s2722 + $0x448] sm:$0xff] %v2793
                %v2795 = vld [vmem:[%s2721 + $0x120] sm:$0xff]
                %2796 = vst [vmem:[%s2722 + $0x480] sm:$0xff] %v2795
                %v2797 = vld [vmem:[%s2721 + $0x128] sm:$0xff]
                %2798 = vst [vmem:[%s2722 + $0x488] sm:$0xff] %v2797
                %v2799 = vld [vmem:[%s2721 + $0x130] sm:$0xff]
                %2800 = vst [vmem:[%s2722 + $0x4c0] sm:$0xff] %v2799
                %v2801 = vld [vmem:[%s2721 + $0x138] sm:$0xff]
                %2802 = vst [vmem:[%s2722 + $0x4c8] sm:$0xff] %v2801
                %v2803 = vld [vmem:[%s2721 + $0x140] sm:$0xff]
                %2804 = vst [vmem:[%s2722 + $0x500] sm:$0xff] %v2803
                %v2805 = vld [vmem:[%s2721 + $0x148] sm:$0xff]
                %2806 = vst [vmem:[%s2722 + $0x508] sm:$0xff] %v2805
                %v2807 = vld [vmem:[%s2721 + $0x150] sm:$0xff]
                %2808 = vst [vmem:[%s2722 + $0x540] sm:$0xff] %v2807
                %v2809 = vld [vmem:[%s2721 + $0x158] sm:$0xff]
                %2810 = vst [vmem:[%s2722 + $0x548] sm:$0xff] %v2809
                %v2811 = vld [vmem:[%s2721 + $0x160] sm:$0xff]
                %2812 = vst [vmem:[%s2722 + $0x580] sm:$0xff] %v2811
                %v2813 = vld [vmem:[%s2721 + $0x168] sm:$0xff]
                %2814 = vst [vmem:[%s2722 + $0x588] sm:$0xff] %v2813
                %v2815 = vld [vmem:[%s2721 + $0x170] sm:$0xff]
                %2816 = vst [vmem:[%s2722 + $0x5c0] sm:$0xff] %v2815
                %v2817 = vld [vmem:[%s2721 + $0x178] sm:$0xff]
                %2818 = vst [vmem:[%s2722 + $0x5c8] sm:$0xff] %v2817
                %v2819 = vld [vmem:[%s2721 + $0x180] sm:$0xff]
                %2820 = vst [vmem:[%s2722 + $0x600] sm:$0xff] %v2819
                %v2821 = vld [vmem:[%s2721 + $0x188] sm:$0xff]
                %2822 = vst [vmem:[%s2722 + $0x608] sm:$0xff] %v2821
                %v2823 = vld [vmem:[%s2721 + $0x190] sm:$0xff]
                %2824 = vst [vmem:[%s2722 + $0x640] sm:$0xff] %v2823
                %v2825 = vld [vmem:[%s2721 + $0x198] sm:$0xff]
                %2826 = vst [vmem:[%s2722 + $0x648] sm:$0xff] %v2825
                %v2827 = vld [vmem:[%s2721 + $0x1a0] sm:$0xff]
                %2828 = vst [vmem:[%s2722 + $0x680] sm:$0xff] %v2827
                %v2829 = vld [vmem:[%s2721 + $0x1a8] sm:$0xff]
                %2830 = vst [vmem:[%s2722 + $0x688] sm:$0xff] %v2829
                %v2831 = vld [vmem:[%s2721 + $0x1b0] sm:$0xff]
                %2832 = vst [vmem:[%s2722 + $0x6c0] sm:$0xff] %v2831
                %v2833 = vld [vmem:[%s2721 + $0x1b8] sm:$0xff]
                %2834 = vst [vmem:[%s2722 + $0x6c8] sm:$0xff] %v2833
                %v2835 = vld [vmem:[%s2721 + $0x1c0] sm:$0xff]
                %2836 = vst [vmem:[%s2722 + $0x700] sm:$0xff] %v2835
                %v2837 = vld [vmem:[%s2721 + $0x1c8] sm:$0xff]
                %2838 = vst [vmem:[%s2722 + $0x708] sm:$0xff] %v2837
                %v2839 = vld [vmem:[%s2721 + $0x1d0] sm:$0xff]
                %2840 = vst [vmem:[%s2722 + $0x740] sm:$0xff] %v2839
                %v2841 = vld [vmem:[%s2721 + $0x1d8] sm:$0xff]
                %2842 = vst [vmem:[%s2722 + $0x748] sm:$0xff] %v2841
                %v2843 = vld [vmem:[%s2721 + $0x1e0] sm:$0xff]
                %2844 = vst [vmem:[%s2722 + $0x780] sm:$0xff] %v2843
                %v2845 = vld [vmem:[%s2721 + $0x1e8] sm:$0xff]
                %2846 = vst [vmem:[%s2722 + $0x788] sm:$0xff] %v2845
                %v2847 = vld [vmem:[%s2721 + $0x1f0] sm:$0xff]
                %2848 = vst [vmem:[%s2722 + $0x7c0] sm:$0xff] %v2847
                %v2849 = vld [vmem:[%s2721 + $0x1f8] sm:$0xff]
                %2850 = vst [vmem:[%s2722 + $0x7c8] sm:$0xff] %v2849
                %v2851 = vld [vmem:[%s2721 + $0x200] sm:$0xff]
                %2852 = vst [vmem:[%s2722 + $0x800] sm:$0xff] %v2851
                %v2853 = vld [vmem:[%s2721 + $0x208] sm:$0xff]
                %2854 = vst [vmem:[%s2722 + $0x808] sm:$0xff] %v2853
                %v2855 = vld [vmem:[%s2721 + $0x210] sm:$0xff]
                %2856 = vst [vmem:[%s2722 + $0x840] sm:$0xff] %v2855
                %v2857 = vld [vmem:[%s2721 + $0x218] sm:$0xff]
                %2858 = vst [vmem:[%s2722 + $0x848] sm:$0xff] %v2857
                %v2859 = vld [vmem:[%s2721 + $0x220] sm:$0xff]
                %2860 = vst [vmem:[%s2722 + $0x880] sm:$0xff] %v2859
                %v2861 = vld [vmem:[%s2721 + $0x228] sm:$0xff]
                %2862 = vst [vmem:[%s2722 + $0x888] sm:$0xff] %v2861
                %v2863 = vld [vmem:[%s2721 + $0x230] sm:$0xff]
                %2864 = vst [vmem:[%s2722 + $0x8c0] sm:$0xff] %v2863
                %v2865 = vld [vmem:[%s2721 + $0x238] sm:$0xff]
                %2866 = vst [vmem:[%s2722 + $0x8c8] sm:$0xff] %v2865
                %v2867 = vld [vmem:[%s2721 + $0x240] sm:$0xff]
                %2868 = vst [vmem:[%s2722 + $0x900] sm:$0xff] %v2867
                %v2869 = vld [vmem:[%s2721 + $0x248] sm:$0xff]
                %2870 = vst [vmem:[%s2722 + $0x908] sm:$0xff] %v2869
                %v2871 = vld [vmem:[%s2721 + $0x250] sm:$0xff]
                %2872 = vst [vmem:[%s2722 + $0x940] sm:$0xff] %v2871
                %v2873 = vld [vmem:[%s2721 + $0x258] sm:$0xff]
                %2874 = vst [vmem:[%s2722 + $0x948] sm:$0xff] %v2873
                %v2875 = vld [vmem:[%s2721 + $0x260] sm:$0xff]
                %2876 = vst [vmem:[%s2722 + $0x980] sm:$0xff] %v2875
                %v2877 = vld [vmem:[%s2721 + $0x268] sm:$0xff]
                %2878 = vst [vmem:[%s2722 + $0x988] sm:$0xff] %v2877
                %v2879 = vld [vmem:[%s2721 + $0x270] sm:$0xff]
                %2880 = vst [vmem:[%s2722 + $0x9c0] sm:$0xff] %v2879
                %v2881 = vld [vmem:[%s2721 + $0x278] sm:$0xff]
                %2882 = vst [vmem:[%s2722 + $0x9c8] sm:$0xff] %v2881
                %v2883 = vld [vmem:[%s2721 + $0x280] sm:$0xff]
                %2884 = vst [vmem:[%s2722 + $0xa00] sm:$0xff] %v2883
                %v2885 = vld [vmem:[%s2721 + $0x288] sm:$0xff]
                %2886 = vst [vmem:[%s2722 + $0xa08] sm:$0xff] %v2885
                %v2887 = vld [vmem:[%s2721 + $0x290] sm:$0xff]
                %2888 = vst [vmem:[%s2722 + $0xa40] sm:$0xff] %v2887
                %v2889 = vld [vmem:[%s2721 + $0x298] sm:$0xff]
                %2890 = vst [vmem:[%s2722 + $0xa48] sm:$0xff] %v2889
                %v2891 = vld [vmem:[%s2721 + $0x2a0] sm:$0xff]
                %2892 = vst [vmem:[%s2722 + $0xa80] sm:$0xff] %v2891
                %v2893 = vld [vmem:[%s2721 + $0x2a8] sm:$0xff]
                %2894 = vst [vmem:[%s2722 + $0xa88] sm:$0xff] %v2893
                %v2895 = vld [vmem:[%s2721 + $0x2b0] sm:$0xff]
                %2896 = vst [vmem:[%s2722 + $0xac0] sm:$0xff] %v2895
                %v2897 = vld [vmem:[%s2721 + $0x2b8] sm:$0xff]
                %2898 = vst [vmem:[%s2722 + $0xac8] sm:$0xff] %v2897
                %v2899 = vld [vmem:[%s2721 + $0x2c0] sm:$0xff]
                %2900 = vst [vmem:[%s2722 + $0xb00] sm:$0xff] %v2899
                %v2901 = vld [vmem:[%s2721 + $0x2c8] sm:$0xff]
                %2902 = vst [vmem:[%s2722 + $0xb08] sm:$0xff] %v2901
                %v2903 = vld [vmem:[%s2721 + $0x2d0] sm:$0xff]
                %2904 = vst [vmem:[%s2722 + $0xb40] sm:$0xff] %v2903
                %v2905 = vld [vmem:[%s2721 + $0x2d8] sm:$0xff]
                %2906 = vst [vmem:[%s2722 + $0xb48] sm:$0xff] %v2905
                %v2907 = vld [vmem:[%s2721 + $0x2e0] sm:$0xff]
                %2908 = vst [vmem:[%s2722 + $0xb80] sm:$0xff] %v2907
                %v2909 = vld [vmem:[%s2721 + $0x2e8] sm:$0xff]
                %2910 = vst [vmem:[%s2722 + $0xb88] sm:$0xff] %v2909
                %v2911 = vld [vmem:[%s2721 + $0x2f0] sm:$0xff]
                %2912 = vst [vmem:[%s2722 + $0xbc0] sm:$0xff] %v2911
                %v2913 = vld [vmem:[%s2721 + $0x2f8] sm:$0xff]
                %2914 = vst [vmem:[%s2722 + $0xbc8] sm:$0xff] %v2913
                %v2915 = vld [vmem:[%s2721 + $0x300] sm:$0xff]
                %2916 = vst [vmem:[%s2722 + $0xc00] sm:$0xff] %v2915
                %v2917 = vld [vmem:[%s2721 + $0x308] sm:$0xff]
                %2918 = vst [vmem:[%s2722 + $0xc08] sm:$0xff] %v2917
                %v2919 = vld [vmem:[%s2721 + $0x310] sm:$0xff]
                %2920 = vst [vmem:[%s2722 + $0xc40] sm:$0xff] %v2919
                %v2921 = vld [vmem:[%s2721 + $0x318] sm:$0xff]
                %2922 = vst [vmem:[%s2722 + $0xc48] sm:$0xff] %v2921
                %v2923 = vld [vmem:[%s2721 + $0x320] sm:$0xff]
                %2924 = vst [vmem:[%s2722 + $0xc80] sm:$0xff] %v2923
                %v2925 = vld [vmem:[%s2721 + $0x328] sm:$0xff]
                %2926 = vst [vmem:[%s2722 + $0xc88] sm:$0xff] %v2925
                %v2927 = vld [vmem:[%s2721 + $0x330] sm:$0xff]
                %2928 = vst [vmem:[%s2722 + $0xcc0] sm:$0xff] %v2927
                %v2929 = vld [vmem:[%s2721 + $0x338] sm:$0xff]
                %2930 = vst [vmem:[%s2722 + $0xcc8] sm:$0xff] %v2929
                %v2931 = vld [vmem:[%s2721 + $0x340] sm:$0xff]
                %2932 = vst [vmem:[%s2722 + $0xd00] sm:$0xff] %v2931
                %v2933 = vld [vmem:[%s2721 + $0x348] sm:$0xff]
                %2934 = vst [vmem:[%s2722 + $0xd08] sm:$0xff] %v2933
                %v2935 = vld [vmem:[%s2721 + $0x350] sm:$0xff]
                %2936 = vst [vmem:[%s2722 + $0xd40] sm:$0xff] %v2935
                %v2937 = vld [vmem:[%s2721 + $0x358] sm:$0xff]
                %2938 = vst [vmem:[%s2722 + $0xd48] sm:$0xff] %v2937
                %v2939 = vld [vmem:[%s2721 + $0x360] sm:$0xff]
                %2940 = vst [vmem:[%s2722 + $0xd80] sm:$0xff] %v2939
                %v2941 = vld [vmem:[%s2721 + $0x368] sm:$0xff]
                %2942 = vst [vmem:[%s2722 + $0xd88] sm:$0xff] %v2941
                %v2943 = vld [vmem:[%s2721 + $0x370] sm:$0xff]
                %2944 = vst [vmem:[%s2722 + $0xdc0] sm:$0xff] %v2943
                %v2945 = vld [vmem:[%s2721 + $0x378] sm:$0xff]
                %2946 = vst [vmem:[%s2722 + $0xdc8] sm:$0xff] %v2945
                %v2947 = vld [vmem:[%s2721 + $0x380] sm:$0xff]
                %2948 = vst [vmem:[%s2722 + $0xe00] sm:$0xff] %v2947
                %v2949 = vld [vmem:[%s2721 + $0x388] sm:$0xff]
                %2950 = vst [vmem:[%s2722 + $0xe08] sm:$0xff] %v2949
                %v2951 = vld [vmem:[%s2721 + $0x390] sm:$0xff]
                %2952 = vst [vmem:[%s2722 + $0xe40] sm:$0xff] %v2951
                %v2953 = vld [vmem:[%s2721 + $0x398] sm:$0xff]
                %2954 = vst [vmem:[%s2722 + $0xe48] sm:$0xff] %v2953
                %v2955 = vld [vmem:[%s2721 + $0x3a0] sm:$0xff]
                %2956 = vst [vmem:[%s2722 + $0xe80] sm:$0xff] %v2955
                %v2957 = vld [vmem:[%s2721 + $0x3a8] sm:$0xff]
                %2958 = vst [vmem:[%s2722 + $0xe88] sm:$0xff] %v2957
                %v2959 = vld [vmem:[%s2721 + $0x3b0] sm:$0xff]
                %2960 = vst [vmem:[%s2722 + $0xec0] sm:$0xff] %v2959
                %v2961 = vld [vmem:[%s2721 + $0x3b8] sm:$0xff]
                %2962 = vst [vmem:[%s2722 + $0xec8] sm:$0xff] %v2961
                %v2963 = vld [vmem:[%s2721 + $0x3c0] sm:$0xff]
                %2964 = vst [vmem:[%s2722 + $0xf00] sm:$0xff] %v2963
                %v2965 = vld [vmem:[%s2721 + $0x3c8] sm:$0xff]
                %2966 = vst [vmem:[%s2722 + $0xf08] sm:$0xff] %v2965
                %v2967 = vld [vmem:[%s2721 + $0x3d0] sm:$0xff]
                %2968 = vst [vmem:[%s2722 + $0xf40] sm:$0xff] %v2967
                %v2969 = vld [vmem:[%s2721 + $0x3d8] sm:$0xff]
                %2970 = vst [vmem:[%s2722 + $0xf48] sm:$0xff] %v2969
                %v2971 = vld [vmem:[%s2721 + $0x3e0] sm:$0xff]
                %2972 = vst [vmem:[%s2722 + $0xf80] sm:$0xff] %v2971
                %v2973 = vld [vmem:[%s2721 + $0x3e8] sm:$0xff]
                %2974 = vst [vmem:[%s2722 + $0xf88] sm:$0xff] %v2973
                %v2975 = vld [vmem:[%s2721 + $0x3f0] sm:$0xff]
                %2976 = vst [vmem:[%s2722 + $0xfc0] sm:$0xff] %v2975
                %v2977 = vld [vmem:[%s2721 + $0x3f8] sm:$0xff]
                %2978 = vst [vmem:[%s2722 + $0xfc8] sm:$0xff] %v2977
                %v2979 = vld [vmem:[%s2721 + $0x400] sm:$0xff]
                %2980 = vst [vmem:[%s2722 + $0x1000] sm:$0xff] %v2979
                %v2981 = vld [vmem:[%s2721 + $0x408] sm:$0xff]
                %2982 = vst [vmem:[%s2722 + $0x1008] sm:$0xff] %v2981
                %v2983 = vld [vmem:[%s2721 + $0x410] sm:$0xff]
                %2984 = vst [vmem:[%s2722 + $0x1040] sm:$0xff] %v2983
                %v2985 = vld [vmem:[%s2721 + $0x418] sm:$0xff]
                %2986 = vst [vmem:[%s2722 + $0x1048] sm:$0xff] %v2985
                %v2987 = vld [vmem:[%s2721 + $0x420] sm:$0xff]
                %2988 = vst [vmem:[%s2722 + $0x1080] sm:$0xff] %v2987
                %v2989 = vld [vmem:[%s2721 + $0x428] sm:$0xff]
                %2990 = vst [vmem:[%s2722 + $0x1088] sm:$0xff] %v2989
                %v2991 = vld [vmem:[%s2721 + $0x430] sm:$0xff]
                %2992 = vst [vmem:[%s2722 + $0x10c0] sm:$0xff] %v2991
                %v2993 = vld [vmem:[%s2721 + $0x438] sm:$0xff]
                %2994 = vst [vmem:[%s2722 + $0x10c8] sm:$0xff] %v2993
                %v2995 = vld [vmem:[%s2721 + $0x440] sm:$0xff]
                %2996 = vst [vmem:[%s2722 + $0x1100] sm:$0xff] %v2995
                %v2997 = vld [vmem:[%s2721 + $0x448] sm:$0xff]
                %2998 = vst [vmem:[%s2722 + $0x1108] sm:$0xff] %v2997
                %v2999 = vld [vmem:[%s2721 + $0x450] sm:$0xff]
                %3000 = vst [vmem:[%s2722 + $0x1140] sm:$0xff] %v2999
                %v3001 = vld [vmem:[%s2721 + $0x458] sm:$0xff]
                %3002 = vst [vmem:[%s2722 + $0x1148] sm:$0xff] %v3001
                %v3003 = vld [vmem:[%s2721 + $0x460] sm:$0xff]
                %3004 = vst [vmem:[%s2722 + $0x1180] sm:$0xff] %v3003
                %v3005 = vld [vmem:[%s2721 + $0x468] sm:$0xff]
                %3006 = vst [vmem:[%s2722 + $0x1188] sm:$0xff] %v3005
                %v3007 = vld [vmem:[%s2721 + $0x470] sm:$0xff]
                %3008 = vst [vmem:[%s2722 + $0x11c0] sm:$0xff] %v3007
                %v3009 = vld [vmem:[%s2721 + $0x478] sm:$0xff]
                %3010 = vst [vmem:[%s2722 + $0x11c8] sm:$0xff] %v3009
                %v3011 = vld [vmem:[%s2721 + $0x480] sm:$0xff]
                %3012 = vst [vmem:[%s2722 + $0x1200] sm:$0xff] %v3011
                %v3013 = vld [vmem:[%s2721 + $0x488] sm:$0xff]
                %3014 = vst [vmem:[%s2722 + $0x1208] sm:$0xff] %v3013
                %v3015 = vld [vmem:[%s2721 + $0x490] sm:$0xff]
                %3016 = vst [vmem:[%s2722 + $0x1240] sm:$0xff] %v3015
                %v3017 = vld [vmem:[%s2721 + $0x498] sm:$0xff]
                %3018 = vst [vmem:[%s2722 + $0x1248] sm:$0xff] %v3017
                %v3019 = vld [vmem:[%s2721 + $0x4a0] sm:$0xff]
                %3020 = vst [vmem:[%s2722 + $0x1280] sm:$0xff] %v3019
                %v3021 = vld [vmem:[%s2721 + $0x4a8] sm:$0xff]
                %3022 = vst [vmem:[%s2722 + $0x1288] sm:$0xff] %v3021
                %v3023 = vld [vmem:[%s2721 + $0x4b0] sm:$0xff]
                %3024 = vst [vmem:[%s2722 + $0x12c0] sm:$0xff] %v3023
                %v3025 = vld [vmem:[%s2721 + $0x4b8] sm:$0xff]
                %3026 = vst [vmem:[%s2722 + $0x12c8] sm:$0xff] %v3025
                %v3027 = vld [vmem:[%s2721 + $0x4c0] sm:$0xff]
                %3028 = vst [vmem:[%s2722 + $0x1300] sm:$0xff] %v3027
                %v3029 = vld [vmem:[%s2721 + $0x4c8] sm:$0xff]
                %3030 = vst [vmem:[%s2722 + $0x1308] sm:$0xff] %v3029
                %v3031 = vld [vmem:[%s2721 + $0x4d0] sm:$0xff]
                %3032 = vst [vmem:[%s2722 + $0x1340] sm:$0xff] %v3031
                %v3033 = vld [vmem:[%s2721 + $0x4d8] sm:$0xff]
                %3034 = vst [vmem:[%s2722 + $0x1348] sm:$0xff] %v3033
                %v3035 = vld [vmem:[%s2721 + $0x4e0] sm:$0xff]
                %3036 = vst [vmem:[%s2722 + $0x1380] sm:$0xff] %v3035
                %v3037 = vld [vmem:[%s2721 + $0x4e8] sm:$0xff]
                %3038 = vst [vmem:[%s2722 + $0x1388] sm:$0xff] %v3037
                %v3039 = vld [vmem:[%s2721 + $0x4f0] sm:$0xff]
                %3040 = vst [vmem:[%s2722 + $0x13c0] sm:$0xff] %v3039
                %v3041 = vld [vmem:[%s2721 + $0x4f8] sm:$0xff]
                %3042 = vst [vmem:[%s2722 + $0x13c8] sm:$0xff] %v3041
                %v3043 = vld [vmem:[%s2721 + $0x500] sm:$0xff]
                %3044 = vst [vmem:[%s2722 + $0x1400] sm:$0xff] %v3043
                %v3045 = vld [vmem:[%s2721 + $0x508] sm:$0xff]
                %3046 = vst [vmem:[%s2722 + $0x1408] sm:$0xff] %v3045
                %v3047 = vld [vmem:[%s2721 + $0x510] sm:$0xff]
                %3048 = vst [vmem:[%s2722 + $0x1440] sm:$0xff] %v3047
                %v3049 = vld [vmem:[%s2721 + $0x518] sm:$0xff]
                %3050 = vst [vmem:[%s2722 + $0x1448] sm:$0xff] %v3049
                %v3051 = vld [vmem:[%s2721 + $0x520] sm:$0xff]
                %3052 = vst [vmem:[%s2722 + $0x1480] sm:$0xff] %v3051
                %v3053 = vld [vmem:[%s2721 + $0x528] sm:$0xff]
                %3054 = vst [vmem:[%s2722 + $0x1488] sm:$0xff] %v3053
                %v3055 = vld [vmem:[%s2721 + $0x530] sm:$0xff]
                %3056 = vst [vmem:[%s2722 + $0x14c0] sm:$0xff] %v3055
                %v3057 = vld [vmem:[%s2721 + $0x538] sm:$0xff]
                %3058 = vst [vmem:[%s2722 + $0x14c8] sm:$0xff] %v3057
                %v3059 = vld [vmem:[%s2721 + $0x540] sm:$0xff]
                %3060 = vst [vmem:[%s2722 + $0x1500] sm:$0xff] %v3059
                %v3061 = vld [vmem:[%s2721 + $0x548] sm:$0xff]
                %3062 = vst [vmem:[%s2722 + $0x1508] sm:$0xff] %v3061
                %v3063 = vld [vmem:[%s2721 + $0x550] sm:$0xff]
                %3064 = vst [vmem:[%s2722 + $0x1540] sm:$0xff] %v3063
                %v3065 = vld [vmem:[%s2721 + $0x558] sm:$0xff]
                %3066 = vst [vmem:[%s2722 + $0x1548] sm:$0xff] %v3065
                %v3067 = vld [vmem:[%s2721 + $0x560] sm:$0xff]
                %3068 = vst [vmem:[%s2722 + $0x1580] sm:$0xff] %v3067
                %v3069 = vld [vmem:[%s2721 + $0x568] sm:$0xff]
                %3070 = vst [vmem:[%s2722 + $0x1588] sm:$0xff] %v3069
                %v3071 = vld [vmem:[%s2721 + $0x570] sm:$0xff]
                %3072 = vst [vmem:[%s2722 + $0x15c0] sm:$0xff] %v3071
                %v3073 = vld [vmem:[%s2721 + $0x578] sm:$0xff]
                %3074 = vst [vmem:[%s2722 + $0x15c8] sm:$0xff] %v3073
                %v3075 = vld [vmem:[%s2721 + $0x580] sm:$0xff]
                %3076 = vst [vmem:[%s2722 + $0x1600] sm:$0xff] %v3075
                %v3077 = vld [vmem:[%s2721 + $0x588] sm:$0xff]
                %3078 = vst [vmem:[%s2722 + $0x1608] sm:$0xff] %v3077
                %v3079 = vld [vmem:[%s2721 + $0x590] sm:$0xff]
                %3080 = vst [vmem:[%s2722 + $0x1640] sm:$0xff] %v3079
                %v3081 = vld [vmem:[%s2721 + $0x598] sm:$0xff]
                %3082 = vst [vmem:[%s2722 + $0x1648] sm:$0xff] %v3081
                %v3083 = vld [vmem:[%s2721 + $0x5a0] sm:$0xff]
                %3084 = vst [vmem:[%s2722 + $0x1680] sm:$0xff] %v3083
                %v3085 = vld [vmem:[%s2721 + $0x5a8] sm:$0xff]
                %3086 = vst [vmem:[%s2722 + $0x1688] sm:$0xff] %v3085
                %v3087 = vld [vmem:[%s2721 + $0x5b0] sm:$0xff]
                %3088 = vst [vmem:[%s2722 + $0x16c0] sm:$0xff] %v3087
                %v3089 = vld [vmem:[%s2721 + $0x5b8] sm:$0xff]
                %3090 = vst [vmem:[%s2722 + $0x16c8] sm:$0xff] %v3089
                %v3091 = vld [vmem:[%s2721 + $0x5c0] sm:$0xff]
                %3092 = vst [vmem:[%s2722 + $0x1700] sm:$0xff] %v3091
                %v3093 = vld [vmem:[%s2721 + $0x5c8] sm:$0xff]
                %3094 = vst [vmem:[%s2722 + $0x1708] sm:$0xff] %v3093
                %v3095 = vld [vmem:[%s2721 + $0x5d0] sm:$0xff]
                %3096 = vst [vmem:[%s2722 + $0x1740] sm:$0xff] %v3095
                %v3097 = vld [vmem:[%s2721 + $0x5d8] sm:$0xff]
                %3098 = vst [vmem:[%s2722 + $0x1748] sm:$0xff] %v3097
                %v3099 = vld [vmem:[%s2721 + $0x5e0] sm:$0xff]
                %3100 = vst [vmem:[%s2722 + $0x1780] sm:$0xff] %v3099
                %v3101 = vld [vmem:[%s2721 + $0x5e8] sm:$0xff]
                %3102 = vst [vmem:[%s2722 + $0x1788] sm:$0xff] %v3101
                %v3103 = vld [vmem:[%s2721 + $0x5f0] sm:$0xff]
                %3104 = vst [vmem:[%s2722 + $0x17c0] sm:$0xff] %v3103
                %v3105 = vld [vmem:[%s2721 + $0x5f8] sm:$0xff]
                %3106 = vst [vmem:[%s2722 + $0x17c8] sm:$0xff] %v3105
              $region72: #{fused_relu_conv1x1_bn_relu.3} parent=66 // loop_footer
                %s2720 = sadd.s32 1, %s2716
              $region73: #{fused_relu_conv1x1_bn_relu.3} parent=66 // loop_footer_branch
                %2715 = sbr.rel target = $region69
              $region74: #{fused_relu_conv1x1_bn_relu.3} parent=66 // loop_exit
                _
            $region67: #{fused_relu_conv1x1_bn_relu.3} parent=62 // pred_fallthru
              _
            // Predicated region
            $region75: #{fused_relu_conv1x1_bn_relu.3} parent=62 // pred_check
              _
            $region76: #{fused_relu_conv1x1_bn_relu.3} parent=62 // pred_check_branch
              %3108 = sbr.rel target = $region78
            $region77: #{fused_relu_conv1x1_bn_relu.3} parent=62 // pred_region
              _
            $region78: #{fused_relu_conv1x1_bn_relu.3} parent=62 // pred_fallthru
              _
          $region63: #{fused_relu_conv1x1_bn_relu.3} parent=58 // pred_fallthru
            _
          %3109 = vnop
        $region59: #{fused_relu_conv1x1_bn_relu.3} parent=50 // pred_fallthru
          _
      $region51: #{fused_relu_conv1x1_bn_relu.3} parent=5 // pred_fallthru
        _
      %p3110 = scmp.le.s32.totalorder 2, %s9
      // Predicated region
      $region79: #{fused_relu_conv1x1_bn_relu.3} parent=5 // pred_check
        %p3111 = pneg %p3110
      $region80: #{fused_relu_conv1x1_bn_relu.3} parent=5 // pred_check_branch
        %3113 = sbr.rel (%p3111) target = $region82
      $region81: #{fused_relu_conv1x1_bn_relu.3} parent=5 // pred_region
        %s3114 = ssub.s32 %s9, 2
        // Predicated region
        $region83: #{fused_relu_conv1x1_bn_relu.3} parent=81 // pred_check
          %p3115 = pneg %p122
        $region84: #{fused_relu_conv1x1_bn_relu.3} parent=81 // pred_check_branch
          %3117 = sbr.rel (%p3115) target = $region86
        $region85: #{fused_relu_conv1x1_bn_relu.3} parent=81 // pred_region
          %s3118 = sand.u32 %s107, 1
          %s3119 = sand.u32 %s107, 1
          %s3120 = smul.addr %s3119, 1536
          %s3121 = scalar_lea.vmem [#allocation3], %s3120
        $region86: #{fused_relu_conv1x1_bn_relu.3} parent=81 // pred_fallthru
          _
      $region82: #{fused_relu_conv1x1_bn_relu.3} parent=5 // pred_fallthru
        _
    $region6: #{fused_relu_conv1x1_bn_relu.3} parent=1 // loop_footer
      %s13 = sadd.s32 1, %s9
    $region7: #{fused_relu_conv1x1_bn_relu.3} parent=1 // loop_footer_branch
      %8 = sbr.rel target = $region3
    $region8: #{fused_relu_conv1x1_bn_relu.3} parent=1 // loop_exit
      _

// kernel: fused_relu_conv1x1_bn_relu.2
$region0: #{fused_relu_conv1x1_bn_relu.2}
  #allocation0 [shape = 'u32[]', space=smem, size = 0x4, offset = 0x4, fixed_abs, tag = 'smem constant byte address 0x4 - core index']
  #allocation1 [shape = 'u32[144,128]{1,0:T(1,128)}', space=vmem, size = 0x12000, scoped, tag = 'internal scratch']
  %s0 = inlined_call_operand.vmem [shape: bf16[768,768], index: 0, kind: input, shape index: {}]
  %s1 = inlined_call_operand.vmem [shape: bf16[1,768,1024], index: 1, kind: input, shape index: {}]
  %s2 = inlined_call_operand.vmem [shape: f32[1,768,1024], index: 2, kind: output, shape index: {0}]
  %s3 = inlined_call_operand.vmem [shape: f32[768,1], index: 3, kind: output, shape index: {1}]
  %s4 = inlined_call_operand.vmem [shape: f32[768,1], index: 4, kind: output, shape index: {2}]
  %5 = xla_tuple %s2, %s3, %s4
  %s6 = sld [smem:[#allocation0]]
  $region118: #{fused_relu_conv1x1_bn_relu.2} parent=0
    _
  %s8 = ssub.s32 1, %s6
  %s9 = scalar_select 0, %s8, %s6
  $region1: #{fused_relu_conv1x1_bn_relu.2} parent=0
    #allocation2 [shape = 'u8[786432]{0}', space=vmem, size = 0xc0000, scoped, tag = 'input window, operand 1']
    #allocation3 [shape = 'u8[1572864]{0}', space=vmem, size = 0x180000, scoped, tag = 'output window, operand 0']
    loop: start=0, step=1, limit=6
    $region2: #{fused_relu_conv1x1_bn_relu.2} parent=1 // loop_pre_header
      _
    $region3: #{fused_relu_conv1x1_bn_relu.2} parent=1 // loop_header
      %s11 = sphi 0, %s15
      %p12 = scmp.ge.s32.totalorder %s11, 6
      %s18 = sphi 0, %s30
      %s19 = sphi 0, %s26
      %s20 = sphi 0, %s18
      %s21 = sphi 0, %s19
      %s22 = sphi 0, %s20
      %s23 = sphi 0, %s21
      %s31 = sphi 0, %s31
      %s33 = sphi 0, %s31
      %s34 = sphi 0, %s33
      %s48 = sphi 0, %s34
      %s56 = sphi 0, %s58
      %s59 = sphi 0, %s56
      %s60 = sphi 0, %s59
      %s76 = sphi 0, %s60
      %s84 = sphi 0, %s86
      %s87 = sphi 0, %s84
      %s88 = sphi 0, %s87
      %s104 = sphi 0, %s88
      %s108 = sphi 0, %s108
      %s110 = sphi 0, %s108
      %s111 = sphi 0, %s110
      %s125 = sphi 0, %s111
      %s129 = sphi 0, %s129
      %s131 = sphi 0, %s129
      %s132 = sphi 0, %s131
      %s146 = sphi 0, %s132
    $region4: #{fused_relu_conv1x1_bn_relu.2} parent=1 // loop_header_branch
      %14 = sbr.rel (%p12) target = $region8
    $region5: #{fused_relu_conv1x1_bn_relu.2} parent=1 // loop_body
      %s16 = ssub.s32 %s11, 1
      %s17 = ssub.s32 %s11, 2
      %s24 = sadd.s32 1, %s19
      %p25 = scmp.ge.s32.totalorder %s24, 4
      %s26 = scalar_select %p25, 0, %s24
      %s27 = sadd.s32 1, %s18
      %s28 = scalar_select %p25, %s27, %s18
      %p29 = scmp.ge.s32.totalorder %s28, 1
      %s30 = scalar_select %p29, 0, %s28
      %s32 = sadd.s32 %s31, 1
      %p35 = scmp.eq.s32.totalorder %s11, 3
      %p36 = scmp.ne.s32.totalorder %s31, %s33
      %p37 = scmp.eq.s32.totalorder %s11, 0
      %p38 = por %p36, %p37
      %p39 = scmp.ne.s32.totalorder %s31, %s33
      %p40 = scmp.eq.s32.totalorder %s16, 3
      %p41 = por %p39, %p40
      %p42 = scmp.ne.s32.totalorder %s33, %s34
      %p43 = scmp.eq.s32.totalorder %s16, 0
      %p44 = por %p42, %p43
      %p45 = scmp.ne.s32.totalorder %s33, %s34
      %p46 = scmp.eq.s32.totalorder %s17, 3
      %p47 = por %p45, %p46
      %p49 = scmp.ne.s32.totalorder %s34, %s48
      %p50 = scmp.eq.s32.totalorder %s17, 0
      %p51 = por %p49, %p50
      %s52 = ssub.s32 %s18, %s30
      %s53 = ssub.s32 %s19, %s26
      %s54 = sor.u32 %s52, %s53
      %p55 = scmp.eq.s32.totalorder %s54, 0
      %s57 = sadd.s32 %s56, 1
      %s58 = scalar_select %p55, %s56, %s57
      %p61 = pneg %p55
      %p62 = scmp.eq.s32.totalorder %s11, 3
      %p63 = por %p61, %p62
      %p64 = scmp.ne.s32.totalorder %s56, %s59
      %p65 = scmp.eq.s32.totalorder %s11, 0
      %p66 = por %p64, %p65
      %p67 = scmp.ne.s32.totalorder %s56, %s59
      %p68 = scmp.eq.s32.totalorder %s16, 3
      %p69 = por %p67, %p68
      %p70 = scmp.ne.s32.totalorder %s59, %s60
      %p71 = scmp.eq.s32.totalorder %s16, 0
      %p72 = por %p70, %p71
      %p73 = scmp.ne.s32.totalorder %s59, %s60
      %p74 = scmp.eq.s32.totalorder %s17, 3
      %p75 = por %p73, %p74
      %p77 = scmp.ne.s32.totalorder %s60, %s76
      %p78 = scmp.eq.s32.totalorder %s17, 0
      %p79 = por %p77, %p78
      %s80 = ssub.s32 %s18, %s30
      %s81 = ssub.s32 %s19, %s26
      %s82 = sor.u32 %s80, %s81
      %p83 = scmp.eq.s32.totalorder %s82, 0
      %s85 = sadd.s32 %s84, 1
      %s86 = scalar_select %p83, %s84, %s85
      %p89 = pneg %p83
      %p90 = scmp.eq.s32.totalorder %s11, 3
      %p91 = por %p89, %p90
      %p92 = scmp.ne.s32.totalorder %s84, %s87
      %p93 = scmp.eq.s32.totalorder %s11, 0
      %p94 = por %p92, %p93
      %p95 = scmp.ne.s32.totalorder %s84, %s87
      %p96 = scmp.eq.s32.totalorder %s16, 3
      %p97 = por %p95, %p96
      %p98 = scmp.ne.s32.totalorder %s87, %s88
      %p99 = scmp.eq.s32.totalorder %s16, 0
      %p100 = por %p98, %p99
      %p101 = scmp.ne.s32.totalorder %s87, %s88
      %p102 = scmp.eq.s32.totalorder %s17, 3
      %p103 = por %p101, %p102
      %p105 = scmp.ne.s32.totalorder %s88, %s104
      %p106 = scmp.eq.s32.totalorder %s17, 0
      %p107 = por %p105, %p106
      %s109 = sadd.s32 %s108, 1
      %p112 = scmp.eq.s32.totalorder %s11, 3
      %p113 = scmp.ne.s32.totalorder %s108, %s110
      %p114 = scmp.eq.s32.totalorder %s11, 0
      %p115 = por %p113, %p114
      %p116 = scmp.ne.s32.totalorder %s108, %s110
      %p117 = scmp.eq.s32.totalorder %s16, 3
      %p118 = por %p116, %p117
      %p119 = scmp.ne.s32.totalorder %s110, %s111
      %p120 = scmp.eq.s32.totalorder %s16, 0
      %p121 = por %p119, %p120
      %p122 = scmp.ne.s32.totalorder %s110, %s111
      %p123 = scmp.eq.s32.totalorder %s17, 3
      %p124 = por %p122, %p123
      %p126 = scmp.ne.s32.totalorder %s111, %s125
      %p127 = scmp.eq.s32.totalorder %s17, 0
      %p128 = por %p126, %p127
      %s130 = sadd.s32 %s129, 1
      %p133 = scmp.eq.s32.totalorder %s11, 3
      %p134 = scmp.ne.s32.totalorder %s129, %s131
      %p135 = scmp.eq.s32.totalorder %s11, 0
      %p136 = por %p134, %p135
      %p137 = scmp.ne.s32.totalorder %s129, %s131
      %p138 = scmp.eq.s32.totalorder %s16, 3
      %p139 = por %p137, %p138
      %p140 = scmp.ne.s32.totalorder %s131, %s132
      %p141 = scmp.eq.s32.totalorder %s16, 0
      %p142 = por %p140, %p141
      %p143 = scmp.ne.s32.totalorder %s131, %s132
      %p144 = scmp.eq.s32.totalorder %s17, 3
      %p145 = por %p143, %p144
      %p147 = scmp.ne.s32.totalorder %s132, %s146
      %p148 = scmp.eq.s32.totalorder %s17, 0
      %p149 = por %p147, %p148
      %p150 = scmp.le.s32.totalorder 1, %s11
      %p151 = scmp.lt.s32.totalorder %s11, 5
      %p152 = pnand %p150, %p151
      %p153 = pneg %p152
      // Predicated region
      $region9: #{fused_relu_conv1x1_bn_relu.2} parent=5 // pred_check
        _
      $region10: #{fused_relu_conv1x1_bn_relu.2} parent=5 // pred_check_branch
        %155 = sbr.rel (%p152) target = $region12
      $region11: #{fused_relu_conv1x1_bn_relu.2} parent=5 // pred_region
        %s156 = ssub.s32 %s11, 1
        // Predicated region
        $region13: #{fused_relu_conv1x1_bn_relu.2} parent=11 // pred_check
          %p157 = pneg %p44
        $region14: #{fused_relu_conv1x1_bn_relu.2} parent=11 // pred_check_branch
          %159 = sbr.rel (%p157) target = $region16
        $region15: #{fused_relu_conv1x1_bn_relu.2} parent=11 // pred_region
          _
        $region16: #{fused_relu_conv1x1_bn_relu.2} parent=11 // pred_fallthru
          _
      $region12: #{fused_relu_conv1x1_bn_relu.2} parent=5 // pred_fallthru
        _
      %p160 = scmp.lt.s32.totalorder %s11, 4
      // Predicated region
      $region17: #{fused_relu_conv1x1_bn_relu.2} parent=5 // pred_check
        %p161 = pneg %p160
      $region18: #{fused_relu_conv1x1_bn_relu.2} parent=5 // pred_check_branch
        %163 = sbr.rel (%p161) target = $region20
      $region19: #{fused_relu_conv1x1_bn_relu.2} parent=5 // pred_region
        // Predicated region
        $region21: #{fused_relu_conv1x1_bn_relu.2} parent=19 // pred_check
          %p164 = pneg %p66
        $region22: #{fused_relu_conv1x1_bn_relu.2} parent=19 // pred_check_branch
          %166 = sbr.rel (%p164) target = $region24
        $region23: #{fused_relu_conv1x1_bn_relu.2} parent=19 // pred_region
          %s167 = sand.u32 %s56, 1
          %s168 = sand.u32 %s56, 1
          %s169 = smul.addr %s168, 768
          %s170 = scalar_lea.vmem [#allocation2], %s169
          %s171 = smul.u32 2, %s19
          %s172 = smul.addr %s18, 768
          %s173 = sadd.s32 %s171, %s172
          %s174 = smul.addr %s173, 4
          %s175 = scalar_lea.vmem %s1, %s174
          // Predicated region
          $region25: #{fused_relu_conv1x1_bn_relu.2} parent=23 // pred_check
            _
          $region26: #{fused_relu_conv1x1_bn_relu.2} parent=23 // pred_check_branch
            %177 = sbr.rel (0) target = $region28
          $region27: #{fused_relu_conv1x1_bn_relu.2} parent=23 // pred_region
            // Predicated region
            $region29: #{fused_relu_conv1x1_bn_relu.2} parent=27 // pred_check
              _
            $region30: #{fused_relu_conv1x1_bn_relu.2} parent=27 // pred_check_branch
              %179 = sbr.rel (0) target = $region32
            $region31: #{fused_relu_conv1x1_bn_relu.2} parent=27 // pred_region
              // Predicated region
              $region44: #{fused_relu_conv1x1_bn_relu.2} parent=31 // pred_check
                _
              $region45: #{fused_relu_conv1x1_bn_relu.2} parent=31 // pred_check_branch
                %385 = sbr.rel (0) target = $region47
              $region46: #{fused_relu_conv1x1_bn_relu.2} parent=31 // pred_region
                loop: start=0, step=1, limit=1
                $region48: #{fused_relu_conv1x1_bn_relu.2} parent=46 // loop_pre_header
                  _
                $region49: #{fused_relu_conv1x1_bn_relu.2} parent=46 // loop_header
                  %s387 = sphi 0, %s391
                  %p388 = scmp.ge.s32.totalorder %s387, 1
                  %s392 = sphi %s175, %s175
                  %s393 = sphi %s170, %s170
                $region50: #{fused_relu_conv1x1_bn_relu.2} parent=46 // loop_header_branch
                  %390 = sbr.rel (%p388) target = $region54
                $region51: #{fused_relu_conv1x1_bn_relu.2} parent=46 // loop_body
                  %v394 = vld [vmem:[%s392] sm:$0xff]
                  %395 = vst [vmem:[%s393] sm:$0xff] %v394
                  %v396 = vld [vmem:[%s392 + $0x20] sm:$0xff]
                  %397 = vst [vmem:[%s393 + $0x8] sm:$0xff] %v396
                  %v398 = vld [vmem:[%s392 + $0x40] sm:$0xff]
                  %399 = vst [vmem:[%s393 + $0x10] sm:$0xff] %v398
                  %v400 = vld [vmem:[%s392 + $0x60] sm:$0xff]
                  %401 = vst [vmem:[%s393 + $0x18] sm:$0xff] %v400
                  %v402 = vld [vmem:[%s392 + $0x80] sm:$0xff]
                  %403 = vst [vmem:[%s393 + $0x20] sm:$0xff] %v402
                  %v404 = vld [vmem:[%s392 + $0xa0] sm:$0xff]
                  %405 = vst [vmem:[%s393 + $0x28] sm:$0xff] %v404
                  %v406 = vld [vmem:[%s392 + $0xc0] sm:$0xff]
                  %407 = vst [vmem:[%s393 + $0x30] sm:$0xff] %v406
                  %v408 = vld [vmem:[%s392 + $0xe0] sm:$0xff]
                  %409 = vst [vmem:[%s393 + $0x38] sm:$0xff] %v408
                  %v410 = vld [vmem:[%s392 + $0x100] sm:$0xff]
                  %411 = vst [vmem:[%s393 + $0x40] sm:$0xff] %v410
                  %v412 = vld [vmem:[%s392 + $0x120] sm:$0xff]
                  %413 = vst [vmem:[%s393 + $0x48] sm:$0xff] %v412
                  %v414 = vld [vmem:[%s392 + $0x140] sm:$0xff]
                  %415 = vst [vmem:[%s393 + $0x50] sm:$0xff] %v414
                  %v416 = vld [vmem:[%s392 + $0x160] sm:$0xff]
                  %417 = vst [vmem:[%s393 + $0x58] sm:$0xff] %v416
                  %v418 = vld [vmem:[%s392 + $0x180] sm:$0xff]
                  %419 = vst [vmem:[%s393 + $0x60] sm:$0xff] %v418
                  %v420 = vld [vmem:[%s392 + $0x1a0] sm:$0xff]
                  %421 = vst [vmem:[%s393 + $0x68] sm:$0xff] %v420
                  %v422 = vld [vmem:[%s392 + $0x1c0] sm:$0xff]
                  %423 = vst [vmem:[%s393 + $0x70] sm:$0xff] %v422
                  %v424 = vld [vmem:[%s392 + $0x1e0] sm:$0xff]
                  %425 = vst [vmem:[%s393 + $0x78] sm:$0xff] %v424
                  %v426 = vld [vmem:[%s392 + $0x200] sm:$0xff]
                  %427 = vst [vmem:[%s393 + $0x80] sm:$0xff] %v426
                  %v428 = vld [vmem:[%s392 + $0x220] sm:$0xff]
                  %429 = vst [vmem:[%s393 + $0x88] sm:$0xff] %v428
                  %v430 = vld [vmem:[%s392 + $0x240] sm:$0xff]
                  %431 = vst [vmem:[%s393 + $0x90] sm:$0xff] %v430
                  %v432 = vld [vmem:[%s392 + $0x260] sm:$0xff]
                  %433 = vst [vmem:[%s393 + $0x98] sm:$0xff] %v432
                  %v434 = vld [vmem:[%s392 + $0x280] sm:$0xff]
                  %435 = vst [vmem:[%s393 + $0xa0] sm:$0xff] %v434
                  %v436 = vld [vmem:[%s392 + $0x2a0] sm:$0xff]
                  %437 = vst [vmem:[%s393 + $0xa8] sm:$0xff] %v436
                  %v438 = vld [vmem:[%s392 + $0x2c0] sm:$0xff]
                  %439 = vst [vmem:[%s393 + $0xb0] sm:$0xff] %v438
                  %v440 = vld [vmem:[%s392 + $0x2e0] sm:$0xff]
                  %441 = vst [vmem:[%s393 + $0xb8] sm:$0xff] %v440
                  %v442 = vld [vmem:[%s392 + $0x300] sm:$0xff]
                  %443 = vst [vmem:[%s393 + $0xc0] sm:$0xff] %v442
                  %v444 = vld [vmem:[%s392 + $0x320] sm:$0xff]
                  %445 = vst [vmem:[%s393 + $0xc8] sm:$0xff] %v444
                  %v446 = vld [vmem:[%s392 + $0x340] sm:$0xff]
                  %447 = vst [vmem:[%s393 + $0xd0] sm:$0xff] %v446
                  %v448 = vld [vmem:[%s392 + $0x360] sm:$0xff]
                  %449 = vst [vmem:[%s393 + $0xd8] sm:$0xff] %v448
                  %v450 = vld [vmem:[%s392 + $0x380] sm:$0xff]
                  %451 = vst [vmem:[%s393 + $0xe0] sm:$0xff] %v450
                  %v452 = vld [vmem:[%s392 + $0x3a0] sm:$0xff]
                  %453 = vst [vmem:[%s393 + $0xe8] sm:$0xff] %v452
                  %v454 = vld [vmem:[%s392 + $0x3c0] sm:$0xff]
                  %455 = vst [vmem:[%s393 + $0xf0] sm:$0xff] %v454
                  %v456 = vld [vmem:[%s392 + $0x3e0] sm:$0xff]
                  %457 = vst [vmem:[%s393 + $0xf8] sm:$0xff] %v456
                  %v458 = vld [vmem:[%s392 + $0x400] sm:$0xff]
                  %459 = vst [vmem:[%s393 + $0x100] sm:$0xff] %v458
                  %v460 = vld [vmem:[%s392 + $0x420] sm:$0xff]
                  %461 = vst [vmem:[%s393 + $0x108] sm:$0xff] %v460
                  %v462 = vld [vmem:[%s392 + $0x440] sm:$0xff]
                  %463 = vst [vmem:[%s393 + $0x110] sm:$0xff] %v462
                  %v464 = vld [vmem:[%s392 + $0x460] sm:$0xff]
                  %465 = vst [vmem:[%s393 + $0x118] sm:$0xff] %v464
                  %v466 = vld [vmem:[%s392 + $0x480] sm:$0xff]
                  %467 = vst [vmem:[%s393 + $0x120] sm:$0xff] %v466
                  %v468 = vld [vmem:[%s392 + $0x4a0] sm:$0xff]
                  %469 = vst [vmem:[%s393 + $0x128] sm:$0xff] %v468
                  %v470 = vld [vmem:[%s392 + $0x4c0] sm:$0xff]
                  %471 = vst [vmem:[%s393 + $0x130] sm:$0xff] %v470
                  %v472 = vld [vmem:[%s392 + $0x4e0] sm:$0xff]
                  %473 = vst [vmem:[%s393 + $0x138] sm:$0xff] %v472
                  %v474 = vld [vmem:[%s392 + $0x500] sm:$0xff]
                  %475 = vst [vmem:[%s393 + $0x140] sm:$0xff] %v474
                  %v476 = vld [vmem:[%s392 + $0x520] sm:$0xff]
                  %477 = vst [vmem:[%s393 + $0x148] sm:$0xff] %v476
                  %v478 = vld [vmem:[%s392 + $0x540] sm:$0xff]
                  %479 = vst [vmem:[%s393 + $0x150] sm:$0xff] %v478
                  %v480 = vld [vmem:[%s392 + $0x560] sm:$0xff]
                  %481 = vst [vmem:[%s393 + $0x158] sm:$0xff] %v480
                  %v482 = vld [vmem:[%s392 + $0x580] sm:$0xff]
                  %483 = vst [vmem:[%s393 + $0x160] sm:$0xff] %v482
                  %v484 = vld [vmem:[%s392 + $0x5a0] sm:$0xff]
                  %485 = vst [vmem:[%s393 + $0x168] sm:$0xff] %v484
                  %v486 = vld [vmem:[%s392 + $0x5c0] sm:$0xff]
                  %487 = vst [vmem:[%s393 + $0x170] sm:$0xff] %v486
                  %v488 = vld [vmem:[%s392 + $0x5e0] sm:$0xff]
                  %489 = vst [vmem:[%s393 + $0x178] sm:$0xff] %v488
                  %v490 = vld [vmem:[%s392 + $0x600] sm:$0xff]
                  %491 = vst [vmem:[%s393 + $0x180] sm:$0xff] %v490
                  %v492 = vld [vmem:[%s392 + $0x620] sm:$0xff]
                  %493 = vst [vmem:[%s393 + $0x188] sm:$0xff] %v492
                  %v494 = vld [vmem:[%s392 + $0x640] sm:$0xff]
                  %495 = vst [vmem:[%s393 + $0x190] sm:$0xff] %v494
                  %v496 = vld [vmem:[%s392 + $0x660] sm:$0xff]
                  %497 = vst [vmem:[%s393 + $0x198] sm:$0xff] %v496
                  %v498 = vld [vmem:[%s392 + $0x680] sm:$0xff]
                  %499 = vst [vmem:[%s393 + $0x1a0] sm:$0xff] %v498
                  %v500 = vld [vmem:[%s392 + $0x6a0] sm:$0xff]
                  %501 = vst [vmem:[%s393 + $0x1a8] sm:$0xff] %v500
                  %v502 = vld [vmem:[%s392 + $0x6c0] sm:$0xff]
                  %503 = vst [vmem:[%s393 + $0x1b0] sm:$0xff] %v502
                  %v504 = vld [vmem:[%s392 + $0x6e0] sm:$0xff]
                  %505 = vst [vmem:[%s393 + $0x1b8] sm:$0xff] %v504
                  %v506 = vld [vmem:[%s392 + $0x700] sm:$0xff]
                  %507 = vst [vmem:[%s393 + $0x1c0] sm:$0xff] %v506
                  %v508 = vld [vmem:[%s392 + $0x720] sm:$0xff]
                  %509 = vst [vmem:[%s393 + $0x1c8] sm:$0xff] %v508
                  %v510 = vld [vmem:[%s392 + $0x740] sm:$0xff]
                  %511 = vst [vmem:[%s393 + $0x1d0] sm:$0xff] %v510
                  %v512 = vld [vmem:[%s392 + $0x760] sm:$0xff]
                  %513 = vst [vmem:[%s393 + $0x1d8] sm:$0xff] %v512
                  %v514 = vld [vmem:[%s392 + $0x780] sm:$0xff]
                  %515 = vst [vmem:[%s393 + $0x1e0] sm:$0xff] %v514
                  %v516 = vld [vmem:[%s392 + $0x7a0] sm:$0xff]
                  %517 = vst [vmem:[%s393 + $0x1e8] sm:$0xff] %v516
                  %v518 = vld [vmem:[%s392 + $0x7c0] sm:$0xff]
                  %519 = vst [vmem:[%s393 + $0x1f0] sm:$0xff] %v518
                  %v520 = vld [vmem:[%s392 + $0x7e0] sm:$0xff]
                  %521 = vst [vmem:[%s393 + $0x1f8] sm:$0xff] %v520
                  %v522 = vld [vmem:[%s392 + $0x800] sm:$0xff]
                  %523 = vst [vmem:[%s393 + $0x200] sm:$0xff] %v522
                  %v524 = vld [vmem:[%s392 + $0x820] sm:$0xff]
                  %525 = vst [vmem:[%s393 + $0x208] sm:$0xff] %v524
                  %v526 = vld [vmem:[%s392 + $0x840] sm:$0xff]
                  %527 = vst [vmem:[%s393 + $0x210] sm:$0xff] %v526
                  %v528 = vld [vmem:[%s392 + $0x860] sm:$0xff]
                  %529 = vst [vmem:[%s393 + $0x218] sm:$0xff] %v528
                  %v530 = vld [vmem:[%s392 + $0x880] sm:$0xff]
                  %531 = vst [vmem:[%s393 + $0x220] sm:$0xff] %v530
                  %v532 = vld [vmem:[%s392 + $0x8a0] sm:$0xff]
                  %533 = vst [vmem:[%s393 + $0x228] sm:$0xff] %v532
                  %v534 = vld [vmem:[%s392 + $0x8c0] sm:$0xff]
                  %535 = vst [vmem:[%s393 + $0x230] sm:$0xff] %v534
                  %v536 = vld [vmem:[%s392 + $0x8e0] sm:$0xff]
                  %537 = vst [vmem:[%s393 + $0x238] sm:$0xff] %v536
                  %v538 = vld [vmem:[%s392 + $0x900] sm:$0xff]
                  %539 = vst [vmem:[%s393 + $0x240] sm:$0xff] %v538
                  %v540 = vld [vmem:[%s392 + $0x920] sm:$0xff]
                  %541 = vst [vmem:[%s393 + $0x248] sm:$0xff] %v540
                  %v542 = vld [vmem:[%s392 + $0x940] sm:$0xff]
                  %543 = vst [vmem:[%s393 + $0x250] sm:$0xff] %v542
                  %v544 = vld [vmem:[%s392 + $0x960] sm:$0xff]
                  %545 = vst [vmem:[%s393 + $0x258] sm:$0xff] %v544
                  %v546 = vld [vmem:[%s392 + $0x980] sm:$0xff]
                  %547 = vst [vmem:[%s393 + $0x260] sm:$0xff] %v546
                  %v548 = vld [vmem:[%s392 + $0x9a0] sm:$0xff]
                  %549 = vst [vmem:[%s393 + $0x268] sm:$0xff] %v548
                  %v550 = vld [vmem:[%s392 + $0x9c0] sm:$0xff]
                  %551 = vst [vmem:[%s393 + $0x270] sm:$0xff] %v550
                  %v552 = vld [vmem:[%s392 + $0x9e0] sm:$0xff]
                  %553 = vst [vmem:[%s393 + $0x278] sm:$0xff] %v552
                  %v554 = vld [vmem:[%s392 + $0xa00] sm:$0xff]
                  %555 = vst [vmem:[%s393 + $0x280] sm:$0xff] %v554
                  %v556 = vld [vmem:[%s392 + $0xa20] sm:$0xff]
                  %557 = vst [vmem:[%s393 + $0x288] sm:$0xff] %v556
                  %v558 = vld [vmem:[%s392 + $0xa40] sm:$0xff]
                  %559 = vst [vmem:[%s393 + $0x290] sm:$0xff] %v558
                  %v560 = vld [vmem:[%s392 + $0xa60] sm:$0xff]
                  %561 = vst [vmem:[%s393 + $0x298] sm:$0xff] %v560
                  %v562 = vld [vmem:[%s392 + $0xa80] sm:$0xff]
                  %563 = vst [vmem:[%s393 + $0x2a0] sm:$0xff] %v562
                  %v564 = vld [vmem:[%s392 + $0xaa0] sm:$0xff]
                  %565 = vst [vmem:[%s393 + $0x2a8] sm:$0xff] %v564
                  %v566 = vld [vmem:[%s392 + $0xac0] sm:$0xff]
                  %567 = vst [vmem:[%s393 + $0x2b0] sm:$0xff] %v566
                  %v568 = vld [vmem:[%s392 + $0xae0] sm:$0xff]
                  %569 = vst [vmem:[%s393 + $0x2b8] sm:$0xff] %v568
                  %v570 = vld [vmem:[%s392 + $0xb00] sm:$0xff]
                  %571 = vst [vmem:[%s393 + $0x2c0] sm:$0xff] %v570
                  %v572 = vld [vmem:[%s392 + $0xb20] sm:$0xff]
                  %573 = vst [vmem:[%s393 + $0x2c8] sm:$0xff] %v572
                  %v574 = vld [vmem:[%s392 + $0xb40] sm:$0xff]
                  %575 = vst [vmem:[%s393 + $0x2d0] sm:$0xff] %v574
                  %v576 = vld [vmem:[%s392 + $0xb60] sm:$0xff]
                  %577 = vst [vmem:[%s393 + $0x2d8] sm:$0xff] %v576
                  %v578 = vld [vmem:[%s392 + $0xb80] sm:$0xff]
                  %579 = vst [vmem:[%s393 + $0x2e0] sm:$0xff] %v578
                  %v580 = vld [vmem:[%s392 + $0xba0] sm:$0xff]
                  %581 = vst [vmem:[%s393 + $0x2e8] sm:$0xff] %v580
                  %v582 = vld [vmem:[%s392 + $0xbc0] sm:$0xff]
                  %583 = vst [vmem:[%s393 + $0x2f0] sm:$0xff] %v582
                  %v584 = vld [vmem:[%s392 + $0xbe0] sm:$0xff]
                  %585 = vst [vmem:[%s393 + $0x2f8] sm:$0xff] %v584
                $region52: #{fused_relu_conv1x1_bn_relu.2} parent=46 // loop_footer
                  %s391 = sadd.s32 1, %s387
                $region53: #{fused_relu_conv1x1_bn_relu.2} parent=46 // loop_footer_branch
                  %386 = sbr.rel target = $region49
                $region54: #{fused_relu_conv1x1_bn_relu.2} parent=46 // loop_exit
                  _
              $region47: #{fused_relu_conv1x1_bn_relu.2} parent=31 // pred_fallthru
                _
              // Predicated region
              $region55: #{fused_relu_conv1x1_bn_relu.2} parent=31 // pred_check
                _
              $region56: #{fused_relu_conv1x1_bn_relu.2} parent=31 // pred_check_branch
                %587 = sbr.rel target = $region58
              $region57: #{fused_relu_conv1x1_bn_relu.2} parent=31 // pred_region
                _
              $region58: #{fused_relu_conv1x1_bn_relu.2} parent=31 // pred_fallthru
                _
            $region32: #{fused_relu_conv1x1_bn_relu.2} parent=27 // pred_fallthru
              _
            // Predicated region
            $region33: #{fused_relu_conv1x1_bn_relu.2} parent=27 // pred_check
              _
            $region34: #{fused_relu_conv1x1_bn_relu.2} parent=27 // pred_check_branch
              %181 = sbr.rel target = $region36
            $region35: #{fused_relu_conv1x1_bn_relu.2} parent=27 // pred_region
              %s183 = ssub.s32 256, 1
              loop: start=0, step=1, limit=1
              $region37: #{fused_relu_conv1x1_bn_relu.2} parent=35 // loop_pre_header
                _
              $region38: #{fused_relu_conv1x1_bn_relu.2} parent=35 // loop_header
                %s185 = sphi 0, %s189
                %p186 = scmp.ge.s32.totalorder %s185, 1
                %s190 = sphi %s175, %s175
                %s191 = sphi %s170, %s170
              $region39: #{fused_relu_conv1x1_bn_relu.2} parent=35 // loop_header_branch
                %188 = sbr.rel (%p186) target = $region43
              $region40: #{fused_relu_conv1x1_bn_relu.2} parent=35 // loop_body
                %v192 = vld [vmem:[%s190] sm:%s183]
                %193 = vst [vmem:[%s191] sm:%s183] %v192
                %v194 = vld [vmem:[%s190 + $0x20] sm:%s183]
                %195 = vst [vmem:[%s191 + $0x8] sm:%s183] %v194
                %v196 = vld [vmem:[%s190 + $0x40] sm:%s183]
                %197 = vst [vmem:[%s191 + $0x10] sm:%s183] %v196
                %v198 = vld [vmem:[%s190 + $0x60] sm:%s183]
                %199 = vst [vmem:[%s191 + $0x18] sm:%s183] %v198
                %v200 = vld [vmem:[%s190 + $0x80] sm:%s183]
                %201 = vst [vmem:[%s191 + $0x20] sm:%s183] %v200
                %v202 = vld [vmem:[%s190 + $0xa0] sm:%s183]
                %203 = vst [vmem:[%s191 + $0x28] sm:%s183] %v202
                %v204 = vld [vmem:[%s190 + $0xc0] sm:%s183]
                %205 = vst [vmem:[%s191 + $0x30] sm:%s183] %v204
                %v206 = vld [vmem:[%s190 + $0xe0] sm:%s183]
                %207 = vst [vmem:[%s191 + $0x38] sm:%s183] %v206
                %v208 = vld [vmem:[%s190 + $0x100] sm:%s183]
                %209 = vst [vmem:[%s191 + $0x40] sm:%s183] %v208
                %v210 = vld [vmem:[%s190 + $0x120] sm:%s183]
                %211 = vst [vmem:[%s191 + $0x48] sm:%s183] %v210
                %v212 = vld [vmem:[%s190 + $0x140] sm:%s183]
                %213 = vst [vmem:[%s191 + $0x50] sm:%s183] %v212
                %v214 = vld [vmem:[%s190 + $0x160] sm:%s183]
                %215 = vst [vmem:[%s191 + $0x58] sm:%s183] %v214
                %v216 = vld [vmem:[%s190 + $0x180] sm:%s183]
                %217 = vst [vmem:[%s191 + $0x60] sm:%s183] %v216
                %v218 = vld [vmem:[%s190 + $0x1a0] sm:%s183]
                %219 = vst [vmem:[%s191 + $0x68] sm:%s183] %v218
                %v220 = vld [vmem:[%s190 + $0x1c0] sm:%s183]
                %221 = vst [vmem:[%s191 + $0x70] sm:%s183] %v220
                %v222 = vld [vmem:[%s190 + $0x1e0] sm:%s183]
                %223 = vst [vmem:[%s191 + $0x78] sm:%s183] %v222
                %v224 = vld [vmem:[%s190 + $0x200] sm:%s183]
                %225 = vst [vmem:[%s191 + $0x80] sm:%s183] %v224
                %v226 = vld [vmem:[%s190 + $0x220] sm:%s183]
                %227 = vst [vmem:[%s191 + $0x88] sm:%s183] %v226
                %v228 = vld [vmem:[%s190 + $0x240] sm:%s183]
                %229 = vst [vmem:[%s191 + $0x90] sm:%s183] %v228
                %v230 = vld [vmem:[%s190 + $0x260] sm:%s183]
                %231 = vst [vmem:[%s191 + $0x98] sm:%s183] %v230
                %v232 = vld [vmem:[%s190 + $0x280] sm:%s183]
                %233 = vst [vmem:[%s191 + $0xa0] sm:%s183] %v232
                %v234 = vld [vmem:[%s190 + $0x2a0] sm:%s183]
                %235 = vst [vmem:[%s191 + $0xa8] sm:%s183] %v234
                %v236 = vld [vmem:[%s190 + $0x2c0] sm:%s183]
                %237 = vst [vmem:[%s191 + $0xb0] sm:%s183] %v236
                %v238 = vld [vmem:[%s190 + $0x2e0] sm:%s183]
                %239 = vst [vmem:[%s191 + $0xb8] sm:%s183] %v238
                %v240 = vld [vmem:[%s190 + $0x300] sm:%s183]
                %241 = vst [vmem:[%s191 + $0xc0] sm:%s183] %v240
                %v242 = vld [vmem:[%s190 + $0x320] sm:%s183]
                %243 = vst [vmem:[%s191 + $0xc8] sm:%s183] %v242
                %v244 = vld [vmem:[%s190 + $0x340] sm:%s183]
                %245 = vst [vmem:[%s191 + $0xd0] sm:%s183] %v244
                %v246 = vld [vmem:[%s190 + $0x360] sm:%s183]
                %247 = vst [vmem:[%s191 + $0xd8] sm:%s183] %v246
                %v248 = vld [vmem:[%s190 + $0x380] sm:%s183]
                %249 = vst [vmem:[%s191 + $0xe0] sm:%s183] %v248
                %v250 = vld [vmem:[%s190 + $0x3a0] sm:%s183]
                %251 = vst [vmem:[%s191 + $0xe8] sm:%s183] %v250
                %v252 = vld [vmem:[%s190 + $0x3c0] sm:%s183]
                %253 = vst [vmem:[%s191 + $0xf0] sm:%s183] %v252
                %v254 = vld [vmem:[%s190 + $0x3e0] sm:%s183]
                %255 = vst [vmem:[%s191 + $0xf8] sm:%s183] %v254
                %v256 = vld [vmem:[%s190 + $0x400] sm:%s183]
                %257 = vst [vmem:[%s191 + $0x100] sm:%s183] %v256
                %v258 = vld [vmem:[%s190 + $0x420] sm:%s183]
                %259 = vst [vmem:[%s191 + $0x108] sm:%s183] %v258
                %v260 = vld [vmem:[%s190 + $0x440] sm:%s183]
                %261 = vst [vmem:[%s191 + $0x110] sm:%s183] %v260
                %v262 = vld [vmem:[%s190 + $0x460] sm:%s183]
                %263 = vst [vmem:[%s191 + $0x118] sm:%s183] %v262
                %v264 = vld [vmem:[%s190 + $0x480] sm:%s183]
                %265 = vst [vmem:[%s191 + $0x120] sm:%s183] %v264
                %v266 = vld [vmem:[%s190 + $0x4a0] sm:%s183]
                %267 = vst [vmem:[%s191 + $0x128] sm:%s183] %v266
                %v268 = vld [vmem:[%s190 + $0x4c0] sm:%s183]
                %269 = vst [vmem:[%s191 + $0x130] sm:%s183] %v268
                %v270 = vld [vmem:[%s190 + $0x4e0] sm:%s183]
                %271 = vst [vmem:[%s191 + $0x138] sm:%s183] %v270
                %v272 = vld [vmem:[%s190 + $0x500] sm:%s183]
                %273 = vst [vmem:[%s191 + $0x140] sm:%s183] %v272
                %v274 = vld [vmem:[%s190 + $0x520] sm:%s183]
                %275 = vst [vmem:[%s191 + $0x148] sm:%s183] %v274
                %v276 = vld [vmem:[%s190 + $0x540] sm:%s183]
                %277 = vst [vmem:[%s191 + $0x150] sm:%s183] %v276
                %v278 = vld [vmem:[%s190 + $0x560] sm:%s183]
                %279 = vst [vmem:[%s191 + $0x158] sm:%s183] %v278
                %v280 = vld [vmem:[%s190 + $0x580] sm:%s183]
                %281 = vst [vmem:[%s191 + $0x160] sm:%s183] %v280
                %v282 = vld [vmem:[%s190 + $0x5a0] sm:%s183]
                %283 = vst [vmem:[%s191 + $0x168] sm:%s183] %v282
                %v284 = vld [vmem:[%s190 + $0x5c0] sm:%s183]
                %285 = vst [vmem:[%s191 + $0x170] sm:%s183] %v284
                %v286 = vld [vmem:[%s190 + $0x5e0] sm:%s183]
                %287 = vst [vmem:[%s191 + $0x178] sm:%s183] %v286
                %v288 = vld [vmem:[%s190 + $0x600] sm:%s183]
                %289 = vst [vmem:[%s191 + $0x180] sm:%s183] %v288
                %v290 = vld [vmem:[%s190 + $0x620] sm:%s183]
                %291 = vst [vmem:[%s191 + $0x188] sm:%s183] %v290
                %v292 = vld [vmem:[%s190 + $0x640] sm:%s183]
                %293 = vst [vmem:[%s191 + $0x190] sm:%s183] %v292
                %v294 = vld [vmem:[%s190 + $0x660] sm:%s183]
                %295 = vst [vmem:[%s191 + $0x198] sm:%s183] %v294
                %v296 = vld [vmem:[%s190 + $0x680] sm:%s183]
                %297 = vst [vmem:[%s191 + $0x1a0] sm:%s183] %v296
                %v298 = vld [vmem:[%s190 + $0x6a0] sm:%s183]
                %299 = vst [vmem:[%s191 + $0x1a8] sm:%s183] %v298
                %v300 = vld [vmem:[%s190 + $0x6c0] sm:%s183]
                %301 = vst [vmem:[%s191 + $0x1b0] sm:%s183] %v300
                %v302 = vld [vmem:[%s190 + $0x6e0] sm:%s183]
                %303 = vst [vmem:[%s191 + $0x1b8] sm:%s183] %v302
                %v304 = vld [vmem:[%s190 + $0x700] sm:%s183]
                %305 = vst [vmem:[%s191 + $0x1c0] sm:%s183] %v304
                %v306 = vld [vmem:[%s190 + $0x720] sm:%s183]
                %307 = vst [vmem:[%s191 + $0x1c8] sm:%s183] %v306
                %v308 = vld [vmem:[%s190 + $0x740] sm:%s183]
                %309 = vst [vmem:[%s191 + $0x1d0] sm:%s183] %v308
                %v310 = vld [vmem:[%s190 + $0x760] sm:%s183]
                %311 = vst [vmem:[%s191 + $0x1d8] sm:%s183] %v310
                %v312 = vld [vmem:[%s190 + $0x780] sm:%s183]
                %313 = vst [vmem:[%s191 + $0x1e0] sm:%s183] %v312
                %v314 = vld [vmem:[%s190 + $0x7a0] sm:%s183]
                %315 = vst [vmem:[%s191 + $0x1e8] sm:%s183] %v314
                %v316 = vld [vmem:[%s190 + $0x7c0] sm:%s183]
                %317 = vst [vmem:[%s191 + $0x1f0] sm:%s183] %v316
                %v318 = vld [vmem:[%s190 + $0x7e0] sm:%s183]
                %319 = vst [vmem:[%s191 + $0x1f8] sm:%s183] %v318
                %v320 = vld [vmem:[%s190 + $0x800] sm:%s183]
                %321 = vst [vmem:[%s191 + $0x200] sm:%s183] %v320
                %v322 = vld [vmem:[%s190 + $0x820] sm:%s183]
                %323 = vst [vmem:[%s191 + $0x208] sm:%s183] %v322
                %v324 = vld [vmem:[%s190 + $0x840] sm:%s183]
                %325 = vst [vmem:[%s191 + $0x210] sm:%s183] %v324
                %v326 = vld [vmem:[%s190 + $0x860] sm:%s183]
                %327 = vst [vmem:[%s191 + $0x218] sm:%s183] %v326
                %v328 = vld [vmem:[%s190 + $0x880] sm:%s183]
                %329 = vst [vmem:[%s191 + $0x220] sm:%s183] %v328
                %v330 = vld [vmem:[%s190 + $0x8a0] sm:%s183]
                %331 = vst [vmem:[%s191 + $0x228] sm:%s183] %v330
                %v332 = vld [vmem:[%s190 + $0x8c0] sm:%s183]
                %333 = vst [vmem:[%s191 + $0x230] sm:%s183] %v332
                %v334 = vld [vmem:[%s190 + $0x8e0] sm:%s183]
                %335 = vst [vmem:[%s191 + $0x238] sm:%s183] %v334
                %v336 = vld [vmem:[%s190 + $0x900] sm:%s183]
                %337 = vst [vmem:[%s191 + $0x240] sm:%s183] %v336
                %v338 = vld [vmem:[%s190 + $0x920] sm:%s183]
                %339 = vst [vmem:[%s191 + $0x248] sm:%s183] %v338
                %v340 = vld [vmem:[%s190 + $0x940] sm:%s183]
                %341 = vst [vmem:[%s191 + $0x250] sm:%s183] %v340
                %v342 = vld [vmem:[%s190 + $0x960] sm:%s183]
                %343 = vst [vmem:[%s191 + $0x258] sm:%s183] %v342
                %v344 = vld [vmem:[%s190 + $0x980] sm:%s183]
                %345 = vst [vmem:[%s191 + $0x260] sm:%s183] %v344
                %v346 = vld [vmem:[%s190 + $0x9a0] sm:%s183]
                %347 = vst [vmem:[%s191 + $0x268] sm:%s183] %v346
                %v348 = vld [vmem:[%s190 + $0x9c0] sm:%s183]
                %349 = vst [vmem:[%s191 + $0x270] sm:%s183] %v348
                %v350 = vld [vmem:[%s190 + $0x9e0] sm:%s183]
                %351 = vst [vmem:[%s191 + $0x278] sm:%s183] %v350
                %v352 = vld [vmem:[%s190 + $0xa00] sm:%s183]
                %353 = vst [vmem:[%s191 + $0x280] sm:%s183] %v352
                %v354 = vld [vmem:[%s190 + $0xa20] sm:%s183]
                %355 = vst [vmem:[%s191 + $0x288] sm:%s183] %v354
                %v356 = vld [vmem:[%s190 + $0xa40] sm:%s183]
                %357 = vst [vmem:[%s191 + $0x290] sm:%s183] %v356
                %v358 = vld [vmem:[%s190 + $0xa60] sm:%s183]
                %359 = vst [vmem:[%s191 + $0x298] sm:%s183] %v358
                %v360 = vld [vmem:[%s190 + $0xa80] sm:%s183]
                %361 = vst [vmem:[%s191 + $0x2a0] sm:%s183] %v360
                %v362 = vld [vmem:[%s190 + $0xaa0] sm:%s183]
                %363 = vst [vmem:[%s191 + $0x2a8] sm:%s183] %v362
                %v364 = vld [vmem:[%s190 + $0xac0] sm:%s183]
                %365 = vst [vmem:[%s191 + $0x2b0] sm:%s183] %v364
                %v366 = vld [vmem:[%s190 + $0xae0] sm:%s183]
                %367 = vst [vmem:[%s191 + $0x2b8] sm:%s183] %v366
                %v368 = vld [vmem:[%s190 + $0xb00] sm:%s183]
                %369 = vst [vmem:[%s191 + $0x2c0] sm:%s183] %v368
                %v370 = vld [vmem:[%s190 + $0xb20] sm:%s183]
                %371 = vst [vmem:[%s191 + $0x2c8] sm:%s183] %v370
                %v372 = vld [vmem:[%s190 + $0xb40] sm:%s183]
                %373 = vst [vmem:[%s191 + $0x2d0] sm:%s183] %v372
                %v374 = vld [vmem:[%s190 + $0xb60] sm:%s183]
                %375 = vst [vmem:[%s191 + $0x2d8] sm:%s183] %v374
                %v376 = vld [vmem:[%s190 + $0xb80] sm:%s183]
                %377 = vst [vmem:[%s191 + $0x2e0] sm:%s183] %v376
                %v378 = vld [vmem:[%s190 + $0xba0] sm:%s183]
                %379 = vst [vmem:[%s191 + $0x2e8] sm:%s183] %v378
                %v380 = vld [vmem:[%s190 + $0xbc0] sm:%s183]
                %381 = vst [vmem:[%s191 + $0x2f0] sm:%s183] %v380
                %v382 = vld [vmem:[%s190 + $0xbe0] sm:%s183]
                %383 = vst [vmem:[%s191 + $0x2f8] sm:%s183] %v382
              $region41: #{fused_relu_conv1x1_bn_relu.2} parent=35 // loop_footer
                %s189 = sadd.s32 1, %s185
              $region42: #{fused_relu_conv1x1_bn_relu.2} parent=35 // loop_footer_branch
                %184 = sbr.rel target = $region38
              $region43: #{fused_relu_conv1x1_bn_relu.2} parent=35 // loop_exit
                _
            $region36: #{fused_relu_conv1x1_bn_relu.2} parent=27 // pred_fallthru
              _
          $region28: #{fused_relu_conv1x1_bn_relu.2} parent=23 // pred_fallthru
            _
          %588 = vnop
        $region24: #{fused_relu_conv1x1_bn_relu.2} parent=19 // pred_fallthru
          _
      $region20: #{fused_relu_conv1x1_bn_relu.2} parent=5 // pred_fallthru
        _
      %p589 = scmp.le.s32.totalorder 1, %s11
      %p590 = scmp.lt.s32.totalorder %s11, 5
      %p591 = pnand %p589, %p590
      %p592 = pneg %p591
      // Predicated region
      $region59: #{fused_relu_conv1x1_bn_relu.2} parent=5 // pred_check
        _
      $region60: #{fused_relu_conv1x1_bn_relu.2} parent=5 // pred_check_branch
        %594 = sbr.rel (%p591) target = $region62
      $region61: #{fused_relu_conv1x1_bn_relu.2} parent=5 // pred_region
        %s595 = ssub.s32 %s11, 1
        %s596 = sand.u32 %s59, 1
        %s597 = sand.u32 %s59, 1
        %s598 = smul.addr %s597, 768
        %s599 = scalar_lea.vmem [#allocation2], %s598
        // Predicated region
        $region63: #{fused_relu_conv1x1_bn_relu.2} parent=61 // pred_check
          %p600 = pneg %p72
        $region64: #{fused_relu_conv1x1_bn_relu.2} parent=61 // pred_check_branch
          %602 = sbr.rel (%p600) target = $region66
        $region65: #{fused_relu_conv1x1_bn_relu.2} parent=61 // pred_region
          _
        $region66: #{fused_relu_conv1x1_bn_relu.2} parent=61 // pred_fallthru
          _
        %p603 = pneg %p44
        %p604 = pneg %p41
        %s605 = sand.u32 %s59, 1
        %s606 = sand.u32 %s59, 1
        %s607 = smul.addr %s606, 768
        %s608 = scalar_lea.vmem [#allocation2], %s607
        %p609 = pneg %p72
        %p610 = pneg %p69
        %p611 = pneg %p100
        %p612 = pneg %p97
        %s613 = sand.u32 %s87, 1
        %s614 = sand.u32 %s87, 1
        %s615 = smul.addr %s614, 1536
        %s616 = scalar_lea.vmem [#allocation3], %s615
        %p617 = pneg %p121
        %p618 = pneg %p118
        %p619 = pneg %p142
        %p620 = pneg %p139
        %s621 = smul.u32 2, %s21
        %s622 = smul.u32 2, %s21
        %v624 = vld [vmem:[%s599] sm:$0xff]
        %v625 = vld [vmem:[%s599 + $0x8] sm:$0xff]
        %v626 = vld [vmem:[%s599 + $0x10] sm:$0xff]
        %v627 = vld [vmem:[%s599 + $0x18] sm:$0xff]
        %v628 = vld [vmem:[%s599 + $0x20] sm:$0xff]
        %v629 = vld [vmem:[%s599 + $0x28] sm:$0xff]
        %v630 = vld [vmem:[%s599 + $0x30] sm:$0xff]
        %v631 = vld [vmem:[%s599 + $0x38] sm:$0xff]
        %v632 = vld [vmem:[%s599 + $0x40] sm:$0xff]
        %v633 = vld [vmem:[%s599 + $0x48] sm:$0xff]
        %v634 = vld [vmem:[%s599 + $0x50] sm:$0xff]
        %v635 = vld [vmem:[%s599 + $0x58] sm:$0xff]
        %v636 = vld [vmem:[%s599 + $0x60] sm:$0xff]
        %v637 = vld [vmem:[%s599 + $0x68] sm:$0xff]
        %v638 = vld [vmem:[%s599 + $0x70] sm:$0xff]
        %v639 = vld [vmem:[%s599 + $0x78] sm:$0xff]
        %v640 = vld [vmem:[%s599 + $0x80] sm:$0xff]
        %v641 = vld [vmem:[%s599 + $0x88] sm:$0xff]
        %v642 = vld [vmem:[%s599 + $0x90] sm:$0xff]
        %v643 = vld [vmem:[%s599 + $0x98] sm:$0xff]
        %v644 = vld [vmem:[%s599 + $0xa0] sm:$0xff]
        %v645 = vld [vmem:[%s599 + $0xa8] sm:$0xff]
        %v646 = vld [vmem:[%s599 + $0xb0] sm:$0xff]
        %v647 = vld [vmem:[%s599 + $0xb8] sm:$0xff]
        %v648 = vld [vmem:[%s599 + $0xc0] sm:$0xff]
        %v649 = vld [vmem:[%s599 + $0xc8] sm:$0xff]
        %v650 = vld [vmem:[%s599 + $0xd0] sm:$0xff]
        %v651 = vld [vmem:[%s599 + $0xd8] sm:$0xff]
        %v652 = vld [vmem:[%s599 + $0xe0] sm:$0xff]
        %v653 = vld [vmem:[%s599 + $0xe8] sm:$0xff]
        %v654 = vld [vmem:[%s599 + $0xf0] sm:$0xff]
        %v655 = vld [vmem:[%s599 + $0xf8] sm:$0xff]
        %v656 = vld [vmem:[%s599 + $0x100] sm:$0xff]
        %v657 = vld [vmem:[%s599 + $0x108] sm:$0xff]
        %v658 = vld [vmem:[%s599 + $0x110] sm:$0xff]
        %v659 = vld [vmem:[%s599 + $0x118] sm:$0xff]
        %v660 = vld [vmem:[%s599 + $0x120] sm:$0xff]
        %v661 = vld [vmem:[%s599 + $0x128] sm:$0xff]
        %v662 = vld [vmem:[%s599 + $0x130] sm:$0xff]
        %v663 = vld [vmem:[%s599 + $0x138] sm:$0xff]
        %v664 = vld [vmem:[%s599 + $0x140] sm:$0xff]
        %v665 = vld [vmem:[%s599 + $0x148] sm:$0xff]
        %v666 = vld [vmem:[%s599 + $0x150] sm:$0xff]
        %v667 = vld [vmem:[%s599 + $0x158] sm:$0xff]
        %v668 = vld [vmem:[%s599 + $0x160] sm:$0xff]
        %v669 = vld [vmem:[%s599 + $0x168] sm:$0xff]
        %v670 = vld [vmem:[%s599 + $0x170] sm:$0xff]
        %v671 = vld [vmem:[%s599 + $0x178] sm:$0xff]
        %v672 = vld [vmem:[%s599 + $0x180] sm:$0xff]
        %v673 = vld [vmem:[%s599 + $0x188] sm:$0xff]
        %v674 = vld [vmem:[%s599 + $0x190] sm:$0xff]
        %v675 = vld [vmem:[%s599 + $0x198] sm:$0xff]
        %v676 = vld [vmem:[%s599 + $0x1a0] sm:$0xff]
        %v677 = vld [vmem:[%s599 + $0x1a8] sm:$0xff]
        %v678 = vld [vmem:[%s599 + $0x1b0] sm:$0xff]
        %v679 = vld [vmem:[%s599 + $0x1b8] sm:$0xff]
        %v680 = vld [vmem:[%s599 + $0x1c0] sm:$0xff]
        %v681 = vld [vmem:[%s599 + $0x1c8] sm:$0xff]
        %v682 = vld [vmem:[%s599 + $0x1d0] sm:$0xff]
        %v683 = vld [vmem:[%s599 + $0x1d8] sm:$0xff]
        %v684 = vld [vmem:[%s599 + $0x1e0] sm:$0xff]
        %v685 = vld [vmem:[%s599 + $0x1e8] sm:$0xff]
        %v686 = vld [vmem:[%s599 + $0x1f0] sm:$0xff]
        %v687 = vld [vmem:[%s599 + $0x1f8] sm:$0xff]
        %v688 = vld [vmem:[%s599 + $0x200] sm:$0xff]
        %v689 = vld [vmem:[%s599 + $0x208] sm:$0xff]
        %v690 = vld [vmem:[%s599 + $0x210] sm:$0xff]
        %v691 = vld [vmem:[%s599 + $0x218] sm:$0xff]
        %v692 = vld [vmem:[%s599 + $0x220] sm:$0xff]
        %v693 = vld [vmem:[%s599 + $0x228] sm:$0xff]
        %v694 = vld [vmem:[%s599 + $0x230] sm:$0xff]
        %v695 = vld [vmem:[%s599 + $0x238] sm:$0xff]
        %v696 = vld [vmem:[%s599 + $0x240] sm:$0xff]
        %v697 = vld [vmem:[%s599 + $0x248] sm:$0xff]
        %v698 = vld [vmem:[%s599 + $0x250] sm:$0xff]
        %v699 = vld [vmem:[%s599 + $0x258] sm:$0xff]
        %v700 = vld [vmem:[%s599 + $0x260] sm:$0xff]
        %v701 = vld [vmem:[%s599 + $0x268] sm:$0xff]
        %v702 = vld [vmem:[%s599 + $0x270] sm:$0xff]
        %v703 = vld [vmem:[%s599 + $0x278] sm:$0xff]
        %v704 = vld [vmem:[%s599 + $0x280] sm:$0xff]
        %v705 = vld [vmem:[%s599 + $0x288] sm:$0xff]
        %v706 = vld [vmem:[%s599 + $0x290] sm:$0xff]
        %v707 = vld [vmem:[%s599 + $0x298] sm:$0xff]
        %v708 = vld [vmem:[%s599 + $0x2a0] sm:$0xff]
        %v709 = vld [vmem:[%s599 + $0x2a8] sm:$0xff]
        %v710 = vld [vmem:[%s599 + $0x2b0] sm:$0xff]
        %v711 = vld [vmem:[%s599 + $0x2b8] sm:$0xff]
        %v712 = vld [vmem:[%s599 + $0x2c0] sm:$0xff]
        %v713 = vld [vmem:[%s599 + $0x2c8] sm:$0xff]
        %v714 = vld [vmem:[%s599 + $0x2d0] sm:$0xff]
        %v715 = vld [vmem:[%s599 + $0x2d8] sm:$0xff]
        %v716 = vld [vmem:[%s599 + $0x2e0] sm:$0xff]
        %v717 = vld [vmem:[%s599 + $0x2e8] sm:$0xff]
        %v718 = vld [vmem:[%s599 + $0x2f0] sm:$0xff]
        %v719 = vld [vmem:[%s599 + $0x2f8] sm:$0xff]
        %v720 = vmax.bf16 %v624, 0
        %v721 = vmax.bf16 %v625, 0
        %v722 = vmax.bf16 %v626, 0
        %v723 = vmax.bf16 %v627, 0
        %v724 = vmax.bf16 %v628, 0
        %v725 = vmax.bf16 %v629, 0
        %v726 = vmax.bf16 %v630, 0
        %v727 = vmax.bf16 %v631, 0
        %v728 = vmax.bf16 %v632, 0
        %v729 = vmax.bf16 %v633, 0
        %v730 = vmax.bf16 %v634, 0
        %v731 = vmax.bf16 %v635, 0
        %v732 = vmax.bf16 %v636, 0
        %v733 = vmax.bf16 %v637, 0
        %v734 = vmax.bf16 %v638, 0
        %v735 = vmax.bf16 %v639, 0
        %v736 = vmax.bf16 %v640, 0
        %v737 = vmax.bf16 %v641, 0
        %v738 = vmax.bf16 %v642, 0
        %v739 = vmax.bf16 %v643, 0
        %v740 = vmax.bf16 %v644, 0
        %v741 = vmax.bf16 %v645, 0
        %v742 = vmax.bf16 %v646, 0
        %v743 = vmax.bf16 %v647, 0
        %v744 = vmax.bf16 %v648, 0
        %v745 = vmax.bf16 %v649, 0
        %v746 = vmax.bf16 %v650, 0
        %v747 = vmax.bf16 %v651, 0
        %v748 = vmax.bf16 %v652, 0
        %v749 = vmax.bf16 %v653, 0
        %v750 = vmax.bf16 %v654, 0
        %v751 = vmax.bf16 %v655, 0
        %v752 = vmax.bf16 %v656, 0
        %v753 = vmax.bf16 %v657, 0
        %v754 = vmax.bf16 %v658, 0
        %v755 = vmax.bf16 %v659, 0
        %v756 = vmax.bf16 %v660, 0
        %v757 = vmax.bf16 %v661, 0
        %v758 = vmax.bf16 %v662, 0
        %v759 = vmax.bf16 %v663, 0
        %v760 = vmax.bf16 %v664, 0
        %v761 = vmax.bf16 %v665, 0
        %v762 = vmax.bf16 %v666, 0
        %v763 = vmax.bf16 %v667, 0
        %v764 = vmax.bf16 %v668, 0
        %v765 = vmax.bf16 %v669, 0
        %v766 = vmax.bf16 %v670, 0
        %v767 = vmax.bf16 %v671, 0
        %v768 = vmax.bf16 %v672, 0
        %v769 = vmax.bf16 %v673, 0
        %v770 = vmax.bf16 %v674, 0
        %v771 = vmax.bf16 %v675, 0
        %v772 = vmax.bf16 %v676, 0
        %v773 = vmax.bf16 %v677, 0
        %v774 = vmax.bf16 %v678, 0
        %v775 = vmax.bf16 %v679, 0
        %v776 = vmax.bf16 %v680, 0
        %v777 = vmax.bf16 %v681, 0
        %v778 = vmax.bf16 %v682, 0
        %v779 = vmax.bf16 %v683, 0
        %v780 = vmax.bf16 %v684, 0
        %v781 = vmax.bf16 %v685, 0
        %v782 = vmax.bf16 %v686, 0
        %v783 = vmax.bf16 %v687, 0
        %v784 = vmax.bf16 %v688, 0
        %v785 = vmax.bf16 %v689, 0
        %v786 = vmax.bf16 %v690, 0
        %v787 = vmax.bf16 %v691, 0
        %v788 = vmax.bf16 %v692, 0
        %v789 = vmax.bf16 %v693, 0
        %v790 = vmax.bf16 %v694, 0
        %v791 = vmax.bf16 %v695, 0
        %v792 = vmax.bf16 %v696, 0
        %v793 = vmax.bf16 %v697, 0
        %v794 = vmax.bf16 %v698, 0
        %v795 = vmax.bf16 %v699, 0
        %v796 = vmax.bf16 %v700, 0
        %v797 = vmax.bf16 %v701, 0
        %v798 = vmax.bf16 %v702, 0
        %v799 = vmax.bf16 %v703, 0
        %v800 = vmax.bf16 %v704, 0
        %v801 = vmax.bf16 %v705, 0
        %v802 = vmax.bf16 %v706, 0
        %v803 = vmax.bf16 %v707, 0
        %v804 = vmax.bf16 %v708, 0
        %v805 = vmax.bf16 %v709, 0
        %v806 = vmax.bf16 %v710, 0
        %v807 = vmax.bf16 %v711, 0
        %v808 = vmax.bf16 %v712, 0
        %v809 = vmax.bf16 %v713, 0
        %v810 = vmax.bf16 %v714, 0
        %v811 = vmax.bf16 %v715, 0
        %v812 = vmax.bf16 %v716, 0
        %v813 = vmax.bf16 %v717, 0
        %v814 = vmax.bf16 %v718, 0
        %v815 = vmax.bf16 %v719, 0
        %v816 = vld [vmem:[%s0] sm:$0xff]
        %v817 = vld [vmem:[%s0 + $0x8] sm:$0xff]
        %v818 = vld [vmem:[%s0 + $0x10] sm:$0xff]
        %v819 = vld [vmem:[%s0 + $0x18] sm:$0xff]
        %v820 = vld [vmem:[%s0 + $0x20] sm:$0xff]
        %v821 = vld [vmem:[%s0 + $0x28] sm:$0xff]
        %v822 = vld [vmem:[%s0 + $0x30] sm:$0xff]
        %v823 = vld [vmem:[%s0 + $0x38] sm:$0xff]
        %v824 = vld [vmem:[%s0 + $0x40] sm:$0xff]
        %v825 = vld [vmem:[%s0 + $0x48] sm:$0xff]
        %v826 = vld [vmem:[%s0 + $0x50] sm:$0xff]
        %v827 = vld [vmem:[%s0 + $0x58] sm:$0xff]
        %v828 = vld [vmem:[%s0 + $0x60] sm:$0xff]
        %v829 = vld [vmem:[%s0 + $0x68] sm:$0xff]
        %v830 = vld [vmem:[%s0 + $0x70] sm:$0xff]
        %v831 = vld [vmem:[%s0 + $0x78] sm:$0xff]
        %v832 = vld [vmem:[%s0 + $0x80] sm:$0xff]
        %v833 = vld [vmem:[%s0 + $0x88] sm:$0xff]
        %v834 = vld [vmem:[%s0 + $0x90] sm:$0xff]
        %v835 = vld [vmem:[%s0 + $0x98] sm:$0xff]
        %v836 = vld [vmem:[%s0 + $0xa0] sm:$0xff]
        %v837 = vld [vmem:[%s0 + $0xa8] sm:$0xff]
        %v838 = vld [vmem:[%s0 + $0xb0] sm:$0xff]
        %v839 = vld [vmem:[%s0 + $0xb8] sm:$0xff]
        %v840 = vld [vmem:[%s0 + $0xc0] sm:$0xff]
        %v841 = vld [vmem:[%s0 + $0xc8] sm:$0xff]
        %v842 = vld [vmem:[%s0 + $0xd0] sm:$0xff]
        %v843 = vld [vmem:[%s0 + $0xd8] sm:$0xff]
        %v844 = vld [vmem:[%s0 + $0xe0] sm:$0xff]
        %v845 = vld [vmem:[%s0 + $0xe8] sm:$0xff]
        %v846 = vld [vmem:[%s0 + $0xf0] sm:$0xff]
        %v847 = vld [vmem:[%s0 + $0xf8] sm:$0xff]
        %v848 = vld [vmem:[%s0 + $0x100] sm:$0xff]
        %v849 = vld [vmem:[%s0 + $0x108] sm:$0xff]
        %v850 = vld [vmem:[%s0 + $0x110] sm:$0xff]
        %v851 = vld [vmem:[%s0 + $0x118] sm:$0xff]
        %v852 = vld [vmem:[%s0 + $0x120] sm:$0xff]
        %v853 = vld [vmem:[%s0 + $0x128] sm:$0xff]
        %v854 = vld [vmem:[%s0 + $0x130] sm:$0xff]
        %v855 = vld [vmem:[%s0 + $0x138] sm:$0xff]
        %v856 = vld [vmem:[%s0 + $0x140] sm:$0xff]
        %v857 = vld [vmem:[%s0 + $0x148] sm:$0xff]
        %v858 = vld [vmem:[%s0 + $0x150] sm:$0xff]
        %v859 = vld [vmem:[%s0 + $0x158] sm:$0xff]
        %v860 = vld [vmem:[%s0 + $0x160] sm:$0xff]
        %v861 = vld [vmem:[%s0 + $0x168] sm:$0xff]
        %v862 = vld [vmem:[%s0 + $0x170] sm:$0xff]
        %v863 = vld [vmem:[%s0 + $0x178] sm:$0xff]
        %v864 = vld [vmem:[%s0 + $0x180] sm:$0xff]
        %v865 = vld [vmem:[%s0 + $0x188] sm:$0xff]
        %v866 = vld [vmem:[%s0 + $0x190] sm:$0xff]
        %v867 = vld [vmem:[%s0 + $0x198] sm:$0xff]
        %v868 = vld [vmem:[%s0 + $0x1a0] sm:$0xff]
        %v869 = vld [vmem:[%s0 + $0x1a8] sm:$0xff]
        %v870 = vld [vmem:[%s0 + $0x1b0] sm:$0xff]
        %v871 = vld [vmem:[%s0 + $0x1b8] sm:$0xff]
        %v872 = vld [vmem:[%s0 + $0x1c0] sm:$0xff]
        %v873 = vld [vmem:[%s0 + $0x1c8] sm:$0xff]
        %v874 = vld [vmem:[%s0 + $0x1d0] sm:$0xff]
        %v875 = vld [vmem:[%s0 + $0x1d8] sm:$0xff]
        %v876 = vld [vmem:[%s0 + $0x1e0] sm:$0xff]
        %v877 = vld [vmem:[%s0 + $0x1e8] sm:$0xff]
        %v878 = vld [vmem:[%s0 + $0x1f0] sm:$0xff]
        %v879 = vld [vmem:[%s0 + $0x1f8] sm:$0xff]
        %v880 = vld [vmem:[%s0 + $0x200] sm:$0xff]
        %v881 = vld [vmem:[%s0 + $0x208] sm:$0xff]
        %v882 = vld [vmem:[%s0 + $0x210] sm:$0xff]
        %v883 = vld [vmem:[%s0 + $0x218] sm:$0xff]
        %v884 = vld [vmem:[%s0 + $0x220] sm:$0xff]
        %v885 = vld [vmem:[%s0 + $0x228] sm:$0xff]
        %v886 = vld [vmem:[%s0 + $0x230] sm:$0xff]
        %v887 = vld [vmem:[%s0 + $0x238] sm:$0xff]
        %v888 = vld [vmem:[%s0 + $0x240] sm:$0xff]
        %v889 = vld [vmem:[%s0 + $0x248] sm:$0xff]
        %v890 = vld [vmem:[%s0 + $0x250] sm:$0xff]
        %v891 = vld [vmem:[%s0 + $0x258] sm:$0xff]
        %v892 = vld [vmem:[%s0 + $0x260] sm:$0xff]
        %v893 = vld [vmem:[%s0 + $0x268] sm:$0xff]
        %v894 = vld [vmem:[%s0 + $0x270] sm:$0xff]
        %v895 = vld [vmem:[%s0 + $0x278] sm:$0xff]
        %v896 = vld [vmem:[%s0 + $0x280] sm:$0xff]
        %v897 = vld [vmem:[%s0 + $0x288] sm:$0xff]
        %v898 = vld [vmem:[%s0 + $0x290] sm:$0xff]
        %v899 = vld [vmem:[%s0 + $0x298] sm:$0xff]
        %v900 = vld [vmem:[%s0 + $0x2a0] sm:$0xff]
        %v901 = vld [vmem:[%s0 + $0x2a8] sm:$0xff]
        %v902 = vld [vmem:[%s0 + $0x2b0] sm:$0xff]
        %v903 = vld [vmem:[%s0 + $0x2b8] sm:$0xff]
        %v904 = vld [vmem:[%s0 + $0x2c0] sm:$0xff]
        %v905 = vld [vmem:[%s0 + $0x2c8] sm:$0xff]
        %v906 = vld [vmem:[%s0 + $0x2d0] sm:$0xff]
        %v907 = vld [vmem:[%s0 + $0x2d8] sm:$0xff]
        %v908 = vld [vmem:[%s0 + $0x2e0] sm:$0xff]
        %v909 = vld [vmem:[%s0 + $0x2e8] sm:$0xff]
        %v910 = vld [vmem:[%s0 + $0x2f0] sm:$0xff]
        %v911 = vld [vmem:[%s0 + $0x2f8] sm:$0xff]
        %v912 = vld [vmem:[%s0 + $0x300] sm:$0xff]
        %v913 = vld [vmem:[%s0 + $0x308] sm:$0xff]
        %v914 = vld [vmem:[%s0 + $0x310] sm:$0xff]
        %v915 = vld [vmem:[%s0 + $0x318] sm:$0xff]
        %v916 = vld [vmem:[%s0 + $0x320] sm:$0xff]
        %v917 = vld [vmem:[%s0 + $0x328] sm:$0xff]
        %v918 = vld [vmem:[%s0 + $0x330] sm:$0xff]
        %v919 = vld [vmem:[%s0 + $0x338] sm:$0xff]
        %v920 = vld [vmem:[%s0 + $0x340] sm:$0xff]
        %v921 = vld [vmem:[%s0 + $0x348] sm:$0xff]
        %v922 = vld [vmem:[%s0 + $0x350] sm:$0xff]
        %v923 = vld [vmem:[%s0 + $0x358] sm:$0xff]
        %v924 = vld [vmem:[%s0 + $0x360] sm:$0xff]
        %v925 = vld [vmem:[%s0 + $0x368] sm:$0xff]
        %v926 = vld [vmem:[%s0 + $0x370] sm:$0xff]
        %v927 = vld [vmem:[%s0 + $0x378] sm:$0xff]
        %v928 = vld [vmem:[%s0 + $0x380] sm:$0xff]
        %v929 = vld [vmem:[%s0 + $0x388] sm:$0xff]
        %v930 = vld [vmem:[%s0 + $0x390] sm:$0xff]
        %v931 = vld [vmem:[%s0 + $0x398] sm:$0xff]
        %v932 = vld [vmem:[%s0 + $0x3a0] sm:$0xff]
        %v933 = vld [vmem:[%s0 + $0x3a8] sm:$0xff]
        %v934 = vld [vmem:[%s0 + $0x3b0] sm:$0xff]
        %v935 = vld [vmem:[%s0 + $0x3b8] sm:$0xff]
        %v936 = vld [vmem:[%s0 + $0x3c0] sm:$0xff]
        %v937 = vld [vmem:[%s0 + $0x3c8] sm:$0xff]
        %v938 = vld [vmem:[%s0 + $0x3d0] sm:$0xff]
        %v939 = vld [vmem:[%s0 + $0x3d8] sm:$0xff]
        %v940 = vld [vmem:[%s0 + $0x3e0] sm:$0xff]
        %v941 = vld [vmem:[%s0 + $0x3e8] sm:$0xff]
        %v942 = vld [vmem:[%s0 + $0x3f0] sm:$0xff]
        %v943 = vld [vmem:[%s0 + $0x3f8] sm:$0xff]
        %v944 = vld [vmem:[%s0 + $0x400] sm:$0xff]
        %v945 = vld [vmem:[%s0 + $0x408] sm:$0xff]
        %v946 = vld [vmem:[%s0 + $0x410] sm:$0xff]
        %v947 = vld [vmem:[%s0 + $0x418] sm:$0xff]
        %v948 = vld [vmem:[%s0 + $0x420] sm:$0xff]
        %v949 = vld [vmem:[%s0 + $0x428] sm:$0xff]
        %v950 = vld [vmem:[%s0 + $0x430] sm:$0xff]
        %v951 = vld [vmem:[%s0 + $0x438] sm:$0xff]
        %v952 = vld [vmem:[%s0 + $0x440] sm:$0xff]
        %v953 = vld [vmem:[%s0 + $0x448] sm:$0xff]
        %v954 = vld [vmem:[%s0 + $0x450] sm:$0xff]
        %v955 = vld [vmem:[%s0 + $0x458] sm:$0xff]
        %v956 = vld [vmem:[%s0 + $0x460] sm:$0xff]
        %v957 = vld [vmem:[%s0 + $0x468] sm:$0xff]
        %v958 = vld [vmem:[%s0 + $0x470] sm:$0xff]
        %v959 = vld [vmem:[%s0 + $0x478] sm:$0xff]
        %v960 = vld [vmem:[%s0 + $0x480] sm:$0xff]
        %v961 = vld [vmem:[%s0 + $0x488] sm:$0xff]
        %v962 = vld [vmem:[%s0 + $0x490] sm:$0xff]
        %v963 = vld [vmem:[%s0 + $0x498] sm:$0xff]
        %v964 = vld [vmem:[%s0 + $0x4a0] sm:$0xff]
        %v965 = vld [vmem:[%s0 + $0x4a8] sm:$0xff]
        %v966 = vld [vmem:[%s0 + $0x4b0] sm:$0xff]
        %v967 = vld [vmem:[%s0 + $0x4b8] sm:$0xff]
        %v968 = vld [vmem:[%s0 + $0x4c0] sm:$0xff]
        %v969 = vld [vmem:[%s0 + $0x4c8] sm:$0xff]
        %v970 = vld [vmem:[%s0 + $0x4d0] sm:$0xff]
        %v971 = vld [vmem:[%s0 + $0x4d8] sm:$0xff]
        %v972 = vld [vmem:[%s0 + $0x4e0] sm:$0xff]
        %v973 = vld [vmem:[%s0 + $0x4e8] sm:$0xff]
        %v974 = vld [vmem:[%s0 + $0x4f0] sm:$0xff]
        %v975 = vld [vmem:[%s0 + $0x4f8] sm:$0xff]
        %v976 = vld [vmem:[%s0 + $0x500] sm:$0xff]
        %v977 = vld [vmem:[%s0 + $0x508] sm:$0xff]
        %v978 = vld [vmem:[%s0 + $0x510] sm:$0xff]
        %v979 = vld [vmem:[%s0 + $0x518] sm:$0xff]
        %v980 = vld [vmem:[%s0 + $0x520] sm:$0xff]
        %v981 = vld [vmem:[%s0 + $0x528] sm:$0xff]
        %v982 = vld [vmem:[%s0 + $0x530] sm:$0xff]
        %v983 = vld [vmem:[%s0 + $0x538] sm:$0xff]
        %v984 = vld [vmem:[%s0 + $0x540] sm:$0xff]
        %v985 = vld [vmem:[%s0 + $0x548] sm:$0xff]
        %v986 = vld [vmem:[%s0 + $0x550] sm:$0xff]
        %v987 = vld [vmem:[%s0 + $0x558] sm:$0xff]
        %v988 = vld [vmem:[%s0 + $0x560] sm:$0xff]
        %v989 = vld [vmem:[%s0 + $0x568] sm:$0xff]
        %v990 = vld [vmem:[%s0 + $0x570] sm:$0xff]
        %v991 = vld [vmem:[%s0 + $0x578] sm:$0xff]
        %v992 = vld [vmem:[%s0 + $0x580] sm:$0xff]
        %v993 = vld [vmem:[%s0 + $0x588] sm:$0xff]
        %v994 = vld [vmem:[%s0 + $0x590] sm:$0xff]
        %v995 = vld [vmem:[%s0 + $0x598] sm:$0xff]
        %v996 = vld [vmem:[%s0 + $0x5a0] sm:$0xff]
        %v997 = vld [vmem:[%s0 + $0x5a8] sm:$0xff]
        %v998 = vld [vmem:[%s0 + $0x5b0] sm:$0xff]
        %v999 = vld [vmem:[%s0 + $0x5b8] sm:$0xff]
        %v1000 = vld [vmem:[%s0 + $0x5c0] sm:$0xff]
        %v1001 = vld [vmem:[%s0 + $0x5c8] sm:$0xff]
        %v1002 = vld [vmem:[%s0 + $0x5d0] sm:$0xff]
        %v1003 = vld [vmem:[%s0 + $0x5d8] sm:$0xff]
        %v1004 = vld [vmem:[%s0 + $0x5e0] sm:$0xff]
        %v1005 = vld [vmem:[%s0 + $0x5e8] sm:$0xff]
        %v1006 = vld [vmem:[%s0 + $0x5f0] sm:$0xff]
        %v1007 = vld [vmem:[%s0 + $0x5f8] sm:$0xff]
        %v1008 = vld [vmem:[%s0 + $0x600] sm:$0xff]
        %v1009 = vld [vmem:[%s0 + $0x608] sm:$0xff]
        %v1010 = vld [vmem:[%s0 + $0x610] sm:$0xff]
        %v1011 = vld [vmem:[%s0 + $0x618] sm:$0xff]
        %v1012 = vld [vmem:[%s0 + $0x620] sm:$0xff]
        %v1013 = vld [vmem:[%s0 + $0x628] sm:$0xff]
        %v1014 = vld [vmem:[%s0 + $0x630] sm:$0xff]
        %v1015 = vld [vmem:[%s0 + $0x638] sm:$0xff]
        %v1016 = vld [vmem:[%s0 + $0x640] sm:$0xff]
        %v1017 = vld [vmem:[%s0 + $0x648] sm:$0xff]
        %v1018 = vld [vmem:[%s0 + $0x650] sm:$0xff]
        %v1019 = vld [vmem:[%s0 + $0x658] sm:$0xff]
        %v1020 = vld [vmem:[%s0 + $0x660] sm:$0xff]
        %v1021 = vld [vmem:[%s0 + $0x668] sm:$0xff]
        %v1022 = vld [vmem:[%s0 + $0x670] sm:$0xff]
        %v1023 = vld [vmem:[%s0 + $0x678] sm:$0xff]
        %v1024 = vld [vmem:[%s0 + $0x680] sm:$0xff]
        %v1025 = vld [vmem:[%s0 + $0x688] sm:$0xff]
        %v1026 = vld [vmem:[%s0 + $0x690] sm:$0xff]
        %v1027 = vld [vmem:[%s0 + $0x698] sm:$0xff]
        %v1028 = vld [vmem:[%s0 + $0x6a0] sm:$0xff]
        %v1029 = vld [vmem:[%s0 + $0x6a8] sm:$0xff]
        %v1030 = vld [vmem:[%s0 + $0x6b0] sm:$0xff]
        %v1031 = vld [vmem:[%s0 + $0x6b8] sm:$0xff]
        %v1032 = vld [vmem:[%s0 + $0x6c0] sm:$0xff]
        %v1033 = vld [vmem:[%s0 + $0x6c8] sm:$0xff]
        %v1034 = vld [vmem:[%s0 + $0x6d0] sm:$0xff]
        %v1035 = vld [vmem:[%s0 + $0x6d8] sm:$0xff]
        %v1036 = vld [vmem:[%s0 + $0x6e0] sm:$0xff]
        %v1037 = vld [vmem:[%s0 + $0x6e8] sm:$0xff]
        %v1038 = vld [vmem:[%s0 + $0x6f0] sm:$0xff]
        %v1039 = vld [vmem:[%s0 + $0x6f8] sm:$0xff]
        %v1040 = vld [vmem:[%s0 + $0x700] sm:$0xff]
        %v1041 = vld [vmem:[%s0 + $0x708] sm:$0xff]
        %v1042 = vld [vmem:[%s0 + $0x710] sm:$0xff]
        %v1043 = vld [vmem:[%s0 + $0x718] sm:$0xff]
        %v1044 = vld [vmem:[%s0 + $0x720] sm:$0xff]
        %v1045 = vld [vmem:[%s0 + $0x728] sm:$0xff]
        %v1046 = vld [vmem:[%s0 + $0x730] sm:$0xff]
        %v1047 = vld [vmem:[%s0 + $0x738] sm:$0xff]
        %v1048 = vld [vmem:[%s0 + $0x740] sm:$0xff]
        %v1049 = vld [vmem:[%s0 + $0x748] sm:$0xff]
        %v1050 = vld [vmem:[%s0 + $0x750] sm:$0xff]
        %v1051 = vld [vmem:[%s0 + $0x758] sm:$0xff]
        %v1052 = vld [vmem:[%s0 + $0x760] sm:$0xff]
        %v1053 = vld [vmem:[%s0 + $0x768] sm:$0xff]
        %v1054 = vld [vmem:[%s0 + $0x770] sm:$0xff]
        %v1055 = vld [vmem:[%s0 + $0x778] sm:$0xff]
        %v1056 = vld [vmem:[%s0 + $0x780] sm:$0xff]
        %v1057 = vld [vmem:[%s0 + $0x788] sm:$0xff]
        %v1058 = vld [vmem:[%s0 + $0x790] sm:$0xff]
        %v1059 = vld [vmem:[%s0 + $0x798] sm:$0xff]
        %v1060 = vld [vmem:[%s0 + $0x7a0] sm:$0xff]
        %v1061 = vld [vmem:[%s0 + $0x7a8] sm:$0xff]
        %v1062 = vld [vmem:[%s0 + $0x7b0] sm:$0xff]
        %v1063 = vld [vmem:[%s0 + $0x7b8] sm:$0xff]
        %v1064 = vld [vmem:[%s0 + $0x7c0] sm:$0xff]
        %v1065 = vld [vmem:[%s0 + $0x7c8] sm:$0xff]
        %v1066 = vld [vmem:[%s0 + $0x7d0] sm:$0xff]
        %v1067 = vld [vmem:[%s0 + $0x7d8] sm:$0xff]
        %v1068 = vld [vmem:[%s0 + $0x7e0] sm:$0xff]
        %v1069 = vld [vmem:[%s0 + $0x7e8] sm:$0xff]
        %v1070 = vld [vmem:[%s0 + $0x7f0] sm:$0xff]
        %v1071 = vld [vmem:[%s0 + $0x7f8] sm:$0xff]
        %v1072 = vld [vmem:[%s0 + $0x800] sm:$0xff]
        %v1073 = vld [vmem:[%s0 + $0x808] sm:$0xff]
        %v1074 = vld [vmem:[%s0 + $0x810] sm:$0xff]
        %v1075 = vld [vmem:[%s0 + $0x818] sm:$0xff]
        %v1076 = vld [vmem:[%s0 + $0x820] sm:$0xff]
        %v1077 = vld [vmem:[%s0 + $0x828] sm:$0xff]
        %v1078 = vld [vmem:[%s0 + $0x830] sm:$0xff]
        %v1079 = vld [vmem:[%s0 + $0x838] sm:$0xff]
        %v1080 = vld [vmem:[%s0 + $0x840] sm:$0xff]
        %v1081 = vld [vmem:[%s0 + $0x848] sm:$0xff]
        %v1082 = vld [vmem:[%s0 + $0x850] sm:$0xff]
        %v1083 = vld [vmem:[%s0 + $0x858] sm:$0xff]
        %v1084 = vld [vmem:[%s0 + $0x860] sm:$0xff]
        %v1085 = vld [vmem:[%s0 + $0x868] sm:$0xff]
        %v1086 = vld [vmem:[%s0 + $0x870] sm:$0xff]
        %v1087 = vld [vmem:[%s0 + $0x878] sm:$0xff]
        %v1088 = vld [vmem:[%s0 + $0x880] sm:$0xff]
        %v1089 = vld [vmem:[%s0 + $0x888] sm:$0xff]
        %v1090 = vld [vmem:[%s0 + $0x890] sm:$0xff]
        %v1091 = vld [vmem:[%s0 + $0x898] sm:$0xff]
        %v1092 = vld [vmem:[%s0 + $0x8a0] sm:$0xff]
        %v1093 = vld [vmem:[%s0 + $0x8a8] sm:$0xff]
        %v1094 = vld [vmem:[%s0 + $0x8b0] sm:$0xff]
        %v1095 = vld [vmem:[%s0 + $0x8b8] sm:$0xff]
        %v1096 = vld [vmem:[%s0 + $0x8c0] sm:$0xff]
        %v1097 = vld [vmem:[%s0 + $0x8c8] sm:$0xff]
        %v1098 = vld [vmem:[%s0 + $0x8d0] sm:$0xff]
        %v1099 = vld [vmem:[%s0 + $0x8d8] sm:$0xff]
        %v1100 = vld [vmem:[%s0 + $0x8e0] sm:$0xff]
        %v1101 = vld [vmem:[%s0 + $0x8e8] sm:$0xff]
        %v1102 = vld [vmem:[%s0 + $0x8f0] sm:$0xff]
        %v1103 = vld [vmem:[%s0 + $0x8f8] sm:$0xff]
        %v1392 = vunpack.c.l.b16 %v816
        %v1393 = vunpack.c.h.b16 %v816
        %v1394 = vunpack.c.l.b16 %v817
        %v1395 = vunpack.c.h.b16 %v817
        %v1396 = vunpack.c.l.b16 %v818
        %v1397 = vunpack.c.h.b16 %v818
        %v1398 = vunpack.c.l.b16 %v819
        %v1399 = vunpack.c.h.b16 %v819
        %v1400 = vunpack.c.l.b16 %v820
        %v1401 = vunpack.c.h.b16 %v820
        %v1402 = vunpack.c.l.b16 %v821
        %v1403 = vunpack.c.h.b16 %v821
        %v1404 = vunpack.c.l.b16 %v822
        %v1405 = vunpack.c.h.b16 %v822
        %v1406 = vunpack.c.l.b16 %v823
        %v1407 = vunpack.c.h.b16 %v823
        %v1408 = vunpack.c.l.b16 %v824
        %v1409 = vunpack.c.h.b16 %v824
        %v1410 = vunpack.c.l.b16 %v825
        %v1411 = vunpack.c.h.b16 %v825
        %v1412 = vunpack.c.l.b16 %v826
        %v1413 = vunpack.c.h.b16 %v826
        %v1414 = vunpack.c.l.b16 %v827
        %v1415 = vunpack.c.h.b16 %v827
        %v1416 = vunpack.c.l.b16 %v828
        %v1417 = vunpack.c.h.b16 %v828
        %v1418 = vunpack.c.l.b16 %v829
        %v1419 = vunpack.c.h.b16 %v829
        %v1420 = vunpack.c.l.b16 %v830
        %v1421 = vunpack.c.h.b16 %v830
        %v1422 = vunpack.c.l.b16 %v831
        %v1423 = vunpack.c.h.b16 %v831
        %v1424 = vunpack.c.l.b16 %v832
        %v1425 = vunpack.c.h.b16 %v832
        %v1426 = vunpack.c.l.b16 %v833
        %v1427 = vunpack.c.h.b16 %v833
        %v1428 = vunpack.c.l.b16 %v834
        %v1429 = vunpack.c.h.b16 %v834
        %v1430 = vunpack.c.l.b16 %v835
        %v1431 = vunpack.c.h.b16 %v835
        %v1432 = vunpack.c.l.b16 %v836
        %v1433 = vunpack.c.h.b16 %v836
        %v1434 = vunpack.c.l.b16 %v837
        %v1435 = vunpack.c.h.b16 %v837
        %v1436 = vunpack.c.l.b16 %v838
        %v1437 = vunpack.c.h.b16 %v838
        %v1438 = vunpack.c.l.b16 %v839
        %v1439 = vunpack.c.h.b16 %v839
        %v1440 = vunpack.c.l.b16 %v840
        %v1441 = vunpack.c.h.b16 %v840
        %v1442 = vunpack.c.l.b16 %v841
        %v1443 = vunpack.c.h.b16 %v841
        %v1444 = vunpack.c.l.b16 %v842
        %v1445 = vunpack.c.h.b16 %v842
        %v1446 = vunpack.c.l.b16 %v843
        %v1447 = vunpack.c.h.b16 %v843
        %v1448 = vunpack.c.l.b16 %v844
        %v1449 = vunpack.c.h.b16 %v844
        %v1450 = vunpack.c.l.b16 %v845
        %v1451 = vunpack.c.h.b16 %v845
        %v1452 = vunpack.c.l.b16 %v846
        %v1453 = vunpack.c.h.b16 %v846
        %v1454 = vunpack.c.l.b16 %v847
        %v1455 = vunpack.c.h.b16 %v847
        %v1456 = vunpack.c.l.b16 %v848
        %v1457 = vunpack.c.h.b16 %v848
        %v1458 = vunpack.c.l.b16 %v849
        %v1459 = vunpack.c.h.b16 %v849
        %v1460 = vunpack.c.l.b16 %v850
        %v1461 = vunpack.c.h.b16 %v850
        %v1462 = vunpack.c.l.b16 %v851
        %v1463 = vunpack.c.h.b16 %v851
        %v1464 = vunpack.c.l.b16 %v852
        %v1465 = vunpack.c.h.b16 %v852
        %v1466 = vunpack.c.l.b16 %v853
        %v1467 = vunpack.c.h.b16 %v853
        %v1468 = vunpack.c.l.b16 %v854
        %v1469 = vunpack.c.h.b16 %v854
        %v1470 = vunpack.c.l.b16 %v855
        %v1471 = vunpack.c.h.b16 %v855
        %v1472 = vunpack.c.l.b16 %v856
        %v1473 = vunpack.c.h.b16 %v856
        %v1474 = vunpack.c.l.b16 %v857
        %v1475 = vunpack.c.h.b16 %v857
        %v1476 = vunpack.c.l.b16 %v858
        %v1477 = vunpack.c.h.b16 %v858
        %v1478 = vunpack.c.l.b16 %v859
        %v1479 = vunpack.c.h.b16 %v859
        %v1480 = vunpack.c.l.b16 %v860
        %v1481 = vunpack.c.h.b16 %v860
        %v1482 = vunpack.c.l.b16 %v861
        %v1483 = vunpack.c.h.b16 %v861
        %v1484 = vunpack.c.l.b16 %v862
        %v1485 = vunpack.c.h.b16 %v862
        %v1486 = vunpack.c.l.b16 %v863
        %v1487 = vunpack.c.h.b16 %v863
        %v1488 = vunpack.c.l.b16 %v864
        %v1489 = vunpack.c.h.b16 %v864
        %v1490 = vunpack.c.l.b16 %v865
        %v1491 = vunpack.c.h.b16 %v865
        %v1492 = vunpack.c.l.b16 %v866
        %v1493 = vunpack.c.h.b16 %v866
        %v1494 = vunpack.c.l.b16 %v867
        %v1495 = vunpack.c.h.b16 %v867
        %v1496 = vunpack.c.l.b16 %v868
        %v1497 = vunpack.c.h.b16 %v868
        %v1498 = vunpack.c.l.b16 %v869
        %v1499 = vunpack.c.h.b16 %v869
        %v1500 = vunpack.c.l.b16 %v870
        %v1501 = vunpack.c.h.b16 %v870
        %v1502 = vunpack.c.l.b16 %v871
        %v1503 = vunpack.c.h.b16 %v871
        %v1504 = vunpack.c.l.b16 %v872
        %v1505 = vunpack.c.h.b16 %v872
        %v1506 = vunpack.c.l.b16 %v873
        %v1507 = vunpack.c.h.b16 %v873
        %v1508 = vunpack.c.l.b16 %v874
        %v1509 = vunpack.c.h.b16 %v874
        %v1510 = vunpack.c.l.b16 %v875
        %v1511 = vunpack.c.h.b16 %v875
        %v1512 = vunpack.c.l.b16 %v876
        %v1513 = vunpack.c.h.b16 %v876
        %v1514 = vunpack.c.l.b16 %v877
        %v1515 = vunpack.c.h.b16 %v877
        %v1516 = vunpack.c.l.b16 %v878
        %v1517 = vunpack.c.h.b16 %v878
        %v1518 = vunpack.c.l.b16 %v879
        %v1519 = vunpack.c.h.b16 %v879
        %v1520 = vunpack.c.l.b16 %v880
        %v1521 = vunpack.c.h.b16 %v880
        %v1522 = vunpack.c.l.b16 %v881
        %v1523 = vunpack.c.h.b16 %v881
        %v1524 = vunpack.c.l.b16 %v882
        %v1525 = vunpack.c.h.b16 %v882
        %v1526 = vunpack.c.l.b16 %v883
        %v1527 = vunpack.c.h.b16 %v883
        %v1528 = vunpack.c.l.b16 %v884
        %v1529 = vunpack.c.h.b16 %v884
        %v1530 = vunpack.c.l.b16 %v885
        %v1531 = vunpack.c.h.b16 %v885
        %v1532 = vunpack.c.l.b16 %v886
        %v1533 = vunpack.c.h.b16 %v886
        %v1534 = vunpack.c.l.b16 %v887
        %v1535 = vunpack.c.h.b16 %v887
        %v1536 = vunpack.c.l.b16 %v888
        %v1537 = vunpack.c.h.b16 %v888
        %v1538 = vunpack.c.l.b16 %v889
        %v1539 = vunpack.c.h.b16 %v889
        %v1540 = vunpack.c.l.b16 %v890
        %v1541 = vunpack.c.h.b16 %v890
        %v1542 = vunpack.c.l.b16 %v891
        %v1543 = vunpack.c.h.b16 %v891
        %v1544 = vunpack.c.l.b16 %v892
        %v1545 = vunpack.c.h.b16 %v892
        %v1546 = vunpack.c.l.b16 %v893
        %v1547 = vunpack.c.h.b16 %v893
        %v1548 = vunpack.c.l.b16 %v894
        %v1549 = vunpack.c.h.b16 %v894
        %v1550 = vunpack.c.l.b16 %v895
        %v1551 = vunpack.c.h.b16 %v895
        %v1552 = vunpack.c.l.b16 %v896
        %v1553 = vunpack.c.h.b16 %v896
        %v1554 = vunpack.c.l.b16 %v897
        %v1555 = vunpack.c.h.b16 %v897
        %v1556 = vunpack.c.l.b16 %v898
        %v1557 = vunpack.c.h.b16 %v898
        %v1558 = vunpack.c.l.b16 %v899
        %v1559 = vunpack.c.h.b16 %v899
        %v1560 = vunpack.c.l.b16 %v900
        %v1561 = vunpack.c.h.b16 %v900
        %v1562 = vunpack.c.l.b16 %v901
        %v1563 = vunpack.c.h.b16 %v901
        %v1564 = vunpack.c.l.b16 %v902
        %v1565 = vunpack.c.h.b16 %v902
        %v1566 = vunpack.c.l.b16 %v903
        %v1567 = vunpack.c.h.b16 %v903
        %v1568 = vunpack.c.l.b16 %v904
        %v1569 = vunpack.c.h.b16 %v904
        %v1570 = vunpack.c.l.b16 %v905
        %v1571 = vunpack.c.h.b16 %v905
        %v1572 = vunpack.c.l.b16 %v906
        %v1573 = vunpack.c.h.b16 %v906
        %v1574 = vunpack.c.l.b16 %v907
        %v1575 = vunpack.c.h.b16 %v907
        %v1576 = vunpack.c.l.b16 %v908
        %v1577 = vunpack.c.h.b16 %v908
        %v1578 = vunpack.c.l.b16 %v909
        %v1579 = vunpack.c.h.b16 %v909
        %v1580 = vunpack.c.l.b16 %v910
        %v1581 = vunpack.c.h.b16 %v910
        %v1582 = vunpack.c.l.b16 %v911
        %v1583 = vunpack.c.h.b16 %v911
        %v1584 = vunpack.c.l.b16 %v912
        %v1585 = vunpack.c.h.b16 %v912
        %v1586 = vunpack.c.l.b16 %v913
        %v1587 = vunpack.c.h.b16 %v913
        %v1588 = vunpack.c.l.b16 %v914
        %v1589 = vunpack.c.h.b16 %v914
        %v1590 = vunpack.c.l.b16 %v915
        %v1591 = vunpack.c.h.b16 %v915
        %v1592 = vunpack.c.l.b16 %v916
        %v1593 = vunpack.c.h.b16 %v916
        %v1594 = vunpack.c.l.b16 %v917
        %v1595 = vunpack.c.h.b16 %v917
        %v1596 = vunpack.c.l.b16 %v918
        %v1597 = vunpack.c.h.b16 %v918
        %v1598 = vunpack.c.l.b16 %v919
        %v1599 = vunpack.c.h.b16 %v919
        %v1600 = vunpack.c.l.b16 %v920
        %v1601 = vunpack.c.h.b16 %v920
        %v1602 = vunpack.c.l.b16 %v921
        %v1603 = vunpack.c.h.b16 %v921
        %v1604 = vunpack.c.l.b16 %v922
        %v1605 = vunpack.c.h.b16 %v922
        %v1606 = vunpack.c.l.b16 %v923
        %v1607 = vunpack.c.h.b16 %v923
        %v1608 = vunpack.c.l.b16 %v924
        %v1609 = vunpack.c.h.b16 %v924
        %v1610 = vunpack.c.l.b16 %v925
        %v1611 = vunpack.c.h.b16 %v925
        %v1612 = vunpack.c.l.b16 %v926
        %v1613 = vunpack.c.h.b16 %v926
        %v1614 = vunpack.c.l.b16 %v927
        %v1615 = vunpack.c.h.b16 %v927
        %v1616 = vunpack.c.l.b16 %v928
        %v1617 = vunpack.c.h.b16 %v928
        %v1618 = vunpack.c.l.b16 %v929
        %v1619 = vunpack.c.h.b16 %v929
        %v1620 = vunpack.c.l.b16 %v930
        %v1621 = vunpack.c.h.b16 %v930
        %v1622 = vunpack.c.l.b16 %v931
        %v1623 = vunpack.c.h.b16 %v931
        %v1624 = vunpack.c.l.b16 %v932
        %v1625 = vunpack.c.h.b16 %v932
        %v1626 = vunpack.c.l.b16 %v933
        %v1627 = vunpack.c.h.b16 %v933
        %v1628 = vunpack.c.l.b16 %v934
        %v1629 = vunpack.c.h.b16 %v934
        %v1630 = vunpack.c.l.b16 %v935
        %v1631 = vunpack.c.h.b16 %v935
        %v1632 = vunpack.c.l.b16 %v936
        %v1633 = vunpack.c.h.b16 %v936
        %v1634 = vunpack.c.l.b16 %v937
        %v1635 = vunpack.c.h.b16 %v937
        %v1636 = vunpack.c.l.b16 %v938
        %v1637 = vunpack.c.h.b16 %v938
        %v1638 = vunpack.c.l.b16 %v939
        %v1639 = vunpack.c.h.b16 %v939
        %v1640 = vunpack.c.l.b16 %v940
        %v1641 = vunpack.c.h.b16 %v940
        %v1642 = vunpack.c.l.b16 %v941
        %v1643 = vunpack.c.h.b16 %v941
        %v1644 = vunpack.c.l.b16 %v942
        %v1645 = vunpack.c.h.b16 %v942
        %v1646 = vunpack.c.l.b16 %v943
        %v1647 = vunpack.c.h.b16 %v943
        %v1648 = vunpack.c.l.b16 %v944
        %v1649 = vunpack.c.h.b16 %v944
        %v1650 = vunpack.c.l.b16 %v945
        %v1651 = vunpack.c.h.b16 %v945
        %v1652 = vunpack.c.l.b16 %v946
        %v1653 = vunpack.c.h.b16 %v946
        %v1654 = vunpack.c.l.b16 %v947
        %v1655 = vunpack.c.h.b16 %v947
        %v1656 = vunpack.c.l.b16 %v948
        %v1657 = vunpack.c.h.b16 %v948
        %v1658 = vunpack.c.l.b16 %v949
        %v1659 = vunpack.c.h.b16 %v949
        %v1660 = vunpack.c.l.b16 %v950
        %v1661 = vunpack.c.h.b16 %v950
        %v1662 = vunpack.c.l.b16 %v951
        %v1663 = vunpack.c.h.b16 %v951
        %v1664 = vunpack.c.l.b16 %v952
        %v1665 = vunpack.c.h.b16 %v952
        %v1666 = vunpack.c.l.b16 %v953
        %v1667 = vunpack.c.h.b16 %v953
        %v1668 = vunpack.c.l.b16 %v954
        %v1669 = vunpack.c.h.b16 %v954
        %v1670 = vunpack.c.l.b16 %v955
        %v1671 = vunpack.c.h.b16 %v955
        %v1672 = vunpack.c.l.b16 %v956
        %v1673 = vunpack.c.h.b16 %v956
        %v1674 = vunpack.c.l.b16 %v957
        %v1675 = vunpack.c.h.b16 %v957
        %v1676 = vunpack.c.l.b16 %v958
        %v1677 = vunpack.c.h.b16 %v958
        %v1678 = vunpack.c.l.b16 %v959
        %v1679 = vunpack.c.h.b16 %v959
        %v1680 = vunpack.c.l.b16 %v960
        %v1681 = vunpack.c.h.b16 %v960
        %v1682 = vunpack.c.l.b16 %v961
        %v1683 = vunpack.c.h.b16 %v961
        %v1684 = vunpack.c.l.b16 %v962
        %v1685 = vunpack.c.h.b16 %v962
        %v1686 = vunpack.c.l.b16 %v963
        %v1687 = vunpack.c.h.b16 %v963
        %v1688 = vunpack.c.l.b16 %v964
        %v1689 = vunpack.c.h.b16 %v964
        %v1690 = vunpack.c.l.b16 %v965
        %v1691 = vunpack.c.h.b16 %v965
        %v1692 = vunpack.c.l.b16 %v966
        %v1693 = vunpack.c.h.b16 %v966
        %v1694 = vunpack.c.l.b16 %v967
        %v1695 = vunpack.c.h.b16 %v967
        %v1696 = vunpack.c.l.b16 %v968
        %v1697 = vunpack.c.h.b16 %v968
        %v1698 = vunpack.c.l.b16 %v969
        %v1699 = vunpack.c.h.b16 %v969
        %v1700 = vunpack.c.l.b16 %v970
        %v1701 = vunpack.c.h.b16 %v970
        %v1702 = vunpack.c.l.b16 %v971
        %v1703 = vunpack.c.h.b16 %v971
        %v1704 = vunpack.c.l.b16 %v972
        %v1705 = vunpack.c.h.b16 %v972
        %v1706 = vunpack.c.l.b16 %v973
        %v1707 = vunpack.c.h.b16 %v973
        %v1708 = vunpack.c.l.b16 %v974
        %v1709 = vunpack.c.h.b16 %v974
        %v1710 = vunpack.c.l.b16 %v975
        %v1711 = vunpack.c.h.b16 %v975
        %v1712 = vunpack.c.l.b16 %v976
        %v1713 = vunpack.c.h.b16 %v976
        %v1714 = vunpack.c.l.b16 %v977
        %v1715 = vunpack.c.h.b16 %v977
        %v1716 = vunpack.c.l.b16 %v978
        %v1717 = vunpack.c.h.b16 %v978
        %v1718 = vunpack.c.l.b16 %v979
        %v1719 = vunpack.c.h.b16 %v979
        %v1720 = vunpack.c.l.b16 %v980
        %v1721 = vunpack.c.h.b16 %v980
        %v1722 = vunpack.c.l.b16 %v981
        %v1723 = vunpack.c.h.b16 %v981
        %v1724 = vunpack.c.l.b16 %v982
        %v1725 = vunpack.c.h.b16 %v982
        %v1726 = vunpack.c.l.b16 %v983
        %v1727 = vunpack.c.h.b16 %v983
        %v1728 = vunpack.c.l.b16 %v984
        %v1729 = vunpack.c.h.b16 %v984
        %v1730 = vunpack.c.l.b16 %v985
        %v1731 = vunpack.c.h.b16 %v985
        %v1732 = vunpack.c.l.b16 %v986
        %v1733 = vunpack.c.h.b16 %v986
        %v1734 = vunpack.c.l.b16 %v987
        %v1735 = vunpack.c.h.b16 %v987
        %v1736 = vunpack.c.l.b16 %v988
        %v1737 = vunpack.c.h.b16 %v988
        %v1738 = vunpack.c.l.b16 %v989
        %v1739 = vunpack.c.h.b16 %v989
        %v1740 = vunpack.c.l.b16 %v990
        %v1741 = vunpack.c.h.b16 %v990
        %v1742 = vunpack.c.l.b16 %v991
        %v1743 = vunpack.c.h.b16 %v991
        %v1744 = vunpack.c.l.b16 %v992
        %v1745 = vunpack.c.h.b16 %v992
        %v1746 = vunpack.c.l.b16 %v993
        %v1747 = vunpack.c.h.b16 %v993
        %v1748 = vunpack.c.l.b16 %v994
        %v1749 = vunpack.c.h.b16 %v994
        %v1750 = vunpack.c.l.b16 %v995
        %v1751 = vunpack.c.h.b16 %v995
        %v1752 = vunpack.c.l.b16 %v996
        %v1753 = vunpack.c.h.b16 %v996
        %v1754 = vunpack.c.l.b16 %v997
        %v1755 = vunpack.c.h.b16 %v997
        %v1756 = vunpack.c.l.b16 %v998
        %v1757 = vunpack.c.h.b16 %v998
        %v1758 = vunpack.c.l.b16 %v999
        %v1759 = vunpack.c.h.b16 %v999
        %v1760 = vunpack.c.l.b16 %v1000
        %v1761 = vunpack.c.h.b16 %v1000
        %v1762 = vunpack.c.l.b16 %v1001
        %v1763 = vunpack.c.h.b16 %v1001
        %v1764 = vunpack.c.l.b16 %v1002
        %v1765 = vunpack.c.h.b16 %v1002
        %v1766 = vunpack.c.l.b16 %v1003
        %v1767 = vunpack.c.h.b16 %v1003
        %v1768 = vunpack.c.l.b16 %v1004
        %v1769 = vunpack.c.h.b16 %v1004
        %v1770 = vunpack.c.l.b16 %v1005
        %v1771 = vunpack.c.h.b16 %v1005
        %v1772 = vunpack.c.l.b16 %v1006
        %v1773 = vunpack.c.h.b16 %v1006
        %v1774 = vunpack.c.l.b16 %v1007
        %v1775 = vunpack.c.h.b16 %v1007
        %v1776 = vunpack.c.l.b16 %v1008
        %v1777 = vunpack.c.h.b16 %v1008
        %v1778 = vunpack.c.l.b16 %v1009
        %v1779 = vunpack.c.h.b16 %v1009
        %v1780 = vunpack.c.l.b16 %v1010
        %v1781 = vunpack.c.h.b16 %v1010
        %v1782 = vunpack.c.l.b16 %v1011
        %v1783 = vunpack.c.h.b16 %v1011
        %v1784 = vunpack.c.l.b16 %v1012
        %v1785 = vunpack.c.h.b16 %v1012
        %v1786 = vunpack.c.l.b16 %v1013
        %v1787 = vunpack.c.h.b16 %v1013
        %v1788 = vunpack.c.l.b16 %v1014
        %v1789 = vunpack.c.h.b16 %v1014
        %v1790 = vunpack.c.l.b16 %v1015
        %v1791 = vunpack.c.h.b16 %v1015
        %v1792 = vunpack.c.l.b16 %v1016
        %v1793 = vunpack.c.h.b16 %v1016
        %v1794 = vunpack.c.l.b16 %v1017
        %v1795 = vunpack.c.h.b16 %v1017
        %v1796 = vunpack.c.l.b16 %v1018
        %v1797 = vunpack.c.h.b16 %v1018
        %v1798 = vunpack.c.l.b16 %v1019
        %v1799 = vunpack.c.h.b16 %v1019
        %v1800 = vunpack.c.l.b16 %v1020
        %v1801 = vunpack.c.h.b16 %v1020
        %v1802 = vunpack.c.l.b16 %v1021
        %v1803 = vunpack.c.h.b16 %v1021
        %v1804 = vunpack.c.l.b16 %v1022
        %v1805 = vunpack.c.h.b16 %v1022
        %v1806 = vunpack.c.l.b16 %v1023
        %v1807 = vunpack.c.h.b16 %v1023
        %v1808 = vunpack.c.l.b16 %v1024
        %v1809 = vunpack.c.h.b16 %v1024
        %v1810 = vunpack.c.l.b16 %v1025
        %v1811 = vunpack.c.h.b16 %v1025
        %v1812 = vunpack.c.l.b16 %v1026
        %v1813 = vunpack.c.h.b16 %v1026
        %v1814 = vunpack.c.l.b16 %v1027
        %v1815 = vunpack.c.h.b16 %v1027
        %v1816 = vunpack.c.l.b16 %v1028
        %v1817 = vunpack.c.h.b16 %v1028
        %v1818 = vunpack.c.l.b16 %v1029
        %v1819 = vunpack.c.h.b16 %v1029
        %v1820 = vunpack.c.l.b16 %v1030
        %v1821 = vunpack.c.h.b16 %v1030
        %v1822 = vunpack.c.l.b16 %v1031
        %v1823 = vunpack.c.h.b16 %v1031
        %v1824 = vunpack.c.l.b16 %v1032
        %v1825 = vunpack.c.h.b16 %v1032
        %v1826 = vunpack.c.l.b16 %v1033
        %v1827 = vunpack.c.h.b16 %v1033
        %v1828 = vunpack.c.l.b16 %v1034
        %v1829 = vunpack.c.h.b16 %v1034
        %v1830 = vunpack.c.l.b16 %v1035
        %v1831 = vunpack.c.h.b16 %v1035
        %v1832 = vunpack.c.l.b16 %v1036
        %v1833 = vunpack.c.h.b16 %v1036
        %v1834 = vunpack.c.l.b16 %v1037
        %v1835 = vunpack.c.h.b16 %v1037
        %v1836 = vunpack.c.l.b16 %v1038
        %v1837 = vunpack.c.h.b16 %v1038
        %v1838 = vunpack.c.l.b16 %v1039
        %v1839 = vunpack.c.h.b16 %v1039
        %v1840 = vunpack.c.l.b16 %v1040
        %v1841 = vunpack.c.h.b16 %v1040
        %v1842 = vunpack.c.l.b16 %v1041
        %v1843 = vunpack.c.h.b16 %v1041
        %v1844 = vunpack.c.l.b16 %v1042
        %v1845 = vunpack.c.h.b16 %v1042
        %v1846 = vunpack.c.l.b16 %v1043
        %v1847 = vunpack.c.h.b16 %v1043
        %v1848 = vunpack.c.l.b16 %v1044
        %v1849 = vunpack.c.h.b16 %v1044
        %v1850 = vunpack.c.l.b16 %v1045
        %v1851 = vunpack.c.h.b16 %v1045
        %v1852 = vunpack.c.l.b16 %v1046
        %v1853 = vunpack.c.h.b16 %v1046
        %v1854 = vunpack.c.l.b16 %v1047
        %v1855 = vunpack.c.h.b16 %v1047
        %v1856 = vunpack.c.l.b16 %v1048
        %v1857 = vunpack.c.h.b16 %v1048
        %v1858 = vunpack.c.l.b16 %v1049
        %v1859 = vunpack.c.h.b16 %v1049
        %v1860 = vunpack.c.l.b16 %v1050
        %v1861 = vunpack.c.h.b16 %v1050
        %v1862 = vunpack.c.l.b16 %v1051
        %v1863 = vunpack.c.h.b16 %v1051
        %v1864 = vunpack.c.l.b16 %v1052
        %v1865 = vunpack.c.h.b16 %v1052
        %v1866 = vunpack.c.l.b16 %v1053
        %v1867 = vunpack.c.h.b16 %v1053
        %v1868 = vunpack.c.l.b16 %v1054
        %v1869 = vunpack.c.h.b16 %v1054
        %v1870 = vunpack.c.l.b16 %v1055
        %v1871 = vunpack.c.h.b16 %v1055
        %v1872 = vunpack.c.l.b16 %v1056
        %v1873 = vunpack.c.h.b16 %v1056
        %v1874 = vunpack.c.l.b16 %v1057
        %v1875 = vunpack.c.h.b16 %v1057
        %v1876 = vunpack.c.l.b16 %v1058
        %v1877 = vunpack.c.h.b16 %v1058
        %v1878 = vunpack.c.l.b16 %v1059
        %v1879 = vunpack.c.h.b16 %v1059
        %v1880 = vunpack.c.l.b16 %v1060
        %v1881 = vunpack.c.h.b16 %v1060
        %v1882 = vunpack.c.l.b16 %v1061
        %v1883 = vunpack.c.h.b16 %v1061
        %v1884 = vunpack.c.l.b16 %v1062
        %v1885 = vunpack.c.h.b16 %v1062
        %v1886 = vunpack.c.l.b16 %v1063
        %v1887 = vunpack.c.h.b16 %v1063
        %v1888 = vunpack.c.l.b16 %v1064
        %v1889 = vunpack.c.h.b16 %v1064
        %v1890 = vunpack.c.l.b16 %v1065
        %v1891 = vunpack.c.h.b16 %v1065
        %v1892 = vunpack.c.l.b16 %v1066
        %v1893 = vunpack.c.h.b16 %v1066
        %v1894 = vunpack.c.l.b16 %v1067
        %v1895 = vunpack.c.h.b16 %v1067
        %v1896 = vunpack.c.l.b16 %v1068
        %v1897 = vunpack.c.h.b16 %v1068
        %v1898 = vunpack.c.l.b16 %v1069
        %v1899 = vunpack.c.h.b16 %v1069
        %v1900 = vunpack.c.l.b16 %v1070
        %v1901 = vunpack.c.h.b16 %v1070
        %v1902 = vunpack.c.l.b16 %v1071
        %v1903 = vunpack.c.h.b16 %v1071
        %v1904 = vunpack.c.l.b16 %v1072
        %v1905 = vunpack.c.h.b16 %v1072
        %v1906 = vunpack.c.l.b16 %v1073
        %v1907 = vunpack.c.h.b16 %v1073
        %v1908 = vunpack.c.l.b16 %v1074
        %v1909 = vunpack.c.h.b16 %v1074
        %v1910 = vunpack.c.l.b16 %v1075
        %v1911 = vunpack.c.h.b16 %v1075
        %v1912 = vunpack.c.l.b16 %v1076
        %v1913 = vunpack.c.h.b16 %v1076
        %v1914 = vunpack.c.l.b16 %v1077
        %v1915 = vunpack.c.h.b16 %v1077
        %v1916 = vunpack.c.l.b16 %v1078
        %v1917 = vunpack.c.h.b16 %v1078
        %v1918 = vunpack.c.l.b16 %v1079
        %v1919 = vunpack.c.h.b16 %v1079
        %v1920 = vunpack.c.l.b16 %v1080
        %v1921 = vunpack.c.h.b16 %v1080
        %v1922 = vunpack.c.l.b16 %v1081
        %v1923 = vunpack.c.h.b16 %v1081
        %v1924 = vunpack.c.l.b16 %v1082
        %v1925 = vunpack.c.h.b16 %v1082
        %v1926 = vunpack.c.l.b16 %v1083
        %v1927 = vunpack.c.h.b16 %v1083
        %v1928 = vunpack.c.l.b16 %v1084
        %v1929 = vunpack.c.h.b16 %v1084
        %v1930 = vunpack.c.l.b16 %v1085
        %v1931 = vunpack.c.h.b16 %v1085
        %v1932 = vunpack.c.l.b16 %v1086
        %v1933 = vunpack.c.h.b16 %v1086
        %v1934 = vunpack.c.l.b16 %v1087
        %v1935 = vunpack.c.h.b16 %v1087
        %v1936 = vunpack.c.l.b16 %v1088
        %v1937 = vunpack.c.h.b16 %v1088
        %v1938 = vunpack.c.l.b16 %v1089
        %v1939 = vunpack.c.h.b16 %v1089
        %v1940 = vunpack.c.l.b16 %v1090
        %v1941 = vunpack.c.h.b16 %v1090
        %v1942 = vunpack.c.l.b16 %v1091
        %v1943 = vunpack.c.h.b16 %v1091
        %v1944 = vunpack.c.l.b16 %v1092
        %v1945 = vunpack.c.h.b16 %v1092
        %v1946 = vunpack.c.l.b16 %v1093
        %v1947 = vunpack.c.h.b16 %v1093
        %v1948 = vunpack.c.l.b16 %v1094
        %v1949 = vunpack.c.h.b16 %v1094
        %v1950 = vunpack.c.l.b16 %v1095
        %v1951 = vunpack.c.h.b16 %v1095
        %v1952 = vunpack.c.l.b16 %v1096
        %v1953 = vunpack.c.h.b16 %v1096
        %v1954 = vunpack.c.l.b16 %v1097
        %v1955 = vunpack.c.h.b16 %v1097
        %v1956 = vunpack.c.l.b16 %v1098
        %v1957 = vunpack.c.h.b16 %v1098
        %v1958 = vunpack.c.l.b16 %v1099
        %v1959 = vunpack.c.h.b16 %v1099
        %v1960 = vunpack.c.l.b16 %v1100
        %v1961 = vunpack.c.h.b16 %v1100
        %v1962 = vunpack.c.l.b16 %v1101
        %v1963 = vunpack.c.h.b16 %v1101
        %v1964 = vunpack.c.l.b16 %v1102
        %v1965 = vunpack.c.h.b16 %v1102
        %v1966 = vunpack.c.l.b16 %v1103
        %v1967 = vunpack.c.h.b16 %v1103
        %v1968 = vpack.c.b16 %v1398, %v1392
        %v1969 = vpack.c.b16 %v1399, %v1393
        %v1970 = vpack.c.b16 %v1400, %v1394
        %v1971 = vpack.c.b16 %v1401, %v1395
        %v1972 = vpack.c.b16 %v1402, %v1396
        %v1973 = vpack.c.b16 %v1403, %v1397
        %v1974 = vpack.c.b16 %v1410, %v1404
        %v1975 = vpack.c.b16 %v1411, %v1405
        %v1976 = vpack.c.b16 %v1412, %v1406
        %v1977 = vpack.c.b16 %v1413, %v1407
        %v1978 = vpack.c.b16 %v1414, %v1408
        %v1979 = vpack.c.b16 %v1415, %v1409
        %v1980 = vpack.c.b16 %v1422, %v1416
        %v1981 = vpack.c.b16 %v1423, %v1417
        %v1982 = vpack.c.b16 %v1424, %v1418
        %v1983 = vpack.c.b16 %v1425, %v1419
        %v1984 = vpack.c.b16 %v1426, %v1420
        %v1985 = vpack.c.b16 %v1427, %v1421
        %v1986 = vpack.c.b16 %v1434, %v1428
        %v1987 = vpack.c.b16 %v1435, %v1429
        %v1988 = vpack.c.b16 %v1436, %v1430
        %v1989 = vpack.c.b16 %v1437, %v1431
        %v1990 = vpack.c.b16 %v1438, %v1432
        %v1991 = vpack.c.b16 %v1439, %v1433
        %v1992 = vpack.c.b16 %v1446, %v1440
        %v1993 = vpack.c.b16 %v1447, %v1441
        %v1994 = vpack.c.b16 %v1448, %v1442
        %v1995 = vpack.c.b16 %v1449, %v1443
        %v1996 = vpack.c.b16 %v1450, %v1444
        %v1997 = vpack.c.b16 %v1451, %v1445
        %v1998 = vpack.c.b16 %v1458, %v1452
        %v1999 = vpack.c.b16 %v1459, %v1453
        %v2000 = vpack.c.b16 %v1460, %v1454
        %v2001 = vpack.c.b16 %v1461, %v1455
        %v2002 = vpack.c.b16 %v1462, %v1456
        %v2003 = vpack.c.b16 %v1463, %v1457
        %v2004 = vpack.c.b16 %v1470, %v1464
        %v2005 = vpack.c.b16 %v1471, %v1465
        %v2006 = vpack.c.b16 %v1472, %v1466
        %v2007 = vpack.c.b16 %v1473, %v1467
        %v2008 = vpack.c.b16 %v1474, %v1468
        %v2009 = vpack.c.b16 %v1475, %v1469
        %v2010 = vpack.c.b16 %v1482, %v1476
        %v2011 = vpack.c.b16 %v1483, %v1477
        %v2012 = vpack.c.b16 %v1484, %v1478
        %v2013 = vpack.c.b16 %v1485, %v1479
        %v2014 = vpack.c.b16 %v1486, %v1480
        %v2015 = vpack.c.b16 %v1487, %v1481
        %v2016 = vpack.c.b16 %v1494, %v1488
        %v2017 = vpack.c.b16 %v1495, %v1489
        %v2018 = vpack.c.b16 %v1496, %v1490
        %v2019 = vpack.c.b16 %v1497, %v1491
        %v2020 = vpack.c.b16 %v1498, %v1492
        %v2021 = vpack.c.b16 %v1499, %v1493
        %v2022 = vpack.c.b16 %v1506, %v1500
        %v2023 = vpack.c.b16 %v1507, %v1501
        %v2024 = vpack.c.b16 %v1508, %v1502
        %v2025 = vpack.c.b16 %v1509, %v1503
        %v2026 = vpack.c.b16 %v1510, %v1504
        %v2027 = vpack.c.b16 %v1511, %v1505
        %v2028 = vpack.c.b16 %v1518, %v1512
        %v2029 = vpack.c.b16 %v1519, %v1513
        %v2030 = vpack.c.b16 %v1520, %v1514
        %v2031 = vpack.c.b16 %v1521, %v1515
        %v2032 = vpack.c.b16 %v1522, %v1516
        %v2033 = vpack.c.b16 %v1523, %v1517
        %v2034 = vpack.c.b16 %v1530, %v1524
        %v2035 = vpack.c.b16 %v1531, %v1525
        %v2036 = vpack.c.b16 %v1532, %v1526
        %v2037 = vpack.c.b16 %v1533, %v1527
        %v2038 = vpack.c.b16 %v1534, %v1528
        %v2039 = vpack.c.b16 %v1535, %v1529
        %v2040 = vpack.c.b16 %v1542, %v1536
        %v2041 = vpack.c.b16 %v1543, %v1537
        %v2042 = vpack.c.b16 %v1544, %v1538
        %v2043 = vpack.c.b16 %v1545, %v1539
        %v2044 = vpack.c.b16 %v1546, %v1540
        %v2045 = vpack.c.b16 %v1547, %v1541
        %v2046 = vpack.c.b16 %v1554, %v1548
        %v2047 = vpack.c.b16 %v1555, %v1549
        %v2048 = vpack.c.b16 %v1556, %v1550
        %v2049 = vpack.c.b16 %v1557, %v1551
        %v2050 = vpack.c.b16 %v1558, %v1552
        %v2051 = vpack.c.b16 %v1559, %v1553
        %v2052 = vpack.c.b16 %v1566, %v1560
        %v2053 = vpack.c.b16 %v1567, %v1561
        %v2054 = vpack.c.b16 %v1568, %v1562
        %v2055 = vpack.c.b16 %v1569, %v1563
        %v2056 = vpack.c.b16 %v1570, %v1564
        %v2057 = vpack.c.b16 %v1571, %v1565
        %v2058 = vpack.c.b16 %v1578, %v1572
        %v2059 = vpack.c.b16 %v1579, %v1573
        %v2060 = vpack.c.b16 %v1580, %v1574
        %v2061 = vpack.c.b16 %v1581, %v1575
        %v2062 = vpack.c.b16 %v1582, %v1576
        %v2063 = vpack.c.b16 %v1583, %v1577
        %v2064 = vpack.c.b16 %v1590, %v1584
        %v2065 = vpack.c.b16 %v1591, %v1585
        %v2066 = vpack.c.b16 %v1592, %v1586
        %v2067 = vpack.c.b16 %v1593, %v1587
        %v2068 = vpack.c.b16 %v1594, %v1588
        %v2069 = vpack.c.b16 %v1595, %v1589
        %v2070 = vpack.c.b16 %v1602, %v1596
        %v2071 = vpack.c.b16 %v1603, %v1597
        %v2072 = vpack.c.b16 %v1604, %v1598
        %v2073 = vpack.c.b16 %v1605, %v1599
        %v2074 = vpack.c.b16 %v1606, %v1600
        %v2075 = vpack.c.b16 %v1607, %v1601
        %v2076 = vpack.c.b16 %v1614, %v1608
        %v2077 = vpack.c.b16 %v1615, %v1609
        %v2078 = vpack.c.b16 %v1616, %v1610
        %v2079 = vpack.c.b16 %v1617, %v1611
        %v2080 = vpack.c.b16 %v1618, %v1612
        %v2081 = vpack.c.b16 %v1619, %v1613
        %v2082 = vpack.c.b16 %v1626, %v1620
        %v2083 = vpack.c.b16 %v1627, %v1621
        %v2084 = vpack.c.b16 %v1628, %v1622
        %v2085 = vpack.c.b16 %v1629, %v1623
        %v2086 = vpack.c.b16 %v1630, %v1624
        %v2087 = vpack.c.b16 %v1631, %v1625
        %v2088 = vpack.c.b16 %v1638, %v1632
        %v2089 = vpack.c.b16 %v1639, %v1633
        %v2090 = vpack.c.b16 %v1640, %v1634
        %v2091 = vpack.c.b16 %v1641, %v1635
        %v2092 = vpack.c.b16 %v1642, %v1636
        %v2093 = vpack.c.b16 %v1643, %v1637
        %v2094 = vpack.c.b16 %v1650, %v1644
        %v2095 = vpack.c.b16 %v1651, %v1645
        %v2096 = vpack.c.b16 %v1652, %v1646
        %v2097 = vpack.c.b16 %v1653, %v1647
        %v2098 = vpack.c.b16 %v1654, %v1648
        %v2099 = vpack.c.b16 %v1655, %v1649
        %v2100 = vpack.c.b16 %v1662, %v1656
        %v2101 = vpack.c.b16 %v1663, %v1657
        %v2102 = vpack.c.b16 %v1664, %v1658
        %v2103 = vpack.c.b16 %v1665, %v1659
        %v2104 = vpack.c.b16 %v1666, %v1660
        %v2105 = vpack.c.b16 %v1667, %v1661
        %v2106 = vpack.c.b16 %v1674, %v1668
        %v2107 = vpack.c.b16 %v1675, %v1669
        %v2108 = vpack.c.b16 %v1676, %v1670
        %v2109 = vpack.c.b16 %v1677, %v1671
        %v2110 = vpack.c.b16 %v1678, %v1672
        %v2111 = vpack.c.b16 %v1679, %v1673
        %v2112 = vpack.c.b16 %v1686, %v1680
        %v2113 = vpack.c.b16 %v1687, %v1681
        %v2114 = vpack.c.b16 %v1688, %v1682
        %v2115 = vpack.c.b16 %v1689, %v1683
        %v2116 = vpack.c.b16 %v1690, %v1684
        %v2117 = vpack.c.b16 %v1691, %v1685
        %v2118 = vpack.c.b16 %v1698, %v1692
        %v2119 = vpack.c.b16 %v1699, %v1693
        %v2120 = vpack.c.b16 %v1700, %v1694
        %v2121 = vpack.c.b16 %v1701, %v1695
        %v2122 = vpack.c.b16 %v1702, %v1696
        %v2123 = vpack.c.b16 %v1703, %v1697
        %v2124 = vpack.c.b16 %v1710, %v1704
        %v2125 = vpack.c.b16 %v1711, %v1705
        %v2126 = vpack.c.b16 %v1712, %v1706
        %v2127 = vpack.c.b16 %v1713, %v1707
        %v2128 = vpack.c.b16 %v1714, %v1708
        %v2129 = vpack.c.b16 %v1715, %v1709
        %v2130 = vpack.c.b16 %v1722, %v1716
        %v2131 = vpack.c.b16 %v1723, %v1717
        %v2132 = vpack.c.b16 %v1724, %v1718
        %v2133 = vpack.c.b16 %v1725, %v1719
        %v2134 = vpack.c.b16 %v1726, %v1720
        %v2135 = vpack.c.b16 %v1727, %v1721
        %v2136 = vpack.c.b16 %v1734, %v1728
        %v2137 = vpack.c.b16 %v1735, %v1729
        %v2138 = vpack.c.b16 %v1736, %v1730
        %v2139 = vpack.c.b16 %v1737, %v1731
        %v2140 = vpack.c.b16 %v1738, %v1732
        %v2141 = vpack.c.b16 %v1739, %v1733
        %v2142 = vpack.c.b16 %v1746, %v1740
        %v2143 = vpack.c.b16 %v1747, %v1741
        %v2144 = vpack.c.b16 %v1748, %v1742
        %v2145 = vpack.c.b16 %v1749, %v1743
        %v2146 = vpack.c.b16 %v1750, %v1744
        %v2147 = vpack.c.b16 %v1751, %v1745
        %v2148 = vpack.c.b16 %v1758, %v1752
        %v2149 = vpack.c.b16 %v1759, %v1753
        %v2150 = vpack.c.b16 %v1760, %v1754
        %v2151 = vpack.c.b16 %v1761, %v1755
        %v2152 = vpack.c.b16 %v1762, %v1756
        %v2153 = vpack.c.b16 %v1763, %v1757
        %v2154 = vpack.c.b16 %v1770, %v1764
        %v2155 = vpack.c.b16 %v1771, %v1765
        %v2156 = vpack.c.b16 %v1772, %v1766
        %v2157 = vpack.c.b16 %v1773, %v1767
        %v2158 = vpack.c.b16 %v1774, %v1768
        %v2159 = vpack.c.b16 %v1775, %v1769
        %v2160 = vpack.c.b16 %v1782, %v1776
        %v2161 = vpack.c.b16 %v1783, %v1777
        %v2162 = vpack.c.b16 %v1784, %v1778
        %v2163 = vpack.c.b16 %v1785, %v1779
        %v2164 = vpack.c.b16 %v1786, %v1780
        %v2165 = vpack.c.b16 %v1787, %v1781
        %v2166 = vpack.c.b16 %v1794, %v1788
        %v2167 = vpack.c.b16 %v1795, %v1789
        %v2168 = vpack.c.b16 %v1796, %v1790
        %v2169 = vpack.c.b16 %v1797, %v1791
        %v2170 = vpack.c.b16 %v1798, %v1792
        %v2171 = vpack.c.b16 %v1799, %v1793
        %v2172 = vpack.c.b16 %v1806, %v1800
        %v2173 = vpack.c.b16 %v1807, %v1801
        %v2174 = vpack.c.b16 %v1808, %v1802
        %v2175 = vpack.c.b16 %v1809, %v1803
        %v2176 = vpack.c.b16 %v1810, %v1804
        %v2177 = vpack.c.b16 %v1811, %v1805
        %v2178 = vpack.c.b16 %v1818, %v1812
        %v2179 = vpack.c.b16 %v1819, %v1813
        %v2180 = vpack.c.b16 %v1820, %v1814
        %v2181 = vpack.c.b16 %v1821, %v1815
        %v2182 = vpack.c.b16 %v1822, %v1816
        %v2183 = vpack.c.b16 %v1823, %v1817
        %v2184 = vpack.c.b16 %v1830, %v1824
        %v2185 = vpack.c.b16 %v1831, %v1825
        %v2186 = vpack.c.b16 %v1832, %v1826
        %v2187 = vpack.c.b16 %v1833, %v1827
        %v2188 = vpack.c.b16 %v1834, %v1828
        %v2189 = vpack.c.b16 %v1835, %v1829
        %v2190 = vpack.c.b16 %v1842, %v1836
        %v2191 = vpack.c.b16 %v1843, %v1837
        %v2192 = vpack.c.b16 %v1844, %v1838
        %v2193 = vpack.c.b16 %v1845, %v1839
        %v2194 = vpack.c.b16 %v1846, %v1840
        %v2195 = vpack.c.b16 %v1847, %v1841
        %v2196 = vpack.c.b16 %v1854, %v1848
        %v2197 = vpack.c.b16 %v1855, %v1849
        %v2198 = vpack.c.b16 %v1856, %v1850
        %v2199 = vpack.c.b16 %v1857, %v1851
        %v2200 = vpack.c.b16 %v1858, %v1852
        %v2201 = vpack.c.b16 %v1859, %v1853
        %v2202 = vpack.c.b16 %v1866, %v1860
        %v2203 = vpack.c.b16 %v1867, %v1861
        %v2204 = vpack.c.b16 %v1868, %v1862
        %v2205 = vpack.c.b16 %v1869, %v1863
        %v2206 = vpack.c.b16 %v1870, %v1864
        %v2207 = vpack.c.b16 %v1871, %v1865
        %v2208 = vpack.c.b16 %v1878, %v1872
        %v2209 = vpack.c.b16 %v1879, %v1873
        %v2210 = vpack.c.b16 %v1880, %v1874
        %v2211 = vpack.c.b16 %v1881, %v1875
        %v2212 = vpack.c.b16 %v1882, %v1876
        %v2213 = vpack.c.b16 %v1883, %v1877
        %v2214 = vpack.c.b16 %v1890, %v1884
        %v2215 = vpack.c.b16 %v1891, %v1885
        %v2216 = vpack.c.b16 %v1892, %v1886
        %v2217 = vpack.c.b16 %v1893, %v1887
        %v2218 = vpack.c.b16 %v1894, %v1888
        %v2219 = vpack.c.b16 %v1895, %v1889
        %v2220 = vpack.c.b16 %v1902, %v1896
        %v2221 = vpack.c.b16 %v1903, %v1897
        %v2222 = vpack.c.b16 %v1904, %v1898
        %v2223 = vpack.c.b16 %v1905, %v1899
        %v2224 = vpack.c.b16 %v1906, %v1900
        %v2225 = vpack.c.b16 %v1907, %v1901
        %v2226 = vpack.c.b16 %v1914, %v1908
        %v2227 = vpack.c.b16 %v1915, %v1909
        %v2228 = vpack.c.b16 %v1916, %v1910
        %v2229 = vpack.c.b16 %v1917, %v1911
        %v2230 = vpack.c.b16 %v1918, %v1912
        %v2231 = vpack.c.b16 %v1919, %v1913
        %v2232 = vpack.c.b16 %v1926, %v1920
        %v2233 = vpack.c.b16 %v1927, %v1921
        %v2234 = vpack.c.b16 %v1928, %v1922
        %v2235 = vpack.c.b16 %v1929, %v1923
        %v2236 = vpack.c.b16 %v1930, %v1924
        %v2237 = vpack.c.b16 %v1931, %v1925
        %v2238 = vpack.c.b16 %v1938, %v1932
        %v2239 = vpack.c.b16 %v1939, %v1933
        %v2240 = vpack.c.b16 %v1940, %v1934
        %v2241 = vpack.c.b16 %v1941, %v1935
        %v2242 = vpack.c.b16 %v1942, %v1936
        %v2243 = vpack.c.b16 %v1943, %v1937
        %v2244 = vpack.c.b16 %v1950, %v1944
        %v2245 = vpack.c.b16 %v1951, %v1945
        %v2246 = vpack.c.b16 %v1952, %v1946
        %v2247 = vpack.c.b16 %v1953, %v1947
        %v2248 = vpack.c.b16 %v1954, %v1948
        %v2249 = vpack.c.b16 %v1955, %v1949
        %v2250 = vpack.c.b16 %v1962, %v1956
        %v2251 = vpack.c.b16 %v1963, %v1957
        %v2252 = vpack.c.b16 %v1964, %v1958
        %v2253 = vpack.c.b16 %v1965, %v1959
        %v2254 = vpack.c.b16 %v1966, %v1960
        %v2255 = vpack.c.b16 %v1967, %v1961
        %v2640 = vunpack.c.l.b16 %v720
        %v2641 = vunpack.c.h.b16 %v720
        %v2642 = vunpack.c.l.b16 %v721
        %v2643 = vunpack.c.h.b16 %v721
        %v2644 = vunpack.c.l.b16 %v722
        %v2645 = vunpack.c.h.b16 %v722
        %v2646 = vunpack.c.l.b16 %v723
        %v2647 = vunpack.c.h.b16 %v723
        %v2648 = vunpack.c.l.b16 %v724
        %v2649 = vunpack.c.h.b16 %v724
        %v2650 = vunpack.c.l.b16 %v725
        %v2651 = vunpack.c.h.b16 %v725
        %v2652 = vunpack.c.l.b16 %v726
        %v2653 = vunpack.c.h.b16 %v726
        %v2654 = vunpack.c.l.b16 %v727
        %v2655 = vunpack.c.h.b16 %v727
        %v2656 = vunpack.c.l.b16 %v728
        %v2657 = vunpack.c.h.b16 %v728
        %v2658 = vunpack.c.l.b16 %v729
        %v2659 = vunpack.c.h.b16 %v729
        %v2660 = vunpack.c.l.b16 %v730
        %v2661 = vunpack.c.h.b16 %v730
        %v2662 = vunpack.c.l.b16 %v731
        %v2663 = vunpack.c.h.b16 %v731
        %v2664 = vunpack.c.l.b16 %v732
        %v2665 = vunpack.c.h.b16 %v732
        %v2666 = vunpack.c.l.b16 %v733
        %v2667 = vunpack.c.h.b16 %v733
        %v2668 = vunpack.c.l.b16 %v734
        %v2669 = vunpack.c.h.b16 %v734
        %v2670 = vunpack.c.l.b16 %v735
        %v2671 = vunpack.c.h.b16 %v735
        %v2672 = vunpack.c.l.b16 %v736
        %v2673 = vunpack.c.h.b16 %v736
        %v2674 = vunpack.c.l.b16 %v737
        %v2675 = vunpack.c.h.b16 %v737
        %v2676 = vunpack.c.l.b16 %v738
        %v2677 = vunpack.c.h.b16 %v738
        %v2678 = vunpack.c.l.b16 %v739
        %v2679 = vunpack.c.h.b16 %v739
        %v2680 = vunpack.c.l.b16 %v740
        %v2681 = vunpack.c.h.b16 %v740
        %v2682 = vunpack.c.l.b16 %v741
        %v2683 = vunpack.c.h.b16 %v741
        %v2684 = vunpack.c.l.b16 %v742
        %v2685 = vunpack.c.h.b16 %v742
        %v2686 = vunpack.c.l.b16 %v743
        %v2687 = vunpack.c.h.b16 %v743
        %v2688 = vunpack.c.l.b16 %v744
        %v2689 = vunpack.c.h.b16 %v744
        %v2690 = vunpack.c.l.b16 %v745
        %v2691 = vunpack.c.h.b16 %v745
        %v2692 = vunpack.c.l.b16 %v746
        %v2693 = vunpack.c.h.b16 %v746
        %v2694 = vunpack.c.l.b16 %v747
        %v2695 = vunpack.c.h.b16 %v747
        %v2696 = vunpack.c.l.b16 %v748
        %v2697 = vunpack.c.h.b16 %v748
        %v2698 = vunpack.c.l.b16 %v749
        %v2699 = vunpack.c.h.b16 %v749
        %v2700 = vunpack.c.l.b16 %v750
        %v2701 = vunpack.c.h.b16 %v750
        %v2702 = vunpack.c.l.b16 %v751
        %v2703 = vunpack.c.h.b16 %v751
        %v2704 = vunpack.c.l.b16 %v752
        %v2705 = vunpack.c.h.b16 %v752
        %v2706 = vunpack.c.l.b16 %v753
        %v2707 = vunpack.c.h.b16 %v753
        %v2708 = vunpack.c.l.b16 %v754
        %v2709 = vunpack.c.h.b16 %v754
        %v2710 = vunpack.c.l.b16 %v755
        %v2711 = vunpack.c.h.b16 %v755
        %v2712 = vunpack.c.l.b16 %v756
        %v2713 = vunpack.c.h.b16 %v756
        %v2714 = vunpack.c.l.b16 %v757
        %v2715 = vunpack.c.h.b16 %v757
        %v2716 = vunpack.c.l.b16 %v758
        %v2717 = vunpack.c.h.b16 %v758
        %v2718 = vunpack.c.l.b16 %v759
        %v2719 = vunpack.c.h.b16 %v759
        %v2720 = vunpack.c.l.b16 %v760
        %v2721 = vunpack.c.h.b16 %v760
        %v2722 = vunpack.c.l.b16 %v761
        %v2723 = vunpack.c.h.b16 %v761
        %v2724 = vunpack.c.l.b16 %v762
        %v2725 = vunpack.c.h.b16 %v762
        %v2726 = vunpack.c.l.b16 %v763
        %v2727 = vunpack.c.h.b16 %v763
        %v2728 = vunpack.c.l.b16 %v764
        %v2729 = vunpack.c.h.b16 %v764
        %v2730 = vunpack.c.l.b16 %v765
        %v2731 = vunpack.c.h.b16 %v765
        %v2732 = vunpack.c.l.b16 %v766
        %v2733 = vunpack.c.h.b16 %v766
        %v2734 = vunpack.c.l.b16 %v767
        %v2735 = vunpack.c.h.b16 %v767
        %v2736 = vunpack.c.l.b16 %v768
        %v2737 = vunpack.c.h.b16 %v768
        %v2738 = vunpack.c.l.b16 %v769
        %v2739 = vunpack.c.h.b16 %v769
        %v2740 = vunpack.c.l.b16 %v770
        %v2741 = vunpack.c.h.b16 %v770
        %v2742 = vunpack.c.l.b16 %v771
        %v2743 = vunpack.c.h.b16 %v771
        %v2744 = vunpack.c.l.b16 %v772
        %v2745 = vunpack.c.h.b16 %v772
        %v2746 = vunpack.c.l.b16 %v773
        %v2747 = vunpack.c.h.b16 %v773
        %v2748 = vunpack.c.l.b16 %v774
        %v2749 = vunpack.c.h.b16 %v774
        %v2750 = vunpack.c.l.b16 %v775
        %v2751 = vunpack.c.h.b16 %v775
        %v2752 = vunpack.c.l.b16 %v776
        %v2753 = vunpack.c.h.b16 %v776
        %v2754 = vunpack.c.l.b16 %v777
        %v2755 = vunpack.c.h.b16 %v777
        %v2756 = vunpack.c.l.b16 %v778
        %v2757 = vunpack.c.h.b16 %v778
        %v2758 = vunpack.c.l.b16 %v779
        %v2759 = vunpack.c.h.b16 %v779
        %v2760 = vunpack.c.l.b16 %v780
        %v2761 = vunpack.c.h.b16 %v780
        %v2762 = vunpack.c.l.b16 %v781
        %v2763 = vunpack.c.h.b16 %v781
        %v2764 = vunpack.c.l.b16 %v782
        %v2765 = vunpack.c.h.b16 %v782
        %v2766 = vunpack.c.l.b16 %v783
        %v2767 = vunpack.c.h.b16 %v783
        %v2768 = vunpack.c.l.b16 %v784
        %v2769 = vunpack.c.h.b16 %v784
        %v2770 = vunpack.c.l.b16 %v785
        %v2771 = vunpack.c.h.b16 %v785
        %v2772 = vunpack.c.l.b16 %v786
        %v2773 = vunpack.c.h.b16 %v786
        %v2774 = vunpack.c.l.b16 %v787
        %v2775 = vunpack.c.h.b16 %v787
        %v2776 = vunpack.c.l.b16 %v788
        %v2777 = vunpack.c.h.b16 %v788
        %v2778 = vunpack.c.l.b16 %v789
        %v2779 = vunpack.c.h.b16 %v789
        %v2780 = vunpack.c.l.b16 %v790
        %v2781 = vunpack.c.h.b16 %v790
        %v2782 = vunpack.c.l.b16 %v791
        %v2783 = vunpack.c.h.b16 %v791
        %v2784 = vunpack.c.l.b16 %v792
        %v2785 = vunpack.c.h.b16 %v792
        %v2786 = vunpack.c.l.b16 %v793
        %v2787 = vunpack.c.h.b16 %v793
        %v2788 = vunpack.c.l.b16 %v794
        %v2789 = vunpack.c.h.b16 %v794
        %v2790 = vunpack.c.l.b16 %v795
        %v2791 = vunpack.c.h.b16 %v795
        %v2792 = vunpack.c.l.b16 %v796
        %v2793 = vunpack.c.h.b16 %v796
        %v2794 = vunpack.c.l.b16 %v797
        %v2795 = vunpack.c.h.b16 %v797
        %v2796 = vunpack.c.l.b16 %v798
        %v2797 = vunpack.c.h.b16 %v798
        %v2798 = vunpack.c.l.b16 %v799
        %v2799 = vunpack.c.h.b16 %v799
        %v2800 = vunpack.c.l.b16 %v800
        %v2801 = vunpack.c.h.b16 %v800
        %v2802 = vunpack.c.l.b16 %v801
        %v2803 = vunpack.c.h.b16 %v801
        %v2804 = vunpack.c.l.b16 %v802
        %v2805 = vunpack.c.h.b16 %v802
        %v2806 = vunpack.c.l.b16 %v803
        %v2807 = vunpack.c.h.b16 %v803
        %v2808 = vunpack.c.l.b16 %v804
        %v2809 = vunpack.c.h.b16 %v804
        %v2810 = vunpack.c.l.b16 %v805
        %v2811 = vunpack.c.h.b16 %v805
        %v2812 = vunpack.c.l.b16 %v806
        %v2813 = vunpack.c.h.b16 %v806
        %v2814 = vunpack.c.l.b16 %v807
        %v2815 = vunpack.c.h.b16 %v807
        %v2816 = vunpack.c.l.b16 %v808
        %v2817 = vunpack.c.h.b16 %v808
        %v2818 = vunpack.c.l.b16 %v809
        %v2819 = vunpack.c.h.b16 %v809
        %v2820 = vunpack.c.l.b16 %v810
        %v2821 = vunpack.c.h.b16 %v810
        %v2822 = vunpack.c.l.b16 %v811
        %v2823 = vunpack.c.h.b16 %v811
        %v2824 = vunpack.c.l.b16 %v812
        %v2825 = vunpack.c.h.b16 %v812
        %v2826 = vunpack.c.l.b16 %v813
        %v2827 = vunpack.c.h.b16 %v813
        %v2828 = vunpack.c.l.b16 %v814
        %v2829 = vunpack.c.h.b16 %v814
        %v2830 = vunpack.c.l.b16 %v815
        %v2831 = vunpack.c.h.b16 %v815
        %v2832 = vpack.c.b16 %v2642, %v2640
        %v2833 = vpack.c.b16 %v2643, %v2641
        %v2834 = vpack.c.b16 %v2646, %v2644
        %v2835 = vpack.c.b16 %v2647, %v2645
        %v2836 = vpack.c.b16 %v2650, %v2648
        %v2837 = vpack.c.b16 %v2651, %v2649
        %v2838 = vpack.c.b16 %v2654, %v2652
        %v2839 = vpack.c.b16 %v2655, %v2653
        %v2840 = vpack.c.b16 %v2658, %v2656
        %v2841 = vpack.c.b16 %v2659, %v2657
        %v2842 = vpack.c.b16 %v2662, %v2660
        %v2843 = vpack.c.b16 %v2663, %v2661
        %v2844 = vpack.c.b16 %v2666, %v2664
        %v2845 = vpack.c.b16 %v2667, %v2665
        %v2846 = vpack.c.b16 %v2670, %v2668
        %v2847 = vpack.c.b16 %v2671, %v2669
        %v2848 = vpack.c.b16 %v2674, %v2672
        %v2849 = vpack.c.b16 %v2675, %v2673
        %v2850 = vpack.c.b16 %v2678, %v2676
        %v2851 = vpack.c.b16 %v2679, %v2677
        %v2852 = vpack.c.b16 %v2682, %v2680
        %v2853 = vpack.c.b16 %v2683, %v2681
        %v2854 = vpack.c.b16 %v2686, %v2684
        %v2855 = vpack.c.b16 %v2687, %v2685
        %v2856 = vpack.c.b16 %v2690, %v2688
        %v2857 = vpack.c.b16 %v2691, %v2689
        %v2858 = vpack.c.b16 %v2694, %v2692
        %v2859 = vpack.c.b16 %v2695, %v2693
        %v2860 = vpack.c.b16 %v2698, %v2696
        %v2861 = vpack.c.b16 %v2699, %v2697
        %v2862 = vpack.c.b16 %v2702, %v2700
        %v2863 = vpack.c.b16 %v2703, %v2701
        %v2864 = vpack.c.b16 %v2706, %v2704
        %v2865 = vpack.c.b16 %v2707, %v2705
        %v2866 = vpack.c.b16 %v2710, %v2708
        %v2867 = vpack.c.b16 %v2711, %v2709
        %v2868 = vpack.c.b16 %v2714, %v2712
        %v2869 = vpack.c.b16 %v2715, %v2713
        %v2870 = vpack.c.b16 %v2718, %v2716
        %v2871 = vpack.c.b16 %v2719, %v2717
        %v2872 = vpack.c.b16 %v2722, %v2720
        %v2873 = vpack.c.b16 %v2723, %v2721
        %v2874 = vpack.c.b16 %v2726, %v2724
        %v2875 = vpack.c.b16 %v2727, %v2725
        %v2876 = vpack.c.b16 %v2730, %v2728
        %v2877 = vpack.c.b16 %v2731, %v2729
        %v2878 = vpack.c.b16 %v2734, %v2732
        %v2879 = vpack.c.b16 %v2735, %v2733
        %v2880 = vpack.c.b16 %v2738, %v2736
        %v2881 = vpack.c.b16 %v2739, %v2737
        %v2882 = vpack.c.b16 %v2742, %v2740
        %v2883 = vpack.c.b16 %v2743, %v2741
        %v2884 = vpack.c.b16 %v2746, %v2744
        %v2885 = vpack.c.b16 %v2747, %v2745
        %v2886 = vpack.c.b16 %v2750, %v2748
        %v2887 = vpack.c.b16 %v2751, %v2749
        %v2888 = vpack.c.b16 %v2754, %v2752
        %v2889 = vpack.c.b16 %v2755, %v2753
        %v2890 = vpack.c.b16 %v2758, %v2756
        %v2891 = vpack.c.b16 %v2759, %v2757
        %v2892 = vpack.c.b16 %v2762, %v2760
        %v2893 = vpack.c.b16 %v2763, %v2761
        %v2894 = vpack.c.b16 %v2766, %v2764
        %v2895 = vpack.c.b16 %v2767, %v2765
        %v2896 = vpack.c.b16 %v2770, %v2768
        %v2897 = vpack.c.b16 %v2771, %v2769
        %v2898 = vpack.c.b16 %v2774, %v2772
        %v2899 = vpack.c.b16 %v2775, %v2773
        %v2900 = vpack.c.b16 %v2778, %v2776
        %v2901 = vpack.c.b16 %v2779, %v2777
        %v2902 = vpack.c.b16 %v2782, %v2780
        %v2903 = vpack.c.b16 %v2783, %v2781
        %v2904 = vpack.c.b16 %v2786, %v2784
        %v2905 = vpack.c.b16 %v2787, %v2785
        %v2906 = vpack.c.b16 %v2790, %v2788
        %v2907 = vpack.c.b16 %v2791, %v2789
        %v2908 = vpack.c.b16 %v2794, %v2792
        %v2909 = vpack.c.b16 %v2795, %v2793
        %v2910 = vpack.c.b16 %v2798, %v2796
        %v2911 = vpack.c.b16 %v2799, %v2797
        %v2912 = vpack.c.b16 %v2802, %v2800
        %v2913 = vpack.c.b16 %v2803, %v2801
        %v2914 = vpack.c.b16 %v2806, %v2804
        %v2915 = vpack.c.b16 %v2807, %v2805
        %v2916 = vpack.c.b16 %v2810, %v2808
        %v2917 = vpack.c.b16 %v2811, %v2809
        %v2918 = vpack.c.b16 %v2814, %v2812
        %v2919 = vpack.c.b16 %v2815, %v2813
        %v2920 = vpack.c.b16 %v2818, %v2816
        %v2921 = vpack.c.b16 %v2819, %v2817
        %v2922 = vpack.c.b16 %v2822, %v2820
        %v2923 = vpack.c.b16 %v2823, %v2821
        %v2924 = vpack.c.b16 %v2826, %v2824
        %v2925 = vpack.c.b16 %v2827, %v2825
        %v2926 = vpack.c.b16 %v2830, %v2828
        %v2927 = vpack.c.b16 %v2831, %v2829
        %3024 = vmatprep.subr.bf16.mxu0 %v2847
        %3025 = vmatpush1.bf16.msra.mxu0 %v2846
        %3026 = vmatprep.subr.bf16.mxu0 %v2845
        %3027 = vmatpush1.bf16.msra.mxu0 %v2844
        %3028 = vmatprep.subr.bf16.mxu0 %v2843
        %3029 = vmatpush1.bf16.msra.mxu0 %v2842
        %3030 = vmatprep.subr.bf16.mxu0 %v2841
        %3031 = vmatpush1.bf16.msra.mxu0 %v2840
        %3032 = vmatprep.subr.bf16.mxu0 %v2839
        %3033 = vmatpush1.bf16.msra.mxu0 %v2838
        %3034 = vmatprep.subr.bf16.mxu0 %v2837
        %3035 = vmatpush1.bf16.msra.mxu0 %v2836
        %3036 = vmatprep.subr.bf16.mxu0 %v2835
        %3037 = vmatpush1.bf16.msra.mxu0 %v2834
        %3038 = vmatprep.subr.bf16.mxu0 %v2833
        %3039 = vmatpush1.bf16.msra.mxu0 %v2832
        %3040 = vmatprep.subr.bf16.mxu0 %v2863
        %3041 = vmatpush2.bf16.msra.mxu0 %v2862
        %3042 = vmatprep.subr.bf16.mxu0 %v2861
        %3043 = vmatpush2.bf16.msra.mxu0 %v2860
        %3044 = vmatprep.subr.bf16.mxu0 %v2859
        %3045 = vmatpush2.bf16.msra.mxu0 %v2858
        %3046 = vmatprep.subr.bf16.mxu0 %v2857
        %3047 = vmatpush2.bf16.msra.mxu0 %v2856
        %3048 = vmatprep.subr.bf16.mxu0 %v2855
        %3049 = vmatpush2.bf16.msra.mxu0 %v2854
        %3050 = vmatprep.subr.bf16.mxu0 %v2853
        %3051 = vmatpush2.bf16.msra.mxu0 %v2852
        %3052 = vmatprep.subr.bf16.mxu0 %v2851
        %3053 = vmatpush2.bf16.msra.mxu0 %v2850
        %3054 = vmatprep.subr.bf16.mxu0 %v2849
        %3055 = vmatpush2.bf16.msra.mxu0 %v2848
        %3056 = vmatprep.mubr.bf16.mxu0 %v1969
        %3057 = vmatmul.mubr.bf16.gmra.mxu0 %v1968
        %v3058 = vpop.f32.mrf.mxu0
        %v3059 = vadd.f32 0.0, %v3058
        %v3060 = vpop.f32.mrf.mxu0
        %v3061 = vadd.f32 0.0, %v3060
        %v3062 = vpop.f32.mrf.mxu0
        %v3063 = vadd.f32 0.0, %v3062
        %v3064 = vpop.f32.mrf.mxu0
        %v3065 = vadd.f32 0.0, %v3064
        %3066 = vmatprep.mubr.bf16.mxu0 %v1975
        %3067 = vmatmul.mubr.bf16.gmra.mxu0 %v1974
        %v3068 = vpop.f32.mrf.mxu0
        %v3069 = vadd.f32 0.0, %v3068
        %v3070 = vpop.f32.mrf.mxu0
        %v3071 = vadd.f32 0.0, %v3070
        %v3072 = vpop.f32.mrf.mxu0
        %v3073 = vadd.f32 0.0, %v3072
        %v3074 = vpop.f32.mrf.mxu0
        %v3075 = vadd.f32 0.0, %v3074
        %3076 = vmatprep.mubr.bf16.mxu0 %v1981
        %3077 = vmatmul.mubr.bf16.gmra.mxu0 %v1980
        %v3078 = vpop.f32.mrf.mxu0
        %v3079 = vadd.f32 0.0, %v3078
        %v3080 = vpop.f32.mrf.mxu0
        %v3081 = vadd.f32 0.0, %v3080
        %v3082 = vpop.f32.mrf.mxu0
        %v3083 = vadd.f32 0.0, %v3082
        %v3084 = vpop.f32.mrf.mxu0
        %v3085 = vadd.f32 0.0, %v3084
        %3086 = vmatprep.mubr.bf16.mxu0 %v1987
        %3087 = vmatmul.mubr.bf16.gmra.mxu0 %v1986
        %v3088 = vpop.f32.mrf.mxu0
        %v3089 = vadd.f32 0.0, %v3088
        %v3090 = vpop.f32.mrf.mxu0
        %v3091 = vadd.f32 0.0, %v3090
        %v3092 = vpop.f32.mrf.mxu0
        %v3093 = vadd.f32 0.0, %v3092
        %v3094 = vpop.f32.mrf.mxu0
        %v3095 = vadd.f32 0.0, %v3094
        %3096 = vmatprep.mubr.bf16.mxu0 %v1993
        %3097 = vmatmul.mubr.bf16.gmra.mxu0 %v1992
        %v3098 = vpop.f32.mrf.mxu0
        %v3099 = vadd.f32 0.0, %v3098
        %v3100 = vpop.f32.mrf.mxu0
        %v3101 = vadd.f32 0.0, %v3100
        %v3102 = vpop.f32.mrf.mxu0
        %v3103 = vadd.f32 0.0, %v3102
        %v3104 = vpop.f32.mrf.mxu0
        %v3105 = vadd.f32 0.0, %v3104
        %3106 = vmatprep.mubr.bf16.mxu0 %v1999
        %3107 = vmatmul.mubr.bf16.gmra.mxu0 %v1998
        %v3108 = vpop.f32.mrf.mxu0
        %v3109 = vadd.f32 0.0, %v3108
        %v3110 = vpop.f32.mrf.mxu0
        %v3111 = vadd.f32 0.0, %v3110
        %v3112 = vpop.f32.mrf.mxu0
        %v3113 = vadd.f32 0.0, %v3112
        %v3114 = vpop.f32.mrf.mxu0
        %v3115 = vadd.f32 0.0, %v3114
        %3116 = vmatprep.mubr.bf16.mxu0 %v2005
        %3117 = vmatmul.mubr.bf16.gmra.mxu0 %v2004
        %v3118 = vpop.f32.mrf.mxu0
        %v3119 = vadd.f32 0.0, %v3118
        %v3120 = vpop.f32.mrf.mxu0
        %v3121 = vadd.f32 0.0, %v3120
        %v3122 = vpop.f32.mrf.mxu0
        %v3123 = vadd.f32 0.0, %v3122
        %v3124 = vpop.f32.mrf.mxu0
        %v3125 = vadd.f32 0.0, %v3124
        %3126 = vmatprep.mubr.bf16.mxu0 %v2011
        %3127 = vmatmul.mubr.bf16.gmra.mxu0 %v2010
        %v3128 = vpop.f32.mrf.mxu0
        %v3129 = vadd.f32 0.0, %v3128
        %v3130 = vpop.f32.mrf.mxu0
        %v3131 = vadd.f32 0.0, %v3130
        %v3132 = vpop.f32.mrf.mxu0
        %v3133 = vadd.f32 0.0, %v3132
        %v3134 = vpop.f32.mrf.mxu0
        %v3135 = vadd.f32 0.0, %v3134
        %3136 = vmatprep.mubr.bf16.mxu0 %v2017
        %3137 = vmatmul.mubr.bf16.gmra.mxu0 %v2016
        %v3138 = vpop.f32.mrf.mxu0
        %v3139 = vadd.f32 0.0, %v3138
        %v3140 = vpop.f32.mrf.mxu0
        %v3141 = vadd.f32 0.0, %v3140
        %v3142 = vpop.f32.mrf.mxu0
        %v3143 = vadd.f32 0.0, %v3142
        %v3144 = vpop.f32.mrf.mxu0
        %v3145 = vadd.f32 0.0, %v3144
        %3146 = vmatprep.mubr.bf16.mxu0 %v2023
        %3147 = vmatmul.mubr.bf16.gmra.mxu0 %v2022
        %v3148 = vpop.f32.mrf.mxu0
        %v3149 = vadd.f32 0.0, %v3148
        %v3150 = vpop.f32.mrf.mxu0
        %v3151 = vadd.f32 0.0, %v3150
        %v3152 = vpop.f32.mrf.mxu0
        %v3153 = vadd.f32 0.0, %v3152
        %v3154 = vpop.f32.mrf.mxu0
        %v3155 = vadd.f32 0.0, %v3154
        %3156 = vmatprep.mubr.bf16.mxu0 %v2029
        %3157 = vmatmul.mubr.bf16.gmra.mxu0 %v2028
        %v3158 = vpop.f32.mrf.mxu0
        %v3159 = vadd.f32 0.0, %v3158
        %v3160 = vpop.f32.mrf.mxu0
        %v3161 = vadd.f32 0.0, %v3160
        %v3162 = vpop.f32.mrf.mxu0
        %v3163 = vadd.f32 0.0, %v3162
        %v3164 = vpop.f32.mrf.mxu0
        %v3165 = vadd.f32 0.0, %v3164
        %3166 = vmatprep.mubr.bf16.mxu0 %v2035
        %3167 = vmatmul.mubr.bf16.gmra.mxu0 %v2034
        %v3168 = vpop.f32.mrf.mxu0
        %v3169 = vadd.f32 0.0, %v3168
        %v3170 = vpop.f32.mrf.mxu0
        %v3171 = vadd.f32 0.0, %v3170
        %v3172 = vpop.f32.mrf.mxu0
        %v3173 = vadd.f32 0.0, %v3172
        %v3174 = vpop.f32.mrf.mxu0
        %v3175 = vadd.f32 0.0, %v3174
        %3176 = vmatprep.mubr.bf16.mxu0 %v2041
        %3177 = vmatmul.mubr.bf16.gmra.mxu0 %v2040
        %v3178 = vpop.f32.mrf.mxu0
        %v3179 = vadd.f32 0.0, %v3178
        %v3180 = vpop.f32.mrf.mxu0
        %v3181 = vadd.f32 0.0, %v3180
        %v3182 = vpop.f32.mrf.mxu0
        %v3183 = vadd.f32 0.0, %v3182
        %v3184 = vpop.f32.mrf.mxu0
        %v3185 = vadd.f32 0.0, %v3184
        %3186 = vmatprep.mubr.bf16.mxu0 %v2047
        %3187 = vmatmul.mubr.bf16.gmra.mxu0 %v2046
        %v3188 = vpop.f32.mrf.mxu0
        %v3189 = vadd.f32 0.0, %v3188
        %v3190 = vpop.f32.mrf.mxu0
        %v3191 = vadd.f32 0.0, %v3190
        %v3192 = vpop.f32.mrf.mxu0
        %v3193 = vadd.f32 0.0, %v3192
        %v3194 = vpop.f32.mrf.mxu0
        %v3195 = vadd.f32 0.0, %v3194
        %3196 = vmatprep.mubr.bf16.mxu0 %v2053
        %3197 = vmatmul.mubr.bf16.gmra.mxu0 %v2052
        %v3198 = vpop.f32.mrf.mxu0
        %v3199 = vadd.f32 0.0, %v3198
        %v3200 = vpop.f32.mrf.mxu0
        %v3201 = vadd.f32 0.0, %v3200
        %v3202 = vpop.f32.mrf.mxu0
        %v3203 = vadd.f32 0.0, %v3202
        %v3204 = vpop.f32.mrf.mxu0
        %v3205 = vadd.f32 0.0, %v3204
        %3206 = vmatprep.mubr.bf16.mxu0 %v2059
        %3207 = vmatmul.mubr.bf16.gmra.mxu0 %v2058
        %v3208 = vpop.f32.mrf.mxu0
        %v3209 = vadd.f32 0.0, %v3208
        %v3210 = vpop.f32.mrf.mxu0
        %v3211 = vadd.f32 0.0, %v3210
        %v3212 = vpop.f32.mrf.mxu0
        %v3213 = vadd.f32 0.0, %v3212
        %v3214 = vpop.f32.mrf.mxu0
        %v3215 = vadd.f32 0.0, %v3214
        %3216 = vmatprep.mubr.bf16.mxu0 %v2065
        %3217 = vmatmul.mubr.bf16.gmra.mxu0 %v2064
        %v3218 = vpop.f32.mrf.mxu0
        %v3219 = vadd.f32 0.0, %v3218
        %v3220 = vpop.f32.mrf.mxu0
        %v3221 = vadd.f32 0.0, %v3220
        %v3222 = vpop.f32.mrf.mxu0
        %v3223 = vadd.f32 0.0, %v3222
        %v3224 = vpop.f32.mrf.mxu0
        %v3225 = vadd.f32 0.0, %v3224
        %3226 = vmatprep.mubr.bf16.mxu0 %v2071
        %3227 = vmatmul.mubr.bf16.gmra.mxu0 %v2070
        %v3228 = vpop.f32.mrf.mxu0
        %v3229 = vadd.f32 0.0, %v3228
        %v3230 = vpop.f32.mrf.mxu0
        %v3231 = vadd.f32 0.0, %v3230
        %v3232 = vpop.f32.mrf.mxu0
        %v3233 = vadd.f32 0.0, %v3232
        %v3234 = vpop.f32.mrf.mxu0
        %v3235 = vadd.f32 0.0, %v3234
        %3236 = vmatprep.mubr.bf16.mxu0 %v2077
        %3237 = vmatmul.mubr.bf16.gmra.mxu0 %v2076
        %v3238 = vpop.f32.mrf.mxu0
        %v3239 = vadd.f32 0.0, %v3238
        %v3240 = vpop.f32.mrf.mxu0
        %v3241 = vadd.f32 0.0, %v3240
        %v3242 = vpop.f32.mrf.mxu0
        %v3243 = vadd.f32 0.0, %v3242
        %v3244 = vpop.f32.mrf.mxu0
        %v3245 = vadd.f32 0.0, %v3244
        %3246 = vmatprep.mubr.bf16.mxu0 %v2083
        %3247 = vmatmul.mubr.bf16.gmra.mxu0 %v2082
        %v3248 = vpop.f32.mrf.mxu0
        %v3249 = vadd.f32 0.0, %v3248
        %v3250 = vpop.f32.mrf.mxu0
        %v3251 = vadd.f32 0.0, %v3250
        %v3252 = vpop.f32.mrf.mxu0
        %v3253 = vadd.f32 0.0, %v3252
        %v3254 = vpop.f32.mrf.mxu0
        %v3255 = vadd.f32 0.0, %v3254
        %3256 = vmatprep.mubr.bf16.mxu0 %v2089
        %3257 = vmatmul.mubr.bf16.gmra.mxu0 %v2088
        %v3258 = vpop.f32.mrf.mxu0
        %v3259 = vadd.f32 0.0, %v3258
        %v3260 = vpop.f32.mrf.mxu0
        %v3261 = vadd.f32 0.0, %v3260
        %v3262 = vpop.f32.mrf.mxu0
        %v3263 = vadd.f32 0.0, %v3262
        %v3264 = vpop.f32.mrf.mxu0
        %v3265 = vadd.f32 0.0, %v3264
        %3266 = vmatprep.mubr.bf16.mxu0 %v2095
        %3267 = vmatmul.mubr.bf16.gmra.mxu0 %v2094
        %v3268 = vpop.f32.mrf.mxu0
        %v3269 = vadd.f32 0.0, %v3268
        %v3270 = vpop.f32.mrf.mxu0
        %v3271 = vadd.f32 0.0, %v3270
        %v3272 = vpop.f32.mrf.mxu0
        %v3273 = vadd.f32 0.0, %v3272
        %v3274 = vpop.f32.mrf.mxu0
        %v3275 = vadd.f32 0.0, %v3274
        %3276 = vmatprep.mubr.bf16.mxu0 %v2101
        %3277 = vmatmul.mubr.bf16.gmra.mxu0 %v2100
        %v3278 = vpop.f32.mrf.mxu0
        %v3279 = vadd.f32 0.0, %v3278
        %v3280 = vpop.f32.mrf.mxu0
        %v3281 = vadd.f32 0.0, %v3280
        %v3282 = vpop.f32.mrf.mxu0
        %v3283 = vadd.f32 0.0, %v3282
        %v3284 = vpop.f32.mrf.mxu0
        %v3285 = vadd.f32 0.0, %v3284
        %3286 = vmatprep.mubr.bf16.mxu0 %v2107
        %3287 = vmatmul.mubr.bf16.gmra.mxu0 %v2106
        %v3288 = vpop.f32.mrf.mxu0
        %v3289 = vadd.f32 0.0, %v3288
        %v3290 = vpop.f32.mrf.mxu0
        %v3291 = vadd.f32 0.0, %v3290
        %v3292 = vpop.f32.mrf.mxu0
        %v3293 = vadd.f32 0.0, %v3292
        %v3294 = vpop.f32.mrf.mxu0
        %v3295 = vadd.f32 0.0, %v3294
        %3296 = vmatprep.mubr.bf16.mxu0 %v2113
        %3297 = vmatmul.mubr.bf16.gmra.mxu0 %v2112
        %v3298 = vpop.f32.mrf.mxu0
        %v3299 = vadd.f32 0.0, %v3298
        %v3300 = vpop.f32.mrf.mxu0
        %v3301 = vadd.f32 0.0, %v3300
        %v3302 = vpop.f32.mrf.mxu0
        %v3303 = vadd.f32 0.0, %v3302
        %v3304 = vpop.f32.mrf.mxu0
        %v3305 = vadd.f32 0.0, %v3304
        %3306 = vmatprep.mubr.bf16.mxu0 %v2119
        %3307 = vmatmul.mubr.bf16.gmra.mxu0 %v2118
        %v3308 = vpop.f32.mrf.mxu0
        %v3309 = vadd.f32 0.0, %v3308
        %v3310 = vpop.f32.mrf.mxu0
        %v3311 = vadd.f32 0.0, %v3310
        %v3312 = vpop.f32.mrf.mxu0
        %v3313 = vadd.f32 0.0, %v3312
        %v3314 = vpop.f32.mrf.mxu0
        %v3315 = vadd.f32 0.0, %v3314
        %3316 = vmatprep.mubr.bf16.mxu0 %v2125
        %3317 = vmatmul.mubr.bf16.gmra.mxu0 %v2124
        %v3318 = vpop.f32.mrf.mxu0
        %v3319 = vadd.f32 0.0, %v3318
        %v3320 = vpop.f32.mrf.mxu0
        %v3321 = vadd.f32 0.0, %v3320
        %v3322 = vpop.f32.mrf.mxu0
        %v3323 = vadd.f32 0.0, %v3322
        %v3324 = vpop.f32.mrf.mxu0
        %v3325 = vadd.f32 0.0, %v3324
        %3326 = vmatprep.mubr.bf16.mxu0 %v2131
        %3327 = vmatmul.mubr.bf16.gmra.mxu0 %v2130
        %v3328 = vpop.f32.mrf.mxu0
        %v3329 = vadd.f32 0.0, %v3328
        %v3330 = vpop.f32.mrf.mxu0
        %v3331 = vadd.f32 0.0, %v3330
        %v3332 = vpop.f32.mrf.mxu0
        %v3333 = vadd.f32 0.0, %v3332
        %v3334 = vpop.f32.mrf.mxu0
        %v3335 = vadd.f32 0.0, %v3334
        %3336 = vmatprep.mubr.bf16.mxu0 %v2137
        %3337 = vmatmul.mubr.bf16.gmra.mxu0 %v2136
        %v3338 = vpop.f32.mrf.mxu0
        %v3339 = vadd.f32 0.0, %v3338
        %v3340 = vpop.f32.mrf.mxu0
        %v3341 = vadd.f32 0.0, %v3340
        %v3342 = vpop.f32.mrf.mxu0
        %v3343 = vadd.f32 0.0, %v3342
        %v3344 = vpop.f32.mrf.mxu0
        %v3345 = vadd.f32 0.0, %v3344
        %3346 = vmatprep.mubr.bf16.mxu0 %v2143
        %3347 = vmatmul.mubr.bf16.gmra.mxu0 %v2142
        %v3348 = vpop.f32.mrf.mxu0
        %v3349 = vadd.f32 0.0, %v3348
        %v3350 = vpop.f32.mrf.mxu0
        %v3351 = vadd.f32 0.0, %v3350
        %v3352 = vpop.f32.mrf.mxu0
        %v3353 = vadd.f32 0.0, %v3352
        %v3354 = vpop.f32.mrf.mxu0
        %v3355 = vadd.f32 0.0, %v3354
        %3356 = vmatprep.mubr.bf16.mxu0 %v2149
        %3357 = vmatmul.mubr.bf16.gmra.mxu0 %v2148
        %v3358 = vpop.f32.mrf.mxu0
        %v3359 = vadd.f32 0.0, %v3358
        %v3360 = vpop.f32.mrf.mxu0
        %v3361 = vadd.f32 0.0, %v3360
        %v3362 = vpop.f32.mrf.mxu0
        %v3363 = vadd.f32 0.0, %v3362
        %v3364 = vpop.f32.mrf.mxu0
        %v3365 = vadd.f32 0.0, %v3364
        %3366 = vmatprep.mubr.bf16.mxu0 %v2155
        %3367 = vmatmul.mubr.bf16.gmra.mxu0 %v2154
        %v3368 = vpop.f32.mrf.mxu0
        %v3369 = vadd.f32 0.0, %v3368
        %v3370 = vpop.f32.mrf.mxu0
        %v3371 = vadd.f32 0.0, %v3370
        %v3372 = vpop.f32.mrf.mxu0
        %v3373 = vadd.f32 0.0, %v3372
        %v3374 = vpop.f32.mrf.mxu0
        %v3375 = vadd.f32 0.0, %v3374
        %3376 = vmatprep.mubr.bf16.mxu0 %v2161
        %3377 = vmatmul.mubr.bf16.gmra.mxu0 %v2160
        %v3378 = vpop.f32.mrf.mxu0
        %v3379 = vadd.f32 0.0, %v3378
        %v3380 = vpop.f32.mrf.mxu0
        %v3381 = vadd.f32 0.0, %v3380
        %v3382 = vpop.f32.mrf.mxu0
        %v3383 = vadd.f32 0.0, %v3382
        %v3384 = vpop.f32.mrf.mxu0
        %v3385 = vadd.f32 0.0, %v3384
        %3386 = vmatprep.mubr.bf16.mxu0 %v2167
        %3387 = vmatmul.mubr.bf16.gmra.mxu0 %v2166
        %v3388 = vpop.f32.mrf.mxu0
        %v3389 = vadd.f32 0.0, %v3388
        %v3390 = vpop.f32.mrf.mxu0
        %v3391 = vadd.f32 0.0, %v3390
        %v3392 = vpop.f32.mrf.mxu0
        %v3393 = vadd.f32 0.0, %v3392
        %v3394 = vpop.f32.mrf.mxu0
        %v3395 = vadd.f32 0.0, %v3394
        %3396 = vmatprep.mubr.bf16.mxu0 %v2173
        %3397 = vmatmul.mubr.bf16.gmra.mxu0 %v2172
        %v3398 = vpop.f32.mrf.mxu0
        %v3399 = vadd.f32 0.0, %v3398
        %v3400 = vpop.f32.mrf.mxu0
        %v3401 = vadd.f32 0.0, %v3400
        %v3402 = vpop.f32.mrf.mxu0
        %v3403 = vadd.f32 0.0, %v3402
        %v3404 = vpop.f32.mrf.mxu0
        %v3405 = vadd.f32 0.0, %v3404
        %3406 = vmatprep.mubr.bf16.mxu0 %v2179
        %3407 = vmatmul.mubr.bf16.gmra.mxu0 %v2178
        %v3408 = vpop.f32.mrf.mxu0
        %v3409 = vadd.f32 0.0, %v3408
        %v3410 = vpop.f32.mrf.mxu0
        %v3411 = vadd.f32 0.0, %v3410
        %v3412 = vpop.f32.mrf.mxu0
        %v3413 = vadd.f32 0.0, %v3412
        %v3414 = vpop.f32.mrf.mxu0
        %v3415 = vadd.f32 0.0, %v3414
        %3416 = vmatprep.mubr.bf16.mxu0 %v2185
        %3417 = vmatmul.mubr.bf16.gmra.mxu0 %v2184
        %v3418 = vpop.f32.mrf.mxu0
        %v3419 = vadd.f32 0.0, %v3418
        %v3420 = vpop.f32.mrf.mxu0
        %v3421 = vadd.f32 0.0, %v3420
        %v3422 = vpop.f32.mrf.mxu0
        %v3423 = vadd.f32 0.0, %v3422
        %v3424 = vpop.f32.mrf.mxu0
        %v3425 = vadd.f32 0.0, %v3424
        %3426 = vmatprep.mubr.bf16.mxu0 %v2191
        %3427 = vmatmul.mubr.bf16.gmra.mxu0 %v2190
        %v3428 = vpop.f32.mrf.mxu0
        %v3429 = vadd.f32 0.0, %v3428
        %v3430 = vpop.f32.mrf.mxu0
        %v3431 = vadd.f32 0.0, %v3430
        %v3432 = vpop.f32.mrf.mxu0
        %v3433 = vadd.f32 0.0, %v3432
        %v3434 = vpop.f32.mrf.mxu0
        %v3435 = vadd.f32 0.0, %v3434
        %3436 = vmatprep.mubr.bf16.mxu0 %v2197
        %3437 = vmatmul.mubr.bf16.gmra.mxu0 %v2196
        %v3438 = vpop.f32.mrf.mxu0
        %v3439 = vadd.f32 0.0, %v3438
        %v3440 = vpop.f32.mrf.mxu0
        %v3441 = vadd.f32 0.0, %v3440
        %v3442 = vpop.f32.mrf.mxu0
        %v3443 = vadd.f32 0.0, %v3442
        %v3444 = vpop.f32.mrf.mxu0
        %v3445 = vadd.f32 0.0, %v3444
        %3446 = vmatprep.mubr.bf16.mxu0 %v2203
        %3447 = vmatmul.mubr.bf16.gmra.mxu0 %v2202
        %v3448 = vpop.f32.mrf.mxu0
        %v3449 = vadd.f32 0.0, %v3448
        %v3450 = vpop.f32.mrf.mxu0
        %v3451 = vadd.f32 0.0, %v3450
        %v3452 = vpop.f32.mrf.mxu0
        %v3453 = vadd.f32 0.0, %v3452
        %v3454 = vpop.f32.mrf.mxu0
        %v3455 = vadd.f32 0.0, %v3454
        %3456 = vmatprep.mubr.bf16.mxu0 %v2209
        %3457 = vmatmul.mubr.bf16.gmra.mxu0 %v2208
        %v3458 = vpop.f32.mrf.mxu0
        %v3459 = vadd.f32 0.0, %v3458
        %v3460 = vpop.f32.mrf.mxu0
        %v3461 = vadd.f32 0.0, %v3460
        %v3462 = vpop.f32.mrf.mxu0
        %v3463 = vadd.f32 0.0, %v3462
        %v3464 = vpop.f32.mrf.mxu0
        %v3465 = vadd.f32 0.0, %v3464
        %3466 = vmatprep.mubr.bf16.mxu0 %v2215
        %3467 = vmatmul.mubr.bf16.gmra.mxu0 %v2214
        %v3468 = vpop.f32.mrf.mxu0
        %v3469 = vadd.f32 0.0, %v3468
        %v3470 = vpop.f32.mrf.mxu0
        %v3471 = vadd.f32 0.0, %v3470
        %v3472 = vpop.f32.mrf.mxu0
        %v3473 = vadd.f32 0.0, %v3472
        %v3474 = vpop.f32.mrf.mxu0
        %v3475 = vadd.f32 0.0, %v3474
        %3476 = vmatprep.mubr.bf16.mxu0 %v2221
        %3477 = vmatmul.mubr.bf16.gmra.mxu0 %v2220
        %v3478 = vpop.f32.mrf.mxu0
        %v3479 = vadd.f32 0.0, %v3478
        %v3480 = vpop.f32.mrf.mxu0
        %v3481 = vadd.f32 0.0, %v3480
        %v3482 = vpop.f32.mrf.mxu0
        %v3483 = vadd.f32 0.0, %v3482
        %v3484 = vpop.f32.mrf.mxu0
        %v3485 = vadd.f32 0.0, %v3484
        %3486 = vmatprep.mubr.bf16.mxu0 %v2227
        %3487 = vmatmul.mubr.bf16.gmra.mxu0 %v2226
        %v3488 = vpop.f32.mrf.mxu0
        %v3489 = vadd.f32 0.0, %v3488
        %v3490 = vpop.f32.mrf.mxu0
        %v3491 = vadd.f32 0.0, %v3490
        %v3492 = vpop.f32.mrf.mxu0
        %v3493 = vadd.f32 0.0, %v3492
        %v3494 = vpop.f32.mrf.mxu0
        %v3495 = vadd.f32 0.0, %v3494
        %3496 = vmatprep.mubr.bf16.mxu0 %v2233
        %3497 = vmatmul.mubr.bf16.gmra.mxu0 %v2232
        %v3498 = vpop.f32.mrf.mxu0
        %v3499 = vadd.f32 0.0, %v3498
        %v3500 = vpop.f32.mrf.mxu0
        %v3501 = vadd.f32 0.0, %v3500
        %v3502 = vpop.f32.mrf.mxu0
        %v3503 = vadd.f32 0.0, %v3502
        %v3504 = vpop.f32.mrf.mxu0
        %v3505 = vadd.f32 0.0, %v3504
        %3506 = vmatprep.mubr.bf16.mxu0 %v2239
        %3507 = vmatmul.mubr.bf16.gmra.mxu0 %v2238
        %v3508 = vpop.f32.mrf.mxu0
        %v3509 = vadd.f32 0.0, %v3508
        %v3510 = vpop.f32.mrf.mxu0
        %v3511 = vadd.f32 0.0, %v3510
        %v3512 = vpop.f32.mrf.mxu0
        %v3513 = vadd.f32 0.0, %v3512
        %v3514 = vpop.f32.mrf.mxu0
        %v3515 = vadd.f32 0.0, %v3514
        %3516 = vmatprep.mubr.bf16.mxu0 %v2245
        %3517 = vmatmul.mubr.bf16.gmra.mxu0 %v2244
        %v3518 = vpop.f32.mrf.mxu0
        %v3519 = vadd.f32 0.0, %v3518
        %v3520 = vpop.f32.mrf.mxu0
        %v3521 = vadd.f32 0.0, %v3520
        %v3522 = vpop.f32.mrf.mxu0
        %v3523 = vadd.f32 0.0, %v3522
        %v3524 = vpop.f32.mrf.mxu0
        %v3525 = vadd.f32 0.0, %v3524
        %3526 = vmatprep.mubr.bf16.mxu0 %v2251
        %3527 = vmatmul.mubr.bf16.gmra.mxu0 %v2250
        %v3528 = vpop.f32.mrf.mxu0
        %v3529 = vadd.f32 0.0, %v3528
        %v3530 = vpop.f32.mrf.mxu0
        %v3531 = vadd.f32 0.0, %v3530
        %v3532 = vpop.f32.mrf.mxu0
        %v3533 = vadd.f32 0.0, %v3532
        %v3534 = vpop.f32.mrf.mxu0
        %v3535 = vadd.f32 0.0, %v3534
        %3536 = vdwg.mxu0
        %3537 = vmatprep.subr.bf16.mxu0 %v2879
        %3538 = vmatpush1.bf16.msra.mxu0 %v2878
        %3539 = vmatprep.subr.bf16.mxu0 %v2877
        %3540 = vmatpush1.bf16.msra.mxu0 %v2876
        %3541 = vmatprep.subr.bf16.mxu0 %v2875
        %3542 = vmatpush1.bf16.msra.mxu0 %v2874
        %3543 = vmatprep.subr.bf16.mxu0 %v2873
        %3544 = vmatpush1.bf16.msra.mxu0 %v2872
        %3545 = vmatprep.subr.bf16.mxu0 %v2871
        %3546 = vmatpush1.bf16.msra.mxu0 %v2870
        %3547 = vmatprep.subr.bf16.mxu0 %v2869
        %3548 = vmatpush1.bf16.msra.mxu0 %v2868
        %3549 = vmatprep.subr.bf16.mxu0 %v2867
        %3550 = vmatpush1.bf16.msra.mxu0 %v2866
        %3551 = vmatprep.subr.bf16.mxu0 %v2865
        %3552 = vmatpush1.bf16.msra.mxu0 %v2864
        %3553 = vmatprep.subr.bf16.mxu0 %v2895
        %3554 = vmatpush2.bf16.msra.mxu0 %v2894
        %3555 = vmatprep.subr.bf16.mxu0 %v2893
        %3556 = vmatpush2.bf16.msra.mxu0 %v2892
        %3557 = vmatprep.subr.bf16.mxu0 %v2891
        %3558 = vmatpush2.bf16.msra.mxu0 %v2890
        %3559 = vmatprep.subr.bf16.mxu0 %v2889
        %3560 = vmatpush2.bf16.msra.mxu0 %v2888
        %3561 = vmatprep.subr.bf16.mxu0 %v2887
        %3562 = vmatpush2.bf16.msra.mxu0 %v2886
        %3563 = vmatprep.subr.bf16.mxu0 %v2885
        %3564 = vmatpush2.bf16.msra.mxu0 %v2884
        %3565 = vmatprep.subr.bf16.mxu0 %v2883
        %3566 = vmatpush2.bf16.msra.mxu0 %v2882
        %3567 = vmatprep.subr.bf16.mxu0 %v2881
        %3568 = vmatpush2.bf16.msra.mxu0 %v2880
        %3569 = vmatprep.mubr.bf16.mxu0 %v1971
        %3570 = vmatmul.mubr.bf16.gmra.mxu0 %v1970
        %v3571 = vpop.f32.mrf.mxu0
        %v3572 = vadd.f32 %v3059, %v3571
        %v3573 = vpop.f32.mrf.mxu0
        %v3574 = vadd.f32 %v3061, %v3573
        %v3575 = vpop.f32.mrf.mxu0
        %v3576 = vadd.f32 %v3063, %v3575
        %v3577 = vpop.f32.mrf.mxu0
        %v3578 = vadd.f32 %v3065, %v3577
        %3579 = vmatprep.mubr.bf16.mxu0 %v1977
        %3580 = vmatmul.mubr.bf16.gmra.mxu0 %v1976
        %v3581 = vpop.f32.mrf.mxu0
        %v3582 = vadd.f32 %v3069, %v3581
        %v3583 = vpop.f32.mrf.mxu0
        %v3584 = vadd.f32 %v3071, %v3583
        %v3585 = vpop.f32.mrf.mxu0
        %v3586 = vadd.f32 %v3073, %v3585
        %v3587 = vpop.f32.mrf.mxu0
        %v3588 = vadd.f32 %v3075, %v3587
        %3589 = vmatprep.mubr.bf16.mxu0 %v1983
        %3590 = vmatmul.mubr.bf16.gmra.mxu0 %v1982
        %v3591 = vpop.f32.mrf.mxu0
        %v3592 = vadd.f32 %v3079, %v3591
        %v3593 = vpop.f32.mrf.mxu0
        %v3594 = vadd.f32 %v3081, %v3593
        %v3595 = vpop.f32.mrf.mxu0
        %v3596 = vadd.f32 %v3083, %v3595
        %v3597 = vpop.f32.mrf.mxu0
        %v3598 = vadd.f32 %v3085, %v3597
        %3599 = vmatprep.mubr.bf16.mxu0 %v1989
        %3600 = vmatmul.mubr.bf16.gmra.mxu0 %v1988
        %v3601 = vpop.f32.mrf.mxu0
        %v3602 = vadd.f32 %v3089, %v3601
        %v3603 = vpop.f32.mrf.mxu0
        %v3604 = vadd.f32 %v3091, %v3603
        %v3605 = vpop.f32.mrf.mxu0
        %v3606 = vadd.f32 %v3093, %v3605
        %v3607 = vpop.f32.mrf.mxu0
        %v3608 = vadd.f32 %v3095, %v3607
        %3609 = vmatprep.mubr.bf16.mxu0 %v1995
        %3610 = vmatmul.mubr.bf16.gmra.mxu0 %v1994
        %v3611 = vpop.f32.mrf.mxu0
        %v3612 = vadd.f32 %v3099, %v3611
        %v3613 = vpop.f32.mrf.mxu0
        %v3614 = vadd.f32 %v3101, %v3613
        %v3615 = vpop.f32.mrf.mxu0
        %v3616 = vadd.f32 %v3103, %v3615
        %v3617 = vpop.f32.mrf.mxu0
        %v3618 = vadd.f32 %v3105, %v3617
        %3619 = vmatprep.mubr.bf16.mxu0 %v2001
        %3620 = vmatmul.mubr.bf16.gmra.mxu0 %v2000
        %v3621 = vpop.f32.mrf.mxu0
        %v3622 = vadd.f32 %v3109, %v3621
        %v3623 = vpop.f32.mrf.mxu0
        %v3624 = vadd.f32 %v3111, %v3623
        %v3625 = vpop.f32.mrf.mxu0
        %v3626 = vadd.f32 %v3113, %v3625
        %v3627 = vpop.f32.mrf.mxu0
        %v3628 = vadd.f32 %v3115, %v3627
        %3629 = vmatprep.mubr.bf16.mxu0 %v2007
        %3630 = vmatmul.mubr.bf16.gmra.mxu0 %v2006
        %v3631 = vpop.f32.mrf.mxu0
        %v3632 = vadd.f32 %v3119, %v3631
        %v3633 = vpop.f32.mrf.mxu0
        %v3634 = vadd.f32 %v3121, %v3633
        %v3635 = vpop.f32.mrf.mxu0
        %v3636 = vadd.f32 %v3123, %v3635
        %v3637 = vpop.f32.mrf.mxu0
        %v3638 = vadd.f32 %v3125, %v3637
        %3639 = vmatprep.mubr.bf16.mxu0 %v2013
        %3640 = vmatmul.mubr.bf16.gmra.mxu0 %v2012
        %v3641 = vpop.f32.mrf.mxu0
        %v3642 = vadd.f32 %v3129, %v3641
        %v3643 = vpop.f32.mrf.mxu0
        %v3644 = vadd.f32 %v3131, %v3643
        %v3645 = vpop.f32.mrf.mxu0
        %v3646 = vadd.f32 %v3133, %v3645
        %v3647 = vpop.f32.mrf.mxu0
        %v3648 = vadd.f32 %v3135, %v3647
        %3649 = vmatprep.mubr.bf16.mxu0 %v2019
        %3650 = vmatmul.mubr.bf16.gmra.mxu0 %v2018
        %v3651 = vpop.f32.mrf.mxu0
        %v3652 = vadd.f32 %v3139, %v3651
        %v3653 = vpop.f32.mrf.mxu0
        %v3654 = vadd.f32 %v3141, %v3653
        %v3655 = vpop.f32.mrf.mxu0
        %v3656 = vadd.f32 %v3143, %v3655
        %v3657 = vpop.f32.mrf.mxu0
        %v3658 = vadd.f32 %v3145, %v3657
        %3659 = vmatprep.mubr.bf16.mxu0 %v2025
        %3660 = vmatmul.mubr.bf16.gmra.mxu0 %v2024
        %v3661 = vpop.f32.mrf.mxu0
        %v3662 = vadd.f32 %v3149, %v3661
        %v3663 = vpop.f32.mrf.mxu0
        %v3664 = vadd.f32 %v3151, %v3663
        %v3665 = vpop.f32.mrf.mxu0
        %v3666 = vadd.f32 %v3153, %v3665
        %v3667 = vpop.f32.mrf.mxu0
        %v3668 = vadd.f32 %v3155, %v3667
        %3669 = vmatprep.mubr.bf16.mxu0 %v2031
        %3670 = vmatmul.mubr.bf16.gmra.mxu0 %v2030
        %v3671 = vpop.f32.mrf.mxu0
        %v3672 = vadd.f32 %v3159, %v3671
        %v3673 = vpop.f32.mrf.mxu0
        %v3674 = vadd.f32 %v3161, %v3673
        %v3675 = vpop.f32.mrf.mxu0
        %v3676 = vadd.f32 %v3163, %v3675
        %v3677 = vpop.f32.mrf.mxu0
        %v3678 = vadd.f32 %v3165, %v3677
        %3679 = vmatprep.mubr.bf16.mxu0 %v2037
        %3680 = vmatmul.mubr.bf16.gmra.mxu0 %v2036
        %v3681 = vpop.f32.mrf.mxu0
        %v3682 = vadd.f32 %v3169, %v3681
        %v3683 = vpop.f32.mrf.mxu0
        %v3684 = vadd.f32 %v3171, %v3683
        %v3685 = vpop.f32.mrf.mxu0
        %v3686 = vadd.f32 %v3173, %v3685
        %v3687 = vpop.f32.mrf.mxu0
        %v3688 = vadd.f32 %v3175, %v3687
        %3689 = vmatprep.mubr.bf16.mxu0 %v2043
        %3690 = vmatmul.mubr.bf16.gmra.mxu0 %v2042
        %v3691 = vpop.f32.mrf.mxu0
        %v3692 = vadd.f32 %v3179, %v3691
        %v3693 = vpop.f32.mrf.mxu0
        %v3694 = vadd.f32 %v3181, %v3693
        %v3695 = vpop.f32.mrf.mxu0
        %v3696 = vadd.f32 %v3183, %v3695
        %v3697 = vpop.f32.mrf.mxu0
        %v3698 = vadd.f32 %v3185, %v3697
        %3699 = vmatprep.mubr.bf16.mxu0 %v2049
        %3700 = vmatmul.mubr.bf16.gmra.mxu0 %v2048
        %v3701 = vpop.f32.mrf.mxu0
        %v3702 = vadd.f32 %v3189, %v3701
        %v3703 = vpop.f32.mrf.mxu0
        %v3704 = vadd.f32 %v3191, %v3703
        %v3705 = vpop.f32.mrf.mxu0
        %v3706 = vadd.f32 %v3193, %v3705
        %v3707 = vpop.f32.mrf.mxu0
        %v3708 = vadd.f32 %v3195, %v3707
        %3709 = vmatprep.mubr.bf16.mxu0 %v2055
        %3710 = vmatmul.mubr.bf16.gmra.mxu0 %v2054
        %v3711 = vpop.f32.mrf.mxu0
        %v3712 = vadd.f32 %v3199, %v3711
        %v3713 = vpop.f32.mrf.mxu0
        %v3714 = vadd.f32 %v3201, %v3713
        %v3715 = vpop.f32.mrf.mxu0
        %v3716 = vadd.f32 %v3203, %v3715
        %v3717 = vpop.f32.mrf.mxu0
        %v3718 = vadd.f32 %v3205, %v3717
        %3719 = vmatprep.mubr.bf16.mxu0 %v2061
        %3720 = vmatmul.mubr.bf16.gmra.mxu0 %v2060
        %v3721 = vpop.f32.mrf.mxu0
        %v3722 = vadd.f32 %v3209, %v3721
        %v3723 = vpop.f32.mrf.mxu0
        %v3724 = vadd.f32 %v3211, %v3723
        %v3725 = vpop.f32.mrf.mxu0
        %v3726 = vadd.f32 %v3213, %v3725
        %v3727 = vpop.f32.mrf.mxu0
        %v3728 = vadd.f32 %v3215, %v3727
        %3729 = vmatprep.mubr.bf16.mxu0 %v2067
        %3730 = vmatmul.mubr.bf16.gmra.mxu0 %v2066
        %v3731 = vpop.f32.mrf.mxu0
        %v3732 = vadd.f32 %v3219, %v3731
        %v3733 = vpop.f32.mrf.mxu0
        %v3734 = vadd.f32 %v3221, %v3733
        %v3735 = vpop.f32.mrf.mxu0
        %v3736 = vadd.f32 %v3223, %v3735
        %v3737 = vpop.f32.mrf.mxu0
        %v3738 = vadd.f32 %v3225, %v3737
        %3739 = vmatprep.mubr.bf16.mxu0 %v2073
        %3740 = vmatmul.mubr.bf16.gmra.mxu0 %v2072
        %v3741 = vpop.f32.mrf.mxu0
        %v3742 = vadd.f32 %v3229, %v3741
        %v3743 = vpop.f32.mrf.mxu0
        %v3744 = vadd.f32 %v3231, %v3743
        %v3745 = vpop.f32.mrf.mxu0
        %v3746 = vadd.f32 %v3233, %v3745
        %v3747 = vpop.f32.mrf.mxu0
        %v3748 = vadd.f32 %v3235, %v3747
        %3749 = vmatprep.mubr.bf16.mxu0 %v2079
        %3750 = vmatmul.mubr.bf16.gmra.mxu0 %v2078
        %v3751 = vpop.f32.mrf.mxu0
        %v3752 = vadd.f32 %v3239, %v3751
        %v3753 = vpop.f32.mrf.mxu0
        %v3754 = vadd.f32 %v3241, %v3753
        %v3755 = vpop.f32.mrf.mxu0
        %v3756 = vadd.f32 %v3243, %v3755
        %v3757 = vpop.f32.mrf.mxu0
        %v3758 = vadd.f32 %v3245, %v3757
        %3759 = vmatprep.mubr.bf16.mxu0 %v2085
        %3760 = vmatmul.mubr.bf16.gmra.mxu0 %v2084
        %v3761 = vpop.f32.mrf.mxu0
        %v3762 = vadd.f32 %v3249, %v3761
        %v3763 = vpop.f32.mrf.mxu0
        %v3764 = vadd.f32 %v3251, %v3763
        %v3765 = vpop.f32.mrf.mxu0
        %v3766 = vadd.f32 %v3253, %v3765
        %v3767 = vpop.f32.mrf.mxu0
        %v3768 = vadd.f32 %v3255, %v3767
        %3769 = vmatprep.mubr.bf16.mxu0 %v2091
        %3770 = vmatmul.mubr.bf16.gmra.mxu0 %v2090
        %v3771 = vpop.f32.mrf.mxu0
        %v3772 = vadd.f32 %v3259, %v3771
        %v3773 = vpop.f32.mrf.mxu0
        %v3774 = vadd.f32 %v3261, %v3773
        %v3775 = vpop.f32.mrf.mxu0
        %v3776 = vadd.f32 %v3263, %v3775
        %v3777 = vpop.f32.mrf.mxu0
        %v3778 = vadd.f32 %v3265, %v3777
        %3779 = vmatprep.mubr.bf16.mxu0 %v2097
        %3780 = vmatmul.mubr.bf16.gmra.mxu0 %v2096
        %v3781 = vpop.f32.mrf.mxu0
        %v3782 = vadd.f32 %v3269, %v3781
        %v3783 = vpop.f32.mrf.mxu0
        %v3784 = vadd.f32 %v3271, %v3783
        %v3785 = vpop.f32.mrf.mxu0
        %v3786 = vadd.f32 %v3273, %v3785
        %v3787 = vpop.f32.mrf.mxu0
        %v3788 = vadd.f32 %v3275, %v3787
        %3789 = vmatprep.mubr.bf16.mxu0 %v2103
        %3790 = vmatmul.mubr.bf16.gmra.mxu0 %v2102
        %v3791 = vpop.f32.mrf.mxu0
        %v3792 = vadd.f32 %v3279, %v3791
        %v3793 = vpop.f32.mrf.mxu0
        %v3794 = vadd.f32 %v3281, %v3793
        %v3795 = vpop.f32.mrf.mxu0
        %v3796 = vadd.f32 %v3283, %v3795
        %v3797 = vpop.f32.mrf.mxu0
        %v3798 = vadd.f32 %v3285, %v3797
        %3799 = vmatprep.mubr.bf16.mxu0 %v2109
        %3800 = vmatmul.mubr.bf16.gmra.mxu0 %v2108
        %v3801 = vpop.f32.mrf.mxu0
        %v3802 = vadd.f32 %v3289, %v3801
        %v3803 = vpop.f32.mrf.mxu0
        %v3804 = vadd.f32 %v3291, %v3803
        %v3805 = vpop.f32.mrf.mxu0
        %v3806 = vadd.f32 %v3293, %v3805
        %v3807 = vpop.f32.mrf.mxu0
        %v3808 = vadd.f32 %v3295, %v3807
        %3809 = vmatprep.mubr.bf16.mxu0 %v2115
        %3810 = vmatmul.mubr.bf16.gmra.mxu0 %v2114
        %v3811 = vpop.f32.mrf.mxu0
        %v3812 = vadd.f32 %v3299, %v3811
        %v3813 = vpop.f32.mrf.mxu0
        %v3814 = vadd.f32 %v3301, %v3813
        %v3815 = vpop.f32.mrf.mxu0
        %v3816 = vadd.f32 %v3303, %v3815
        %v3817 = vpop.f32.mrf.mxu0
        %v3818 = vadd.f32 %v3305, %v3817
        %3819 = vmatprep.mubr.bf16.mxu0 %v2121
        %3820 = vmatmul.mubr.bf16.gmra.mxu0 %v2120
        %v3821 = vpop.f32.mrf.mxu0
        %v3822 = vadd.f32 %v3309, %v3821
        %v3823 = vpop.f32.mrf.mxu0
        %v3824 = vadd.f32 %v3311, %v3823
        %v3825 = vpop.f32.mrf.mxu0
        %v3826 = vadd.f32 %v3313, %v3825
        %v3827 = vpop.f32.mrf.mxu0
        %v3828 = vadd.f32 %v3315, %v3827
        %3829 = vmatprep.mubr.bf16.mxu0 %v2127
        %3830 = vmatmul.mubr.bf16.gmra.mxu0 %v2126
        %v3831 = vpop.f32.mrf.mxu0
        %v3832 = vadd.f32 %v3319, %v3831
        %v3833 = vpop.f32.mrf.mxu0
        %v3834 = vadd.f32 %v3321, %v3833
        %v3835 = vpop.f32.mrf.mxu0
        %v3836 = vadd.f32 %v3323, %v3835
        %v3837 = vpop.f32.mrf.mxu0
        %v3838 = vadd.f32 %v3325, %v3837
        %3839 = vmatprep.mubr.bf16.mxu0 %v2133
        %3840 = vmatmul.mubr.bf16.gmra.mxu0 %v2132
        %v3841 = vpop.f32.mrf.mxu0
        %v3842 = vadd.f32 %v3329, %v3841
        %v3843 = vpop.f32.mrf.mxu0
        %v3844 = vadd.f32 %v3331, %v3843
        %v3845 = vpop.f32.mrf.mxu0
        %v3846 = vadd.f32 %v3333, %v3845
        %v3847 = vpop.f32.mrf.mxu0
        %v3848 = vadd.f32 %v3335, %v3847
        %3849 = vmatprep.mubr.bf16.mxu0 %v2139
        %3850 = vmatmul.mubr.bf16.gmra.mxu0 %v2138
        %v3851 = vpop.f32.mrf.mxu0
        %v3852 = vadd.f32 %v3339, %v3851
        %v3853 = vpop.f32.mrf.mxu0
        %v3854 = vadd.f32 %v3341, %v3853
        %v3855 = vpop.f32.mrf.mxu0
        %v3856 = vadd.f32 %v3343, %v3855
        %v3857 = vpop.f32.mrf.mxu0
        %v3858 = vadd.f32 %v3345, %v3857
        %3859 = vmatprep.mubr.bf16.mxu0 %v2145
        %3860 = vmatmul.mubr.bf16.gmra.mxu0 %v2144
        %v3861 = vpop.f32.mrf.mxu0
        %v3862 = vadd.f32 %v3349, %v3861
        %v3863 = vpop.f32.mrf.mxu0
        %v3864 = vadd.f32 %v3351, %v3863
        %v3865 = vpop.f32.mrf.mxu0
        %v3866 = vadd.f32 %v3353, %v3865
        %v3867 = vpop.f32.mrf.mxu0
        %v3868 = vadd.f32 %v3355, %v3867
        %3869 = vmatprep.mubr.bf16.mxu0 %v2151
        %3870 = vmatmul.mubr.bf16.gmra.mxu0 %v2150
        %v3871 = vpop.f32.mrf.mxu0
        %v3872 = vadd.f32 %v3359, %v3871
        %v3873 = vpop.f32.mrf.mxu0
        %v3874 = vadd.f32 %v3361, %v3873
        %v3875 = vpop.f32.mrf.mxu0
        %v3876 = vadd.f32 %v3363, %v3875
        %v3877 = vpop.f32.mrf.mxu0
        %v3878 = vadd.f32 %v3365, %v3877
        %3879 = vmatprep.mubr.bf16.mxu0 %v2157
        %3880 = vmatmul.mubr.bf16.gmra.mxu0 %v2156
        %v3881 = vpop.f32.mrf.mxu0
        %v3882 = vadd.f32 %v3369, %v3881
        %v3883 = vpop.f32.mrf.mxu0
        %v3884 = vadd.f32 %v3371, %v3883
        %v3885 = vpop.f32.mrf.mxu0
        %v3886 = vadd.f32 %v3373, %v3885
        %v3887 = vpop.f32.mrf.mxu0
        %v3888 = vadd.f32 %v3375, %v3887
        %3889 = vmatprep.mubr.bf16.mxu0 %v2163
        %3890 = vmatmul.mubr.bf16.gmra.mxu0 %v2162
        %v3891 = vpop.f32.mrf.mxu0
        %v3892 = vadd.f32 %v3379, %v3891
        %v3893 = vpop.f32.mrf.mxu0
        %v3894 = vadd.f32 %v3381, %v3893
        %v3895 = vpop.f32.mrf.mxu0
        %v3896 = vadd.f32 %v3383, %v3895
        %v3897 = vpop.f32.mrf.mxu0
        %v3898 = vadd.f32 %v3385, %v3897
        %3899 = vmatprep.mubr.bf16.mxu0 %v2169
        %3900 = vmatmul.mubr.bf16.gmra.mxu0 %v2168
        %v3901 = vpop.f32.mrf.mxu0
        %v3902 = vadd.f32 %v3389, %v3901
        %v3903 = vpop.f32.mrf.mxu0
        %v3904 = vadd.f32 %v3391, %v3903
        %v3905 = vpop.f32.mrf.mxu0
        %v3906 = vadd.f32 %v3393, %v3905
        %v3907 = vpop.f32.mrf.mxu0
        %v3908 = vadd.f32 %v3395, %v3907
        %3909 = vmatprep.mubr.bf16.mxu0 %v2175
        %3910 = vmatmul.mubr.bf16.gmra.mxu0 %v2174
        %v3911 = vpop.f32.mrf.mxu0
        %v3912 = vadd.f32 %v3399, %v3911
        %v3913 = vpop.f32.mrf.mxu0
        %v3914 = vadd.f32 %v3401, %v3913
        %v3915 = vpop.f32.mrf.mxu0
        %v3916 = vadd.f32 %v3403, %v3915
        %v3917 = vpop.f32.mrf.mxu0
        %v3918 = vadd.f32 %v3405, %v3917
        %3919 = vmatprep.mubr.bf16.mxu0 %v2181
        %3920 = vmatmul.mubr.bf16.gmra.mxu0 %v2180
        %v3921 = vpop.f32.mrf.mxu0
        %v3922 = vadd.f32 %v3409, %v3921
        %v3923 = vpop.f32.mrf.mxu0
        %v3924 = vadd.f32 %v3411, %v3923
        %v3925 = vpop.f32.mrf.mxu0
        %v3926 = vadd.f32 %v3413, %v3925
        %v3927 = vpop.f32.mrf.mxu0
        %v3928 = vadd.f32 %v3415, %v3927
        %3929 = vmatprep.mubr.bf16.mxu0 %v2187
        %3930 = vmatmul.mubr.bf16.gmra.mxu0 %v2186
        %v3931 = vpop.f32.mrf.mxu0
        %v3932 = vadd.f32 %v3419, %v3931
        %v3933 = vpop.f32.mrf.mxu0
        %v3934 = vadd.f32 %v3421, %v3933
        %v3935 = vpop.f32.mrf.mxu0
        %v3936 = vadd.f32 %v3423, %v3935
        %v3937 = vpop.f32.mrf.mxu0
        %v3938 = vadd.f32 %v3425, %v3937
        %3939 = vmatprep.mubr.bf16.mxu0 %v2193
        %3940 = vmatmul.mubr.bf16.gmra.mxu0 %v2192
        %v3941 = vpop.f32.mrf.mxu0
        %v3942 = vadd.f32 %v3429, %v3941
        %v3943 = vpop.f32.mrf.mxu0
        %v3944 = vadd.f32 %v3431, %v3943
        %v3945 = vpop.f32.mrf.mxu0
        %v3946 = vadd.f32 %v3433, %v3945
        %v3947 = vpop.f32.mrf.mxu0
        %v3948 = vadd.f32 %v3435, %v3947
        %3949 = vmatprep.mubr.bf16.mxu0 %v2199
        %3950 = vmatmul.mubr.bf16.gmra.mxu0 %v2198
        %v3951 = vpop.f32.mrf.mxu0
        %v3952 = vadd.f32 %v3439, %v3951
        %v3953 = vpop.f32.mrf.mxu0
        %v3954 = vadd.f32 %v3441, %v3953
        %v3955 = vpop.f32.mrf.mxu0
        %v3956 = vadd.f32 %v3443, %v3955
        %v3957 = vpop.f32.mrf.mxu0
        %v3958 = vadd.f32 %v3445, %v3957
        %3959 = vmatprep.mubr.bf16.mxu0 %v2205
        %3960 = vmatmul.mubr.bf16.gmra.mxu0 %v2204
        %v3961 = vpop.f32.mrf.mxu0
        %v3962 = vadd.f32 %v3449, %v3961
        %v3963 = vpop.f32.mrf.mxu0
        %v3964 = vadd.f32 %v3451, %v3963
        %v3965 = vpop.f32.mrf.mxu0
        %v3966 = vadd.f32 %v3453, %v3965
        %v3967 = vpop.f32.mrf.mxu0
        %v3968 = vadd.f32 %v3455, %v3967
        %3969 = vmatprep.mubr.bf16.mxu0 %v2211
        %3970 = vmatmul.mubr.bf16.gmra.mxu0 %v2210
        %v3971 = vpop.f32.mrf.mxu0
        %v3972 = vadd.f32 %v3459, %v3971
        %v3973 = vpop.f32.mrf.mxu0
        %v3974 = vadd.f32 %v3461, %v3973
        %v3975 = vpop.f32.mrf.mxu0
        %v3976 = vadd.f32 %v3463, %v3975
        %v3977 = vpop.f32.mrf.mxu0
        %v3978 = vadd.f32 %v3465, %v3977
        %3979 = vmatprep.mubr.bf16.mxu0 %v2217
        %3980 = vmatmul.mubr.bf16.gmra.mxu0 %v2216
        %v3981 = vpop.f32.mrf.mxu0
        %v3982 = vadd.f32 %v3469, %v3981
        %v3983 = vpop.f32.mrf.mxu0
        %v3984 = vadd.f32 %v3471, %v3983
        %v3985 = vpop.f32.mrf.mxu0
        %v3986 = vadd.f32 %v3473, %v3985
        %v3987 = vpop.f32.mrf.mxu0
        %v3988 = vadd.f32 %v3475, %v3987
        %3989 = vmatprep.mubr.bf16.mxu0 %v2223
        %3990 = vmatmul.mubr.bf16.gmra.mxu0 %v2222
        %v3991 = vpop.f32.mrf.mxu0
        %v3992 = vadd.f32 %v3479, %v3991
        %v3993 = vpop.f32.mrf.mxu0
        %v3994 = vadd.f32 %v3481, %v3993
        %v3995 = vpop.f32.mrf.mxu0
        %v3996 = vadd.f32 %v3483, %v3995
        %v3997 = vpop.f32.mrf.mxu0
        %v3998 = vadd.f32 %v3485, %v3997
        %3999 = vmatprep.mubr.bf16.mxu0 %v2229
        %4000 = vmatmul.mubr.bf16.gmra.mxu0 %v2228
        %v4001 = vpop.f32.mrf.mxu0
        %v4002 = vadd.f32 %v3489, %v4001
        %v4003 = vpop.f32.mrf.mxu0
        %v4004 = vadd.f32 %v3491, %v4003
        %v4005 = vpop.f32.mrf.mxu0
        %v4006 = vadd.f32 %v3493, %v4005
        %v4007 = vpop.f32.mrf.mxu0
        %v4008 = vadd.f32 %v3495, %v4007
        %4009 = vmatprep.mubr.bf16.mxu0 %v2235
        %4010 = vmatmul.mubr.bf16.gmra.mxu0 %v2234
        %v4011 = vpop.f32.mrf.mxu0
        %v4012 = vadd.f32 %v3499, %v4011
        %v4013 = vpop.f32.mrf.mxu0
        %v4014 = vadd.f32 %v3501, %v4013
        %v4015 = vpop.f32.mrf.mxu0
        %v4016 = vadd.f32 %v3503, %v4015
        %v4017 = vpop.f32.mrf.mxu0
        %v4018 = vadd.f32 %v3505, %v4017
        %4019 = vmatprep.mubr.bf16.mxu0 %v2241
        %4020 = vmatmul.mubr.bf16.gmra.mxu0 %v2240
        %v4021 = vpop.f32.mrf.mxu0
        %v4022 = vadd.f32 %v3509, %v4021
        %v4023 = vpop.f32.mrf.mxu0
        %v4024 = vadd.f32 %v3511, %v4023
        %v4025 = vpop.f32.mrf.mxu0
        %v4026 = vadd.f32 %v3513, %v4025
        %v4027 = vpop.f32.mrf.mxu0
        %v4028 = vadd.f32 %v3515, %v4027
        %4029 = vmatprep.mubr.bf16.mxu0 %v2247
        %4030 = vmatmul.mubr.bf16.gmra.mxu0 %v2246
        %v4031 = vpop.f32.mrf.mxu0
        %v4032 = vadd.f32 %v3519, %v4031
        %v4033 = vpop.f32.mrf.mxu0
        %v4034 = vadd.f32 %v3521, %v4033
        %v4035 = vpop.f32.mrf.mxu0
        %v4036 = vadd.f32 %v3523, %v4035
        %v4037 = vpop.f32.mrf.mxu0
        %v4038 = vadd.f32 %v3525, %v4037
        %4039 = vmatprep.mubr.bf16.mxu0 %v2253
        %4040 = vmatmul.mubr.bf16.gmra.mxu0 %v2252
        %v4041 = vpop.f32.mrf.mxu0
        %v4042 = vadd.f32 %v3529, %v4041
        %v4043 = vpop.f32.mrf.mxu0
        %v4044 = vadd.f32 %v3531, %v4043
        %v4045 = vpop.f32.mrf.mxu0
        %v4046 = vadd.f32 %v3533, %v4045
        %v4047 = vpop.f32.mrf.mxu0
        %v4048 = vadd.f32 %v3535, %v4047
        %4049 = vdwg.mxu0
        %4050 = vmatprep.subr.bf16.mxu0 %v2911
        %4051 = vmatpush1.bf16.msra.mxu0 %v2910
        %4052 = vmatprep.subr.bf16.mxu0 %v2909
        %4053 = vmatpush1.bf16.msra.mxu0 %v2908
        %4054 = vmatprep.subr.bf16.mxu0 %v2907
        %4055 = vmatpush1.bf16.msra.mxu0 %v2906
        %4056 = vmatprep.subr.bf16.mxu0 %v2905
        %4057 = vmatpush1.bf16.msra.mxu0 %v2904
        %4058 = vmatprep.subr.bf16.mxu0 %v2903
        %4059 = vmatpush1.bf16.msra.mxu0 %v2902
        %4060 = vmatprep.subr.bf16.mxu0 %v2901
        %4061 = vmatpush1.bf16.msra.mxu0 %v2900
        %4062 = vmatprep.subr.bf16.mxu0 %v2899
        %4063 = vmatpush1.bf16.msra.mxu0 %v2898
        %4064 = vmatprep.subr.bf16.mxu0 %v2897
        %4065 = vmatpush1.bf16.msra.mxu0 %v2896
        %4066 = vmatprep.subr.bf16.mxu0 %v2927
        %4067 = vmatpush2.bf16.msra.mxu0 %v2926
        %4068 = vmatprep.subr.bf16.mxu0 %v2925
        %4069 = vmatpush2.bf16.msra.mxu0 %v2924
        %4070 = vmatprep.subr.bf16.mxu0 %v2923
        %4071 = vmatpush2.bf16.msra.mxu0 %v2922
        %4072 = vmatprep.subr.bf16.mxu0 %v2921
        %4073 = vmatpush2.bf16.msra.mxu0 %v2920
        %4074 = vmatprep.subr.bf16.mxu0 %v2919
        %4075 = vmatpush2.bf16.msra.mxu0 %v2918
        %4076 = vmatprep.subr.bf16.mxu0 %v2917
        %4077 = vmatpush2.bf16.msra.mxu0 %v2916
        %4078 = vmatprep.subr.bf16.mxu0 %v2915
        %4079 = vmatpush2.bf16.msra.mxu0 %v2914
        %4080 = vmatprep.subr.bf16.mxu0 %v2913
        %4081 = vmatpush2.bf16.msra.mxu0 %v2912
        %4082 = vmatprep.mubr.bf16.mxu0 %v1973
        %4083 = vmatmul.mubr.bf16.gmra.mxu0 %v1972
        %v4084 = vpop.f32.mrf.mxu0
        %v4085 = vadd.f32 %v3572, %v4084
        %v4086 = vpop.f32.mrf.mxu0
        %v4087 = vadd.f32 %v3574, %v4086
        %v4088 = vpop.f32.mrf.mxu0
        %v4089 = vadd.f32 %v3576, %v4088
        %v4090 = vpop.f32.mrf.mxu0
        %v4091 = vadd.f32 %v3578, %v4090
        %4092 = vmatprep.mubr.bf16.mxu0 %v1979
        %4093 = vmatmul.mubr.bf16.gmra.mxu0 %v1978
        %v4094 = vpop.f32.mrf.mxu0
        %v4095 = vadd.f32 %v3582, %v4094
        %v4096 = vpop.f32.mrf.mxu0
        %v4097 = vadd.f32 %v3584, %v4096
        %v4098 = vpop.f32.mrf.mxu0
        %v4099 = vadd.f32 %v3586, %v4098
        %v4100 = vpop.f32.mrf.mxu0
        %v4101 = vadd.f32 %v3588, %v4100
        %4102 = vmatprep.mubr.bf16.mxu0 %v1985
        %4103 = vmatmul.mubr.bf16.gmra.mxu0 %v1984
        %v4104 = vpop.f32.mrf.mxu0
        %v4105 = vadd.f32 %v3592, %v4104
        %v4106 = vpop.f32.mrf.mxu0
        %v4107 = vadd.f32 %v3594, %v4106
        %v4108 = vpop.f32.mrf.mxu0
        %v4109 = vadd.f32 %v3596, %v4108
        %v4110 = vpop.f32.mrf.mxu0
        %v4111 = vadd.f32 %v3598, %v4110
        %4112 = vmatprep.mubr.bf16.mxu0 %v1991
        %4113 = vmatmul.mubr.bf16.gmra.mxu0 %v1990
        %v4114 = vpop.f32.mrf.mxu0
        %v4115 = vadd.f32 %v3602, %v4114
        %v4116 = vpop.f32.mrf.mxu0
        %v4117 = vadd.f32 %v3604, %v4116
        %v4118 = vpop.f32.mrf.mxu0
        %v4119 = vadd.f32 %v3606, %v4118
        %v4120 = vpop.f32.mrf.mxu0
        %v4121 = vadd.f32 %v3608, %v4120
        %4122 = vmatprep.mubr.bf16.mxu0 %v1997
        %4123 = vmatmul.mubr.bf16.gmra.mxu0 %v1996
        %v4124 = vpop.f32.mrf.mxu0
        %v4125 = vadd.f32 %v3612, %v4124
        %v4126 = vpop.f32.mrf.mxu0
        %v4127 = vadd.f32 %v3614, %v4126
        %v4128 = vpop.f32.mrf.mxu0
        %v4129 = vadd.f32 %v3616, %v4128
        %v4130 = vpop.f32.mrf.mxu0
        %v4131 = vadd.f32 %v3618, %v4130
        %4132 = vmatprep.mubr.bf16.mxu0 %v2003
        %4133 = vmatmul.mubr.bf16.gmra.mxu0 %v2002
        %v4134 = vpop.f32.mrf.mxu0
        %v4135 = vadd.f32 %v3622, %v4134
        %v4136 = vpop.f32.mrf.mxu0
        %v4137 = vadd.f32 %v3624, %v4136
        %v4138 = vpop.f32.mrf.mxu0
        %v4139 = vadd.f32 %v3626, %v4138
        %v4140 = vpop.f32.mrf.mxu0
        %v4141 = vadd.f32 %v3628, %v4140
        %4142 = vmatprep.mubr.bf16.mxu0 %v2009
        %4143 = vmatmul.mubr.bf16.gmra.mxu0 %v2008
        %v4144 = vpop.f32.mrf.mxu0
        %v4145 = vadd.f32 %v3632, %v4144
        %v4146 = vpop.f32.mrf.mxu0
        %v4147 = vadd.f32 %v3634, %v4146
        %v4148 = vpop.f32.mrf.mxu0
        %v4149 = vadd.f32 %v3636, %v4148
        %v4150 = vpop.f32.mrf.mxu0
        %v4151 = vadd.f32 %v3638, %v4150
        %4152 = vmatprep.mubr.bf16.mxu0 %v2015
        %4153 = vmatmul.mubr.bf16.gmra.mxu0 %v2014
        %v4154 = vpop.f32.mrf.mxu0
        %v4155 = vadd.f32 %v3642, %v4154
        %v4156 = vpop.f32.mrf.mxu0
        %v4157 = vadd.f32 %v3644, %v4156
        %v4158 = vpop.f32.mrf.mxu0
        %v4159 = vadd.f32 %v3646, %v4158
        %v4160 = vpop.f32.mrf.mxu0
        %v4161 = vadd.f32 %v3648, %v4160
        %4162 = vmatprep.mubr.bf16.mxu0 %v2021
        %4163 = vmatmul.mubr.bf16.gmra.mxu0 %v2020
        %v4164 = vpop.f32.mrf.mxu0
        %v4165 = vadd.f32 %v3652, %v4164
        %v4166 = vpop.f32.mrf.mxu0
        %v4167 = vadd.f32 %v3654, %v4166
        %v4168 = vpop.f32.mrf.mxu0
        %v4169 = vadd.f32 %v3656, %v4168
        %v4170 = vpop.f32.mrf.mxu0
        %v4171 = vadd.f32 %v3658, %v4170
        %4172 = vmatprep.mubr.bf16.mxu0 %v2027
        %4173 = vmatmul.mubr.bf16.gmra.mxu0 %v2026
        %v4174 = vpop.f32.mrf.mxu0
        %v4175 = vadd.f32 %v3662, %v4174
        %v4176 = vpop.f32.mrf.mxu0
        %v4177 = vadd.f32 %v3664, %v4176
        %v4178 = vpop.f32.mrf.mxu0
        %v4179 = vadd.f32 %v3666, %v4178
        %v4180 = vpop.f32.mrf.mxu0
        %v4181 = vadd.f32 %v3668, %v4180
        %4182 = vmatprep.mubr.bf16.mxu0 %v2033
        %4183 = vmatmul.mubr.bf16.gmra.mxu0 %v2032
        %v4184 = vpop.f32.mrf.mxu0
        %v4185 = vadd.f32 %v3672, %v4184
        %v4186 = vpop.f32.mrf.mxu0
        %v4187 = vadd.f32 %v3674, %v4186
        %v4188 = vpop.f32.mrf.mxu0
        %v4189 = vadd.f32 %v3676, %v4188
        %v4190 = vpop.f32.mrf.mxu0
        %v4191 = vadd.f32 %v3678, %v4190
        %4192 = vmatprep.mubr.bf16.mxu0 %v2039
        %4193 = vmatmul.mubr.bf16.gmra.mxu0 %v2038
        %v4194 = vpop.f32.mrf.mxu0
        %v4195 = vadd.f32 %v3682, %v4194
        %v4196 = vpop.f32.mrf.mxu0
        %v4197 = vadd.f32 %v3684, %v4196
        %v4198 = vpop.f32.mrf.mxu0
        %v4199 = vadd.f32 %v3686, %v4198
        %v4200 = vpop.f32.mrf.mxu0
        %v4201 = vadd.f32 %v3688, %v4200
        %4202 = vmatprep.mubr.bf16.mxu0 %v2045
        %4203 = vmatmul.mubr.bf16.gmra.mxu0 %v2044
        %v4204 = vpop.f32.mrf.mxu0
        %v4205 = vadd.f32 %v3692, %v4204
        %v4206 = vpop.f32.mrf.mxu0
        %v4207 = vadd.f32 %v3694, %v4206
        %v4208 = vpop.f32.mrf.mxu0
        %v4209 = vadd.f32 %v3696, %v4208
        %v4210 = vpop.f32.mrf.mxu0
        %v4211 = vadd.f32 %v3698, %v4210
        %4212 = vmatprep.mubr.bf16.mxu0 %v2051
        %4213 = vmatmul.mubr.bf16.gmra.mxu0 %v2050
        %v4214 = vpop.f32.mrf.mxu0
        %v4215 = vadd.f32 %v3702, %v4214
        %v4216 = vpop.f32.mrf.mxu0
        %v4217 = vadd.f32 %v3704, %v4216
        %v4218 = vpop.f32.mrf.mxu0
        %v4219 = vadd.f32 %v3706, %v4218
        %v4220 = vpop.f32.mrf.mxu0
        %v4221 = vadd.f32 %v3708, %v4220
        %4222 = vmatprep.mubr.bf16.mxu0 %v2057
        %4223 = vmatmul.mubr.bf16.gmra.mxu0 %v2056
        %v4224 = vpop.f32.mrf.mxu0
        %v4225 = vadd.f32 %v3712, %v4224
        %v4226 = vpop.f32.mrf.mxu0
        %v4227 = vadd.f32 %v3714, %v4226
        %v4228 = vpop.f32.mrf.mxu0
        %v4229 = vadd.f32 %v3716, %v4228
        %v4230 = vpop.f32.mrf.mxu0
        %v4231 = vadd.f32 %v3718, %v4230
        %4232 = vmatprep.mubr.bf16.mxu0 %v2063
        %4233 = vmatmul.mubr.bf16.gmra.mxu0 %v2062
        %v4234 = vpop.f32.mrf.mxu0
        %v4235 = vadd.f32 %v3722, %v4234
        %v4236 = vpop.f32.mrf.mxu0
        %v4237 = vadd.f32 %v3724, %v4236
        %v4238 = vpop.f32.mrf.mxu0
        %v4239 = vadd.f32 %v3726, %v4238
        %v4240 = vpop.f32.mrf.mxu0
        %v4241 = vadd.f32 %v3728, %v4240
        %4242 = vmatprep.mubr.bf16.mxu0 %v2069
        %4243 = vmatmul.mubr.bf16.gmra.mxu0 %v2068
        %v4244 = vpop.f32.mrf.mxu0
        %v4245 = vadd.f32 %v3732, %v4244
        %v4246 = vpop.f32.mrf.mxu0
        %v4247 = vadd.f32 %v3734, %v4246
        %v4248 = vpop.f32.mrf.mxu0
        %v4249 = vadd.f32 %v3736, %v4248
        %v4250 = vpop.f32.mrf.mxu0
        %v4251 = vadd.f32 %v3738, %v4250
        %4252 = vmatprep.mubr.bf16.mxu0 %v2075
        %4253 = vmatmul.mubr.bf16.gmra.mxu0 %v2074
        %v4254 = vpop.f32.mrf.mxu0
        %v4255 = vadd.f32 %v3742, %v4254
        %v4256 = vpop.f32.mrf.mxu0
        %v4257 = vadd.f32 %v3744, %v4256
        %v4258 = vpop.f32.mrf.mxu0
        %v4259 = vadd.f32 %v3746, %v4258
        %v4260 = vpop.f32.mrf.mxu0
        %v4261 = vadd.f32 %v3748, %v4260
        %4262 = vmatprep.mubr.bf16.mxu0 %v2081
        %4263 = vmatmul.mubr.bf16.gmra.mxu0 %v2080
        %v4264 = vpop.f32.mrf.mxu0
        %v4265 = vadd.f32 %v3752, %v4264
        %v4266 = vpop.f32.mrf.mxu0
        %v4267 = vadd.f32 %v3754, %v4266
        %v4268 = vpop.f32.mrf.mxu0
        %v4269 = vadd.f32 %v3756, %v4268
        %v4270 = vpop.f32.mrf.mxu0
        %v4271 = vadd.f32 %v3758, %v4270
        %4272 = vmatprep.mubr.bf16.mxu0 %v2087
        %4273 = vmatmul.mubr.bf16.gmra.mxu0 %v2086
        %v4274 = vpop.f32.mrf.mxu0
        %v4275 = vadd.f32 %v3762, %v4274
        %v4276 = vpop.f32.mrf.mxu0
        %v4277 = vadd.f32 %v3764, %v4276
        %v4278 = vpop.f32.mrf.mxu0
        %v4279 = vadd.f32 %v3766, %v4278
        %v4280 = vpop.f32.mrf.mxu0
        %v4281 = vadd.f32 %v3768, %v4280
        %4282 = vmatprep.mubr.bf16.mxu0 %v2093
        %4283 = vmatmul.mubr.bf16.gmra.mxu0 %v2092
        %v4284 = vpop.f32.mrf.mxu0
        %v4285 = vadd.f32 %v3772, %v4284
        %v4286 = vpop.f32.mrf.mxu0
        %v4287 = vadd.f32 %v3774, %v4286
        %v4288 = vpop.f32.mrf.mxu0
        %v4289 = vadd.f32 %v3776, %v4288
        %v4290 = vpop.f32.mrf.mxu0
        %v4291 = vadd.f32 %v3778, %v4290
        %4292 = vmatprep.mubr.bf16.mxu0 %v2099
        %4293 = vmatmul.mubr.bf16.gmra.mxu0 %v2098
        %v4294 = vpop.f32.mrf.mxu0
        %v4295 = vadd.f32 %v3782, %v4294
        %v4296 = vpop.f32.mrf.mxu0
        %v4297 = vadd.f32 %v3784, %v4296
        %v4298 = vpop.f32.mrf.mxu0
        %v4299 = vadd.f32 %v3786, %v4298
        %v4300 = vpop.f32.mrf.mxu0
        %v4301 = vadd.f32 %v3788, %v4300
        %4302 = vmatprep.mubr.bf16.mxu0 %v2105
        %4303 = vmatmul.mubr.bf16.gmra.mxu0 %v2104
        %v4304 = vpop.f32.mrf.mxu0
        %v4305 = vadd.f32 %v3792, %v4304
        %v4306 = vpop.f32.mrf.mxu0
        %v4307 = vadd.f32 %v3794, %v4306
        %v4308 = vpop.f32.mrf.mxu0
        %v4309 = vadd.f32 %v3796, %v4308
        %v4310 = vpop.f32.mrf.mxu0
        %v4311 = vadd.f32 %v3798, %v4310
        %4312 = vmatprep.mubr.bf16.mxu0 %v2111
        %4313 = vmatmul.mubr.bf16.gmra.mxu0 %v2110
        %v4314 = vpop.f32.mrf.mxu0
        %v4315 = vadd.f32 %v3802, %v4314
        %v4316 = vpop.f32.mrf.mxu0
        %v4317 = vadd.f32 %v3804, %v4316
        %v4318 = vpop.f32.mrf.mxu0
        %v4319 = vadd.f32 %v3806, %v4318
        %v4320 = vpop.f32.mrf.mxu0
        %v4321 = vadd.f32 %v3808, %v4320
        %4322 = vmatprep.mubr.bf16.mxu0 %v2117
        %4323 = vmatmul.mubr.bf16.gmra.mxu0 %v2116
        %v4324 = vpop.f32.mrf.mxu0
        %v4325 = vadd.f32 %v3812, %v4324
        %v4326 = vpop.f32.mrf.mxu0
        %v4327 = vadd.f32 %v3814, %v4326
        %v4328 = vpop.f32.mrf.mxu0
        %v4329 = vadd.f32 %v3816, %v4328
        %v4330 = vpop.f32.mrf.mxu0
        %v4331 = vadd.f32 %v3818, %v4330
        %4332 = vmatprep.mubr.bf16.mxu0 %v2123
        %4333 = vmatmul.mubr.bf16.gmra.mxu0 %v2122
        %v4334 = vpop.f32.mrf.mxu0
        %v4335 = vadd.f32 %v3822, %v4334
        %v4336 = vpop.f32.mrf.mxu0
        %v4337 = vadd.f32 %v3824, %v4336
        %v4338 = vpop.f32.mrf.mxu0
        %v4339 = vadd.f32 %v3826, %v4338
        %v4340 = vpop.f32.mrf.mxu0
        %v4341 = vadd.f32 %v3828, %v4340
        %4342 = vmatprep.mubr.bf16.mxu0 %v2129
        %4343 = vmatmul.mubr.bf16.gmra.mxu0 %v2128
        %v4344 = vpop.f32.mrf.mxu0
        %v4345 = vadd.f32 %v3832, %v4344
        %v4346 = vpop.f32.mrf.mxu0
        %v4347 = vadd.f32 %v3834, %v4346
        %v4348 = vpop.f32.mrf.mxu0
        %v4349 = vadd.f32 %v3836, %v4348
        %v4350 = vpop.f32.mrf.mxu0
        %v4351 = vadd.f32 %v3838, %v4350
        %4352 = vmatprep.mubr.bf16.mxu0 %v2135
        %4353 = vmatmul.mubr.bf16.gmra.mxu0 %v2134
        %v4354 = vpop.f32.mrf.mxu0
        %v4355 = vadd.f32 %v3842, %v4354
        %v4356 = vpop.f32.mrf.mxu0
        %v4357 = vadd.f32 %v3844, %v4356
        %v4358 = vpop.f32.mrf.mxu0
        %v4359 = vadd.f32 %v3846, %v4358
        %v4360 = vpop.f32.mrf.mxu0
        %v4361 = vadd.f32 %v3848, %v4360
        %4362 = vmatprep.mubr.bf16.mxu0 %v2141
        %4363 = vmatmul.mubr.bf16.gmra.mxu0 %v2140
        %v4364 = vpop.f32.mrf.mxu0
        %v4365 = vadd.f32 %v3852, %v4364
        %v4366 = vpop.f32.mrf.mxu0
        %v4367 = vadd.f32 %v3854, %v4366
        %v4368 = vpop.f32.mrf.mxu0
        %v4369 = vadd.f32 %v3856, %v4368
        %v4370 = vpop.f32.mrf.mxu0
        %v4371 = vadd.f32 %v3858, %v4370
        %4372 = vmatprep.mubr.bf16.mxu0 %v2147
        %4373 = vmatmul.mubr.bf16.gmra.mxu0 %v2146
        %v4374 = vpop.f32.mrf.mxu0
        %v4375 = vadd.f32 %v3862, %v4374
        %v4376 = vpop.f32.mrf.mxu0
        %v4377 = vadd.f32 %v3864, %v4376
        %v4378 = vpop.f32.mrf.mxu0
        %v4379 = vadd.f32 %v3866, %v4378
        %v4380 = vpop.f32.mrf.mxu0
        %v4381 = vadd.f32 %v3868, %v4380
        %4382 = vmatprep.mubr.bf16.mxu0 %v2153
        %4383 = vmatmul.mubr.bf16.gmra.mxu0 %v2152
        %v4384 = vpop.f32.mrf.mxu0
        %v4385 = vadd.f32 %v3872, %v4384
        %v4386 = vpop.f32.mrf.mxu0
        %v4387 = vadd.f32 %v3874, %v4386
        %v4388 = vpop.f32.mrf.mxu0
        %v4389 = vadd.f32 %v3876, %v4388
        %v4390 = vpop.f32.mrf.mxu0
        %v4391 = vadd.f32 %v3878, %v4390
        %4392 = vmatprep.mubr.bf16.mxu0 %v2159
        %4393 = vmatmul.mubr.bf16.gmra.mxu0 %v2158
        %v4394 = vpop.f32.mrf.mxu0
        %v4395 = vadd.f32 %v3882, %v4394
        %v4396 = vpop.f32.mrf.mxu0
        %v4397 = vadd.f32 %v3884, %v4396
        %v4398 = vpop.f32.mrf.mxu0
        %v4399 = vadd.f32 %v3886, %v4398
        %v4400 = vpop.f32.mrf.mxu0
        %v4401 = vadd.f32 %v3888, %v4400
        %4402 = vmatprep.mubr.bf16.mxu0 %v2165
        %4403 = vmatmul.mubr.bf16.gmra.mxu0 %v2164
        %v4404 = vpop.f32.mrf.mxu0
        %v4405 = vadd.f32 %v3892, %v4404
        %v4406 = vpop.f32.mrf.mxu0
        %v4407 = vadd.f32 %v3894, %v4406
        %v4408 = vpop.f32.mrf.mxu0
        %v4409 = vadd.f32 %v3896, %v4408
        %v4410 = vpop.f32.mrf.mxu0
        %v4411 = vadd.f32 %v3898, %v4410
        %4412 = vmatprep.mubr.bf16.mxu0 %v2171
        %4413 = vmatmul.mubr.bf16.gmra.mxu0 %v2170
        %v4414 = vpop.f32.mrf.mxu0
        %v4415 = vadd.f32 %v3902, %v4414
        %v4416 = vpop.f32.mrf.mxu0
        %v4417 = vadd.f32 %v3904, %v4416
        %v4418 = vpop.f32.mrf.mxu0
        %v4419 = vadd.f32 %v3906, %v4418
        %v4420 = vpop.f32.mrf.mxu0
        %v4421 = vadd.f32 %v3908, %v4420
        %4422 = vmatprep.mubr.bf16.mxu0 %v2177
        %4423 = vmatmul.mubr.bf16.gmra.mxu0 %v2176
        %v4424 = vpop.f32.mrf.mxu0
        %v4425 = vadd.f32 %v3912, %v4424
        %v4426 = vpop.f32.mrf.mxu0
        %v4427 = vadd.f32 %v3914, %v4426
        %v4428 = vpop.f32.mrf.mxu0
        %v4429 = vadd.f32 %v3916, %v4428
        %v4430 = vpop.f32.mrf.mxu0
        %v4431 = vadd.f32 %v3918, %v4430
        %4432 = vmatprep.mubr.bf16.mxu0 %v2183
        %4433 = vmatmul.mubr.bf16.gmra.mxu0 %v2182
        %v4434 = vpop.f32.mrf.mxu0
        %v4435 = vadd.f32 %v3922, %v4434
        %v4436 = vpop.f32.mrf.mxu0
        %v4437 = vadd.f32 %v3924, %v4436
        %v4438 = vpop.f32.mrf.mxu0
        %v4439 = vadd.f32 %v3926, %v4438
        %v4440 = vpop.f32.mrf.mxu0
        %v4441 = vadd.f32 %v3928, %v4440
        %4442 = vmatprep.mubr.bf16.mxu0 %v2189
        %4443 = vmatmul.mubr.bf16.gmra.mxu0 %v2188
        %v4444 = vpop.f32.mrf.mxu0
        %v4445 = vadd.f32 %v3932, %v4444
        %v4446 = vpop.f32.mrf.mxu0
        %v4447 = vadd.f32 %v3934, %v4446
        %v4448 = vpop.f32.mrf.mxu0
        %v4449 = vadd.f32 %v3936, %v4448
        %v4450 = vpop.f32.mrf.mxu0
        %v4451 = vadd.f32 %v3938, %v4450
        %4452 = vmatprep.mubr.bf16.mxu0 %v2195
        %4453 = vmatmul.mubr.bf16.gmra.mxu0 %v2194
        %v4454 = vpop.f32.mrf.mxu0
        %v4455 = vadd.f32 %v3942, %v4454
        %v4456 = vpop.f32.mrf.mxu0
        %v4457 = vadd.f32 %v3944, %v4456
        %v4458 = vpop.f32.mrf.mxu0
        %v4459 = vadd.f32 %v3946, %v4458
        %v4460 = vpop.f32.mrf.mxu0
        %v4461 = vadd.f32 %v3948, %v4460
        %4462 = vmatprep.mubr.bf16.mxu0 %v2201
        %4463 = vmatmul.mubr.bf16.gmra.mxu0 %v2200
        %v4464 = vpop.f32.mrf.mxu0
        %v4465 = vadd.f32 %v3952, %v4464
        %v4466 = vpop.f32.mrf.mxu0
        %v4467 = vadd.f32 %v3954, %v4466
        %v4468 = vpop.f32.mrf.mxu0
        %v4469 = vadd.f32 %v3956, %v4468
        %v4470 = vpop.f32.mrf.mxu0
        %v4471 = vadd.f32 %v3958, %v4470
        %4472 = vmatprep.mubr.bf16.mxu0 %v2207
        %4473 = vmatmul.mubr.bf16.gmra.mxu0 %v2206
        %v4474 = vpop.f32.mrf.mxu0
        %v4475 = vadd.f32 %v3962, %v4474
        %v4476 = vpop.f32.mrf.mxu0
        %v4477 = vadd.f32 %v3964, %v4476
        %v4478 = vpop.f32.mrf.mxu0
        %v4479 = vadd.f32 %v3966, %v4478
        %v4480 = vpop.f32.mrf.mxu0
        %v4481 = vadd.f32 %v3968, %v4480
        %4482 = vmatprep.mubr.bf16.mxu0 %v2213
        %4483 = vmatmul.mubr.bf16.gmra.mxu0 %v2212
        %v4484 = vpop.f32.mrf.mxu0
        %v4485 = vadd.f32 %v3972, %v4484
        %v4486 = vpop.f32.mrf.mxu0
        %v4487 = vadd.f32 %v3974, %v4486
        %v4488 = vpop.f32.mrf.mxu0
        %v4489 = vadd.f32 %v3976, %v4488
        %v4490 = vpop.f32.mrf.mxu0
        %v4491 = vadd.f32 %v3978, %v4490
        %4492 = vmatprep.mubr.bf16.mxu0 %v2219
        %4493 = vmatmul.mubr.bf16.gmra.mxu0 %v2218
        %v4494 = vpop.f32.mrf.mxu0
        %v4495 = vadd.f32 %v3982, %v4494
        %v4496 = vpop.f32.mrf.mxu0
        %v4497 = vadd.f32 %v3984, %v4496
        %v4498 = vpop.f32.mrf.mxu0
        %v4499 = vadd.f32 %v3986, %v4498
        %v4500 = vpop.f32.mrf.mxu0
        %v4501 = vadd.f32 %v3988, %v4500
        %4502 = vmatprep.mubr.bf16.mxu0 %v2225
        %4503 = vmatmul.mubr.bf16.gmra.mxu0 %v2224
        %v4504 = vpop.f32.mrf.mxu0
        %v4505 = vadd.f32 %v3992, %v4504
        %v4506 = vpop.f32.mrf.mxu0
        %v4507 = vadd.f32 %v3994, %v4506
        %v4508 = vpop.f32.mrf.mxu0
        %v4509 = vadd.f32 %v3996, %v4508
        %v4510 = vpop.f32.mrf.mxu0
        %v4511 = vadd.f32 %v3998, %v4510
        %4512 = vmatprep.mubr.bf16.mxu0 %v2231
        %4513 = vmatmul.mubr.bf16.gmra.mxu0 %v2230
        %v4514 = vpop.f32.mrf.mxu0
        %v4515 = vadd.f32 %v4002, %v4514
        %v4516 = vpop.f32.mrf.mxu0
        %v4517 = vadd.f32 %v4004, %v4516
        %v4518 = vpop.f32.mrf.mxu0
        %v4519 = vadd.f32 %v4006, %v4518
        %v4520 = vpop.f32.mrf.mxu0
        %v4521 = vadd.f32 %v4008, %v4520
        %4522 = vmatprep.mubr.bf16.mxu0 %v2237
        %4523 = vmatmul.mubr.bf16.gmra.mxu0 %v2236
        %v4524 = vpop.f32.mrf.mxu0
        %v4525 = vadd.f32 %v4012, %v4524
        %v4526 = vpop.f32.mrf.mxu0
        %v4527 = vadd.f32 %v4014, %v4526
        %v4528 = vpop.f32.mrf.mxu0
        %v4529 = vadd.f32 %v4016, %v4528
        %v4530 = vpop.f32.mrf.mxu0
        %v4531 = vadd.f32 %v4018, %v4530
        %4532 = vmatprep.mubr.bf16.mxu0 %v2243
        %4533 = vmatmul.mubr.bf16.gmra.mxu0 %v2242
        %v4534 = vpop.f32.mrf.mxu0
        %v4535 = vadd.f32 %v4022, %v4534
        %v4536 = vpop.f32.mrf.mxu0
        %v4537 = vadd.f32 %v4024, %v4536
        %v4538 = vpop.f32.mrf.mxu0
        %v4539 = vadd.f32 %v4026, %v4538
        %v4540 = vpop.f32.mrf.mxu0
        %v4541 = vadd.f32 %v4028, %v4540
        %4542 = vmatprep.mubr.bf16.mxu0 %v2249
        %4543 = vmatmul.mubr.bf16.gmra.mxu0 %v2248
        %v4544 = vpop.f32.mrf.mxu0
        %v4545 = vadd.f32 %v4032, %v4544
        %v4546 = vpop.f32.mrf.mxu0
        %v4547 = vadd.f32 %v4034, %v4546
        %v4548 = vpop.f32.mrf.mxu0
        %v4549 = vadd.f32 %v4036, %v4548
        %v4550 = vpop.f32.mrf.mxu0
        %v4551 = vadd.f32 %v4038, %v4550
        %4552 = vmatprep.mubr.bf16.mxu0 %v2255
        %4553 = vmatmul.mubr.bf16.gmra.mxu0 %v2254
        %v4554 = vpop.f32.mrf.mxu0
        %v4555 = vadd.f32 %v4042, %v4554
        %v4556 = vpop.f32.mrf.mxu0
        %v4557 = vadd.f32 %v4044, %v4556
        %v4558 = vpop.f32.mrf.mxu0
        %v4559 = vadd.f32 %v4046, %v4558
        %v4560 = vpop.f32.mrf.mxu0
        %v4561 = vadd.f32 %v4048, %v4560
        %4562 = vdwg.mxu0
        %4563 = vst [vmem:[%s616] sm:$0xff] %v4085
        %4564 = vst [vmem:[%s616 + $0x8] sm:$0xff] %v4087
        %4565 = vst [vmem:[%s616 + $0x10] sm:$0xff] %v4089
        %4566 = vst [vmem:[%s616 + $0x18] sm:$0xff] %v4091
        %4567 = vst [vmem:[%s616 + $0x20] sm:$0xff] %v4095
        %4568 = vst [vmem:[%s616 + $0x28] sm:$0xff] %v4097
        %4569 = vst [vmem:[%s616 + $0x30] sm:$0xff] %v4099
        %4570 = vst [vmem:[%s616 + $0x38] sm:$0xff] %v4101
        %4571 = vst [vmem:[%s616 + $0x40] sm:$0xff] %v4105
        %4572 = vst [vmem:[%s616 + $0x48] sm:$0xff] %v4107
        %4573 = vst [vmem:[%s616 + $0x50] sm:$0xff] %v4109
        %4574 = vst [vmem:[%s616 + $0x58] sm:$0xff] %v4111
        %4575 = vst [vmem:[%s616 + $0x60] sm:$0xff] %v4115
        %4576 = vst [vmem:[%s616 + $0x68] sm:$0xff] %v4117
        %4577 = vst [vmem:[%s616 + $0x70] sm:$0xff] %v4119
        %4578 = vst [vmem:[%s616 + $0x78] sm:$0xff] %v4121
        %4579 = vst [vmem:[%s616 + $0x80] sm:$0xff] %v4125
        %4580 = vst [vmem:[%s616 + $0x88] sm:$0xff] %v4127
        %4581 = vst [vmem:[%s616 + $0x90] sm:$0xff] %v4129
        %4582 = vst [vmem:[%s616 + $0x98] sm:$0xff] %v4131
        %4583 = vst [vmem:[%s616 + $0xa0] sm:$0xff] %v4135
        %4584 = vst [vmem:[%s616 + $0xa8] sm:$0xff] %v4137
        %4585 = vst [vmem:[%s616 + $0xb0] sm:$0xff] %v4139
        %4586 = vst [vmem:[%s616 + $0xb8] sm:$0xff] %v4141
        %4587 = vst [vmem:[%s616 + $0xc0] sm:$0xff] %v4145
        %4588 = vst [vmem:[%s616 + $0xc8] sm:$0xff] %v4147
        %4589 = vst [vmem:[%s616 + $0xd0] sm:$0xff] %v4149
        %4590 = vst [vmem:[%s616 + $0xd8] sm:$0xff] %v4151
        %4591 = vst [vmem:[%s616 + $0xe0] sm:$0xff] %v4155
        %4592 = vst [vmem:[%s616 + $0xe8] sm:$0xff] %v4157
        %4593 = vst [vmem:[%s616 + $0xf0] sm:$0xff] %v4159
        %4594 = vst [vmem:[%s616 + $0xf8] sm:$0xff] %v4161
        %4595 = vst [vmem:[%s616 + $0x100] sm:$0xff] %v4165
        %4596 = vst [vmem:[%s616 + $0x108] sm:$0xff] %v4167
        %4597 = vst [vmem:[%s616 + $0x110] sm:$0xff] %v4169
        %4598 = vst [vmem:[%s616 + $0x118] sm:$0xff] %v4171
        %4599 = vst [vmem:[%s616 + $0x120] sm:$0xff] %v4175
        %4600 = vst [vmem:[%s616 + $0x128] sm:$0xff] %v4177
        %4601 = vst [vmem:[%s616 + $0x130] sm:$0xff] %v4179
        %4602 = vst [vmem:[%s616 + $0x138] sm:$0xff] %v4181
        %4603 = vst [vmem:[%s616 + $0x140] sm:$0xff] %v4185
        %4604 = vst [vmem:[%s616 + $0x148] sm:$0xff] %v4187
        %4605 = vst [vmem:[%s616 + $0x150] sm:$0xff] %v4189
        %4606 = vst [vmem:[%s616 + $0x158] sm:$0xff] %v4191
        %4607 = vst [vmem:[%s616 + $0x160] sm:$0xff] %v4195
        %4608 = vst [vmem:[%s616 + $0x168] sm:$0xff] %v4197
        %4609 = vst [vmem:[%s616 + $0x170] sm:$0xff] %v4199
        %4610 = vst [vmem:[%s616 + $0x178] sm:$0xff] %v4201
        %4611 = vst [vmem:[%s616 + $0x180] sm:$0xff] %v4205
        %4612 = vst [vmem:[%s616 + $0x188] sm:$0xff] %v4207
        %4613 = vst [vmem:[%s616 + $0x190] sm:$0xff] %v4209
        %4614 = vst [vmem:[%s616 + $0x198] sm:$0xff] %v4211
        %4615 = vst [vmem:[%s616 + $0x1a0] sm:$0xff] %v4215
        %4616 = vst [vmem:[%s616 + $0x1a8] sm:$0xff] %v4217
        %4617 = vst [vmem:[%s616 + $0x1b0] sm:$0xff] %v4219
        %4618 = vst [vmem:[%s616 + $0x1b8] sm:$0xff] %v4221
        %4619 = vst [vmem:[%s616 + $0x1c0] sm:$0xff] %v4225
        %4620 = vst [vmem:[%s616 + $0x1c8] sm:$0xff] %v4227
        %4621 = vst [vmem:[%s616 + $0x1d0] sm:$0xff] %v4229
        %4622 = vst [vmem:[%s616 + $0x1d8] sm:$0xff] %v4231
        %4623 = vst [vmem:[%s616 + $0x1e0] sm:$0xff] %v4235
        %4624 = vst [vmem:[%s616 + $0x1e8] sm:$0xff] %v4237
        %4625 = vst [vmem:[%s616 + $0x1f0] sm:$0xff] %v4239
        %4626 = vst [vmem:[%s616 + $0x1f8] sm:$0xff] %v4241
        %4627 = vst [vmem:[%s616 + $0x200] sm:$0xff] %v4245
        %4628 = vst [vmem:[%s616 + $0x208] sm:$0xff] %v4247
        %4629 = vst [vmem:[%s616 + $0x210] sm:$0xff] %v4249
        %4630 = vst [vmem:[%s616 + $0x218] sm:$0xff] %v4251
        %4631 = vst [vmem:[%s616 + $0x220] sm:$0xff] %v4255
        %4632 = vst [vmem:[%s616 + $0x228] sm:$0xff] %v4257
        %4633 = vst [vmem:[%s616 + $0x230] sm:$0xff] %v4259
        %4634 = vst [vmem:[%s616 + $0x238] sm:$0xff] %v4261
        %4635 = vst [vmem:[%s616 + $0x240] sm:$0xff] %v4265
        %4636 = vst [vmem:[%s616 + $0x248] sm:$0xff] %v4267
        %4637 = vst [vmem:[%s616 + $0x250] sm:$0xff] %v4269
        %4638 = vst [vmem:[%s616 + $0x258] sm:$0xff] %v4271
        %4639 = vst [vmem:[%s616 + $0x260] sm:$0xff] %v4275
        %4640 = vst [vmem:[%s616 + $0x268] sm:$0xff] %v4277
        %4641 = vst [vmem:[%s616 + $0x270] sm:$0xff] %v4279
        %4642 = vst [vmem:[%s616 + $0x278] sm:$0xff] %v4281
        %4643 = vst [vmem:[%s616 + $0x280] sm:$0xff] %v4285
        %4644 = vst [vmem:[%s616 + $0x288] sm:$0xff] %v4287
        %4645 = vst [vmem:[%s616 + $0x290] sm:$0xff] %v4289
        %4646 = vst [vmem:[%s616 + $0x298] sm:$0xff] %v4291
        %4647 = vst [vmem:[%s616 + $0x2a0] sm:$0xff] %v4295
        %4648 = vst [vmem:[%s616 + $0x2a8] sm:$0xff] %v4297
        %4649 = vst [vmem:[%s616 + $0x2b0] sm:$0xff] %v4299
        %4650 = vst [vmem:[%s616 + $0x2b8] sm:$0xff] %v4301
        %4651 = vst [vmem:[%s616 + $0x2c0] sm:$0xff] %v4305
        %4652 = vst [vmem:[%s616 + $0x2c8] sm:$0xff] %v4307
        %4653 = vst [vmem:[%s616 + $0x2d0] sm:$0xff] %v4309
        %4654 = vst [vmem:[%s616 + $0x2d8] sm:$0xff] %v4311
        %4655 = vst [vmem:[%s616 + $0x2e0] sm:$0xff] %v4315
        %4656 = vst [vmem:[%s616 + $0x2e8] sm:$0xff] %v4317
        %4657 = vst [vmem:[%s616 + $0x2f0] sm:$0xff] %v4319
        %4658 = vst [vmem:[%s616 + $0x2f8] sm:$0xff] %v4321
        %4659 = vst [vmem:[%s616 + $0x300] sm:$0xff] %v4325
        %4660 = vst [vmem:[%s616 + $0x308] sm:$0xff] %v4327
        %4661 = vst [vmem:[%s616 + $0x310] sm:$0xff] %v4329
        %4662 = vst [vmem:[%s616 + $0x318] sm:$0xff] %v4331
        %4663 = vst [vmem:[%s616 + $0x320] sm:$0xff] %v4335
        %4664 = vst [vmem:[%s616 + $0x328] sm:$0xff] %v4337
        %4665 = vst [vmem:[%s616 + $0x330] sm:$0xff] %v4339
        %4666 = vst [vmem:[%s616 + $0x338] sm:$0xff] %v4341
        %4667 = vst [vmem:[%s616 + $0x340] sm:$0xff] %v4345
        %4668 = vst [vmem:[%s616 + $0x348] sm:$0xff] %v4347
        %4669 = vst [vmem:[%s616 + $0x350] sm:$0xff] %v4349
        %4670 = vst [vmem:[%s616 + $0x358] sm:$0xff] %v4351
        %4671 = vst [vmem:[%s616 + $0x360] sm:$0xff] %v4355
        %4672 = vst [vmem:[%s616 + $0x368] sm:$0xff] %v4357
        %4673 = vst [vmem:[%s616 + $0x370] sm:$0xff] %v4359
        %4674 = vst [vmem:[%s616 + $0x378] sm:$0xff] %v4361
        %4675 = vst [vmem:[%s616 + $0x380] sm:$0xff] %v4365
        %4676 = vst [vmem:[%s616 + $0x388] sm:$0xff] %v4367
        %4677 = vst [vmem:[%s616 + $0x390] sm:$0xff] %v4369
        %4678 = vst [vmem:[%s616 + $0x398] sm:$0xff] %v4371
        %4679 = vst [vmem:[%s616 + $0x3a0] sm:$0xff] %v4375
        %4680 = vst [vmem:[%s616 + $0x3a8] sm:$0xff] %v4377
        %4681 = vst [vmem:[%s616 + $0x3b0] sm:$0xff] %v4379
        %4682 = vst [vmem:[%s616 + $0x3b8] sm:$0xff] %v4381
        %4683 = vst [vmem:[%s616 + $0x3c0] sm:$0xff] %v4385
        %4684 = vst [vmem:[%s616 + $0x3c8] sm:$0xff] %v4387
        %4685 = vst [vmem:[%s616 + $0x3d0] sm:$0xff] %v4389
        %4686 = vst [vmem:[%s616 + $0x3d8] sm:$0xff] %v4391
        %4687 = vst [vmem:[%s616 + $0x3e0] sm:$0xff] %v4395
        %4688 = vst [vmem:[%s616 + $0x3e8] sm:$0xff] %v4397
        %4689 = vst [vmem:[%s616 + $0x3f0] sm:$0xff] %v4399
        %4690 = vst [vmem:[%s616 + $0x3f8] sm:$0xff] %v4401
        %4691 = vst [vmem:[%s616 + $0x400] sm:$0xff] %v4405
        %4692 = vst [vmem:[%s616 + $0x408] sm:$0xff] %v4407
        %4693 = vst [vmem:[%s616 + $0x410] sm:$0xff] %v4409
        %4694 = vst [vmem:[%s616 + $0x418] sm:$0xff] %v4411
        %4695 = vst [vmem:[%s616 + $0x420] sm:$0xff] %v4415
        %4696 = vst [vmem:[%s616 + $0x428] sm:$0xff] %v4417
        %4697 = vst [vmem:[%s616 + $0x430] sm:$0xff] %v4419
        %4698 = vst [vmem:[%s616 + $0x438] sm:$0xff] %v4421
        %4699 = vst [vmem:[%s616 + $0x440] sm:$0xff] %v4425
        %4700 = vst [vmem:[%s616 + $0x448] sm:$0xff] %v4427
        %4701 = vst [vmem:[%s616 + $0x450] sm:$0xff] %v4429
        %4702 = vst [vmem:[%s616 + $0x458] sm:$0xff] %v4431
        %4703 = vst [vmem:[%s616 + $0x460] sm:$0xff] %v4435
        %4704 = vst [vmem:[%s616 + $0x468] sm:$0xff] %v4437
        %4705 = vst [vmem:[%s616 + $0x470] sm:$0xff] %v4439
        %4706 = vst [vmem:[%s616 + $0x478] sm:$0xff] %v4441
        %4707 = vst [vmem:[%s616 + $0x480] sm:$0xff] %v4445
        %4708 = vst [vmem:[%s616 + $0x488] sm:$0xff] %v4447
        %4709 = vst [vmem:[%s616 + $0x490] sm:$0xff] %v4449
        %4710 = vst [vmem:[%s616 + $0x498] sm:$0xff] %v4451
        %4711 = vst [vmem:[%s616 + $0x4a0] sm:$0xff] %v4455
        %4712 = vst [vmem:[%s616 + $0x4a8] sm:$0xff] %v4457
        %4713 = vst [vmem:[%s616 + $0x4b0] sm:$0xff] %v4459
        %4714 = vst [vmem:[%s616 + $0x4b8] sm:$0xff] %v4461
        %4715 = vst [vmem:[%s616 + $0x4c0] sm:$0xff] %v4465
        %4716 = vst [vmem:[%s616 + $0x4c8] sm:$0xff] %v4467
        %4717 = vst [vmem:[%s616 + $0x4d0] sm:$0xff] %v4469
        %4718 = vst [vmem:[%s616 + $0x4d8] sm:$0xff] %v4471
        %4719 = vst [vmem:[%s616 + $0x4e0] sm:$0xff] %v4475
        %4720 = vst [vmem:[%s616 + $0x4e8] sm:$0xff] %v4477
        %4721 = vst [vmem:[%s616 + $0x4f0] sm:$0xff] %v4479
        %4722 = vst [vmem:[%s616 + $0x4f8] sm:$0xff] %v4481
        %4723 = vst [vmem:[%s616 + $0x500] sm:$0xff] %v4485
        %4724 = vst [vmem:[%s616 + $0x508] sm:$0xff] %v4487
        %4725 = vst [vmem:[%s616 + $0x510] sm:$0xff] %v4489
        %4726 = vst [vmem:[%s616 + $0x518] sm:$0xff] %v4491
        %4727 = vst [vmem:[%s616 + $0x520] sm:$0xff] %v4495
        %4728 = vst [vmem:[%s616 + $0x528] sm:$0xff] %v4497
        %4729 = vst [vmem:[%s616 + $0x530] sm:$0xff] %v4499
        %4730 = vst [vmem:[%s616 + $0x538] sm:$0xff] %v4501
        %4731 = vst [vmem:[%s616 + $0x540] sm:$0xff] %v4505
        %4732 = vst [vmem:[%s616 + $0x548] sm:$0xff] %v4507
        %4733 = vst [vmem:[%s616 + $0x550] sm:$0xff] %v4509
        %4734 = vst [vmem:[%s616 + $0x558] sm:$0xff] %v4511
        %4735 = vst [vmem:[%s616 + $0x560] sm:$0xff] %v4515
        %4736 = vst [vmem:[%s616 + $0x568] sm:$0xff] %v4517
        %4737 = vst [vmem:[%s616 + $0x570] sm:$0xff] %v4519
        %4738 = vst [vmem:[%s616 + $0x578] sm:$0xff] %v4521
        %4739 = vst [vmem:[%s616 + $0x580] sm:$0xff] %v4525
        %4740 = vst [vmem:[%s616 + $0x588] sm:$0xff] %v4527
        %4741 = vst [vmem:[%s616 + $0x590] sm:$0xff] %v4529
        %4742 = vst [vmem:[%s616 + $0x598] sm:$0xff] %v4531
        %4743 = vst [vmem:[%s616 + $0x5a0] sm:$0xff] %v4535
        %4744 = vst [vmem:[%s616 + $0x5a8] sm:$0xff] %v4537
        %4745 = vst [vmem:[%s616 + $0x5b0] sm:$0xff] %v4539
        %4746 = vst [vmem:[%s616 + $0x5b8] sm:$0xff] %v4541
        %4747 = vst [vmem:[%s616 + $0x5c0] sm:$0xff] %v4545
        %4748 = vst [vmem:[%s616 + $0x5c8] sm:$0xff] %v4547
        %4749 = vst [vmem:[%s616 + $0x5d0] sm:$0xff] %v4549
        %4750 = vst [vmem:[%s616 + $0x5d8] sm:$0xff] %v4551
        %4751 = vst [vmem:[%s616 + $0x5e0] sm:$0xff] %v4555
        %4752 = vst [vmem:[%s616 + $0x5e8] sm:$0xff] %v4557
        %4753 = vst [vmem:[%s616 + $0x5f0] sm:$0xff] %v4559
        %4754 = vst [vmem:[%s616 + $0x5f8] sm:$0xff] %v4561
        %p4755 = scmp.eq.s32.totalorder %s20, 0
        %p4756 = scmp.eq.s32.totalorder %s21, 0
        %p4757 = pnand %p4755, %p4756
        %p4758 = pneg %p4757
        // Predicated region
        $region67: #{fused_relu_conv1x1_bn_relu.2} parent=61 // pred_check
          _
        $region68: #{fused_relu_conv1x1_bn_relu.2} parent=61 // pred_check_branch
          %4760 = sbr.rel (%p4757) target = $region70
        $region69: #{fused_relu_conv1x1_bn_relu.2} parent=61 // pred_region
          %vm4761 = vcmask 7168
          %4762 = vst.msk [vmem:[%s3] sm:$0xff] %vm4761, 0.0
          %4763 = vst.msk [vmem:[%s3 + $0x8] sm:$0xff] %vm4761, 0.0
          %4764 = vst.msk [vmem:[%s3 + $0x10] sm:$0xff] %vm4761, 0.0
          %4765 = vst.msk [vmem:[%s3 + $0x18] sm:$0xff] %vm4761, 0.0
          %4766 = vst.msk [vmem:[%s3 + $0x20] sm:$0xff] %vm4761, 0.0
          %4767 = vst.msk [vmem:[%s3 + $0x28] sm:$0xff] %vm4761, 0.0
          %4768 = vst.msk [vmem:[%s3 + $0x30] sm:$0xff] %vm4761, 0.0
          %4769 = vst.msk [vmem:[%s3 + $0x38] sm:$0xff] %vm4761, 0.0
          %4770 = vst.msk [vmem:[%s3 + $0x40] sm:$0xff] %vm4761, 0.0
          %4771 = vst.msk [vmem:[%s3 + $0x48] sm:$0xff] %vm4761, 0.0
          %4772 = vst.msk [vmem:[%s3 + $0x50] sm:$0xff] %vm4761, 0.0
          %4773 = vst.msk [vmem:[%s3 + $0x58] sm:$0xff] %vm4761, 0.0
          %4774 = vst.msk [vmem:[%s3 + $0x60] sm:$0xff] %vm4761, 0.0
          %4775 = vst.msk [vmem:[%s3 + $0x68] sm:$0xff] %vm4761, 0.0
          %4776 = vst.msk [vmem:[%s3 + $0x70] sm:$0xff] %vm4761, 0.0
          %4777 = vst.msk [vmem:[%s3 + $0x78] sm:$0xff] %vm4761, 0.0
          %4778 = vst.msk [vmem:[%s3 + $0x80] sm:$0xff] %vm4761, 0.0
          %4779 = vst.msk [vmem:[%s3 + $0x88] sm:$0xff] %vm4761, 0.0
          %4780 = vst.msk [vmem:[%s3 + $0x90] sm:$0xff] %vm4761, 0.0
          %4781 = vst.msk [vmem:[%s3 + $0x98] sm:$0xff] %vm4761, 0.0
          %4782 = vst.msk [vmem:[%s3 + $0xa0] sm:$0xff] %vm4761, 0.0
          %4783 = vst.msk [vmem:[%s3 + $0xa8] sm:$0xff] %vm4761, 0.0
          %4784 = vst.msk [vmem:[%s3 + $0xb0] sm:$0xff] %vm4761, 0.0
          %4785 = vst.msk [vmem:[%s3 + $0xb8] sm:$0xff] %vm4761, 0.0
          %4786 = vst.msk [vmem:[%s3 + $0xc0] sm:$0xff] %vm4761, 0.0
          %4787 = vst.msk [vmem:[%s3 + $0xc8] sm:$0xff] %vm4761, 0.0
          %4788 = vst.msk [vmem:[%s3 + $0xd0] sm:$0xff] %vm4761, 0.0
          %4789 = vst.msk [vmem:[%s3 + $0xd8] sm:$0xff] %vm4761, 0.0
          %4790 = vst.msk [vmem:[%s3 + $0xe0] sm:$0xff] %vm4761, 0.0
          %4791 = vst.msk [vmem:[%s3 + $0xe8] sm:$0xff] %vm4761, 0.0
          %4792 = vst.msk [vmem:[%s3 + $0xf0] sm:$0xff] %vm4761, 0.0
          %4793 = vst.msk [vmem:[%s3 + $0xf8] sm:$0xff] %vm4761, 0.0
          %4794 = vst.msk [vmem:[%s3 + $0x100] sm:$0xff] %vm4761, 0.0
          %4795 = vst.msk [vmem:[%s3 + $0x108] sm:$0xff] %vm4761, 0.0
          %4796 = vst.msk [vmem:[%s3 + $0x110] sm:$0xff] %vm4761, 0.0
          %4797 = vst.msk [vmem:[%s3 + $0x118] sm:$0xff] %vm4761, 0.0
          %4798 = vst.msk [vmem:[%s3 + $0x120] sm:$0xff] %vm4761, 0.0
          %4799 = vst.msk [vmem:[%s3 + $0x128] sm:$0xff] %vm4761, 0.0
          %4800 = vst.msk [vmem:[%s3 + $0x130] sm:$0xff] %vm4761, 0.0
          %4801 = vst.msk [vmem:[%s3 + $0x138] sm:$0xff] %vm4761, 0.0
          %4802 = vst.msk [vmem:[%s3 + $0x140] sm:$0xff] %vm4761, 0.0
          %4803 = vst.msk [vmem:[%s3 + $0x148] sm:$0xff] %vm4761, 0.0
          %4804 = vst.msk [vmem:[%s3 + $0x150] sm:$0xff] %vm4761, 0.0
          %4805 = vst.msk [vmem:[%s3 + $0x158] sm:$0xff] %vm4761, 0.0
          %4806 = vst.msk [vmem:[%s3 + $0x160] sm:$0xff] %vm4761, 0.0
          %4807 = vst.msk [vmem:[%s3 + $0x168] sm:$0xff] %vm4761, 0.0
          %4808 = vst.msk [vmem:[%s3 + $0x170] sm:$0xff] %vm4761, 0.0
          %4809 = vst.msk [vmem:[%s3 + $0x178] sm:$0xff] %vm4761, 0.0
          %4810 = vst.msk [vmem:[%s3 + $0x180] sm:$0xff] %vm4761, 0.0
          %4811 = vst.msk [vmem:[%s3 + $0x188] sm:$0xff] %vm4761, 0.0
          %4812 = vst.msk [vmem:[%s3 + $0x190] sm:$0xff] %vm4761, 0.0
          %4813 = vst.msk [vmem:[%s3 + $0x198] sm:$0xff] %vm4761, 0.0
          %4814 = vst.msk [vmem:[%s3 + $0x1a0] sm:$0xff] %vm4761, 0.0
          %4815 = vst.msk [vmem:[%s3 + $0x1a8] sm:$0xff] %vm4761, 0.0
          %4816 = vst.msk [vmem:[%s3 + $0x1b0] sm:$0xff] %vm4761, 0.0
          %4817 = vst.msk [vmem:[%s3 + $0x1b8] sm:$0xff] %vm4761, 0.0
          %4818 = vst.msk [vmem:[%s3 + $0x1c0] sm:$0xff] %vm4761, 0.0
          %4819 = vst.msk [vmem:[%s3 + $0x1c8] sm:$0xff] %vm4761, 0.0
          %4820 = vst.msk [vmem:[%s3 + $0x1d0] sm:$0xff] %vm4761, 0.0
          %4821 = vst.msk [vmem:[%s3 + $0x1d8] sm:$0xff] %vm4761, 0.0
          %4822 = vst.msk [vmem:[%s3 + $0x1e0] sm:$0xff] %vm4761, 0.0
          %4823 = vst.msk [vmem:[%s3 + $0x1e8] sm:$0xff] %vm4761, 0.0
          %4824 = vst.msk [vmem:[%s3 + $0x1f0] sm:$0xff] %vm4761, 0.0
          %4825 = vst.msk [vmem:[%s3 + $0x1f8] sm:$0xff] %vm4761, 0.0
          %4826 = vst.msk [vmem:[%s3 + $0x200] sm:$0xff] %vm4761, 0.0
          %4827 = vst.msk [vmem:[%s3 + $0x208] sm:$0xff] %vm4761, 0.0
          %4828 = vst.msk [vmem:[%s3 + $0x210] sm:$0xff] %vm4761, 0.0
          %4829 = vst.msk [vmem:[%s3 + $0x218] sm:$0xff] %vm4761, 0.0
          %4830 = vst.msk [vmem:[%s3 + $0x220] sm:$0xff] %vm4761, 0.0
          %4831 = vst.msk [vmem:[%s3 + $0x228] sm:$0xff] %vm4761, 0.0
          %4832 = vst.msk [vmem:[%s3 + $0x230] sm:$0xff] %vm4761, 0.0
          %4833 = vst.msk [vmem:[%s3 + $0x238] sm:$0xff] %vm4761, 0.0
          %4834 = vst.msk [vmem:[%s3 + $0x240] sm:$0xff] %vm4761, 0.0
          %4835 = vst.msk [vmem:[%s3 + $0x248] sm:$0xff] %vm4761, 0.0
          %4836 = vst.msk [vmem:[%s3 + $0x250] sm:$0xff] %vm4761, 0.0
          %4837 = vst.msk [vmem:[%s3 + $0x258] sm:$0xff] %vm4761, 0.0
          %4838 = vst.msk [vmem:[%s3 + $0x260] sm:$0xff] %vm4761, 0.0
          %4839 = vst.msk [vmem:[%s3 + $0x268] sm:$0xff] %vm4761, 0.0
          %4840 = vst.msk [vmem:[%s3 + $0x270] sm:$0xff] %vm4761, 0.0
          %4841 = vst.msk [vmem:[%s3 + $0x278] sm:$0xff] %vm4761, 0.0
          %4842 = vst.msk [vmem:[%s3 + $0x280] sm:$0xff] %vm4761, 0.0
          %4843 = vst.msk [vmem:[%s3 + $0x288] sm:$0xff] %vm4761, 0.0
          %4844 = vst.msk [vmem:[%s3 + $0x290] sm:$0xff] %vm4761, 0.0
          %4845 = vst.msk [vmem:[%s3 + $0x298] sm:$0xff] %vm4761, 0.0
          %4846 = vst.msk [vmem:[%s3 + $0x2a0] sm:$0xff] %vm4761, 0.0
          %4847 = vst.msk [vmem:[%s3 + $0x2a8] sm:$0xff] %vm4761, 0.0
          %4848 = vst.msk [vmem:[%s3 + $0x2b0] sm:$0xff] %vm4761, 0.0
          %4849 = vst.msk [vmem:[%s3 + $0x2b8] sm:$0xff] %vm4761, 0.0
          %4850 = vst.msk [vmem:[%s3 + $0x2c0] sm:$0xff] %vm4761, 0.0
          %4851 = vst.msk [vmem:[%s3 + $0x2c8] sm:$0xff] %vm4761, 0.0
          %4852 = vst.msk [vmem:[%s3 + $0x2d0] sm:$0xff] %vm4761, 0.0
          %4853 = vst.msk [vmem:[%s3 + $0x2d8] sm:$0xff] %vm4761, 0.0
          %4854 = vst.msk [vmem:[%s3 + $0x2e0] sm:$0xff] %vm4761, 0.0
          %4855 = vst.msk [vmem:[%s3 + $0x2e8] sm:$0xff] %vm4761, 0.0
          %4856 = vst.msk [vmem:[%s3 + $0x2f0] sm:$0xff] %vm4761, 0.0
          %4857 = vst.msk [vmem:[%s3 + $0x2f8] sm:$0xff] %vm4761, 0.0
          %4858 = vst.msk [vmem:[%s4] sm:$0xff] %vm4761, 0.0
          %4859 = vst.msk [vmem:[%s4 + $0x8] sm:$0xff] %vm4761, 0.0
          %4860 = vst.msk [vmem:[%s4 + $0x10] sm:$0xff] %vm4761, 0.0
          %4861 = vst.msk [vmem:[%s4 + $0x18] sm:$0xff] %vm4761, 0.0
          %4862 = vst.msk [vmem:[%s4 + $0x20] sm:$0xff] %vm4761, 0.0
          %4863 = vst.msk [vmem:[%s4 + $0x28] sm:$0xff] %vm4761, 0.0
          %4864 = vst.msk [vmem:[%s4 + $0x30] sm:$0xff] %vm4761, 0.0
          %4865 = vst.msk [vmem:[%s4 + $0x38] sm:$0xff] %vm4761, 0.0
          %4866 = vst.msk [vmem:[%s4 + $0x40] sm:$0xff] %vm4761, 0.0
          %4867 = vst.msk [vmem:[%s4 + $0x48] sm:$0xff] %vm4761, 0.0
          %4868 = vst.msk [vmem:[%s4 + $0x50] sm:$0xff] %vm4761, 0.0
          %4869 = vst.msk [vmem:[%s4 + $0x58] sm:$0xff] %vm4761, 0.0
          %4870 = vst.msk [vmem:[%s4 + $0x60] sm:$0xff] %vm4761, 0.0
          %4871 = vst.msk [vmem:[%s4 + $0x68] sm:$0xff] %vm4761, 0.0
          %4872 = vst.msk [vmem:[%s4 + $0x70] sm:$0xff] %vm4761, 0.0
          %4873 = vst.msk [vmem:[%s4 + $0x78] sm:$0xff] %vm4761, 0.0
          %4874 = vst.msk [vmem:[%s4 + $0x80] sm:$0xff] %vm4761, 0.0
          %4875 = vst.msk [vmem:[%s4 + $0x88] sm:$0xff] %vm4761, 0.0
          %4876 = vst.msk [vmem:[%s4 + $0x90] sm:$0xff] %vm4761, 0.0
          %4877 = vst.msk [vmem:[%s4 + $0x98] sm:$0xff] %vm4761, 0.0
          %4878 = vst.msk [vmem:[%s4 + $0xa0] sm:$0xff] %vm4761, 0.0
          %4879 = vst.msk [vmem:[%s4 + $0xa8] sm:$0xff] %vm4761, 0.0
          %4880 = vst.msk [vmem:[%s4 + $0xb0] sm:$0xff] %vm4761, 0.0
          %4881 = vst.msk [vmem:[%s4 + $0xb8] sm:$0xff] %vm4761, 0.0
          %4882 = vst.msk [vmem:[%s4 + $0xc0] sm:$0xff] %vm4761, 0.0
          %4883 = vst.msk [vmem:[%s4 + $0xc8] sm:$0xff] %vm4761, 0.0
          %4884 = vst.msk [vmem:[%s4 + $0xd0] sm:$0xff] %vm4761, 0.0
          %4885 = vst.msk [vmem:[%s4 + $0xd8] sm:$0xff] %vm4761, 0.0
          %4886 = vst.msk [vmem:[%s4 + $0xe0] sm:$0xff] %vm4761, 0.0
          %4887 = vst.msk [vmem:[%s4 + $0xe8] sm:$0xff] %vm4761, 0.0
          %4888 = vst.msk [vmem:[%s4 + $0xf0] sm:$0xff] %vm4761, 0.0
          %4889 = vst.msk [vmem:[%s4 + $0xf8] sm:$0xff] %vm4761, 0.0
          %4890 = vst.msk [vmem:[%s4 + $0x100] sm:$0xff] %vm4761, 0.0
          %4891 = vst.msk [vmem:[%s4 + $0x108] sm:$0xff] %vm4761, 0.0
          %4892 = vst.msk [vmem:[%s4 + $0x110] sm:$0xff] %vm4761, 0.0
          %4893 = vst.msk [vmem:[%s4 + $0x118] sm:$0xff] %vm4761, 0.0
          %4894 = vst.msk [vmem:[%s4 + $0x120] sm:$0xff] %vm4761, 0.0
          %4895 = vst.msk [vmem:[%s4 + $0x128] sm:$0xff] %vm4761, 0.0
          %4896 = vst.msk [vmem:[%s4 + $0x130] sm:$0xff] %vm4761, 0.0
          %4897 = vst.msk [vmem:[%s4 + $0x138] sm:$0xff] %vm4761, 0.0
          %4898 = vst.msk [vmem:[%s4 + $0x140] sm:$0xff] %vm4761, 0.0
          %4899 = vst.msk [vmem:[%s4 + $0x148] sm:$0xff] %vm4761, 0.0
          %4900 = vst.msk [vmem:[%s4 + $0x150] sm:$0xff] %vm4761, 0.0
          %4901 = vst.msk [vmem:[%s4 + $0x158] sm:$0xff] %vm4761, 0.0
          %4902 = vst.msk [vmem:[%s4 + $0x160] sm:$0xff] %vm4761, 0.0
          %4903 = vst.msk [vmem:[%s4 + $0x168] sm:$0xff] %vm4761, 0.0
          %4904 = vst.msk [vmem:[%s4 + $0x170] sm:$0xff] %vm4761, 0.0
          %4905 = vst.msk [vmem:[%s4 + $0x178] sm:$0xff] %vm4761, 0.0
          %4906 = vst.msk [vmem:[%s4 + $0x180] sm:$0xff] %vm4761, 0.0
          %4907 = vst.msk [vmem:[%s4 + $0x188] sm:$0xff] %vm4761, 0.0
          %4908 = vst.msk [vmem:[%s4 + $0x190] sm:$0xff] %vm4761, 0.0
          %4909 = vst.msk [vmem:[%s4 + $0x198] sm:$0xff] %vm4761, 0.0
          %4910 = vst.msk [vmem:[%s4 + $0x1a0] sm:$0xff] %vm4761, 0.0
          %4911 = vst.msk [vmem:[%s4 + $0x1a8] sm:$0xff] %vm4761, 0.0
          %4912 = vst.msk [vmem:[%s4 + $0x1b0] sm:$0xff] %vm4761, 0.0
          %4913 = vst.msk [vmem:[%s4 + $0x1b8] sm:$0xff] %vm4761, 0.0
          %4914 = vst.msk [vmem:[%s4 + $0x1c0] sm:$0xff] %vm4761, 0.0
          %4915 = vst.msk [vmem:[%s4 + $0x1c8] sm:$0xff] %vm4761, 0.0
          %4916 = vst.msk [vmem:[%s4 + $0x1d0] sm:$0xff] %vm4761, 0.0
          %4917 = vst.msk [vmem:[%s4 + $0x1d8] sm:$0xff] %vm4761, 0.0
          %4918 = vst.msk [vmem:[%s4 + $0x1e0] sm:$0xff] %vm4761, 0.0
          %4919 = vst.msk [vmem:[%s4 + $0x1e8] sm:$0xff] %vm4761, 0.0
          %4920 = vst.msk [vmem:[%s4 + $0x1f0] sm:$0xff] %vm4761, 0.0
          %4921 = vst.msk [vmem:[%s4 + $0x1f8] sm:$0xff] %vm4761, 0.0
          %4922 = vst.msk [vmem:[%s4 + $0x200] sm:$0xff] %vm4761, 0.0
          %4923 = vst.msk [vmem:[%s4 + $0x208] sm:$0xff] %vm4761, 0.0
          %4924 = vst.msk [vmem:[%s4 + $0x210] sm:$0xff] %vm4761, 0.0
          %4925 = vst.msk [vmem:[%s4 + $0x218] sm:$0xff] %vm4761, 0.0
          %4926 = vst.msk [vmem:[%s4 + $0x220] sm:$0xff] %vm4761, 0.0
          %4927 = vst.msk [vmem:[%s4 + $0x228] sm:$0xff] %vm4761, 0.0
          %4928 = vst.msk [vmem:[%s4 + $0x230] sm:$0xff] %vm4761, 0.0
          %4929 = vst.msk [vmem:[%s4 + $0x238] sm:$0xff] %vm4761, 0.0
          %4930 = vst.msk [vmem:[%s4 + $0x240] sm:$0xff] %vm4761, 0.0
          %4931 = vst.msk [vmem:[%s4 + $0x248] sm:$0xff] %vm4761, 0.0
          %4932 = vst.msk [vmem:[%s4 + $0x250] sm:$0xff] %vm4761, 0.0
          %4933 = vst.msk [vmem:[%s4 + $0x258] sm:$0xff] %vm4761, 0.0
          %4934 = vst.msk [vmem:[%s4 + $0x260] sm:$0xff] %vm4761, 0.0
          %4935 = vst.msk [vmem:[%s4 + $0x268] sm:$0xff] %vm4761, 0.0
          %4936 = vst.msk [vmem:[%s4 + $0x270] sm:$0xff] %vm4761, 0.0
          %4937 = vst.msk [vmem:[%s4 + $0x278] sm:$0xff] %vm4761, 0.0
          %4938 = vst.msk [vmem:[%s4 + $0x280] sm:$0xff] %vm4761, 0.0
          %4939 = vst.msk [vmem:[%s4 + $0x288] sm:$0xff] %vm4761, 0.0
          %4940 = vst.msk [vmem:[%s4 + $0x290] sm:$0xff] %vm4761, 0.0
          %4941 = vst.msk [vmem:[%s4 + $0x298] sm:$0xff] %vm4761, 0.0
          %4942 = vst.msk [vmem:[%s4 + $0x2a0] sm:$0xff] %vm4761, 0.0
          %4943 = vst.msk [vmem:[%s4 + $0x2a8] sm:$0xff] %vm4761, 0.0
          %4944 = vst.msk [vmem:[%s4 + $0x2b0] sm:$0xff] %vm4761, 0.0
          %4945 = vst.msk [vmem:[%s4 + $0x2b8] sm:$0xff] %vm4761, 0.0
          %4946 = vst.msk [vmem:[%s4 + $0x2c0] sm:$0xff] %vm4761, 0.0
          %4947 = vst.msk [vmem:[%s4 + $0x2c8] sm:$0xff] %vm4761, 0.0
          %4948 = vst.msk [vmem:[%s4 + $0x2d0] sm:$0xff] %vm4761, 0.0
          %4949 = vst.msk [vmem:[%s4 + $0x2d8] sm:$0xff] %vm4761, 0.0
          %4950 = vst.msk [vmem:[%s4 + $0x2e0] sm:$0xff] %vm4761, 0.0
          %4951 = vst.msk [vmem:[%s4 + $0x2e8] sm:$0xff] %vm4761, 0.0
          %4952 = vst.msk [vmem:[%s4 + $0x2f0] sm:$0xff] %vm4761, 0.0
          %4953 = vst.msk [vmem:[%s4 + $0x2f8] sm:$0xff] %vm4761, 0.0
        $region70: #{fused_relu_conv1x1_bn_relu.2} parent=61 // pred_fallthru
          _
        %v4954 = vld [vmem:[%s3] sm:$0xff]
        %v4955 = vld [vmem:[%s3 + $0x8] sm:$0xff]
        %v4956 = vld [vmem:[%s3 + $0x10] sm:$0xff]
        %v4957 = vld [vmem:[%s3 + $0x18] sm:$0xff]
        %v4958 = vld [vmem:[%s3 + $0x20] sm:$0xff]
        %v4959 = vld [vmem:[%s3 + $0x28] sm:$0xff]
        %v4960 = vld [vmem:[%s3 + $0x30] sm:$0xff]
        %v4961 = vld [vmem:[%s3 + $0x38] sm:$0xff]
        %v4962 = vld [vmem:[%s3 + $0x40] sm:$0xff]
        %v4963 = vld [vmem:[%s3 + $0x48] sm:$0xff]
        %v4964 = vld [vmem:[%s3 + $0x50] sm:$0xff]
        %v4965 = vld [vmem:[%s3 + $0x58] sm:$0xff]
        %v4966 = vld [vmem:[%s3 + $0x60] sm:$0xff]
        %v4967 = vld [vmem:[%s3 + $0x68] sm:$0xff]
        %v4968 = vld [vmem:[%s3 + $0x70] sm:$0xff]
        %v4969 = vld [vmem:[%s3 + $0x78] sm:$0xff]
        %v4970 = vld [vmem:[%s3 + $0x80] sm:$0xff]
        %v4971 = vld [vmem:[%s3 + $0x88] sm:$0xff]
        %v4972 = vld [vmem:[%s3 + $0x90] sm:$0xff]
        %v4973 = vld [vmem:[%s3 + $0x98] sm:$0xff]
        %v4974 = vld [vmem:[%s3 + $0xa0] sm:$0xff]
        %v4975 = vld [vmem:[%s3 + $0xa8] sm:$0xff]
        %v4976 = vld [vmem:[%s3 + $0xb0] sm:$0xff]
        %v4977 = vld [vmem:[%s3 + $0xb8] sm:$0xff]
        %v4978 = vld [vmem:[%s3 + $0xc0] sm:$0xff]
        %v4979 = vld [vmem:[%s3 + $0xc8] sm:$0xff]
        %v4980 = vld [vmem:[%s3 + $0xd0] sm:$0xff]
        %v4981 = vld [vmem:[%s3 + $0xd8] sm:$0xff]
        %v4982 = vld [vmem:[%s3 + $0xe0] sm:$0xff]
        %v4983 = vld [vmem:[%s3 + $0xe8] sm:$0xff]
        %v4984 = vld [vmem:[%s3 + $0xf0] sm:$0xff]
        %v4985 = vld [vmem:[%s3 + $0xf8] sm:$0xff]
        %v4986 = vld [vmem:[%s3 + $0x100] sm:$0xff]
        %v4987 = vld [vmem:[%s3 + $0x108] sm:$0xff]
        %v4988 = vld [vmem:[%s3 + $0x110] sm:$0xff]
        %v4989 = vld [vmem:[%s3 + $0x118] sm:$0xff]
        %v4990 = vld [vmem:[%s3 + $0x120] sm:$0xff]
        %v4991 = vld [vmem:[%s3 + $0x128] sm:$0xff]
        %v4992 = vld [vmem:[%s3 + $0x130] sm:$0xff]
        %v4993 = vld [vmem:[%s3 + $0x138] sm:$0xff]
        %v4994 = vld [vmem:[%s3 + $0x140] sm:$0xff]
        %v4995 = vld [vmem:[%s3 + $0x148] sm:$0xff]
        %v4996 = vld [vmem:[%s3 + $0x150] sm:$0xff]
        %v4997 = vld [vmem:[%s3 + $0x158] sm:$0xff]
        %v4998 = vld [vmem:[%s3 + $0x160] sm:$0xff]
        %v4999 = vld [vmem:[%s3 + $0x168] sm:$0xff]
        %v5000 = vld [vmem:[%s3 + $0x170] sm:$0xff]
        %v5001 = vld [vmem:[%s3 + $0x178] sm:$0xff]
        %v5002 = vld [vmem:[%s3 + $0x180] sm:$0xff]
        %v5003 = vld [vmem:[%s3 + $0x188] sm:$0xff]
        %v5004 = vld [vmem:[%s3 + $0x190] sm:$0xff]
        %v5005 = vld [vmem:[%s3 + $0x198] sm:$0xff]
        %v5006 = vld [vmem:[%s3 + $0x1a0] sm:$0xff]
        %v5007 = vld [vmem:[%s3 + $0x1a8] sm:$0xff]
        %v5008 = vld [vmem:[%s3 + $0x1b0] sm:$0xff]
        %v5009 = vld [vmem:[%s3 + $0x1b8] sm:$0xff]
        %v5010 = vld [vmem:[%s3 + $0x1c0] sm:$0xff]
        %v5011 = vld [vmem:[%s3 + $0x1c8] sm:$0xff]
        %v5012 = vld [vmem:[%s3 + $0x1d0] sm:$0xff]
        %v5013 = vld [vmem:[%s3 + $0x1d8] sm:$0xff]
        %v5014 = vld [vmem:[%s3 + $0x1e0] sm:$0xff]
        %v5015 = vld [vmem:[%s3 + $0x1e8] sm:$0xff]
        %v5016 = vld [vmem:[%s3 + $0x1f0] sm:$0xff]
        %v5017 = vld [vmem:[%s3 + $0x1f8] sm:$0xff]
        %v5018 = vld [vmem:[%s3 + $0x200] sm:$0xff]
        %v5019 = vld [vmem:[%s3 + $0x208] sm:$0xff]
        %v5020 = vld [vmem:[%s3 + $0x210] sm:$0xff]
        %v5021 = vld [vmem:[%s3 + $0x218] sm:$0xff]
        %v5022 = vld [vmem:[%s3 + $0x220] sm:$0xff]
        %v5023 = vld [vmem:[%s3 + $0x228] sm:$0xff]
        %v5024 = vld [vmem:[%s3 + $0x230] sm:$0xff]
        %v5025 = vld [vmem:[%s3 + $0x238] sm:$0xff]
        %v5026 = vld [vmem:[%s3 + $0x240] sm:$0xff]
        %v5027 = vld [vmem:[%s3 + $0x248] sm:$0xff]
        %v5028 = vld [vmem:[%s3 + $0x250] sm:$0xff]
        %v5029 = vld [vmem:[%s3 + $0x258] sm:$0xff]
        %v5030 = vld [vmem:[%s3 + $0x260] sm:$0xff]
        %v5031 = vld [vmem:[%s3 + $0x268] sm:$0xff]
        %v5032 = vld [vmem:[%s3 + $0x270] sm:$0xff]
        %v5033 = vld [vmem:[%s3 + $0x278] sm:$0xff]
        %v5034 = vld [vmem:[%s3 + $0x280] sm:$0xff]
        %v5035 = vld [vmem:[%s3 + $0x288] sm:$0xff]
        %v5036 = vld [vmem:[%s3 + $0x290] sm:$0xff]
        %v5037 = vld [vmem:[%s3 + $0x298] sm:$0xff]
        %v5038 = vld [vmem:[%s3 + $0x2a0] sm:$0xff]
        %v5039 = vld [vmem:[%s3 + $0x2a8] sm:$0xff]
        %v5040 = vld [vmem:[%s3 + $0x2b0] sm:$0xff]
        %v5041 = vld [vmem:[%s3 + $0x2b8] sm:$0xff]
        %v5042 = vld [vmem:[%s3 + $0x2c0] sm:$0xff]
        %v5043 = vld [vmem:[%s3 + $0x2c8] sm:$0xff]
        %v5044 = vld [vmem:[%s3 + $0x2d0] sm:$0xff]
        %v5045 = vld [vmem:[%s3 + $0x2d8] sm:$0xff]
        %v5046 = vld [vmem:[%s3 + $0x2e0] sm:$0xff]
        %v5047 = vld [vmem:[%s3 + $0x2e8] sm:$0xff]
        %v5048 = vld [vmem:[%s3 + $0x2f0] sm:$0xff]
        %v5049 = vld [vmem:[%s3 + $0x2f8] sm:$0xff]
        %v5050 = vadd.f32 %v4085, %v4087
        %5051 = vadd.xlane.f32.xlu0 %v5050
        %v5052 = vpop.xlane.xlu0 %5051
        %v5053 = vadd.f32 %v4089, %v4091
        %5054 = vadd.xlane.f32.xlu0 %v5053
        %v5055 = vpop.xlane.xlu0 %5054
        %v5056 = vadd.f32 %v4095, %v4097
        %5057 = vadd.xlane.f32.xlu0 %v5056
        %v5058 = vpop.xlane.xlu0 %5057
        %v5059 = vadd.f32 %v4099, %v4101
        %5060 = vadd.xlane.f32.xlu0 %v5059
        %v5061 = vpop.xlane.xlu0 %5060
        %v5062 = vadd.f32 %v4105, %v4107
        %5063 = vadd.xlane.f32.xlu0 %v5062
        %v5064 = vpop.xlane.xlu0 %5063
        %v5065 = vadd.f32 %v4109, %v4111
        %5066 = vadd.xlane.f32.xlu0 %v5065
        %v5067 = vpop.xlane.xlu0 %5066
        %v5068 = vadd.f32 %v4115, %v4117
        %5069 = vadd.xlane.f32.xlu0 %v5068
        %v5070 = vpop.xlane.xlu0 %5069
        %v5071 = vadd.f32 %v4119, %v4121
        %5072 = vadd.xlane.f32.xlu0 %v5071
        %v5073 = vpop.xlane.xlu0 %5072
        %v5074 = vadd.f32 %v4125, %v4127
        %5075 = vadd.xlane.f32.xlu0 %v5074
        %v5076 = vpop.xlane.xlu0 %5075
        %v5077 = vadd.f32 %v4129, %v4131
        %5078 = vadd.xlane.f32.xlu0 %v5077
        %v5079 = vpop.xlane.xlu0 %5078
        %v5080 = vadd.f32 %v4135, %v4137
        %5081 = vadd.xlane.f32.xlu0 %v5080
        %v5082 = vpop.xlane.xlu0 %5081
        %v5083 = vadd.f32 %v4139, %v4141
        %5084 = vadd.xlane.f32.xlu0 %v5083
        %v5085 = vpop.xlane.xlu0 %5084
        %v5086 = vadd.f32 %v4145, %v4147
        %5087 = vadd.xlane.f32.xlu0 %v5086
        %v5088 = vpop.xlane.xlu0 %5087
        %v5089 = vadd.f32 %v4149, %v4151
        %5090 = vadd.xlane.f32.xlu0 %v5089
        %v5091 = vpop.xlane.xlu0 %5090
        %v5092 = vadd.f32 %v4155, %v4157
        %5093 = vadd.xlane.f32.xlu0 %v5092
        %v5094 = vpop.xlane.xlu0 %5093
        %v5095 = vadd.f32 %v4159, %v4161
        %5096 = vadd.xlane.f32.xlu0 %v5095
        %v5097 = vpop.xlane.xlu0 %5096
        %v5098 = vadd.f32 %v4165, %v4167
        %5099 = vadd.xlane.f32.xlu0 %v5098
        %v5100 = vpop.xlane.xlu0 %5099
        %v5101 = vadd.f32 %v4169, %v4171
        %5102 = vadd.xlane.f32.xlu0 %v5101
        %v5103 = vpop.xlane.xlu0 %5102
        %v5104 = vadd.f32 %v4175, %v4177
        %5105 = vadd.xlane.f32.xlu0 %v5104
        %v5106 = vpop.xlane.xlu0 %5105
        %v5107 = vadd.f32 %v4179, %v4181
        %5108 = vadd.xlane.f32.xlu0 %v5107
        %v5109 = vpop.xlane.xlu0 %5108
        %v5110 = vadd.f32 %v4185, %v4187
        %5111 = vadd.xlane.f32.xlu0 %v5110
        %v5112 = vpop.xlane.xlu0 %5111
        %v5113 = vadd.f32 %v4189, %v4191
        %5114 = vadd.xlane.f32.xlu0 %v5113
        %v5115 = vpop.xlane.xlu0 %5114
        %v5116 = vadd.f32 %v4195, %v4197
        %5117 = vadd.xlane.f32.xlu0 %v5116
        %v5118 = vpop.xlane.xlu0 %5117
        %v5119 = vadd.f32 %v4199, %v4201
        %5120 = vadd.xlane.f32.xlu0 %v5119
        %v5121 = vpop.xlane.xlu0 %5120
        %v5122 = vadd.f32 %v4205, %v4207
        %5123 = vadd.xlane.f32.xlu0 %v5122
        %v5124 = vpop.xlane.xlu0 %5123
        %v5125 = vadd.f32 %v4209, %v4211
        %5126 = vadd.xlane.f32.xlu0 %v5125
        %v5127 = vpop.xlane.xlu0 %5126
        %v5128 = vadd.f32 %v4215, %v4217
        %5129 = vadd.xlane.f32.xlu0 %v5128
        %v5130 = vpop.xlane.xlu0 %5129
        %v5131 = vadd.f32 %v4219, %v4221
        %5132 = vadd.xlane.f32.xlu0 %v5131
        %v5133 = vpop.xlane.xlu0 %5132
        %v5134 = vadd.f32 %v4225, %v4227
        %5135 = vadd.xlane.f32.xlu0 %v5134
        %v5136 = vpop.xlane.xlu0 %5135
        %v5137 = vadd.f32 %v4229, %v4231
        %5138 = vadd.xlane.f32.xlu0 %v5137
        %v5139 = vpop.xlane.xlu0 %5138
        %v5140 = vadd.f32 %v4235, %v4237
        %5141 = vadd.xlane.f32.xlu0 %v5140
        %v5142 = vpop.xlane.xlu0 %5141
        %v5143 = vadd.f32 %v4239, %v4241
        %5144 = vadd.xlane.f32.xlu0 %v5143
        %v5145 = vpop.xlane.xlu0 %5144
        %v5146 = vadd.f32 %v4245, %v4247
        %5147 = vadd.xlane.f32.xlu0 %v5146
        %v5148 = vpop.xlane.xlu0 %5147
        %v5149 = vadd.f32 %v4249, %v4251
        %5150 = vadd.xlane.f32.xlu0 %v5149
        %v5151 = vpop.xlane.xlu0 %5150
        %v5152 = vadd.f32 %v4255, %v4257
        %5153 = vadd.xlane.f32.xlu0 %v5152
        %v5154 = vpop.xlane.xlu0 %5153
        %v5155 = vadd.f32 %v4259, %v4261
        %5156 = vadd.xlane.f32.xlu0 %v5155
        %v5157 = vpop.xlane.xlu0 %5156
        %v5158 = vadd.f32 %v4265, %v4267
        %5159 = vadd.xlane.f32.xlu0 %v5158
        %v5160 = vpop.xlane.xlu0 %5159
        %v5161 = vadd.f32 %v4269, %v4271
        %5162 = vadd.xlane.f32.xlu0 %v5161
        %v5163 = vpop.xlane.xlu0 %5162
        %v5164 = vadd.f32 %v4275, %v4277
        %5165 = vadd.xlane.f32.xlu0 %v5164
        %v5166 = vpop.xlane.xlu0 %5165
        %v5167 = vadd.f32 %v4279, %v4281
        %5168 = vadd.xlane.f32.xlu0 %v5167
        %v5169 = vpop.xlane.xlu0 %5168
        %v5170 = vadd.f32 %v4285, %v4287
        %5171 = vadd.xlane.f32.xlu0 %v5170
        %v5172 = vpop.xlane.xlu0 %5171
        %v5173 = vadd.f32 %v4289, %v4291
        %5174 = vadd.xlane.f32.xlu0 %v5173
        %v5175 = vpop.xlane.xlu0 %5174
        %v5176 = vadd.f32 %v4295, %v4297
        %5177 = vadd.xlane.f32.xlu0 %v5176
        %v5178 = vpop.xlane.xlu0 %5177
        %v5179 = vadd.f32 %v4299, %v4301
        %5180 = vadd.xlane.f32.xlu0 %v5179
        %v5181 = vpop.xlane.xlu0 %5180
        %v5182 = vadd.f32 %v4305, %v4307
        %5183 = vadd.xlane.f32.xlu0 %v5182
        %v5184 = vpop.xlane.xlu0 %5183
        %v5185 = vadd.f32 %v4309, %v4311
        %5186 = vadd.xlane.f32.xlu0 %v5185
        %v5187 = vpop.xlane.xlu0 %5186
        %v5188 = vadd.f32 %v4315, %v4317
        %5189 = vadd.xlane.f32.xlu0 %v5188
        %v5190 = vpop.xlane.xlu0 %5189
        %v5191 = vadd.f32 %v4319, %v4321
        %5192 = vadd.xlane.f32.xlu0 %v5191
        %v5193 = vpop.xlane.xlu0 %5192
        %v5194 = vadd.f32 %v4325, %v4327
        %5195 = vadd.xlane.f32.xlu0 %v5194
        %v5196 = vpop.xlane.xlu0 %5195
        %v5197 = vadd.f32 %v4329, %v4331
        %5198 = vadd.xlane.f32.xlu0 %v5197
        %v5199 = vpop.xlane.xlu0 %5198
        %v5200 = vadd.f32 %v4335, %v4337
        %5201 = vadd.xlane.f32.xlu0 %v5200
        %v5202 = vpop.xlane.xlu0 %5201
        %v5203 = vadd.f32 %v4339, %v4341
        %5204 = vadd.xlane.f32.xlu0 %v5203
        %v5205 = vpop.xlane.xlu0 %5204
        %v5206 = vadd.f32 %v4345, %v4347
        %5207 = vadd.xlane.f32.xlu0 %v5206
        %v5208 = vpop.xlane.xlu0 %5207
        %v5209 = vadd.f32 %v4349, %v4351
        %5210 = vadd.xlane.f32.xlu0 %v5209
        %v5211 = vpop.xlane.xlu0 %5210
        %v5212 = vadd.f32 %v4355, %v4357
        %5213 = vadd.xlane.f32.xlu0 %v5212
        %v5214 = vpop.xlane.xlu0 %5213
        %v5215 = vadd.f32 %v4359, %v4361
        %5216 = vadd.xlane.f32.xlu0 %v5215
        %v5217 = vpop.xlane.xlu0 %5216
        %v5218 = vadd.f32 %v4365, %v4367
        %5219 = vadd.xlane.f32.xlu0 %v5218
        %v5220 = vpop.xlane.xlu0 %5219
        %v5221 = vadd.f32 %v4369, %v4371
        %5222 = vadd.xlane.f32.xlu0 %v5221
        %v5223 = vpop.xlane.xlu0 %5222
        %v5224 = vadd.f32 %v4375, %v4377
        %5225 = vadd.xlane.f32.xlu0 %v5224
        %v5226 = vpop.xlane.xlu0 %5225
        %v5227 = vadd.f32 %v4379, %v4381
        %5228 = vadd.xlane.f32.xlu0 %v5227
        %v5229 = vpop.xlane.xlu0 %5228
        %v5230 = vadd.f32 %v4385, %v4387
        %5231 = vadd.xlane.f32.xlu0 %v5230
        %v5232 = vpop.xlane.xlu0 %5231
        %v5233 = vadd.f32 %v4389, %v4391
        %5234 = vadd.xlane.f32.xlu0 %v5233
        %v5235 = vpop.xlane.xlu0 %5234
        %v5236 = vadd.f32 %v4395, %v4397
        %5237 = vadd.xlane.f32.xlu0 %v5236
        %v5238 = vpop.xlane.xlu0 %5237
        %v5239 = vadd.f32 %v4399, %v4401
        %5240 = vadd.xlane.f32.xlu0 %v5239
        %v5241 = vpop.xlane.xlu0 %5240
        %v5242 = vadd.f32 %v4405, %v4407
        %5243 = vadd.xlane.f32.xlu0 %v5242
        %v5244 = vpop.xlane.xlu0 %5243
        %v5245 = vadd.f32 %v4409, %v4411
        %5246 = vadd.xlane.f32.xlu0 %v5245
        %v5247 = vpop.xlane.xlu0 %5246
        %v5248 = vadd.f32 %v4415, %v4417
        %5249 = vadd.xlane.f32.xlu0 %v5248
        %v5250 = vpop.xlane.xlu0 %5249
        %v5251 = vadd.f32 %v4419, %v4421
        %5252 = vadd.xlane.f32.xlu0 %v5251
        %v5253 = vpop.xlane.xlu0 %5252
        %v5254 = vadd.f32 %v4425, %v4427
        %5255 = vadd.xlane.f32.xlu0 %v5254
        %v5256 = vpop.xlane.xlu0 %5255
        %v5257 = vadd.f32 %v4429, %v4431
        %5258 = vadd.xlane.f32.xlu0 %v5257
        %v5259 = vpop.xlane.xlu0 %5258
        %v5260 = vadd.f32 %v4435, %v4437
        %5261 = vadd.xlane.f32.xlu0 %v5260
        %v5262 = vpop.xlane.xlu0 %5261
        %v5263 = vadd.f32 %v4439, %v4441
        %5264 = vadd.xlane.f32.xlu0 %v5263
        %v5265 = vpop.xlane.xlu0 %5264
        %v5266 = vadd.f32 %v4445, %v4447
        %5267 = vadd.xlane.f32.xlu0 %v5266
        %v5268 = vpop.xlane.xlu0 %5267
        %v5269 = vadd.f32 %v4449, %v4451
        %5270 = vadd.xlane.f32.xlu0 %v5269
        %v5271 = vpop.xlane.xlu0 %5270
        %v5272 = vadd.f32 %v4455, %v4457
        %5273 = vadd.xlane.f32.xlu0 %v5272
        %v5274 = vpop.xlane.xlu0 %5273
        %v5275 = vadd.f32 %v4459, %v4461
        %5276 = vadd.xlane.f32.xlu0 %v5275
        %v5277 = vpop.xlane.xlu0 %5276
        %v5278 = vadd.f32 %v4465, %v4467
        %5279 = vadd.xlane.f32.xlu0 %v5278
        %v5280 = vpop.xlane.xlu0 %5279
        %v5281 = vadd.f32 %v4469, %v4471
        %5282 = vadd.xlane.f32.xlu0 %v5281
        %v5283 = vpop.xlane.xlu0 %5282
        %v5284 = vadd.f32 %v4475, %v4477
        %5285 = vadd.xlane.f32.xlu0 %v5284
        %v5286 = vpop.xlane.xlu0 %5285
        %v5287 = vadd.f32 %v4479, %v4481
        %5288 = vadd.xlane.f32.xlu0 %v5287
        %v5289 = vpop.xlane.xlu0 %5288
        %v5290 = vadd.f32 %v4485, %v4487
        %5291 = vadd.xlane.f32.xlu0 %v5290
        %v5292 = vpop.xlane.xlu0 %5291
        %v5293 = vadd.f32 %v4489, %v4491
        %5294 = vadd.xlane.f32.xlu0 %v5293
        %v5295 = vpop.xlane.xlu0 %5294
        %v5296 = vadd.f32 %v4495, %v4497
        %5297 = vadd.xlane.f32.xlu0 %v5296
        %v5298 = vpop.xlane.xlu0 %5297
        %v5299 = vadd.f32 %v4499, %v4501
        %5300 = vadd.xlane.f32.xlu0 %v5299
        %v5301 = vpop.xlane.xlu0 %5300
        %v5302 = vadd.f32 %v4505, %v4507
        %5303 = vadd.xlane.f32.xlu0 %v5302
        %v5304 = vpop.xlane.xlu0 %5303
        %v5305 = vadd.f32 %v4509, %v4511
        %5306 = vadd.xlane.f32.xlu0 %v5305
        %v5307 = vpop.xlane.xlu0 %5306
        %v5308 = vadd.f32 %v4515, %v4517
        %5309 = vadd.xlane.f32.xlu0 %v5308
        %v5310 = vpop.xlane.xlu0 %5309
        %v5311 = vadd.f32 %v4519, %v4521
        %5312 = vadd.xlane.f32.xlu0 %v5311
        %v5313 = vpop.xlane.xlu0 %5312
        %v5314 = vadd.f32 %v4525, %v4527
        %5315 = vadd.xlane.f32.xlu0 %v5314
        %v5316 = vpop.xlane.xlu0 %5315
        %v5317 = vadd.f32 %v4529, %v4531
        %5318 = vadd.xlane.f32.xlu0 %v5317
        %v5319 = vpop.xlane.xlu0 %5318
        %v5320 = vadd.f32 %v4535, %v4537
        %5321 = vadd.xlane.f32.xlu0 %v5320
        %v5322 = vpop.xlane.xlu0 %5321
        %v5323 = vadd.f32 %v4539, %v4541
        %5324 = vadd.xlane.f32.xlu0 %v5323
        %v5325 = vpop.xlane.xlu0 %5324
        %v5326 = vadd.f32 %v4545, %v4547
        %5327 = vadd.xlane.f32.xlu0 %v5326
        %v5328 = vpop.xlane.xlu0 %5327
        %v5329 = vadd.f32 %v4549, %v4551
        %5330 = vadd.xlane.f32.xlu0 %v5329
        %v5331 = vpop.xlane.xlu0 %5330
        %v5332 = vadd.f32 %v4555, %v4557
        %5333 = vadd.xlane.f32.xlu0 %v5332
        %v5334 = vpop.xlane.xlu0 %5333
        %v5335 = vadd.f32 %v4559, %v4561
        %5336 = vadd.xlane.f32.xlu0 %v5335
        %v5337 = vpop.xlane.xlu0 %5336
        %v5338 = vadd.f32 %v4954, %v5052
        %v5339 = vadd.f32 %v4955, %v5055
        %v5340 = vadd.f32 %v4956, %v5058
        %v5341 = vadd.f32 %v4957, %v5061
        %v5342 = vadd.f32 %v4958, %v5064
        %v5343 = vadd.f32 %v4959, %v5067
        %v5344 = vadd.f32 %v4960, %v5070
        %v5345 = vadd.f32 %v4961, %v5073
        %v5346 = vadd.f32 %v4962, %v5076
        %v5347 = vadd.f32 %v4963, %v5079
        %v5348 = vadd.f32 %v4964, %v5082
        %v5349 = vadd.f32 %v4965, %v5085
        %v5350 = vadd.f32 %v4966, %v5088
        %v5351 = vadd.f32 %v4967, %v5091
        %v5352 = vadd.f32 %v4968, %v5094
        %v5353 = vadd.f32 %v4969, %v5097
        %v5354 = vadd.f32 %v4970, %v5100
        %v5355 = vadd.f32 %v4971, %v5103
        %v5356 = vadd.f32 %v4972, %v5106
        %v5357 = vadd.f32 %v4973, %v5109
        %v5358 = vadd.f32 %v4974, %v5112
        %v5359 = vadd.f32 %v4975, %v5115
        %v5360 = vadd.f32 %v4976, %v5118
        %v5361 = vadd.f32 %v4977, %v5121
        %v5362 = vadd.f32 %v4978, %v5124
        %v5363 = vadd.f32 %v4979, %v5127
        %v5364 = vadd.f32 %v4980, %v5130
        %v5365 = vadd.f32 %v4981, %v5133
        %v5366 = vadd.f32 %v4982, %v5136
        %v5367 = vadd.f32 %v4983, %v5139
        %v5368 = vadd.f32 %v4984, %v5142
        %v5369 = vadd.f32 %v4985, %v5145
        %v5370 = vadd.f32 %v4986, %v5148
        %v5371 = vadd.f32 %v4987, %v5151
        %v5372 = vadd.f32 %v4988, %v5154
        %v5373 = vadd.f32 %v4989, %v5157
        %v5374 = vadd.f32 %v4990, %v5160
        %v5375 = vadd.f32 %v4991, %v5163
        %v5376 = vadd.f32 %v4992, %v5166
        %v5377 = vadd.f32 %v4993, %v5169
        %v5378 = vadd.f32 %v4994, %v5172
        %v5379 = vadd.f32 %v4995, %v5175
        %v5380 = vadd.f32 %v4996, %v5178
        %v5381 = vadd.f32 %v4997, %v5181
        %v5382 = vadd.f32 %v4998, %v5184
        %v5383 = vadd.f32 %v4999, %v5187
        %v5384 = vadd.f32 %v5000, %v5190
        %v5385 = vadd.f32 %v5001, %v5193
        %v5386 = vadd.f32 %v5002, %v5196
        %v5387 = vadd.f32 %v5003, %v5199
        %v5388 = vadd.f32 %v5004, %v5202
        %v5389 = vadd.f32 %v5005, %v5205
        %v5390 = vadd.f32 %v5006, %v5208
        %v5391 = vadd.f32 %v5007, %v5211
        %v5392 = vadd.f32 %v5008, %v5214
        %v5393 = vadd.f32 %v5009, %v5217
        %v5394 = vadd.f32 %v5010, %v5220
        %v5395 = vadd.f32 %v5011, %v5223
        %v5396 = vadd.f32 %v5012, %v5226
        %v5397 = vadd.f32 %v5013, %v5229
        %v5398 = vadd.f32 %v5014, %v5232
        %v5399 = vadd.f32 %v5015, %v5235
        %v5400 = vadd.f32 %v5016, %v5238
        %v5401 = vadd.f32 %v5017, %v5241
        %v5402 = vadd.f32 %v5018, %v5244
        %v5403 = vadd.f32 %v5019, %v5247
        %v5404 = vadd.f32 %v5020, %v5250
        %v5405 = vadd.f32 %v5021, %v5253
        %v5406 = vadd.f32 %v5022, %v5256
        %v5407 = vadd.f32 %v5023, %v5259
        %v5408 = vadd.f32 %v5024, %v5262
        %v5409 = vadd.f32 %v5025, %v5265
        %v5410 = vadd.f32 %v5026, %v5268
        %v5411 = vadd.f32 %v5027, %v5271
        %v5412 = vadd.f32 %v5028, %v5274
        %v5413 = vadd.f32 %v5029, %v5277
        %v5414 = vadd.f32 %v5030, %v5280
        %v5415 = vadd.f32 %v5031, %v5283
        %v5416 = vadd.f32 %v5032, %v5286
        %v5417 = vadd.f32 %v5033, %v5289
        %v5418 = vadd.f32 %v5034, %v5292
        %v5419 = vadd.f32 %v5035, %v5295
        %v5420 = vadd.f32 %v5036, %v5298
        %v5421 = vadd.f32 %v5037, %v5301
        %v5422 = vadd.f32 %v5038, %v5304
        %v5423 = vadd.f32 %v5039, %v5307
        %v5424 = vadd.f32 %v5040, %v5310
        %v5425 = vadd.f32 %v5041, %v5313
        %v5426 = vadd.f32 %v5042, %v5316
        %v5427 = vadd.f32 %v5043, %v5319
        %v5428 = vadd.f32 %v5044, %v5322
        %v5429 = vadd.f32 %v5045, %v5325
        %v5430 = vadd.f32 %v5046, %v5328
        %v5431 = vadd.f32 %v5047, %v5331
        %v5432 = vadd.f32 %v5048, %v5334
        %v5433 = vadd.f32 %v5049, %v5337
        %vm5434 = vcmask 7168
        %5435 = vst.msk [vmem:[%s3] sm:$0xff] %vm5434, %v5338
        %5436 = vst.msk [vmem:[%s3 + $0x8] sm:$0xff] %vm5434, %v5339
        %5437 = vst.msk [vmem:[%s3 + $0x10] sm:$0xff] %vm5434, %v5340
        %5438 = vst.msk [vmem:[%s3 + $0x18] sm:$0xff] %vm5434, %v5341
        %5439 = vst.msk [vmem:[%s3 + $0x20] sm:$0xff] %vm5434, %v5342
        %5440 = vst.msk [vmem:[%s3 + $0x28] sm:$0xff] %vm5434, %v5343
        %5441 = vst.msk [vmem:[%s3 + $0x30] sm:$0xff] %vm5434, %v5344
        %5442 = vst.msk [vmem:[%s3 + $0x38] sm:$0xff] %vm5434, %v5345
        %5443 = vst.msk [vmem:[%s3 + $0x40] sm:$0xff] %vm5434, %v5346
        %5444 = vst.msk [vmem:[%s3 + $0x48] sm:$0xff] %vm5434, %v5347
        %5445 = vst.msk [vmem:[%s3 + $0x50] sm:$0xff] %vm5434, %v5348
        %5446 = vst.msk [vmem:[%s3 + $0x58] sm:$0xff] %vm5434, %v5349
        %5447 = vst.msk [vmem:[%s3 + $0x60] sm:$0xff] %vm5434, %v5350
        %5448 = vst.msk [vmem:[%s3 + $0x68] sm:$0xff] %vm5434, %v5351
        %5449 = vst.msk [vmem:[%s3 + $0x70] sm:$0xff] %vm5434, %v5352
        %5450 = vst.msk [vmem:[%s3 + $0x78] sm:$0xff] %vm5434, %v5353
        %5451 = vst.msk [vmem:[%s3 + $0x80] sm:$0xff] %vm5434, %v5354
        %5452 = vst.msk [vmem:[%s3 + $0x88] sm:$0xff] %vm5434, %v5355
        %5453 = vst.msk [vmem:[%s3 + $0x90] sm:$0xff] %vm5434, %v5356
        %5454 = vst.msk [vmem:[%s3 + $0x98] sm:$0xff] %vm5434, %v5357
        %5455 = vst.msk [vmem:[%s3 + $0xa0] sm:$0xff] %vm5434, %v5358
        %5456 = vst.msk [vmem:[%s3 + $0xa8] sm:$0xff] %vm5434, %v5359
        %5457 = vst.msk [vmem:[%s3 + $0xb0] sm:$0xff] %vm5434, %v5360
        %5458 = vst.msk [vmem:[%s3 + $0xb8] sm:$0xff] %vm5434, %v5361
        %5459 = vst.msk [vmem:[%s3 + $0xc0] sm:$0xff] %vm5434, %v5362
        %5460 = vst.msk [vmem:[%s3 + $0xc8] sm:$0xff] %vm5434, %v5363
        %5461 = vst.msk [vmem:[%s3 + $0xd0] sm:$0xff] %vm5434, %v5364
        %5462 = vst.msk [vmem:[%s3 + $0xd8] sm:$0xff] %vm5434, %v5365
        %5463 = vst.msk [vmem:[%s3 + $0xe0] sm:$0xff] %vm5434, %v5366
        %5464 = vst.msk [vmem:[%s3 + $0xe8] sm:$0xff] %vm5434, %v5367
        %5465 = vst.msk [vmem:[%s3 + $0xf0] sm:$0xff] %vm5434, %v5368
        %5466 = vst.msk [vmem:[%s3 + $0xf8] sm:$0xff] %vm5434, %v5369
        %5467 = vst.msk [vmem:[%s3 + $0x100] sm:$0xff] %vm5434, %v5370
        %5468 = vst.msk [vmem:[%s3 + $0x108] sm:$0xff] %vm5434, %v5371
        %5469 = vst.msk [vmem:[%s3 + $0x110] sm:$0xff] %vm5434, %v5372
        %5470 = vst.msk [vmem:[%s3 + $0x118] sm:$0xff] %vm5434, %v5373
        %5471 = vst.msk [vmem:[%s3 + $0x120] sm:$0xff] %vm5434, %v5374
        %5472 = vst.msk [vmem:[%s3 + $0x128] sm:$0xff] %vm5434, %v5375
        %5473 = vst.msk [vmem:[%s3 + $0x130] sm:$0xff] %vm5434, %v5376
        %5474 = vst.msk [vmem:[%s3 + $0x138] sm:$0xff] %vm5434, %v5377
        %5475 = vst.msk [vmem:[%s3 + $0x140] sm:$0xff] %vm5434, %v5378
        %5476 = vst.msk [vmem:[%s3 + $0x148] sm:$0xff] %vm5434, %v5379
        %5477 = vst.msk [vmem:[%s3 + $0x150] sm:$0xff] %vm5434, %v5380
        %5478 = vst.msk [vmem:[%s3 + $0x158] sm:$0xff] %vm5434, %v5381
        %5479 = vst.msk [vmem:[%s3 + $0x160] sm:$0xff] %vm5434, %v5382
        %5480 = vst.msk [vmem:[%s3 + $0x168] sm:$0xff] %vm5434, %v5383
        %5481 = vst.msk [vmem:[%s3 + $0x170] sm:$0xff] %vm5434, %v5384
        %5482 = vst.msk [vmem:[%s3 + $0x178] sm:$0xff] %vm5434, %v5385
        %5483 = vst.msk [vmem:[%s3 + $0x180] sm:$0xff] %vm5434, %v5386
        %5484 = vst.msk [vmem:[%s3 + $0x188] sm:$0xff] %vm5434, %v5387
        %5485 = vst.msk [vmem:[%s3 + $0x190] sm:$0xff] %vm5434, %v5388
        %5486 = vst.msk [vmem:[%s3 + $0x198] sm:$0xff] %vm5434, %v5389
        %5487 = vst.msk [vmem:[%s3 + $0x1a0] sm:$0xff] %vm5434, %v5390
        %5488 = vst.msk [vmem:[%s3 + $0x1a8] sm:$0xff] %vm5434, %v5391
        %5489 = vst.msk [vmem:[%s3 + $0x1b0] sm:$0xff] %vm5434, %v5392
        %5490 = vst.msk [vmem:[%s3 + $0x1b8] sm:$0xff] %vm5434, %v5393
        %5491 = vst.msk [vmem:[%s3 + $0x1c0] sm:$0xff] %vm5434, %v5394
        %5492 = vst.msk [vmem:[%s3 + $0x1c8] sm:$0xff] %vm5434, %v5395
        %5493 = vst.msk [vmem:[%s3 + $0x1d0] sm:$0xff] %vm5434, %v5396
        %5494 = vst.msk [vmem:[%s3 + $0x1d8] sm:$0xff] %vm5434, %v5397
        %5495 = vst.msk [vmem:[%s3 + $0x1e0] sm:$0xff] %vm5434, %v5398
        %5496 = vst.msk [vmem:[%s3 + $0x1e8] sm:$0xff] %vm5434, %v5399
        %5497 = vst.msk [vmem:[%s3 + $0x1f0] sm:$0xff] %vm5434, %v5400
        %5498 = vst.msk [vmem:[%s3 + $0x1f8] sm:$0xff] %vm5434, %v5401
        %5499 = vst.msk [vmem:[%s3 + $0x200] sm:$0xff] %vm5434, %v5402
        %5500 = vst.msk [vmem:[%s3 + $0x208] sm:$0xff] %vm5434, %v5403
        %5501 = vst.msk [vmem:[%s3 + $0x210] sm:$0xff] %vm5434, %v5404
        %5502 = vst.msk [vmem:[%s3 + $0x218] sm:$0xff] %vm5434, %v5405
        %5503 = vst.msk [vmem:[%s3 + $0x220] sm:$0xff] %vm5434, %v5406
        %5504 = vst.msk [vmem:[%s3 + $0x228] sm:$0xff] %vm5434, %v5407
        %5505 = vst.msk [vmem:[%s3 + $0x230] sm:$0xff] %vm5434, %v5408
        %5506 = vst.msk [vmem:[%s3 + $0x238] sm:$0xff] %vm5434, %v5409
        %5507 = vst.msk [vmem:[%s3 + $0x240] sm:$0xff] %vm5434, %v5410
        %5508 = vst.msk [vmem:[%s3 + $0x248] sm:$0xff] %vm5434, %v5411
        %5509 = vst.msk [vmem:[%s3 + $0x250] sm:$0xff] %vm5434, %v5412
        %5510 = vst.msk [vmem:[%s3 + $0x258] sm:$0xff] %vm5434, %v5413
        %5511 = vst.msk [vmem:[%s3 + $0x260] sm:$0xff] %vm5434, %v5414
        %5512 = vst.msk [vmem:[%s3 + $0x268] sm:$0xff] %vm5434, %v5415
        %5513 = vst.msk [vmem:[%s3 + $0x270] sm:$0xff] %vm5434, %v5416
        %5514 = vst.msk [vmem:[%s3 + $0x278] sm:$0xff] %vm5434, %v5417
        %5515 = vst.msk [vmem:[%s3 + $0x280] sm:$0xff] %vm5434, %v5418
        %5516 = vst.msk [vmem:[%s3 + $0x288] sm:$0xff] %vm5434, %v5419
        %5517 = vst.msk [vmem:[%s3 + $0x290] sm:$0xff] %vm5434, %v5420
        %5518 = vst.msk [vmem:[%s3 + $0x298] sm:$0xff] %vm5434, %v5421
        %5519 = vst.msk [vmem:[%s3 + $0x2a0] sm:$0xff] %vm5434, %v5422
        %5520 = vst.msk [vmem:[%s3 + $0x2a8] sm:$0xff] %vm5434, %v5423
        %5521 = vst.msk [vmem:[%s3 + $0x2b0] sm:$0xff] %vm5434, %v5424
        %5522 = vst.msk [vmem:[%s3 + $0x2b8] sm:$0xff] %vm5434, %v5425
        %5523 = vst.msk [vmem:[%s3 + $0x2c0] sm:$0xff] %vm5434, %v5426
        %5524 = vst.msk [vmem:[%s3 + $0x2c8] sm:$0xff] %vm5434, %v5427
        %5525 = vst.msk [vmem:[%s3 + $0x2d0] sm:$0xff] %vm5434, %v5428
        %5526 = vst.msk [vmem:[%s3 + $0x2d8] sm:$0xff] %vm5434, %v5429
        %5527 = vst.msk [vmem:[%s3 + $0x2e0] sm:$0xff] %vm5434, %v5430
        %5528 = vst.msk [vmem:[%s3 + $0x2e8] sm:$0xff] %vm5434, %v5431
        %5529 = vst.msk [vmem:[%s3 + $0x2f0] sm:$0xff] %vm5434, %v5432
        %5530 = vst.msk [vmem:[%s3 + $0x2f8] sm:$0xff] %vm5434, %v5433
        %v5531 = vld [vmem:[%s4] sm:$0xff]
        %v5532 = vld [vmem:[%s4 + $0x8] sm:$0xff]
        %v5533 = vld [vmem:[%s4 + $0x10] sm:$0xff]
        %v5534 = vld [vmem:[%s4 + $0x18] sm:$0xff]
        %v5535 = vld [vmem:[%s4 + $0x20] sm:$0xff]
        %v5536 = vld [vmem:[%s4 + $0x28] sm:$0xff]
        %v5537 = vld [vmem:[%s4 + $0x30] sm:$0xff]
        %v5538 = vld [vmem:[%s4 + $0x38] sm:$0xff]
        %v5539 = vld [vmem:[%s4 + $0x40] sm:$0xff]
        %v5540 = vld [vmem:[%s4 + $0x48] sm:$0xff]
        %v5541 = vld [vmem:[%s4 + $0x50] sm:$0xff]
        %v5542 = vld [vmem:[%s4 + $0x58] sm:$0xff]
        %v5543 = vld [vmem:[%s4 + $0x60] sm:$0xff]
        %v5544 = vld [vmem:[%s4 + $0x68] sm:$0xff]
        %v5545 = vld [vmem:[%s4 + $0x70] sm:$0xff]
        %v5546 = vld [vmem:[%s4 + $0x78] sm:$0xff]
        %v5547 = vld [vmem:[%s4 + $0x80] sm:$0xff]
        %v5548 = vld [vmem:[%s4 + $0x88] sm:$0xff]
        %v5549 = vld [vmem:[%s4 + $0x90] sm:$0xff]
        %v5550 = vld [vmem:[%s4 + $0x98] sm:$0xff]
        %v5551 = vld [vmem:[%s4 + $0xa0] sm:$0xff]
        %v5552 = vld [vmem:[%s4 + $0xa8] sm:$0xff]
        %v5553 = vld [vmem:[%s4 + $0xb0] sm:$0xff]
        %v5554 = vld [vmem:[%s4 + $0xb8] sm:$0xff]
        %v5555 = vld [vmem:[%s4 + $0xc0] sm:$0xff]
        %v5556 = vld [vmem:[%s4 + $0xc8] sm:$0xff]
        %v5557 = vld [vmem:[%s4 + $0xd0] sm:$0xff]
        %v5558 = vld [vmem:[%s4 + $0xd8] sm:$0xff]
        %v5559 = vld [vmem:[%s4 + $0xe0] sm:$0xff]
        %v5560 = vld [vmem:[%s4 + $0xe8] sm:$0xff]
        %v5561 = vld [vmem:[%s4 + $0xf0] sm:$0xff]
        %v5562 = vld [vmem:[%s4 + $0xf8] sm:$0xff]
        %v5563 = vld [vmem:[%s4 + $0x100] sm:$0xff]
        %v5564 = vld [vmem:[%s4 + $0x108] sm:$0xff]
        %v5565 = vld [vmem:[%s4 + $0x110] sm:$0xff]
        %v5566 = vld [vmem:[%s4 + $0x118] sm:$0xff]
        %v5567 = vld [vmem:[%s4 + $0x120] sm:$0xff]
        %v5568 = vld [vmem:[%s4 + $0x128] sm:$0xff]
        %v5569 = vld [vmem:[%s4 + $0x130] sm:$0xff]
        %v5570 = vld [vmem:[%s4 + $0x138] sm:$0xff]
        %v5571 = vld [vmem:[%s4 + $0x140] sm:$0xff]
        %v5572 = vld [vmem:[%s4 + $0x148] sm:$0xff]
        %v5573 = vld [vmem:[%s4 + $0x150] sm:$0xff]
        %v5574 = vld [vmem:[%s4 + $0x158] sm:$0xff]
        %v5575 = vld [vmem:[%s4 + $0x160] sm:$0xff]
        %v5576 = vld [vmem:[%s4 + $0x168] sm:$0xff]
        %v5577 = vld [vmem:[%s4 + $0x170] sm:$0xff]
        %v5578 = vld [vmem:[%s4 + $0x178] sm:$0xff]
        %v5579 = vld [vmem:[%s4 + $0x180] sm:$0xff]
        %v5580 = vld [vmem:[%s4 + $0x188] sm:$0xff]
        %v5581 = vld [vmem:[%s4 + $0x190] sm:$0xff]
        %v5582 = vld [vmem:[%s4 + $0x198] sm:$0xff]
        %v5583 = vld [vmem:[%s4 + $0x1a0] sm:$0xff]
        %v5584 = vld [vmem:[%s4 + $0x1a8] sm:$0xff]
        %v5585 = vld [vmem:[%s4 + $0x1b0] sm:$0xff]
        %v5586 = vld [vmem:[%s4 + $0x1b8] sm:$0xff]
        %v5587 = vld [vmem:[%s4 + $0x1c0] sm:$0xff]
        %v5588 = vld [vmem:[%s4 + $0x1c8] sm:$0xff]
        %v5589 = vld [vmem:[%s4 + $0x1d0] sm:$0xff]
        %v5590 = vld [vmem:[%s4 + $0x1d8] sm:$0xff]
        %v5591 = vld [vmem:[%s4 + $0x1e0] sm:$0xff]
        %v5592 = vld [vmem:[%s4 + $0x1e8] sm:$0xff]
        %v5593 = vld [vmem:[%s4 + $0x1f0] sm:$0xff]
        %v5594 = vld [vmem:[%s4 + $0x1f8] sm:$0xff]
        %v5595 = vld [vmem:[%s4 + $0x200] sm:$0xff]
        %v5596 = vld [vmem:[%s4 + $0x208] sm:$0xff]
        %v5597 = vld [vmem:[%s4 + $0x210] sm:$0xff]
        %v5598 = vld [vmem:[%s4 + $0x218] sm:$0xff]
        %v5599 = vld [vmem:[%s4 + $0x220] sm:$0xff]
        %v5600 = vld [vmem:[%s4 + $0x228] sm:$0xff]
        %v5601 = vld [vmem:[%s4 + $0x230] sm:$0xff]
        %v5602 = vld [vmem:[%s4 + $0x238] sm:$0xff]
        %v5603 = vld [vmem:[%s4 + $0x240] sm:$0xff]
        %v5604 = vld [vmem:[%s4 + $0x248] sm:$0xff]
        %v5605 = vld [vmem:[%s4 + $0x250] sm:$0xff]
        %v5606 = vld [vmem:[%s4 + $0x258] sm:$0xff]
        %v5607 = vld [vmem:[%s4 + $0x260] sm:$0xff]
        %v5608 = vld [vmem:[%s4 + $0x268] sm:$0xff]
        %v5609 = vld [vmem:[%s4 + $0x270] sm:$0xff]
        %v5610 = vld [vmem:[%s4 + $0x278] sm:$0xff]
        %v5611 = vld [vmem:[%s4 + $0x280] sm:$0xff]
        %v5612 = vld [vmem:[%s4 + $0x288] sm:$0xff]
        %v5613 = vld [vmem:[%s4 + $0x290] sm:$0xff]
        %v5614 = vld [vmem:[%s4 + $0x298] sm:$0xff]
        %v5615 = vld [vmem:[%s4 + $0x2a0] sm:$0xff]
        %v5616 = vld [vmem:[%s4 + $0x2a8] sm:$0xff]
        %v5617 = vld [vmem:[%s4 + $0x2b0] sm:$0xff]
        %v5618 = vld [vmem:[%s4 + $0x2b8] sm:$0xff]
        %v5619 = vld [vmem:[%s4 + $0x2c0] sm:$0xff]
        %v5620 = vld [vmem:[%s4 + $0x2c8] sm:$0xff]
        %v5621 = vld [vmem:[%s4 + $0x2d0] sm:$0xff]
        %v5622 = vld [vmem:[%s4 + $0x2d8] sm:$0xff]
        %v5623 = vld [vmem:[%s4 + $0x2e0] sm:$0xff]
        %v5624 = vld [vmem:[%s4 + $0x2e8] sm:$0xff]
        %v5625 = vld [vmem:[%s4 + $0x2f0] sm:$0xff]
        %v5626 = vld [vmem:[%s4 + $0x2f8] sm:$0xff]
        %v5627 = vmul.f32 %v4085, %v4085
        %v5628 = vmul.f32 %v4087, %v4087
        %v5629 = vmul.f32 %v4089, %v4089
        %v5630 = vmul.f32 %v4091, %v4091
        %v5631 = vmul.f32 %v4095, %v4095
        %v5632 = vmul.f32 %v4097, %v4097
        %v5633 = vmul.f32 %v4099, %v4099
        %v5634 = vmul.f32 %v4101, %v4101
        %v5635 = vmul.f32 %v4105, %v4105
        %v5636 = vmul.f32 %v4107, %v4107
        %v5637 = vmul.f32 %v4109, %v4109
        %v5638 = vmul.f32 %v4111, %v4111
        %v5639 = vmul.f32 %v4115, %v4115
        %v5640 = vmul.f32 %v4117, %v4117
        %v5641 = vmul.f32 %v4119, %v4119
        %v5642 = vmul.f32 %v4121, %v4121
        %v5643 = vmul.f32 %v4125, %v4125
        %v5644 = vmul.f32 %v4127, %v4127
        %v5645 = vmul.f32 %v4129, %v4129
        %v5646 = vmul.f32 %v4131, %v4131
        %v5647 = vmul.f32 %v4135, %v4135
        %v5648 = vmul.f32 %v4137, %v4137
        %v5649 = vmul.f32 %v4139, %v4139
        %v5650 = vmul.f32 %v4141, %v4141
        %v5651 = vmul.f32 %v4145, %v4145
        %v5652 = vmul.f32 %v4147, %v4147
        %v5653 = vmul.f32 %v4149, %v4149
        %v5654 = vmul.f32 %v4151, %v4151
        %v5655 = vmul.f32 %v4155, %v4155
        %v5656 = vmul.f32 %v4157, %v4157
        %v5657 = vmul.f32 %v4159, %v4159
        %v5658 = vmul.f32 %v4161, %v4161
        %v5659 = vmul.f32 %v4165, %v4165
        %v5660 = vmul.f32 %v4167, %v4167
        %v5661 = vmul.f32 %v4169, %v4169
        %v5662 = vmul.f32 %v4171, %v4171
        %v5663 = vmul.f32 %v4175, %v4175
        %v5664 = vmul.f32 %v4177, %v4177
        %v5665 = vmul.f32 %v4179, %v4179
        %v5666 = vmul.f32 %v4181, %v4181
        %v5667 = vmul.f32 %v4185, %v4185
        %v5668 = vmul.f32 %v4187, %v4187
        %v5669 = vmul.f32 %v4189, %v4189
        %v5670 = vmul.f32 %v4191, %v4191
        %v5671 = vmul.f32 %v4195, %v4195
        %v5672 = vmul.f32 %v4197, %v4197
        %v5673 = vmul.f32 %v4199, %v4199
        %v5674 = vmul.f32 %v4201, %v4201
        %v5675 = vmul.f32 %v4205, %v4205
        %v5676 = vmul.f32 %v4207, %v4207
        %v5677 = vmul.f32 %v4209, %v4209
        %v5678 = vmul.f32 %v4211, %v4211
        %v5679 = vmul.f32 %v4215, %v4215
        %v5680 = vmul.f32 %v4217, %v4217
        %v5681 = vmul.f32 %v4219, %v4219
        %v5682 = vmul.f32 %v4221, %v4221
        %v5683 = vmul.f32 %v4225, %v4225
        %v5684 = vmul.f32 %v4227, %v4227
        %v5685 = vmul.f32 %v4229, %v4229
        %v5686 = vmul.f32 %v4231, %v4231
        %v5687 = vmul.f32 %v4235, %v4235
        %v5688 = vmul.f32 %v4237, %v4237
        %v5689 = vmul.f32 %v4239, %v4239
        %v5690 = vmul.f32 %v4241, %v4241
        %v5691 = vmul.f32 %v4245, %v4245
        %v5692 = vmul.f32 %v4247, %v4247
        %v5693 = vmul.f32 %v4249, %v4249
        %v5694 = vmul.f32 %v4251, %v4251
        %v5695 = vmul.f32 %v4255, %v4255
        %v5696 = vmul.f32 %v4257, %v4257
        %v5697 = vmul.f32 %v4259, %v4259
        %v5698 = vmul.f32 %v4261, %v4261
        %v5699 = vmul.f32 %v4265, %v4265
        %v5700 = vmul.f32 %v4267, %v4267
        %v5701 = vmul.f32 %v4269, %v4269
        %v5702 = vmul.f32 %v4271, %v4271
        %v5703 = vmul.f32 %v4275, %v4275
        %v5704 = vmul.f32 %v4277, %v4277
        %v5705 = vmul.f32 %v4279, %v4279
        %v5706 = vmul.f32 %v4281, %v4281
        %v5707 = vmul.f32 %v4285, %v4285
        %v5708 = vmul.f32 %v4287, %v4287
        %v5709 = vmul.f32 %v4289, %v4289
        %v5710 = vmul.f32 %v4291, %v4291
        %v5711 = vmul.f32 %v4295, %v4295
        %v5712 = vmul.f32 %v4297, %v4297
        %v5713 = vmul.f32 %v4299, %v4299
        %v5714 = vmul.f32 %v4301, %v4301
        %v5715 = vmul.f32 %v4305, %v4305
        %v5716 = vmul.f32 %v4307, %v4307
        %v5717 = vmul.f32 %v4309, %v4309
        %v5718 = vmul.f32 %v4311, %v4311
        %v5719 = vmul.f32 %v4315, %v4315
        %v5720 = vmul.f32 %v4317, %v4317
        %v5721 = vmul.f32 %v4319, %v4319
        %v5722 = vmul.f32 %v4321, %v4321
        %v5723 = vmul.f32 %v4325, %v4325
        %v5724 = vmul.f32 %v4327, %v4327
        %v5725 = vmul.f32 %v4329, %v4329
        %v5726 = vmul.f32 %v4331, %v4331
        %v5727 = vmul.f32 %v4335, %v4335
        %v5728 = vmul.f32 %v4337, %v4337
        %v5729 = vmul.f32 %v4339, %v4339
        %v5730 = vmul.f32 %v4341, %v4341
        %v5731 = vmul.f32 %v4345, %v4345
        %v5732 = vmul.f32 %v4347, %v4347
        %v5733 = vmul.f32 %v4349, %v4349
        %v5734 = vmul.f32 %v4351, %v4351
        %v5735 = vmul.f32 %v4355, %v4355
        %v5736 = vmul.f32 %v4357, %v4357
        %v5737 = vmul.f32 %v4359, %v4359
        %v5738 = vmul.f32 %v4361, %v4361
        %v5739 = vmul.f32 %v4365, %v4365
        %v5740 = vmul.f32 %v4367, %v4367
        %v5741 = vmul.f32 %v4369, %v4369
        %v5742 = vmul.f32 %v4371, %v4371
        %v5743 = vmul.f32 %v4375, %v4375
        %v5744 = vmul.f32 %v4377, %v4377
        %v5745 = vmul.f32 %v4379, %v4379
        %v5746 = vmul.f32 %v4381, %v4381
        %v5747 = vmul.f32 %v4385, %v4385
        %v5748 = vmul.f32 %v4387, %v4387
        %v5749 = vmul.f32 %v4389, %v4389
        %v5750 = vmul.f32 %v4391, %v4391
        %v5751 = vmul.f32 %v4395, %v4395
        %v5752 = vmul.f32 %v4397, %v4397
        %v5753 = vmul.f32 %v4399, %v4399
        %v5754 = vmul.f32 %v4401, %v4401
        %v5755 = vmul.f32 %v4405, %v4405
        %v5756 = vmul.f32 %v4407, %v4407
        %v5757 = vmul.f32 %v4409, %v4409
        %v5758 = vmul.f32 %v4411, %v4411
        %v5759 = vmul.f32 %v4415, %v4415
        %v5760 = vmul.f32 %v4417, %v4417
        %v5761 = vmul.f32 %v4419, %v4419
        %v5762 = vmul.f32 %v4421, %v4421
        %v5763 = vmul.f32 %v4425, %v4425
        %v5764 = vmul.f32 %v4427, %v4427
        %v5765 = vmul.f32 %v4429, %v4429
        %v5766 = vmul.f32 %v4431, %v4431
        %v5767 = vmul.f32 %v4435, %v4435
        %v5768 = vmul.f32 %v4437, %v4437
        %v5769 = vmul.f32 %v4439, %v4439
        %v5770 = vmul.f32 %v4441, %v4441
        %v5771 = vmul.f32 %v4445, %v4445
        %v5772 = vmul.f32 %v4447, %v4447
        %v5773 = vmul.f32 %v4449, %v4449
        %v5774 = vmul.f32 %v4451, %v4451
        %v5775 = vmul.f32 %v4455, %v4455
        %v5776 = vmul.f32 %v4457, %v4457
        %v5777 = vmul.f32 %v4459, %v4459
        %v5778 = vmul.f32 %v4461, %v4461
        %v5779 = vmul.f32 %v4465, %v4465
        %v5780 = vmul.f32 %v4467, %v4467
        %v5781 = vmul.f32 %v4469, %v4469
        %v5782 = vmul.f32 %v4471, %v4471
        %v5783 = vmul.f32 %v4475, %v4475
        %v5784 = vmul.f32 %v4477, %v4477
        %v5785 = vmul.f32 %v4479, %v4479
        %v5786 = vmul.f32 %v4481, %v4481
        %v5787 = vmul.f32 %v4485, %v4485
        %v5788 = vmul.f32 %v4487, %v4487
        %v5789 = vmul.f32 %v4489, %v4489
        %v5790 = vmul.f32 %v4491, %v4491
        %v5791 = vmul.f32 %v4495, %v4495
        %v5792 = vmul.f32 %v4497, %v4497
        %v5793 = vmul.f32 %v4499, %v4499
        %v5794 = vmul.f32 %v4501, %v4501
        %v5795 = vmul.f32 %v4505, %v4505
        %v5796 = vmul.f32 %v4507, %v4507
        %v5797 = vmul.f32 %v4509, %v4509
        %v5798 = vmul.f32 %v4511, %v4511
        %v5799 = vmul.f32 %v4515, %v4515
        %v5800 = vmul.f32 %v4517, %v4517
        %v5801 = vmul.f32 %v4519, %v4519
        %v5802 = vmul.f32 %v4521, %v4521
        %v5803 = vmul.f32 %v4525, %v4525
        %v5804 = vmul.f32 %v4527, %v4527
        %v5805 = vmul.f32 %v4529, %v4529
        %v5806 = vmul.f32 %v4531, %v4531
        %v5807 = vmul.f32 %v4535, %v4535
        %v5808 = vmul.f32 %v4537, %v4537
        %v5809 = vmul.f32 %v4539, %v4539
        %v5810 = vmul.f32 %v4541, %v4541
        %v5811 = vmul.f32 %v4545, %v4545
        %v5812 = vmul.f32 %v4547, %v4547
        %v5813 = vmul.f32 %v4549, %v4549
        %v5814 = vmul.f32 %v4551, %v4551
        %v5815 = vmul.f32 %v4555, %v4555
        %v5816 = vmul.f32 %v4557, %v4557
        %v5817 = vmul.f32 %v4559, %v4559
        %v5818 = vmul.f32 %v4561, %v4561
        %v5819 = vadd.f32 %v5627, %v5628
        %5820 = vadd.xlane.f32.xlu0 %v5819
        %v5821 = vpop.xlane.xlu0 %5820
        %v5822 = vadd.f32 %v5629, %v5630
        %5823 = vadd.xlane.f32.xlu0 %v5822
        %v5824 = vpop.xlane.xlu0 %5823
        %v5825 = vadd.f32 %v5631, %v5632
        %5826 = vadd.xlane.f32.xlu0 %v5825
        %v5827 = vpop.xlane.xlu0 %5826
        %v5828 = vadd.f32 %v5633, %v5634
        %5829 = vadd.xlane.f32.xlu0 %v5828
        %v5830 = vpop.xlane.xlu0 %5829
        %v5831 = vadd.f32 %v5635, %v5636
        %5832 = vadd.xlane.f32.xlu0 %v5831
        %v5833 = vpop.xlane.xlu0 %5832
        %v5834 = vadd.f32 %v5637, %v5638
        %5835 = vadd.xlane.f32.xlu0 %v5834
        %v5836 = vpop.xlane.xlu0 %5835
        %v5837 = vadd.f32 %v5639, %v5640
        %5838 = vadd.xlane.f32.xlu0 %v5837
        %v5839 = vpop.xlane.xlu0 %5838
        %v5840 = vadd.f32 %v5641, %v5642
        %5841 = vadd.xlane.f32.xlu0 %v5840
        %v5842 = vpop.xlane.xlu0 %5841
        %v5843 = vadd.f32 %v5643, %v5644
        %5844 = vadd.xlane.f32.xlu0 %v5843
        %v5845 = vpop.xlane.xlu0 %5844
        %v5846 = vadd.f32 %v5645, %v5646
        %5847 = vadd.xlane.f32.xlu0 %v5846
        %v5848 = vpop.xlane.xlu0 %5847
        %v5849 = vadd.f32 %v5647, %v5648
        %5850 = vadd.xlane.f32.xlu0 %v5849
        %v5851 = vpop.xlane.xlu0 %5850
        %v5852 = vadd.f32 %v5649, %v5650
        %5853 = vadd.xlane.f32.xlu0 %v5852
        %v5854 = vpop.xlane.xlu0 %5853
        %v5855 = vadd.f32 %v5651, %v5652
        %5856 = vadd.xlane.f32.xlu0 %v5855
        %v5857 = vpop.xlane.xlu0 %5856
        %v5858 = vadd.f32 %v5653, %v5654
        %5859 = vadd.xlane.f32.xlu0 %v5858
        %v5860 = vpop.xlane.xlu0 %5859
        %v5861 = vadd.f32 %v5655, %v5656
        %5862 = vadd.xlane.f32.xlu0 %v5861
        %v5863 = vpop.xlane.xlu0 %5862
        %v5864 = vadd.f32 %v5657, %v5658
        %5865 = vadd.xlane.f32.xlu0 %v5864
        %v5866 = vpop.xlane.xlu0 %5865
        %v5867 = vadd.f32 %v5659, %v5660
        %5868 = vadd.xlane.f32.xlu0 %v5867
        %v5869 = vpop.xlane.xlu0 %5868
        %v5870 = vadd.f32 %v5661, %v5662
        %5871 = vadd.xlane.f32.xlu0 %v5870
        %v5872 = vpop.xlane.xlu0 %5871
        %v5873 = vadd.f32 %v5663, %v5664
        %5874 = vadd.xlane.f32.xlu0 %v5873
        %v5875 = vpop.xlane.xlu0 %5874
        %v5876 = vadd.f32 %v5665, %v5666
        %5877 = vadd.xlane.f32.xlu0 %v5876
        %v5878 = vpop.xlane.xlu0 %5877
        %v5879 = vadd.f32 %v5667, %v5668
        %5880 = vadd.xlane.f32.xlu0 %v5879
        %v5881 = vpop.xlane.xlu0 %5880
        %v5882 = vadd.f32 %v5669, %v5670
        %5883 = vadd.xlane.f32.xlu0 %v5882
        %v5884 = vpop.xlane.xlu0 %5883
        %v5885 = vadd.f32 %v5671, %v5672
        %5886 = vadd.xlane.f32.xlu0 %v5885
        %v5887 = vpop.xlane.xlu0 %5886
        %v5888 = vadd.f32 %v5673, %v5674
        %5889 = vadd.xlane.f32.xlu0 %v5888
        %v5890 = vpop.xlane.xlu0 %5889
        %v5891 = vadd.f32 %v5675, %v5676
        %5892 = vadd.xlane.f32.xlu0 %v5891
        %v5893 = vpop.xlane.xlu0 %5892
        %v5894 = vadd.f32 %v5677, %v5678
        %5895 = vadd.xlane.f32.xlu0 %v5894
        %v5896 = vpop.xlane.xlu0 %5895
        %v5897 = vadd.f32 %v5679, %v5680
        %5898 = vadd.xlane.f32.xlu0 %v5897
        %v5899 = vpop.xlane.xlu0 %5898
        %v5900 = vadd.f32 %v5681, %v5682
        %5901 = vadd.xlane.f32.xlu0 %v5900
        %v5902 = vpop.xlane.xlu0 %5901
        %v5903 = vadd.f32 %v5683, %v5684
        %5904 = vadd.xlane.f32.xlu0 %v5903
        %v5905 = vpop.xlane.xlu0 %5904
        %v5906 = vadd.f32 %v5685, %v5686
        %5907 = vadd.xlane.f32.xlu0 %v5906
        %v5908 = vpop.xlane.xlu0 %5907
        %v5909 = vadd.f32 %v5687, %v5688
        %5910 = vadd.xlane.f32.xlu0 %v5909
        %v5911 = vpop.xlane.xlu0 %5910
        %v5912 = vadd.f32 %v5689, %v5690
        %5913 = vadd.xlane.f32.xlu0 %v5912
        %v5914 = vpop.xlane.xlu0 %5913
        %v5915 = vadd.f32 %v5691, %v5692
        %5916 = vadd.xlane.f32.xlu0 %v5915
        %v5917 = vpop.xlane.xlu0 %5916
        %v5918 = vadd.f32 %v5693, %v5694
        %5919 = vadd.xlane.f32.xlu0 %v5918
        %v5920 = vpop.xlane.xlu0 %5919
        %v5921 = vadd.f32 %v5695, %v5696
        %5922 = vadd.xlane.f32.xlu0 %v5921
        %v5923 = vpop.xlane.xlu0 %5922
        %v5924 = vadd.f32 %v5697, %v5698
        %5925 = vadd.xlane.f32.xlu0 %v5924
        %v5926 = vpop.xlane.xlu0 %5925
        %v5927 = vadd.f32 %v5699, %v5700
        %5928 = vadd.xlane.f32.xlu0 %v5927
        %v5929 = vpop.xlane.xlu0 %5928
        %v5930 = vadd.f32 %v5701, %v5702
        %5931 = vadd.xlane.f32.xlu0 %v5930
        %v5932 = vpop.xlane.xlu0 %5931
        %v5933 = vadd.f32 %v5703, %v5704
        %5934 = vadd.xlane.f32.xlu0 %v5933
        %v5935 = vpop.xlane.xlu0 %5934
        %v5936 = vadd.f32 %v5705, %v5706
        %5937 = vadd.xlane.f32.xlu0 %v5936
        %v5938 = vpop.xlane.xlu0 %5937
        %v5939 = vadd.f32 %v5707, %v5708
        %5940 = vadd.xlane.f32.xlu0 %v5939
        %v5941 = vpop.xlane.xlu0 %5940
        %v5942 = vadd.f32 %v5709, %v5710
        %5943 = vadd.xlane.f32.xlu0 %v5942
        %v5944 = vpop.xlane.xlu0 %5943
        %v5945 = vadd.f32 %v5711, %v5712
        %5946 = vadd.xlane.f32.xlu0 %v5945
        %v5947 = vpop.xlane.xlu0 %5946
        %v5948 = vadd.f32 %v5713, %v5714
        %5949 = vadd.xlane.f32.xlu0 %v5948
        %v5950 = vpop.xlane.xlu0 %5949
        %v5951 = vadd.f32 %v5715, %v5716
        %5952 = vadd.xlane.f32.xlu0 %v5951
        %v5953 = vpop.xlane.xlu0 %5952
        %v5954 = vadd.f32 %v5717, %v5718
        %5955 = vadd.xlane.f32.xlu0 %v5954
        %v5956 = vpop.xlane.xlu0 %5955
        %v5957 = vadd.f32 %v5719, %v5720
        %5958 = vadd.xlane.f32.xlu0 %v5957
        %v5959 = vpop.xlane.xlu0 %5958
        %v5960 = vadd.f32 %v5721, %v5722
        %5961 = vadd.xlane.f32.xlu0 %v5960
        %v5962 = vpop.xlane.xlu0 %5961
        %v5963 = vadd.f32 %v5723, %v5724
        %5964 = vadd.xlane.f32.xlu0 %v5963
        %v5965 = vpop.xlane.xlu0 %5964
        %v5966 = vadd.f32 %v5725, %v5726
        %5967 = vadd.xlane.f32.xlu0 %v5966
        %v5968 = vpop.xlane.xlu0 %5967
        %v5969 = vadd.f32 %v5727, %v5728
        %5970 = vadd.xlane.f32.xlu0 %v5969
        %v5971 = vpop.xlane.xlu0 %5970
        %v5972 = vadd.f32 %v5729, %v5730
        %5973 = vadd.xlane.f32.xlu0 %v5972
        %v5974 = vpop.xlane.xlu0 %5973
        %v5975 = vadd.f32 %v5731, %v5732
        %5976 = vadd.xlane.f32.xlu0 %v5975
        %v5977 = vpop.xlane.xlu0 %5976
        %v5978 = vadd.f32 %v5733, %v5734
        %5979 = vadd.xlane.f32.xlu0 %v5978
        %v5980 = vpop.xlane.xlu0 %5979
        %v5981 = vadd.f32 %v5735, %v5736
        %5982 = vadd.xlane.f32.xlu0 %v5981
        %v5983 = vpop.xlane.xlu0 %5982
        %v5984 = vadd.f32 %v5737, %v5738
        %5985 = vadd.xlane.f32.xlu0 %v5984
        %v5986 = vpop.xlane.xlu0 %5985
        %v5987 = vadd.f32 %v5739, %v5740
        %5988 = vadd.xlane.f32.xlu0 %v5987
        %v5989 = vpop.xlane.xlu0 %5988
        %v5990 = vadd.f32 %v5741, %v5742
        %5991 = vadd.xlane.f32.xlu0 %v5990
        %v5992 = vpop.xlane.xlu0 %5991
        %v5993 = vadd.f32 %v5743, %v5744
        %5994 = vadd.xlane.f32.xlu0 %v5993
        %v5995 = vpop.xlane.xlu0 %5994
        %v5996 = vadd.f32 %v5745, %v5746
        %5997 = vadd.xlane.f32.xlu0 %v5996
        %v5998 = vpop.xlane.xlu0 %5997
        %v5999 = vadd.f32 %v5747, %v5748
        %6000 = vadd.xlane.f32.xlu0 %v5999
        %v6001 = vpop.xlane.xlu0 %6000
        %v6002 = vadd.f32 %v5749, %v5750
        %6003 = vadd.xlane.f32.xlu0 %v6002
        %v6004 = vpop.xlane.xlu0 %6003
        %v6005 = vadd.f32 %v5751, %v5752
        %6006 = vadd.xlane.f32.xlu0 %v6005
        %v6007 = vpop.xlane.xlu0 %6006
        %v6008 = vadd.f32 %v5753, %v5754
        %6009 = vadd.xlane.f32.xlu0 %v6008
        %v6010 = vpop.xlane.xlu0 %6009
        %v6011 = vadd.f32 %v5755, %v5756
        %6012 = vadd.xlane.f32.xlu0 %v6011
        %v6013 = vpop.xlane.xlu0 %6012
        %v6014 = vadd.f32 %v5757, %v5758
        %6015 = vadd.xlane.f32.xlu0 %v6014
        %v6016 = vpop.xlane.xlu0 %6015
        %v6017 = vadd.f32 %v5759, %v5760
        %6018 = vadd.xlane.f32.xlu0 %v6017
        %v6019 = vpop.xlane.xlu0 %6018
        %v6020 = vadd.f32 %v5761, %v5762
        %6021 = vadd.xlane.f32.xlu0 %v6020
        %v6022 = vpop.xlane.xlu0 %6021
        %v6023 = vadd.f32 %v5763, %v5764
        %6024 = vadd.xlane.f32.xlu0 %v6023
        %v6025 = vpop.xlane.xlu0 %6024
        %v6026 = vadd.f32 %v5765, %v5766
        %6027 = vadd.xlane.f32.xlu0 %v6026
        %v6028 = vpop.xlane.xlu0 %6027
        %v6029 = vadd.f32 %v5767, %v5768
        %6030 = vadd.xlane.f32.xlu0 %v6029
        %v6031 = vpop.xlane.xlu0 %6030
        %v6032 = vadd.f32 %v5769, %v5770
        %6033 = vadd.xlane.f32.xlu0 %v6032
        %v6034 = vpop.xlane.xlu0 %6033
        %v6035 = vadd.f32 %v5771, %v5772
        %6036 = vadd.xlane.f32.xlu0 %v6035
        %v6037 = vpop.xlane.xlu0 %6036
        %v6038 = vadd.f32 %v5773, %v5774
        %6039 = vadd.xlane.f32.xlu0 %v6038
        %v6040 = vpop.xlane.xlu0 %6039
        %v6041 = vadd.f32 %v5775, %v5776
        %6042 = vadd.xlane.f32.xlu0 %v6041
        %v6043 = vpop.xlane.xlu0 %6042
        %v6044 = vadd.f32 %v5777, %v5778
        %6045 = vadd.xlane.f32.xlu0 %v6044
        %v6046 = vpop.xlane.xlu0 %6045
        %v6047 = vadd.f32 %v5779, %v5780
        %6048 = vadd.xlane.f32.xlu0 %v6047
        %v6049 = vpop.xlane.xlu0 %6048
        %v6050 = vadd.f32 %v5781, %v5782
        %6051 = vadd.xlane.f32.xlu0 %v6050
        %v6052 = vpop.xlane.xlu0 %6051
        %v6053 = vadd.f32 %v5783, %v5784
        %6054 = vadd.xlane.f32.xlu0 %v6053
        %v6055 = vpop.xlane.xlu0 %6054
        %v6056 = vadd.f32 %v5785, %v5786
        %6057 = vadd.xlane.f32.xlu0 %v6056
        %v6058 = vpop.xlane.xlu0 %6057
        %v6059 = vadd.f32 %v5787, %v5788
        %6060 = vadd.xlane.f32.xlu0 %v6059
        %v6061 = vpop.xlane.xlu0 %6060
        %v6062 = vadd.f32 %v5789, %v5790
        %6063 = vadd.xlane.f32.xlu0 %v6062
        %v6064 = vpop.xlane.xlu0 %6063
        %v6065 = vadd.f32 %v5791, %v5792
        %6066 = vadd.xlane.f32.xlu0 %v6065
        %v6067 = vpop.xlane.xlu0 %6066
        %v6068 = vadd.f32 %v5793, %v5794
        %6069 = vadd.xlane.f32.xlu0 %v6068
        %v6070 = vpop.xlane.xlu0 %6069
        %v6071 = vadd.f32 %v5795, %v5796
        %6072 = vadd.xlane.f32.xlu0 %v6071
        %v6073 = vpop.xlane.xlu0 %6072
        %v6074 = vadd.f32 %v5797, %v5798
        %6075 = vadd.xlane.f32.xlu0 %v6074
        %v6076 = vpop.xlane.xlu0 %6075
        %v6077 = vadd.f32 %v5799, %v5800
        %6078 = vadd.xlane.f32.xlu0 %v6077
        %v6079 = vpop.xlane.xlu0 %6078
        %v6080 = vadd.f32 %v5801, %v5802
        %6081 = vadd.xlane.f32.xlu0 %v6080
        %v6082 = vpop.xlane.xlu0 %6081
        %v6083 = vadd.f32 %v5803, %v5804
        %6084 = vadd.xlane.f32.xlu0 %v6083
        %v6085 = vpop.xlane.xlu0 %6084
        %v6086 = vadd.f32 %v5805, %v5806
        %6087 = vadd.xlane.f32.xlu0 %v6086
        %v6088 = vpop.xlane.xlu0 %6087
        %v6089 = vadd.f32 %v5807, %v5808
        %6090 = vadd.xlane.f32.xlu0 %v6089
        %v6091 = vpop.xlane.xlu0 %6090
        %v6092 = vadd.f32 %v5809, %v5810
        %6093 = vadd.xlane.f32.xlu0 %v6092
        %v6094 = vpop.xlane.xlu0 %6093
        %v6095 = vadd.f32 %v5811, %v5812
        %6096 = vadd.xlane.f32.xlu0 %v6095
        %v6097 = vpop.xlane.xlu0 %6096
        %v6098 = vadd.f32 %v5813, %v5814
        %6099 = vadd.xlane.f32.xlu0 %v6098
        %v6100 = vpop.xlane.xlu0 %6099
        %v6101 = vadd.f32 %v5815, %v5816
        %6102 = vadd.xlane.f32.xlu0 %v6101
        %v6103 = vpop.xlane.xlu0 %6102
        %v6104 = vadd.f32 %v5817, %v5818
        %6105 = vadd.xlane.f32.xlu0 %v6104
        %v6106 = vpop.xlane.xlu0 %6105
        %v6107 = vadd.f32 %v5531, %v5821
        %v6108 = vadd.f32 %v5532, %v5824
        %v6109 = vadd.f32 %v5533, %v5827
        %v6110 = vadd.f32 %v5534, %v5830
        %v6111 = vadd.f32 %v5535, %v5833
        %v6112 = vadd.f32 %v5536, %v5836
        %v6113 = vadd.f32 %v5537, %v5839
        %v6114 = vadd.f32 %v5538, %v5842
        %v6115 = vadd.f32 %v5539, %v5845
        %v6116 = vadd.f32 %v5540, %v5848
        %v6117 = vadd.f32 %v5541, %v5851
        %v6118 = vadd.f32 %v5542, %v5854
        %v6119 = vadd.f32 %v5543, %v5857
        %v6120 = vadd.f32 %v5544, %v5860
        %v6121 = vadd.f32 %v5545, %v5863
        %v6122 = vadd.f32 %v5546, %v5866
        %v6123 = vadd.f32 %v5547, %v5869
        %v6124 = vadd.f32 %v5548, %v5872
        %v6125 = vadd.f32 %v5549, %v5875
        %v6126 = vadd.f32 %v5550, %v5878
        %v6127 = vadd.f32 %v5551, %v5881
        %v6128 = vadd.f32 %v5552, %v5884
        %v6129 = vadd.f32 %v5553, %v5887
        %v6130 = vadd.f32 %v5554, %v5890
        %v6131 = vadd.f32 %v5555, %v5893
        %v6132 = vadd.f32 %v5556, %v5896
        %v6133 = vadd.f32 %v5557, %v5899
        %v6134 = vadd.f32 %v5558, %v5902
        %v6135 = vadd.f32 %v5559, %v5905
        %v6136 = vadd.f32 %v5560, %v5908
        %v6137 = vadd.f32 %v5561, %v5911
        %v6138 = vadd.f32 %v5562, %v5914
        %v6139 = vadd.f32 %v5563, %v5917
        %v6140 = vadd.f32 %v5564, %v5920
        %v6141 = vadd.f32 %v5565, %v5923
        %v6142 = vadd.f32 %v5566, %v5926
        %v6143 = vadd.f32 %v5567, %v5929
        %v6144 = vadd.f32 %v5568, %v5932
        %v6145 = vadd.f32 %v5569, %v5935
        %v6146 = vadd.f32 %v5570, %v5938
        %v6147 = vadd.f32 %v5571, %v5941
        %v6148 = vadd.f32 %v5572, %v5944
        %v6149 = vadd.f32 %v5573, %v5947
        %v6150 = vadd.f32 %v5574, %v5950
        %v6151 = vadd.f32 %v5575, %v5953
        %v6152 = vadd.f32 %v5576, %v5956
        %v6153 = vadd.f32 %v5577, %v5959
        %v6154 = vadd.f32 %v5578, %v5962
        %v6155 = vadd.f32 %v5579, %v5965
        %v6156 = vadd.f32 %v5580, %v5968
        %v6157 = vadd.f32 %v5581, %v5971
        %v6158 = vadd.f32 %v5582, %v5974
        %v6159 = vadd.f32 %v5583, %v5977
        %v6160 = vadd.f32 %v5584, %v5980
        %v6161 = vadd.f32 %v5585, %v5983
        %v6162 = vadd.f32 %v5586, %v5986
        %v6163 = vadd.f32 %v5587, %v5989
        %v6164 = vadd.f32 %v5588, %v5992
        %v6165 = vadd.f32 %v5589, %v5995
        %v6166 = vadd.f32 %v5590, %v5998
        %v6167 = vadd.f32 %v5591, %v6001
        %v6168 = vadd.f32 %v5592, %v6004
        %v6169 = vadd.f32 %v5593, %v6007
        %v6170 = vadd.f32 %v5594, %v6010
        %v6171 = vadd.f32 %v5595, %v6013
        %v6172 = vadd.f32 %v5596, %v6016
        %v6173 = vadd.f32 %v5597, %v6019
        %v6174 = vadd.f32 %v5598, %v6022
        %v6175 = vadd.f32 %v5599, %v6025
        %v6176 = vadd.f32 %v5600, %v6028
        %v6177 = vadd.f32 %v5601, %v6031
        %v6178 = vadd.f32 %v5602, %v6034
        %v6179 = vadd.f32 %v5603, %v6037
        %v6180 = vadd.f32 %v5604, %v6040
        %v6181 = vadd.f32 %v5605, %v6043
        %v6182 = vadd.f32 %v5606, %v6046
        %v6183 = vadd.f32 %v5607, %v6049
        %v6184 = vadd.f32 %v5608, %v6052
        %v6185 = vadd.f32 %v5609, %v6055
        %v6186 = vadd.f32 %v5610, %v6058
        %v6187 = vadd.f32 %v5611, %v6061
        %v6188 = vadd.f32 %v5612, %v6064
        %v6189 = vadd.f32 %v5613, %v6067
        %v6190 = vadd.f32 %v5614, %v6070
        %v6191 = vadd.f32 %v5615, %v6073
        %v6192 = vadd.f32 %v5616, %v6076
        %v6193 = vadd.f32 %v5617, %v6079
        %v6194 = vadd.f32 %v5618, %v6082
        %v6195 = vadd.f32 %v5619, %v6085
        %v6196 = vadd.f32 %v5620, %v6088
        %v6197 = vadd.f32 %v5621, %v6091
        %v6198 = vadd.f32 %v5622, %v6094
        %v6199 = vadd.f32 %v5623, %v6097
        %v6200 = vadd.f32 %v5624, %v6100
        %v6201 = vadd.f32 %v5625, %v6103
        %v6202 = vadd.f32 %v5626, %v6106
        %6203 = vst.msk [vmem:[%s4] sm:$0xff] %vm5434, %v6107
        %6204 = vst.msk [vmem:[%s4 + $0x8] sm:$0xff] %vm5434, %v6108
        %6205 = vst.msk [vmem:[%s4 + $0x10] sm:$0xff] %vm5434, %v6109
        %6206 = vst.msk [vmem:[%s4 + $0x18] sm:$0xff] %vm5434, %v6110
        %6207 = vst.msk [vmem:[%s4 + $0x20] sm:$0xff] %vm5434, %v6111
        %6208 = vst.msk [vmem:[%s4 + $0x28] sm:$0xff] %vm5434, %v6112
        %6209 = vst.msk [vmem:[%s4 + $0x30] sm:$0xff] %vm5434, %v6113
        %6210 = vst.msk [vmem:[%s4 + $0x38] sm:$0xff] %vm5434, %v6114
        %6211 = vst.msk [vmem:[%s4 + $0x40] sm:$0xff] %vm5434, %v6115
        %6212 = vst.msk [vmem:[%s4 + $0x48] sm:$0xff] %vm5434, %v6116
        %6213 = vst.msk [vmem:[%s4 + $0x50] sm:$0xff] %vm5434, %v6117
        %6214 = vst.msk [vmem:[%s4 + $0x58] sm:$0xff] %vm5434, %v6118
        %6215 = vst.msk [vmem:[%s4 + $0x60] sm:$0xff] %vm5434, %v6119
        %6216 = vst.msk [vmem:[%s4 + $0x68] sm:$0xff] %vm5434, %v6120
        %6217 = vst.msk [vmem:[%s4 + $0x70] sm:$0xff] %vm5434, %v6121
        %6218 = vst.msk [vmem:[%s4 + $0x78] sm:$0xff] %vm5434, %v6122
        %6219 = vst.msk [vmem:[%s4 + $0x80] sm:$0xff] %vm5434, %v6123
        %6220 = vst.msk [vmem:[%s4 + $0x88] sm:$0xff] %vm5434, %v6124
        %6221 = vst.msk [vmem:[%s4 + $0x90] sm:$0xff] %vm5434, %v6125
        %6222 = vst.msk [vmem:[%s4 + $0x98] sm:$0xff] %vm5434, %v6126
        %6223 = vst.msk [vmem:[%s4 + $0xa0] sm:$0xff] %vm5434, %v6127
        %6224 = vst.msk [vmem:[%s4 + $0xa8] sm:$0xff] %vm5434, %v6128
        %6225 = vst.msk [vmem:[%s4 + $0xb0] sm:$0xff] %vm5434, %v6129
        %6226 = vst.msk [vmem:[%s4 + $0xb8] sm:$0xff] %vm5434, %v6130
        %6227 = vst.msk [vmem:[%s4 + $0xc0] sm:$0xff] %vm5434, %v6131
        %6228 = vst.msk [vmem:[%s4 + $0xc8] sm:$0xff] %vm5434, %v6132
        %6229 = vst.msk [vmem:[%s4 + $0xd0] sm:$0xff] %vm5434, %v6133
        %6230 = vst.msk [vmem:[%s4 + $0xd8] sm:$0xff] %vm5434, %v6134
        %6231 = vst.msk [vmem:[%s4 + $0xe0] sm:$0xff] %vm5434, %v6135
        %6232 = vst.msk [vmem:[%s4 + $0xe8] sm:$0xff] %vm5434, %v6136
        %6233 = vst.msk [vmem:[%s4 + $0xf0] sm:$0xff] %vm5434, %v6137
        %6234 = vst.msk [vmem:[%s4 + $0xf8] sm:$0xff] %vm5434, %v6138
        %6235 = vst.msk [vmem:[%s4 + $0x100] sm:$0xff] %vm5434, %v6139
        %6236 = vst.msk [vmem:[%s4 + $0x108] sm:$0xff] %vm5434, %v6140
        %6237 = vst.msk [vmem:[%s4 + $0x110] sm:$0xff] %vm5434, %v6141
        %6238 = vst.msk [vmem:[%s4 + $0x118] sm:$0xff] %vm5434, %v6142
        %6239 = vst.msk [vmem:[%s4 + $0x120] sm:$0xff] %vm5434, %v6143
        %6240 = vst.msk [vmem:[%s4 + $0x128] sm:$0xff] %vm5434, %v6144
        %6241 = vst.msk [vmem:[%s4 + $0x130] sm:$0xff] %vm5434, %v6145
        %6242 = vst.msk [vmem:[%s4 + $0x138] sm:$0xff] %vm5434, %v6146
        %6243 = vst.msk [vmem:[%s4 + $0x140] sm:$0xff] %vm5434, %v6147
        %6244 = vst.msk [vmem:[%s4 + $0x148] sm:$0xff] %vm5434, %v6148
        %6245 = vst.msk [vmem:[%s4 + $0x150] sm:$0xff] %vm5434, %v6149
        %6246 = vst.msk [vmem:[%s4 + $0x158] sm:$0xff] %vm5434, %v6150
        %6247 = vst.msk [vmem:[%s4 + $0x160] sm:$0xff] %vm5434, %v6151
        %6248 = vst.msk [vmem:[%s4 + $0x168] sm:$0xff] %vm5434, %v6152
        %6249 = vst.msk [vmem:[%s4 + $0x170] sm:$0xff] %vm5434, %v6153
        %6250 = vst.msk [vmem:[%s4 + $0x178] sm:$0xff] %vm5434, %v6154
        %6251 = vst.msk [vmem:[%s4 + $0x180] sm:$0xff] %vm5434, %v6155
        %6252 = vst.msk [vmem:[%s4 + $0x188] sm:$0xff] %vm5434, %v6156
        %6253 = vst.msk [vmem:[%s4 + $0x190] sm:$0xff] %vm5434, %v6157
        %6254 = vst.msk [vmem:[%s4 + $0x198] sm:$0xff] %vm5434, %v6158
        %6255 = vst.msk [vmem:[%s4 + $0x1a0] sm:$0xff] %vm5434, %v6159
        %6256 = vst.msk [vmem:[%s4 + $0x1a8] sm:$0xff] %vm5434, %v6160
        %6257 = vst.msk [vmem:[%s4 + $0x1b0] sm:$0xff] %vm5434, %v6161
        %6258 = vst.msk [vmem:[%s4 + $0x1b8] sm:$0xff] %vm5434, %v6162
        %6259 = vst.msk [vmem:[%s4 + $0x1c0] sm:$0xff] %vm5434, %v6163
        %6260 = vst.msk [vmem:[%s4 + $0x1c8] sm:$0xff] %vm5434, %v6164
        %6261 = vst.msk [vmem:[%s4 + $0x1d0] sm:$0xff] %vm5434, %v6165
        %6262 = vst.msk [vmem:[%s4 + $0x1d8] sm:$0xff] %vm5434, %v6166
        %6263 = vst.msk [vmem:[%s4 + $0x1e0] sm:$0xff] %vm5434, %v6167
        %6264 = vst.msk [vmem:[%s4 + $0x1e8] sm:$0xff] %vm5434, %v6168
        %6265 = vst.msk [vmem:[%s4 + $0x1f0] sm:$0xff] %vm5434, %v6169
        %6266 = vst.msk [vmem:[%s4 + $0x1f8] sm:$0xff] %vm5434, %v6170
        %6267 = vst.msk [vmem:[%s4 + $0x200] sm:$0xff] %vm5434, %v6171
        %6268 = vst.msk [vmem:[%s4 + $0x208] sm:$0xff] %vm5434, %v6172
        %6269 = vst.msk [vmem:[%s4 + $0x210] sm:$0xff] %vm5434, %v6173
        %6270 = vst.msk [vmem:[%s4 + $0x218] sm:$0xff] %vm5434, %v6174
        %6271 = vst.msk [vmem:[%s4 + $0x220] sm:$0xff] %vm5434, %v6175
        %6272 = vst.msk [vmem:[%s4 + $0x228] sm:$0xff] %vm5434, %v6176
        %6273 = vst.msk [vmem:[%s4 + $0x230] sm:$0xff] %vm5434, %v6177
        %6274 = vst.msk [vmem:[%s4 + $0x238] sm:$0xff] %vm5434, %v6178
        %6275 = vst.msk [vmem:[%s4 + $0x240] sm:$0xff] %vm5434, %v6179
        %6276 = vst.msk [vmem:[%s4 + $0x248] sm:$0xff] %vm5434, %v6180
        %6277 = vst.msk [vmem:[%s4 + $0x250] sm:$0xff] %vm5434, %v6181
        %6278 = vst.msk [vmem:[%s4 + $0x258] sm:$0xff] %vm5434, %v6182
        %6279 = vst.msk [vmem:[%s4 + $0x260] sm:$0xff] %vm5434, %v6183
        %6280 = vst.msk [vmem:[%s4 + $0x268] sm:$0xff] %vm5434, %v6184
        %6281 = vst.msk [vmem:[%s4 + $0x270] sm:$0xff] %vm5434, %v6185
        %6282 = vst.msk [vmem:[%s4 + $0x278] sm:$0xff] %vm5434, %v6186
        %6283 = vst.msk [vmem:[%s4 + $0x280] sm:$0xff] %vm5434, %v6187
        %6284 = vst.msk [vmem:[%s4 + $0x288] sm:$0xff] %vm5434, %v6188
        %6285 = vst.msk [vmem:[%s4 + $0x290] sm:$0xff] %vm5434, %v6189
        %6286 = vst.msk [vmem:[%s4 + $0x298] sm:$0xff] %vm5434, %v6190
        %6287 = vst.msk [vmem:[%s4 + $0x2a0] sm:$0xff] %vm5434, %v6191
        %6288 = vst.msk [vmem:[%s4 + $0x2a8] sm:$0xff] %vm5434, %v6192
        %6289 = vst.msk [vmem:[%s4 + $0x2b0] sm:$0xff] %vm5434, %v6193
        %6290 = vst.msk [vmem:[%s4 + $0x2b8] sm:$0xff] %vm5434, %v6194
        %6291 = vst.msk [vmem:[%s4 + $0x2c0] sm:$0xff] %vm5434, %v6195
        %6292 = vst.msk [vmem:[%s4 + $0x2c8] sm:$0xff] %vm5434, %v6196
        %6293 = vst.msk [vmem:[%s4 + $0x2d0] sm:$0xff] %vm5434, %v6197
        %6294 = vst.msk [vmem:[%s4 + $0x2d8] sm:$0xff] %vm5434, %v6198
        %6295 = vst.msk [vmem:[%s4 + $0x2e0] sm:$0xff] %vm5434, %v6199
        %6296 = vst.msk [vmem:[%s4 + $0x2e8] sm:$0xff] %vm5434, %v6200
        %6297 = vst.msk [vmem:[%s4 + $0x2f0] sm:$0xff] %vm5434, %v6201
        %6298 = vst.msk [vmem:[%s4 + $0x2f8] sm:$0xff] %vm5434, %v6202
        %s6299 = sand.u32 %s87, 1
        %s6300 = sand.u32 %s87, 1
        %s6301 = smul.addr %s6300, 1536
        %s6302 = scalar_lea.vmem [#allocation3], %s6301
        // Predicated region
        $region71: #{fused_relu_conv1x1_bn_relu.2} parent=61 // pred_check
          %p6303 = pneg %p97
        $region72: #{fused_relu_conv1x1_bn_relu.2} parent=61 // pred_check_branch
          %6305 = sbr.rel (%p6303) target = $region74
        $region73: #{fused_relu_conv1x1_bn_relu.2} parent=61 // pred_region
          %s6306 = smul.u32 2, %s21
          %s6307 = smul.addr %s20, 768
          %s6308 = sadd.s32 %s6306, %s6307
          %s6309 = smul.addr %s6308, 8
          %s6310 = scalar_lea.vmem %s2, %s6309
          // Predicated region
          $region75: #{fused_relu_conv1x1_bn_relu.2} parent=73 // pred_check
            _
          $region76: #{fused_relu_conv1x1_bn_relu.2} parent=73 // pred_check_branch
            %6312 = sbr.rel (0) target = $region78
          $region77: #{fused_relu_conv1x1_bn_relu.2} parent=73 // pred_region
            // Predicated region
            $region79: #{fused_relu_conv1x1_bn_relu.2} parent=77 // pred_check
              _
            $region80: #{fused_relu_conv1x1_bn_relu.2} parent=77 // pred_check_branch
              %6314 = sbr.rel (0) target = $region82
            $region81: #{fused_relu_conv1x1_bn_relu.2} parent=77 // pred_region
              loop: start=0, step=1, limit=1
              $region83: #{fused_relu_conv1x1_bn_relu.2} parent=81 // loop_pre_header
                _
              $region84: #{fused_relu_conv1x1_bn_relu.2} parent=81 // loop_header
                %s6316 = sphi 0, %s6320
                %p6317 = scmp.ge.s32.totalorder %s6316, 1
                %s6321 = sphi %s6302, %s6302
                %s6322 = sphi %s6310, %s6310
              $region85: #{fused_relu_conv1x1_bn_relu.2} parent=81 // loop_header_branch
                %6319 = sbr.rel (%p6317) target = $region89
              $region86: #{fused_relu_conv1x1_bn_relu.2} parent=81 // loop_body
                %v6323 = vld [vmem:[%s6321] sm:$0xff]
                %6324 = vst [vmem:[%s6322] sm:$0xff] %v6323
                %v6325 = vld [vmem:[%s6321 + $0x8] sm:$0xff]
                %6326 = vst [vmem:[%s6322 + $0x8] sm:$0xff] %v6325
                %v6327 = vld [vmem:[%s6321 + $0x10] sm:$0xff]
                %6328 = vst [vmem:[%s6322 + $0x40] sm:$0xff] %v6327
                %v6329 = vld [vmem:[%s6321 + $0x18] sm:$0xff]
                %6330 = vst [vmem:[%s6322 + $0x48] sm:$0xff] %v6329
                %v6331 = vld [vmem:[%s6321 + $0x20] sm:$0xff]
                %6332 = vst [vmem:[%s6322 + $0x80] sm:$0xff] %v6331
                %v6333 = vld [vmem:[%s6321 + $0x28] sm:$0xff]
                %6334 = vst [vmem:[%s6322 + $0x88] sm:$0xff] %v6333
                %v6335 = vld [vmem:[%s6321 + $0x30] sm:$0xff]
                %6336 = vst [vmem:[%s6322 + $0xc0] sm:$0xff] %v6335
                %v6337 = vld [vmem:[%s6321 + $0x38] sm:$0xff]
                %6338 = vst [vmem:[%s6322 + $0xc8] sm:$0xff] %v6337
                %v6339 = vld [vmem:[%s6321 + $0x40] sm:$0xff]
                %6340 = vst [vmem:[%s6322 + $0x100] sm:$0xff] %v6339
                %v6341 = vld [vmem:[%s6321 + $0x48] sm:$0xff]
                %6342 = vst [vmem:[%s6322 + $0x108] sm:$0xff] %v6341
                %v6343 = vld [vmem:[%s6321 + $0x50] sm:$0xff]
                %6344 = vst [vmem:[%s6322 + $0x140] sm:$0xff] %v6343
                %v6345 = vld [vmem:[%s6321 + $0x58] sm:$0xff]
                %6346 = vst [vmem:[%s6322 + $0x148] sm:$0xff] %v6345
                %v6347 = vld [vmem:[%s6321 + $0x60] sm:$0xff]
                %6348 = vst [vmem:[%s6322 + $0x180] sm:$0xff] %v6347
                %v6349 = vld [vmem:[%s6321 + $0x68] sm:$0xff]
                %6350 = vst [vmem:[%s6322 + $0x188] sm:$0xff] %v6349
                %v6351 = vld [vmem:[%s6321 + $0x70] sm:$0xff]
                %6352 = vst [vmem:[%s6322 + $0x1c0] sm:$0xff] %v6351
                %v6353 = vld [vmem:[%s6321 + $0x78] sm:$0xff]
                %6354 = vst [vmem:[%s6322 + $0x1c8] sm:$0xff] %v6353
                %v6355 = vld [vmem:[%s6321 + $0x80] sm:$0xff]
                %6356 = vst [vmem:[%s6322 + $0x200] sm:$0xff] %v6355
                %v6357 = vld [vmem:[%s6321 + $0x88] sm:$0xff]
                %6358 = vst [vmem:[%s6322 + $0x208] sm:$0xff] %v6357
                %v6359 = vld [vmem:[%s6321 + $0x90] sm:$0xff]
                %6360 = vst [vmem:[%s6322 + $0x240] sm:$0xff] %v6359
                %v6361 = vld [vmem:[%s6321 + $0x98] sm:$0xff]
                %6362 = vst [vmem:[%s6322 + $0x248] sm:$0xff] %v6361
                %v6363 = vld [vmem:[%s6321 + $0xa0] sm:$0xff]
                %6364 = vst [vmem:[%s6322 + $0x280] sm:$0xff] %v6363
                %v6365 = vld [vmem:[%s6321 + $0xa8] sm:$0xff]
                %6366 = vst [vmem:[%s6322 + $0x288] sm:$0xff] %v6365
                %v6367 = vld [vmem:[%s6321 + $0xb0] sm:$0xff]
                %6368 = vst [vmem:[%s6322 + $0x2c0] sm:$0xff] %v6367
                %v6369 = vld [vmem:[%s6321 + $0xb8] sm:$0xff]
                %6370 = vst [vmem:[%s6322 + $0x2c8] sm:$0xff] %v6369
                %v6371 = vld [vmem:[%s6321 + $0xc0] sm:$0xff]
                %6372 = vst [vmem:[%s6322 + $0x300] sm:$0xff] %v6371
                %v6373 = vld [vmem:[%s6321 + $0xc8] sm:$0xff]
                %6374 = vst [vmem:[%s6322 + $0x308] sm:$0xff] %v6373
                %v6375 = vld [vmem:[%s6321 + $0xd0] sm:$0xff]
                %6376 = vst [vmem:[%s6322 + $0x340] sm:$0xff] %v6375
                %v6377 = vld [vmem:[%s6321 + $0xd8] sm:$0xff]
                %6378 = vst [vmem:[%s6322 + $0x348] sm:$0xff] %v6377
                %v6379 = vld [vmem:[%s6321 + $0xe0] sm:$0xff]
                %6380 = vst [vmem:[%s6322 + $0x380] sm:$0xff] %v6379
                %v6381 = vld [vmem:[%s6321 + $0xe8] sm:$0xff]
                %6382 = vst [vmem:[%s6322 + $0x388] sm:$0xff] %v6381
                %v6383 = vld [vmem:[%s6321 + $0xf0] sm:$0xff]
                %6384 = vst [vmem:[%s6322 + $0x3c0] sm:$0xff] %v6383
                %v6385 = vld [vmem:[%s6321 + $0xf8] sm:$0xff]
                %6386 = vst [vmem:[%s6322 + $0x3c8] sm:$0xff] %v6385
                %v6387 = vld [vmem:[%s6321 + $0x100] sm:$0xff]
                %6388 = vst [vmem:[%s6322 + $0x400] sm:$0xff] %v6387
                %v6389 = vld [vmem:[%s6321 + $0x108] sm:$0xff]
                %6390 = vst [vmem:[%s6322 + $0x408] sm:$0xff] %v6389
                %v6391 = vld [vmem:[%s6321 + $0x110] sm:$0xff]
                %6392 = vst [vmem:[%s6322 + $0x440] sm:$0xff] %v6391
                %v6393 = vld [vmem:[%s6321 + $0x118] sm:$0xff]
                %6394 = vst [vmem:[%s6322 + $0x448] sm:$0xff] %v6393
                %v6395 = vld [vmem:[%s6321 + $0x120] sm:$0xff]
                %6396 = vst [vmem:[%s6322 + $0x480] sm:$0xff] %v6395
                %v6397 = vld [vmem:[%s6321 + $0x128] sm:$0xff]
                %6398 = vst [vmem:[%s6322 + $0x488] sm:$0xff] %v6397
                %v6399 = vld [vmem:[%s6321 + $0x130] sm:$0xff]
                %6400 = vst [vmem:[%s6322 + $0x4c0] sm:$0xff] %v6399
                %v6401 = vld [vmem:[%s6321 + $0x138] sm:$0xff]
                %6402 = vst [vmem:[%s6322 + $0x4c8] sm:$0xff] %v6401
                %v6403 = vld [vmem:[%s6321 + $0x140] sm:$0xff]
                %6404 = vst [vmem:[%s6322 + $0x500] sm:$0xff] %v6403
                %v6405 = vld [vmem:[%s6321 + $0x148] sm:$0xff]
                %6406 = vst [vmem:[%s6322 + $0x508] sm:$0xff] %v6405
                %v6407 = vld [vmem:[%s6321 + $0x150] sm:$0xff]
                %6408 = vst [vmem:[%s6322 + $0x540] sm:$0xff] %v6407
                %v6409 = vld [vmem:[%s6321 + $0x158] sm:$0xff]
                %6410 = vst [vmem:[%s6322 + $0x548] sm:$0xff] %v6409
                %v6411 = vld [vmem:[%s6321 + $0x160] sm:$0xff]
                %6412 = vst [vmem:[%s6322 + $0x580] sm:$0xff] %v6411
                %v6413 = vld [vmem:[%s6321 + $0x168] sm:$0xff]
                %6414 = vst [vmem:[%s6322 + $0x588] sm:$0xff] %v6413
                %v6415 = vld [vmem:[%s6321 + $0x170] sm:$0xff]
                %6416 = vst [vmem:[%s6322 + $0x5c0] sm:$0xff] %v6415
                %v6417 = vld [vmem:[%s6321 + $0x178] sm:$0xff]
                %6418 = vst [vmem:[%s6322 + $0x5c8] sm:$0xff] %v6417
                %v6419 = vld [vmem:[%s6321 + $0x180] sm:$0xff]
                %6420 = vst [vmem:[%s6322 + $0x600] sm:$0xff] %v6419
                %v6421 = vld [vmem:[%s6321 + $0x188] sm:$0xff]
                %6422 = vst [vmem:[%s6322 + $0x608] sm:$0xff] %v6421
                %v6423 = vld [vmem:[%s6321 + $0x190] sm:$0xff]
                %6424 = vst [vmem:[%s6322 + $0x640] sm:$0xff] %v6423
                %v6425 = vld [vmem:[%s6321 + $0x198] sm:$0xff]
                %6426 = vst [vmem:[%s6322 + $0x648] sm:$0xff] %v6425
                %v6427 = vld [vmem:[%s6321 + $0x1a0] sm:$0xff]
                %6428 = vst [vmem:[%s6322 + $0x680] sm:$0xff] %v6427
                %v6429 = vld [vmem:[%s6321 + $0x1a8] sm:$0xff]
                %6430 = vst [vmem:[%s6322 + $0x688] sm:$0xff] %v6429
                %v6431 = vld [vmem:[%s6321 + $0x1b0] sm:$0xff]
                %6432 = vst [vmem:[%s6322 + $0x6c0] sm:$0xff] %v6431
                %v6433 = vld [vmem:[%s6321 + $0x1b8] sm:$0xff]
                %6434 = vst [vmem:[%s6322 + $0x6c8] sm:$0xff] %v6433
                %v6435 = vld [vmem:[%s6321 + $0x1c0] sm:$0xff]
                %6436 = vst [vmem:[%s6322 + $0x700] sm:$0xff] %v6435
                %v6437 = vld [vmem:[%s6321 + $0x1c8] sm:$0xff]
                %6438 = vst [vmem:[%s6322 + $0x708] sm:$0xff] %v6437
                %v6439 = vld [vmem:[%s6321 + $0x1d0] sm:$0xff]
                %6440 = vst [vmem:[%s6322 + $0x740] sm:$0xff] %v6439
                %v6441 = vld [vmem:[%s6321 + $0x1d8] sm:$0xff]
                %6442 = vst [vmem:[%s6322 + $0x748] sm:$0xff] %v6441
                %v6443 = vld [vmem:[%s6321 + $0x1e0] sm:$0xff]
                %6444 = vst [vmem:[%s6322 + $0x780] sm:$0xff] %v6443
                %v6445 = vld [vmem:[%s6321 + $0x1e8] sm:$0xff]
                %6446 = vst [vmem:[%s6322 + $0x788] sm:$0xff] %v6445
                %v6447 = vld [vmem:[%s6321 + $0x1f0] sm:$0xff]
                %6448 = vst [vmem:[%s6322 + $0x7c0] sm:$0xff] %v6447
                %v6449 = vld [vmem:[%s6321 + $0x1f8] sm:$0xff]
                %6450 = vst [vmem:[%s6322 + $0x7c8] sm:$0xff] %v6449
                %v6451 = vld [vmem:[%s6321 + $0x200] sm:$0xff]
                %6452 = vst [vmem:[%s6322 + $0x800] sm:$0xff] %v6451
                %v6453 = vld [vmem:[%s6321 + $0x208] sm:$0xff]
                %6454 = vst [vmem:[%s6322 + $0x808] sm:$0xff] %v6453
                %v6455 = vld [vmem:[%s6321 + $0x210] sm:$0xff]
                %6456 = vst [vmem:[%s6322 + $0x840] sm:$0xff] %v6455
                %v6457 = vld [vmem:[%s6321 + $0x218] sm:$0xff]
                %6458 = vst [vmem:[%s6322 + $0x848] sm:$0xff] %v6457
                %v6459 = vld [vmem:[%s6321 + $0x220] sm:$0xff]
                %6460 = vst [vmem:[%s6322 + $0x880] sm:$0xff] %v6459
                %v6461 = vld [vmem:[%s6321 + $0x228] sm:$0xff]
                %6462 = vst [vmem:[%s6322 + $0x888] sm:$0xff] %v6461
                %v6463 = vld [vmem:[%s6321 + $0x230] sm:$0xff]
                %6464 = vst [vmem:[%s6322 + $0x8c0] sm:$0xff] %v6463
                %v6465 = vld [vmem:[%s6321 + $0x238] sm:$0xff]
                %6466 = vst [vmem:[%s6322 + $0x8c8] sm:$0xff] %v6465
                %v6467 = vld [vmem:[%s6321 + $0x240] sm:$0xff]
                %6468 = vst [vmem:[%s6322 + $0x900] sm:$0xff] %v6467
                %v6469 = vld [vmem:[%s6321 + $0x248] sm:$0xff]
                %6470 = vst [vmem:[%s6322 + $0x908] sm:$0xff] %v6469
                %v6471 = vld [vmem:[%s6321 + $0x250] sm:$0xff]
                %6472 = vst [vmem:[%s6322 + $0x940] sm:$0xff] %v6471
                %v6473 = vld [vmem:[%s6321 + $0x258] sm:$0xff]
                %6474 = vst [vmem:[%s6322 + $0x948] sm:$0xff] %v6473
                %v6475 = vld [vmem:[%s6321 + $0x260] sm:$0xff]
                %6476 = vst [vmem:[%s6322 + $0x980] sm:$0xff] %v6475
                %v6477 = vld [vmem:[%s6321 + $0x268] sm:$0xff]
                %6478 = vst [vmem:[%s6322 + $0x988] sm:$0xff] %v6477
                %v6479 = vld [vmem:[%s6321 + $0x270] sm:$0xff]
                %6480 = vst [vmem:[%s6322 + $0x9c0] sm:$0xff] %v6479
                %v6481 = vld [vmem:[%s6321 + $0x278] sm:$0xff]
                %6482 = vst [vmem:[%s6322 + $0x9c8] sm:$0xff] %v6481
                %v6483 = vld [vmem:[%s6321 + $0x280] sm:$0xff]
                %6484 = vst [vmem:[%s6322 + $0xa00] sm:$0xff] %v6483
                %v6485 = vld [vmem:[%s6321 + $0x288] sm:$0xff]
                %6486 = vst [vmem:[%s6322 + $0xa08] sm:$0xff] %v6485
                %v6487 = vld [vmem:[%s6321 + $0x290] sm:$0xff]
                %6488 = vst [vmem:[%s6322 + $0xa40] sm:$0xff] %v6487
                %v6489 = vld [vmem:[%s6321 + $0x298] sm:$0xff]
                %6490 = vst [vmem:[%s6322 + $0xa48] sm:$0xff] %v6489
                %v6491 = vld [vmem:[%s6321 + $0x2a0] sm:$0xff]
                %6492 = vst [vmem:[%s6322 + $0xa80] sm:$0xff] %v6491
                %v6493 = vld [vmem:[%s6321 + $0x2a8] sm:$0xff]
                %6494 = vst [vmem:[%s6322 + $0xa88] sm:$0xff] %v6493
                %v6495 = vld [vmem:[%s6321 + $0x2b0] sm:$0xff]
                %6496 = vst [vmem:[%s6322 + $0xac0] sm:$0xff] %v6495
                %v6497 = vld [vmem:[%s6321 + $0x2b8] sm:$0xff]
                %6498 = vst [vmem:[%s6322 + $0xac8] sm:$0xff] %v6497
                %v6499 = vld [vmem:[%s6321 + $0x2c0] sm:$0xff]
                %6500 = vst [vmem:[%s6322 + $0xb00] sm:$0xff] %v6499
                %v6501 = vld [vmem:[%s6321 + $0x2c8] sm:$0xff]
                %6502 = vst [vmem:[%s6322 + $0xb08] sm:$0xff] %v6501
                %v6503 = vld [vmem:[%s6321 + $0x2d0] sm:$0xff]
                %6504 = vst [vmem:[%s6322 + $0xb40] sm:$0xff] %v6503
                %v6505 = vld [vmem:[%s6321 + $0x2d8] sm:$0xff]
                %6506 = vst [vmem:[%s6322 + $0xb48] sm:$0xff] %v6505
                %v6507 = vld [vmem:[%s6321 + $0x2e0] sm:$0xff]
                %6508 = vst [vmem:[%s6322 + $0xb80] sm:$0xff] %v6507
                %v6509 = vld [vmem:[%s6321 + $0x2e8] sm:$0xff]
                %6510 = vst [vmem:[%s6322 + $0xb88] sm:$0xff] %v6509
                %v6511 = vld [vmem:[%s6321 + $0x2f0] sm:$0xff]
                %6512 = vst [vmem:[%s6322 + $0xbc0] sm:$0xff] %v6511
                %v6513 = vld [vmem:[%s6321 + $0x2f8] sm:$0xff]
                %6514 = vst [vmem:[%s6322 + $0xbc8] sm:$0xff] %v6513
                %v6515 = vld [vmem:[%s6321 + $0x300] sm:$0xff]
                %6516 = vst [vmem:[%s6322 + $0xc00] sm:$0xff] %v6515
                %v6517 = vld [vmem:[%s6321 + $0x308] sm:$0xff]
                %6518 = vst [vmem:[%s6322 + $0xc08] sm:$0xff] %v6517
                %v6519 = vld [vmem:[%s6321 + $0x310] sm:$0xff]
                %6520 = vst [vmem:[%s6322 + $0xc40] sm:$0xff] %v6519
                %v6521 = vld [vmem:[%s6321 + $0x318] sm:$0xff]
                %6522 = vst [vmem:[%s6322 + $0xc48] sm:$0xff] %v6521
                %v6523 = vld [vmem:[%s6321 + $0x320] sm:$0xff]
                %6524 = vst [vmem:[%s6322 + $0xc80] sm:$0xff] %v6523
                %v6525 = vld [vmem:[%s6321 + $0x328] sm:$0xff]
                %6526 = vst [vmem:[%s6322 + $0xc88] sm:$0xff] %v6525
                %v6527 = vld [vmem:[%s6321 + $0x330] sm:$0xff]
                %6528 = vst [vmem:[%s6322 + $0xcc0] sm:$0xff] %v6527
                %v6529 = vld [vmem:[%s6321 + $0x338] sm:$0xff]
                %6530 = vst [vmem:[%s6322 + $0xcc8] sm:$0xff] %v6529
                %v6531 = vld [vmem:[%s6321 + $0x340] sm:$0xff]
                %6532 = vst [vmem:[%s6322 + $0xd00] sm:$0xff] %v6531
                %v6533 = vld [vmem:[%s6321 + $0x348] sm:$0xff]
                %6534 = vst [vmem:[%s6322 + $0xd08] sm:$0xff] %v6533
                %v6535 = vld [vmem:[%s6321 + $0x350] sm:$0xff]
                %6536 = vst [vmem:[%s6322 + $0xd40] sm:$0xff] %v6535
                %v6537 = vld [vmem:[%s6321 + $0x358] sm:$0xff]
                %6538 = vst [vmem:[%s6322 + $0xd48] sm:$0xff] %v6537
                %v6539 = vld [vmem:[%s6321 + $0x360] sm:$0xff]
                %6540 = vst [vmem:[%s6322 + $0xd80] sm:$0xff] %v6539
                %v6541 = vld [vmem:[%s6321 + $0x368] sm:$0xff]
                %6542 = vst [vmem:[%s6322 + $0xd88] sm:$0xff] %v6541
                %v6543 = vld [vmem:[%s6321 + $0x370] sm:$0xff]
                %6544 = vst [vmem:[%s6322 + $0xdc0] sm:$0xff] %v6543
                %v6545 = vld [vmem:[%s6321 + $0x378] sm:$0xff]
                %6546 = vst [vmem:[%s6322 + $0xdc8] sm:$0xff] %v6545
                %v6547 = vld [vmem:[%s6321 + $0x380] sm:$0xff]
                %6548 = vst [vmem:[%s6322 + $0xe00] sm:$0xff] %v6547
                %v6549 = vld [vmem:[%s6321 + $0x388] sm:$0xff]
                %6550 = vst [vmem:[%s6322 + $0xe08] sm:$0xff] %v6549
                %v6551 = vld [vmem:[%s6321 + $0x390] sm:$0xff]
                %6552 = vst [vmem:[%s6322 + $0xe40] sm:$0xff] %v6551
                %v6553 = vld [vmem:[%s6321 + $0x398] sm:$0xff]
                %6554 = vst [vmem:[%s6322 + $0xe48] sm:$0xff] %v6553
                %v6555 = vld [vmem:[%s6321 + $0x3a0] sm:$0xff]
                %6556 = vst [vmem:[%s6322 + $0xe80] sm:$0xff] %v6555
                %v6557 = vld [vmem:[%s6321 + $0x3a8] sm:$0xff]
                %6558 = vst [vmem:[%s6322 + $0xe88] sm:$0xff] %v6557
                %v6559 = vld [vmem:[%s6321 + $0x3b0] sm:$0xff]
                %6560 = vst [vmem:[%s6322 + $0xec0] sm:$0xff] %v6559
                %v6561 = vld [vmem:[%s6321 + $0x3b8] sm:$0xff]
                %6562 = vst [vmem:[%s6322 + $0xec8] sm:$0xff] %v6561
                %v6563 = vld [vmem:[%s6321 + $0x3c0] sm:$0xff]
                %6564 = vst [vmem:[%s6322 + $0xf00] sm:$0xff] %v6563
                %v6565 = vld [vmem:[%s6321 + $0x3c8] sm:$0xff]
                %6566 = vst [vmem:[%s6322 + $0xf08] sm:$0xff] %v6565
                %v6567 = vld [vmem:[%s6321 + $0x3d0] sm:$0xff]
                %6568 = vst [vmem:[%s6322 + $0xf40] sm:$0xff] %v6567
                %v6569 = vld [vmem:[%s6321 + $0x3d8] sm:$0xff]
                %6570 = vst [vmem:[%s6322 + $0xf48] sm:$0xff] %v6569
                %v6571 = vld [vmem:[%s6321 + $0x3e0] sm:$0xff]
                %6572 = vst [vmem:[%s6322 + $0xf80] sm:$0xff] %v6571
                %v6573 = vld [vmem:[%s6321 + $0x3e8] sm:$0xff]
                %6574 = vst [vmem:[%s6322 + $0xf88] sm:$0xff] %v6573
                %v6575 = vld [vmem:[%s6321 + $0x3f0] sm:$0xff]
                %6576 = vst [vmem:[%s6322 + $0xfc0] sm:$0xff] %v6575
                %v6577 = vld [vmem:[%s6321 + $0x3f8] sm:$0xff]
                %6578 = vst [vmem:[%s6322 + $0xfc8] sm:$0xff] %v6577
                %v6579 = vld [vmem:[%s6321 + $0x400] sm:$0xff]
                %6580 = vst [vmem:[%s6322 + $0x1000] sm:$0xff] %v6579
                %v6581 = vld [vmem:[%s6321 + $0x408] sm:$0xff]
                %6582 = vst [vmem:[%s6322 + $0x1008] sm:$0xff] %v6581
                %v6583 = vld [vmem:[%s6321 + $0x410] sm:$0xff]
                %6584 = vst [vmem:[%s6322 + $0x1040] sm:$0xff] %v6583
                %v6585 = vld [vmem:[%s6321 + $0x418] sm:$0xff]
                %6586 = vst [vmem:[%s6322 + $0x1048] sm:$0xff] %v6585
                %v6587 = vld [vmem:[%s6321 + $0x420] sm:$0xff]
                %6588 = vst [vmem:[%s6322 + $0x1080] sm:$0xff] %v6587
                %v6589 = vld [vmem:[%s6321 + $0x428] sm:$0xff]
                %6590 = vst [vmem:[%s6322 + $0x1088] sm:$0xff] %v6589
                %v6591 = vld [vmem:[%s6321 + $0x430] sm:$0xff]
                %6592 = vst [vmem:[%s6322 + $0x10c0] sm:$0xff] %v6591
                %v6593 = vld [vmem:[%s6321 + $0x438] sm:$0xff]
                %6594 = vst [vmem:[%s6322 + $0x10c8] sm:$0xff] %v6593
                %v6595 = vld [vmem:[%s6321 + $0x440] sm:$0xff]
                %6596 = vst [vmem:[%s6322 + $0x1100] sm:$0xff] %v6595
                %v6597 = vld [vmem:[%s6321 + $0x448] sm:$0xff]
                %6598 = vst [vmem:[%s6322 + $0x1108] sm:$0xff] %v6597
                %v6599 = vld [vmem:[%s6321 + $0x450] sm:$0xff]
                %6600 = vst [vmem:[%s6322 + $0x1140] sm:$0xff] %v6599
                %v6601 = vld [vmem:[%s6321 + $0x458] sm:$0xff]
                %6602 = vst [vmem:[%s6322 + $0x1148] sm:$0xff] %v6601
                %v6603 = vld [vmem:[%s6321 + $0x460] sm:$0xff]
                %6604 = vst [vmem:[%s6322 + $0x1180] sm:$0xff] %v6603
                %v6605 = vld [vmem:[%s6321 + $0x468] sm:$0xff]
                %6606 = vst [vmem:[%s6322 + $0x1188] sm:$0xff] %v6605
                %v6607 = vld [vmem:[%s6321 + $0x470] sm:$0xff]
                %6608 = vst [vmem:[%s6322 + $0x11c0] sm:$0xff] %v6607
                %v6609 = vld [vmem:[%s6321 + $0x478] sm:$0xff]
                %6610 = vst [vmem:[%s6322 + $0x11c8] sm:$0xff] %v6609
                %v6611 = vld [vmem:[%s6321 + $0x480] sm:$0xff]
                %6612 = vst [vmem:[%s6322 + $0x1200] sm:$0xff] %v6611
                %v6613 = vld [vmem:[%s6321 + $0x488] sm:$0xff]
                %6614 = vst [vmem:[%s6322 + $0x1208] sm:$0xff] %v6613
                %v6615 = vld [vmem:[%s6321 + $0x490] sm:$0xff]
                %6616 = vst [vmem:[%s6322 + $0x1240] sm:$0xff] %v6615
                %v6617 = vld [vmem:[%s6321 + $0x498] sm:$0xff]
                %6618 = vst [vmem:[%s6322 + $0x1248] sm:$0xff] %v6617
                %v6619 = vld [vmem:[%s6321 + $0x4a0] sm:$0xff]
                %6620 = vst [vmem:[%s6322 + $0x1280] sm:$0xff] %v6619
                %v6621 = vld [vmem:[%s6321 + $0x4a8] sm:$0xff]
                %6622 = vst [vmem:[%s6322 + $0x1288] sm:$0xff] %v6621
                %v6623 = vld [vmem:[%s6321 + $0x4b0] sm:$0xff]
                %6624 = vst [vmem:[%s6322 + $0x12c0] sm:$0xff] %v6623
                %v6625 = vld [vmem:[%s6321 + $0x4b8] sm:$0xff]
                %6626 = vst [vmem:[%s6322 + $0x12c8] sm:$0xff] %v6625
                %v6627 = vld [vmem:[%s6321 + $0x4c0] sm:$0xff]
                %6628 = vst [vmem:[%s6322 + $0x1300] sm:$0xff] %v6627
                %v6629 = vld [vmem:[%s6321 + $0x4c8] sm:$0xff]
                %6630 = vst [vmem:[%s6322 + $0x1308] sm:$0xff] %v6629
                %v6631 = vld [vmem:[%s6321 + $0x4d0] sm:$0xff]
                %6632 = vst [vmem:[%s6322 + $0x1340] sm:$0xff] %v6631
                %v6633 = vld [vmem:[%s6321 + $0x4d8] sm:$0xff]
                %6634 = vst [vmem:[%s6322 + $0x1348] sm:$0xff] %v6633
                %v6635 = vld [vmem:[%s6321 + $0x4e0] sm:$0xff]
                %6636 = vst [vmem:[%s6322 + $0x1380] sm:$0xff] %v6635
                %v6637 = vld [vmem:[%s6321 + $0x4e8] sm:$0xff]
                %6638 = vst [vmem:[%s6322 + $0x1388] sm:$0xff] %v6637
                %v6639 = vld [vmem:[%s6321 + $0x4f0] sm:$0xff]
                %6640 = vst [vmem:[%s6322 + $0x13c0] sm:$0xff] %v6639
                %v6641 = vld [vmem:[%s6321 + $0x4f8] sm:$0xff]
                %6642 = vst [vmem:[%s6322 + $0x13c8] sm:$0xff] %v6641
                %v6643 = vld [vmem:[%s6321 + $0x500] sm:$0xff]
                %6644 = vst [vmem:[%s6322 + $0x1400] sm:$0xff] %v6643
                %v6645 = vld [vmem:[%s6321 + $0x508] sm:$0xff]
                %6646 = vst [vmem:[%s6322 + $0x1408] sm:$0xff] %v6645
                %v6647 = vld [vmem:[%s6321 + $0x510] sm:$0xff]
                %6648 = vst [vmem:[%s6322 + $0x1440] sm:$0xff] %v6647
                %v6649 = vld [vmem:[%s6321 + $0x518] sm:$0xff]
                %6650 = vst [vmem:[%s6322 + $0x1448] sm:$0xff] %v6649
                %v6651 = vld [vmem:[%s6321 + $0x520] sm:$0xff]
                %6652 = vst [vmem:[%s6322 + $0x1480] sm:$0xff] %v6651
                %v6653 = vld [vmem:[%s6321 + $0x528] sm:$0xff]
                %6654 = vst [vmem:[%s6322 + $0x1488] sm:$0xff] %v6653
                %v6655 = vld [vmem:[%s6321 + $0x530] sm:$0xff]
                %6656 = vst [vmem:[%s6322 + $0x14c0] sm:$0xff] %v6655
                %v6657 = vld [vmem:[%s6321 + $0x538] sm:$0xff]
                %6658 = vst [vmem:[%s6322 + $0x14c8] sm:$0xff] %v6657
                %v6659 = vld [vmem:[%s6321 + $0x540] sm:$0xff]
                %6660 = vst [vmem:[%s6322 + $0x1500] sm:$0xff] %v6659
                %v6661 = vld [vmem:[%s6321 + $0x548] sm:$0xff]
                %6662 = vst [vmem:[%s6322 + $0x1508] sm:$0xff] %v6661
                %v6663 = vld [vmem:[%s6321 + $0x550] sm:$0xff]
                %6664 = vst [vmem:[%s6322 + $0x1540] sm:$0xff] %v6663
                %v6665 = vld [vmem:[%s6321 + $0x558] sm:$0xff]
                %6666 = vst [vmem:[%s6322 + $0x1548] sm:$0xff] %v6665
                %v6667 = vld [vmem:[%s6321 + $0x560] sm:$0xff]
                %6668 = vst [vmem:[%s6322 + $0x1580] sm:$0xff] %v6667
                %v6669 = vld [vmem:[%s6321 + $0x568] sm:$0xff]
                %6670 = vst [vmem:[%s6322 + $0x1588] sm:$0xff] %v6669
                %v6671 = vld [vmem:[%s6321 + $0x570] sm:$0xff]
                %6672 = vst [vmem:[%s6322 + $0x15c0] sm:$0xff] %v6671
                %v6673 = vld [vmem:[%s6321 + $0x578] sm:$0xff]
                %6674 = vst [vmem:[%s6322 + $0x15c8] sm:$0xff] %v6673
                %v6675 = vld [vmem:[%s6321 + $0x580] sm:$0xff]
                %6676 = vst [vmem:[%s6322 + $0x1600] sm:$0xff] %v6675
                %v6677 = vld [vmem:[%s6321 + $0x588] sm:$0xff]
                %6678 = vst [vmem:[%s6322 + $0x1608] sm:$0xff] %v6677
                %v6679 = vld [vmem:[%s6321 + $0x590] sm:$0xff]
                %6680 = vst [vmem:[%s6322 + $0x1640] sm:$0xff] %v6679
                %v6681 = vld [vmem:[%s6321 + $0x598] sm:$0xff]
                %6682 = vst [vmem:[%s6322 + $0x1648] sm:$0xff] %v6681
                %v6683 = vld [vmem:[%s6321 + $0x5a0] sm:$0xff]
                %6684 = vst [vmem:[%s6322 + $0x1680] sm:$0xff] %v6683
                %v6685 = vld [vmem:[%s6321 + $0x5a8] sm:$0xff]
                %6686 = vst [vmem:[%s6322 + $0x1688] sm:$0xff] %v6685
                %v6687 = vld [vmem:[%s6321 + $0x5b0] sm:$0xff]
                %6688 = vst [vmem:[%s6322 + $0x16c0] sm:$0xff] %v6687
                %v6689 = vld [vmem:[%s6321 + $0x5b8] sm:$0xff]
                %6690 = vst [vmem:[%s6322 + $0x16c8] sm:$0xff] %v6689
                %v6691 = vld [vmem:[%s6321 + $0x5c0] sm:$0xff]
                %6692 = vst [vmem:[%s6322 + $0x1700] sm:$0xff] %v6691
                %v6693 = vld [vmem:[%s6321 + $0x5c8] sm:$0xff]
                %6694 = vst [vmem:[%s6322 + $0x1708] sm:$0xff] %v6693
                %v6695 = vld [vmem:[%s6321 + $0x5d0] sm:$0xff]
                %6696 = vst [vmem:[%s6322 + $0x1740] sm:$0xff] %v6695
                %v6697 = vld [vmem:[%s6321 + $0x5d8] sm:$0xff]
                %6698 = vst [vmem:[%s6322 + $0x1748] sm:$0xff] %v6697
                %v6699 = vld [vmem:[%s6321 + $0x5e0] sm:$0xff]
                %6700 = vst [vmem:[%s6322 + $0x1780] sm:$0xff] %v6699
                %v6701 = vld [vmem:[%s6321 + $0x5e8] sm:$0xff]
                %6702 = vst [vmem:[%s6322 + $0x1788] sm:$0xff] %v6701
                %v6703 = vld [vmem:[%s6321 + $0x5f0] sm:$0xff]
                %6704 = vst [vmem:[%s6322 + $0x17c0] sm:$0xff] %v6703
                %v6705 = vld [vmem:[%s6321 + $0x5f8] sm:$0xff]
                %6706 = vst [vmem:[%s6322 + $0x17c8] sm:$0xff] %v6705
              $region87: #{fused_relu_conv1x1_bn_relu.2} parent=81 // loop_footer
                %s6320 = sadd.s32 1, %s6316
              $region88: #{fused_relu_conv1x1_bn_relu.2} parent=81 // loop_footer_branch
                %6315 = sbr.rel target = $region84
              $region89: #{fused_relu_conv1x1_bn_relu.2} parent=81 // loop_exit
                _
            $region82: #{fused_relu_conv1x1_bn_relu.2} parent=77 // pred_fallthru
              _
            // Predicated region
            $region90: #{fused_relu_conv1x1_bn_relu.2} parent=77 // pred_check
              _
            $region91: #{fused_relu_conv1x1_bn_relu.2} parent=77 // pred_check_branch
              %6708 = sbr.rel target = $region93
            $region92: #{fused_relu_conv1x1_bn_relu.2} parent=77 // pred_region
              _
            $region93: #{fused_relu_conv1x1_bn_relu.2} parent=77 // pred_fallthru
              _
          $region78: #{fused_relu_conv1x1_bn_relu.2} parent=73 // pred_fallthru
            _
          %6709 = vnop
        $region74: #{fused_relu_conv1x1_bn_relu.2} parent=61 // pred_fallthru
          _
        // Predicated region
        $region94: #{fused_relu_conv1x1_bn_relu.2} parent=61 // pred_check
          %p6710 = pneg %p118
        $region95: #{fused_relu_conv1x1_bn_relu.2} parent=61 // pred_check_branch
          %6712 = sbr.rel (%p6710) target = $region97
        $region96: #{fused_relu_conv1x1_bn_relu.2} parent=61 // pred_region
          _
        $region97: #{fused_relu_conv1x1_bn_relu.2} parent=61 // pred_fallthru
          _
        // Predicated region
        $region98: #{fused_relu_conv1x1_bn_relu.2} parent=61 // pred_check
          %p6713 = pneg %p139
        $region99: #{fused_relu_conv1x1_bn_relu.2} parent=61 // pred_check_branch
          %6715 = sbr.rel (%p6713) target = $region101
        $region100: #{fused_relu_conv1x1_bn_relu.2} parent=61 // pred_region
          _
        $region101: #{fused_relu_conv1x1_bn_relu.2} parent=61 // pred_fallthru
          _
        // Predicated region
        $region102: #{fused_relu_conv1x1_bn_relu.2} parent=61 // pred_check
          %p6716 = pneg %p118
        $region103: #{fused_relu_conv1x1_bn_relu.2} parent=61 // pred_check_branch
          %6718 = sbr.rel (%p6716) target = $region105
        $region104: #{fused_relu_conv1x1_bn_relu.2} parent=61 // pred_region
          _
        $region105: #{fused_relu_conv1x1_bn_relu.2} parent=61 // pred_fallthru
          _
        // Predicated region
        $region106: #{fused_relu_conv1x1_bn_relu.2} parent=61 // pred_check
          %p6719 = pneg %p139
        $region107: #{fused_relu_conv1x1_bn_relu.2} parent=61 // pred_check_branch
          %6721 = sbr.rel (%p6719) target = $region109
        $region108: #{fused_relu_conv1x1_bn_relu.2} parent=61 // pred_region
          _
        $region109: #{fused_relu_conv1x1_bn_relu.2} parent=61 // pred_fallthru
          _
      $region62: #{fused_relu_conv1x1_bn_relu.2} parent=5 // pred_fallthru
        _
      %p6722 = scmp.le.s32.totalorder 2, %s11
      // Predicated region
      $region110: #{fused_relu_conv1x1_bn_relu.2} parent=5 // pred_check
        %p6723 = pneg %p6722
      $region111: #{fused_relu_conv1x1_bn_relu.2} parent=5 // pred_check_branch
        %6725 = sbr.rel (%p6723) target = $region113
      $region112: #{fused_relu_conv1x1_bn_relu.2} parent=5 // pred_region
        %s6726 = ssub.s32 %s11, 2
        // Predicated region
        $region114: #{fused_relu_conv1x1_bn_relu.2} parent=112 // pred_check
          %p6727 = pneg %p103
        $region115: #{fused_relu_conv1x1_bn_relu.2} parent=112 // pred_check_branch
          %6729 = sbr.rel (%p6727) target = $region117
        $region116: #{fused_relu_conv1x1_bn_relu.2} parent=112 // pred_region
          %s6730 = sand.u32 %s88, 1
          %s6731 = sand.u32 %s88, 1
          %s6732 = smul.addr %s6731, 1536
          %s6733 = scalar_lea.vmem [#allocation3], %s6732
        $region117: #{fused_relu_conv1x1_bn_relu.2} parent=112 // pred_fallthru
          _
      $region113: #{fused_relu_conv1x1_bn_relu.2} parent=5 // pred_fallthru
        _
    $region6: #{fused_relu_conv1x1_bn_relu.2} parent=1 // loop_footer
      %s15 = sadd.s32 1, %s11
    $region7: #{fused_relu_conv1x1_bn_relu.2} parent=1 // loop_footer_branch
      %10 = sbr.rel target = $region3
    $region8: #{fused_relu_conv1x1_bn_relu.2} parent=1 // loop_exit
      _

</llo_original>
